<compile_context>
chip_gen: v5e
topology: v5e:2x2
jax: 0.10.0
libtpu: 0.0.40
codegen_flags: <defaults>
</compile_context>

<pallas_src>
import functools

import jax
import jax.numpy as jnp
from jax.experimental import pallas as pl
from jax.experimental.pallas import tpu as pltpu


# output channels of the 7 conv layers (c1, c2a, c2b, c3a, c3b, c4a, c4b)
_CONV_CH = (3, 16, 16, 32, 32, 64, 64)


# ----------------------------------------------------------------------------
# Fused kernel: one batch element per grid step
# ----------------------------------------------------------------------------
def _net_kernel(x_ref,
                c1w, c1b, c2aw, c2ab, c2bw, c2bb,
                c3aw, c3ab, c3bw, c3bb, c4aw, c4ab, c4bw, c4bb,
                l1w, l1b, l2w, l2b, l3w, l3b, l4w, l4b, l5w, l5b, ow, ob,
                o_ref,
                a1, a2, a3, a4, a5, a6,
                *, lens):
    """Activations use (L, C) layout: length on sublanes, channels on lanes."""

    def conv_relu(src_ref, w_ref, b_ref, lo):
        # Conv1d(k=3, stride=2, valid):
        #   out[t, co] = relu( sum_{k, ci} src[2t + k, ci] * w[k, ci, co] + b[co] )
        # implemented as 3 strided VMEM reads + 3 MXU matmuls (in-VMEM im2col).
        acc = jnp.dot(src_ref[pl.ds(0, lo, stride=2), :], w_ref[0],
                      preferred_element_type=jnp.float32)
        acc += jnp.dot(src_ref[pl.ds(1, lo, stride=2), :], w_ref[1],
                       preferred_element_type=jnp.float32)
        acc += jnp.dot(src_ref[pl.ds(2, lo, stride=2), :], w_ref[2],
                       preferred_element_type=jnp.float32)
        return jnp.maximum(acc + b_ref[...], 0.0)

    # --- conv stack: intermediates stay in VMEM scratch ----------------------
    a1[...] = conv_relu(x_ref, c1w, c1b, lens[0])
    a2[...] = conv_relu(a1, c2aw, c2ab, lens[1])
    a3[...] = conv_relu(a2, c2bw, c2bb, lens[2])
    a4[...] = conv_relu(a3, c3aw, c3ab, lens[3])
    a5[...] = conv_relu(a4, c3bw, c3bb, lens[4])
    a6[...] = conv_relu(a5, c4aw, c4ab, lens[5])
    v7 = conv_relu(a6, c4bw, c4bb, lens[6])            # (7, 64) value in vregs

    # --- line1: torch's channel-major flatten is folded into the (7, 64, 256)
    #     pre-arranged weight, so no in-kernel transpose/reshape is needed.
    h = l1b[...]                                        # (1, 256)
    for t in range(lens[6]):
        h = h + jnp.dot(v7[t:t + 1, :], l1w[t],
                        preferred_element_type=jnp.float32)
    h = jnp.maximum(h, 0.0)

    # TODO(synk): Dropout(0.5) layers are inference-mode identities here.
    for w_ref, b_ref in ((l2w, l2b), (l3w, l3b), (l4w, l4b), (l5w, l5b)):
        h = jnp.maximum(
            jnp.dot(h, w_ref[...], preferred_element_type=jnp.float32)
            + b_ref[...], 0.0)

    y = jnp.dot(h, ow[...], preferred_element_type=jnp.float32) + ob[...]
    o_ref[...] = y.astype(o_ref.dtype)


# ----------------------------------------------------------------------------
# Wrapper: single pallas_call for the whole network
# ----------------------------------------------------------------------------
def net_forward(prep, x):
    """x: (B, 2, L) float32 NCL (PyTorch layout) -> logits (B, num_class)."""
    B, cin, L = x.shape
    x_nlc = jnp.transpose(x, (0, 2, 1)).astype(jnp.float32)      # (B, L, Cin)

    # conv chain output lengths for kernel=3, stride=2, valid padding
    lens = []
    l = L
    for _ in range(7):
        l = (l - 3) // 2 + 1
        lens.append(l)
    lens = tuple(lens)
    assert lens[-1] == prep["l1_w"].shape[0], (lens, prep["l1_w"].shape)

    num_class = prep["out_b"].shape[-1]
    vmem = pl.BlockSpec(memory_space=pltpu.MemorySpace.VMEM)
    weight_order = (
        "c1_w", "c1_b", "c2a_w", "c2a_b", "c2b_w", "c2b_b",
        "c3a_w", "c3a_b", "c3b_w", "c3b_b", "c4a_w", "c4a_b",
        "c4b_w", "c4b_b",
        "l1_w", "l1_b", "l2_w", "l2_b", "l3_w", "l3_b",
        "l4_w", "l4_b", "l5_w", "l5_b", "out_w", "out_b")
    weights = [prep[k] for k in weight_order]

    out = pl.pallas_call(
        functools.partial(_net_kernel, lens=lens),
        out_shape=jax.ShapeDtypeStruct((B, 1, num_class), jnp.float32),
        grid=(B,),
        in_specs=[pl.BlockSpec((None, L, cin), lambda b: (b, 0, 0))]
                 + [vmem] * len(weights),
        out_specs=pl.BlockSpec((None, 1, num_class), lambda b: (b, 0, 0)),
        scratch_shapes=[pltpu.VMEM((lens[i], _CONV_CH[i]), jnp.float32)
                        for i in range(6)],
        compiler_params=pltpu.CompilerParams(
            dimension_semantics=("parallel",)),   # v7x: one batch elem per TC
    )(x_nlc, *weights)
    return out.reshape(B, num_class)


# ----------------------------------------------------------------------------
# Parameters (deterministic init — synthetic weights, PyTorch layouts)
# ----------------------------------------------------------------------------
def init_params(key, num_class=10):
    conv_shapes = {
        "c1":  (3, 2, 3),
        "c2a": (16, 3, 3),  "c2b": (16, 16, 3),
        "c3a": (32, 16, 3), "c3b": (32, 32, 3),
        "c4a": (64, 32, 3), "c4b": (64, 64, 3),
    }
    lin_shapes = {
        "l1": (256, 64 * 7),
        "l2": (256, 256),
        "l3": (256, 256),
        "l4": (128, 256),
        "l5": (32, 128),
        "out": (num_class, 32),
    }
    params = {}
    names = list(conv_shapes) + list(lin_shapes)
    keys = jax.random.split(key, 2 * len(names))
    i = 0
    for name, shp in conv_shapes.items():
        fan_in = shp[1] * shp[2]
        bound = 1.0 / jnp.sqrt(fan_in)
        params[name + "_w"] = jax.random.uniform(keys[i], shp, jnp.float32, -bound, bound)
        params[name + "_b"] = jax.random.uniform(keys[i + 1], (shp[0],), jnp.float32, -bound, bound)
        i += 2
    for name, shp in lin_shapes.items():
        fan_in = shp[1]
        bound = 1.0 / jnp.sqrt(fan_in)
        params[name + "_w"] = jax.random.uniform(keys[i], shp, jnp.float32, -bound, bound)
        params[name + "_b"] = jax.random.uniform(keys[i + 1], (shp[0],), jnp.float32, -bound, bound)
        i += 2
    return params


def prepare_params(params):
    """One-time conversion of torch-layout params to kernel-friendly layouts."""
    prep = {}
    for name in ("c1", "c2a", "c2b", "c3a", "c3b", "c4a", "c4b"):
        w = params[name + "_w"]                                    # (Cout, Cin, K)
        prep[name + "_w"] = jnp.transpose(w, (2, 1, 0)).astype(jnp.float32)  # (K, Cin, Cout)
        prep[name + "_b"] = params[name + "_b"].reshape(1, -1).astype(jnp.float32)
    # line1: (256, 64*7) -> (7, 64, 256); folds torch's channel-major flatten.
    w1 = params["l1_w"].reshape(params["l1_w"].shape[0], 64, 7)
    prep["l1_w"] = jnp.transpose(w1, (2, 1, 0)).astype(jnp.float32)
    prep["l1_b"] = params["l1_b"].reshape(1, -1).astype(jnp.float32)
    for name in ("l2", "l3", "l4", "l5", "out"):
        prep[name + "_w"] = params[name + "_w"].T.astype(jnp.float32)  # (in, out)
        prep[name + "_b"] = params[name + "_b"].reshape(1, -1).astype(jnp.float32)
    return prep


# ----------------------------------------------------------------------------
# Pure-JAX reference (for correctness check)
# ----------------------------------------------------------------------------
def _ref_conv(x, w, b, relu):
    y = jax.lax.conv_general_dilated(
        x, w, window_strides=(2,), padding="VALID",
        dimension_numbers=("NCH", "OIH", "NCH"))
    y = y + b[None, :, None]
    return jnp.maximum(y, 0.0) if relu else y


def ref_forward(params, x):
    p = params
    for name in ["c1", "c2a", "c2b", "c3a", "c3b", "c4a", "c4b"]:
        x = _ref_conv(x, p[name + "_w"], p[name + "_b"], relu=True)
    x = x.reshape(x.shape[0], -1)
    for name, relu in [("l1", True), ("l2", True), ("l3", True),
                       ("l4", True), ("l5", True), ("out", False)]:
        x = x @ p[name + "_w"].T + p[name + "_b"]
        if relu:
            x = jnp.maximum(x, 0.0)
    return x


if __name__ == "__main__":
    key = jax.random.PRNGKey(0)
    k_param, k_x = jax.random.split(key)
    num_class = 10
    params = init_params(k_param, num_class=num_class)
    prep = prepare_params(params)

    # Input length 1024 -> after 7 stride-2 valid convs the length is 7,
    # matching the 64*7 flatten expected by line1.
    B, C_in, L = 2, 2, 1024
    x = jax.random.normal(k_x, (B, C_in, L), dtype=jnp.float32)

    fwd = jax.jit(net_forward)
    out = jax.block_until_ready(fwd(prep, x))
    assert out.shape == (B, num_class), out.shape

    ref = jax.block_until_ready(ref_forward(params, x))
    assert jnp.allclose(out, ref, atol=1e-3, rtol=1e-3), (
        float(jnp.max(jnp.abs(out - ref))))

    print("KERNEL_OK")
</pallas_src>

<mosaic_0001>
module attributes {stable_mosaic.version = 11 : i64} {
  func.func @_net_kernel(%arg0: i32, %arg1: memref<1x1024x2xf32, #tpu.memory_space<vmem>>, %arg2: memref<3x2x3xf32, #tpu.memory_space<vmem>>, %arg3: memref<1x3xf32, #tpu.memory_space<vmem>>, %arg4: memref<3x3x16xf32, #tpu.memory_space<vmem>>, %arg5: memref<1x16xf32, #tpu.memory_space<vmem>>, %arg6: memref<3x16x16xf32, #tpu.memory_space<vmem>>, %arg7: memref<1x16xf32, #tpu.memory_space<vmem>>, %arg8: memref<3x16x32xf32, #tpu.memory_space<vmem>>, %arg9: memref<1x32xf32, #tpu.memory_space<vmem>>, %arg10: memref<3x32x32xf32, #tpu.memory_space<vmem>>, %arg11: memref<1x32xf32, #tpu.memory_space<vmem>>, %arg12: memref<3x32x64xf32, #tpu.memory_space<vmem>>, %arg13: memref<1x64xf32, #tpu.memory_space<vmem>>, %arg14: memref<3x64x64xf32, #tpu.memory_space<vmem>>, %arg15: memref<1x64xf32, #tpu.memory_space<vmem>>, %arg16: memref<7x64x256xf32, #tpu.memory_space<vmem>>, %arg17: memref<1x256xf32, #tpu.memory_space<vmem>>, %arg18: memref<256x256xf32, #tpu.memory_space<vmem>>, %arg19: memref<1x256xf32, #tpu.memory_space<vmem>>, %arg20: memref<256x256xf32, #tpu.memory_space<vmem>>, %arg21: memref<1x256xf32, #tpu.memory_space<vmem>>, %arg22: memref<256x128xf32, #tpu.memory_space<vmem>>, %arg23: memref<1x128xf32, #tpu.memory_space<vmem>>, %arg24: memref<128x32xf32, #tpu.memory_space<vmem>>, %arg25: memref<1x32xf32, #tpu.memory_space<vmem>>, %arg26: memref<32x10xf32, #tpu.memory_space<vmem>>, %arg27: memref<1x10xf32, #tpu.memory_space<vmem>>, %arg28: memref<1x1x10xf32, #tpu.memory_space<vmem>>, %arg29: memref<511x3xf32, #tpu.memory_space<vmem>>, %arg30: memref<255x16xf32, #tpu.memory_space<vmem>>, %arg31: memref<127x16xf32, #tpu.memory_space<vmem>>, %arg32: memref<63x32xf32, #tpu.memory_space<vmem>>, %arg33: memref<31x32xf32, #tpu.memory_space<vmem>>, %arg34: memref<15x64xf32, #tpu.memory_space<vmem>>) attributes {dimension_semantics = [#tpu.dimension_semantics<parallel>], iteration_bounds = array<i64: 2>, scalar_prefetch = 0 : i64, scratch_operands = 6 : i64, tpu.core_type = #tpu.core_type<tc>, window_params = [{transform_indices = @transform_0, window_bounds = array<i64: 1, 1024, 2>}, {pipeline_mode = #tpu.pipeline_mode<synchronous>, transform_indices = @transform_1, window_bounds = array<i64: 3, 2, 3>}, {pipeline_mode = #tpu.pipeline_mode<synchronous>, transform_indices = @transform_2, window_bounds = array<i64: 1, 3>}, {pipeline_mode = #tpu.pipeline_mode<synchronous>, transform_indices = @transform_3, window_bounds = array<i64: 3, 3, 16>}, {pipeline_mode = #tpu.pipeline_mode<synchronous>, transform_indices = @transform_4, window_bounds = array<i64: 1, 16>}, {pipeline_mode = #tpu.pipeline_mode<synchronous>, transform_indices = @transform_5, window_bounds = array<i64: 3, 16, 16>}, {pipeline_mode = #tpu.pipeline_mode<synchronous>, transform_indices = @transform_6, window_bounds = array<i64: 1, 16>}, {pipeline_mode = #tpu.pipeline_mode<synchronous>, transform_indices = @transform_7, window_bounds = array<i64: 3, 16, 32>}, {pipeline_mode = #tpu.pipeline_mode<synchronous>, transform_indices = @transform_8, window_bounds = array<i64: 1, 32>}, {pipeline_mode = #tpu.pipeline_mode<synchronous>, transform_indices = @transform_9, window_bounds = array<i64: 3, 32, 32>}, {pipeline_mode = #tpu.pipeline_mode<synchronous>, transform_indices = @transform_10, window_bounds = array<i64: 1, 32>}, {pipeline_mode = #tpu.pipeline_mode<synchronous>, transform_indices = @transform_11, window_bounds = array<i64: 3, 32, 64>}, {pipeline_mode = #tpu.pipeline_mode<synchronous>, transform_indices = @transform_12, window_bounds = array<i64: 1, 64>}, {pipeline_mode = #tpu.pipeline_mode<synchronous>, transform_indices = @transform_13, window_bounds = array<i64: 3, 64, 64>}, {pipeline_mode = #tpu.pipeline_mode<synchronous>, transform_indices = @transform_14, window_bounds = array<i64: 1, 64>}, {pipeline_mode = #tpu.pipeline_mode<synchronous>, transform_indices = @transform_15, window_bounds = array<i64: 7, 64, 256>}, {pipeline_mode = #tpu.pipeline_mode<synchronous>, transform_indices = @transform_16, window_bounds = array<i64: 1, 256>}, {pipeline_mode = #tpu.pipeline_mode<synchronous>, transform_indices = @transform_17, window_bounds = array<i64: 256, 256>}, {pipeline_mode = #tpu.pipeline_mode<synchronous>, transform_indices = @transform_18, window_bounds = array<i64: 1, 256>}, {pipeline_mode = #tpu.pipeline_mode<synchronous>, transform_indices = @transform_19, window_bounds = array<i64: 256, 256>}, {pipeline_mode = #tpu.pipeline_mode<synchronous>, transform_indices = @transform_20, window_bounds = array<i64: 1, 256>}, {pipeline_mode = #tpu.pipeline_mode<synchronous>, transform_indices = @transform_21, window_bounds = array<i64: 256, 128>}, {pipeline_mode = #tpu.pipeline_mode<synchronous>, transform_indices = @transform_22, window_bounds = array<i64: 1, 128>}, {pipeline_mode = #tpu.pipeline_mode<synchronous>, transform_indices = @transform_23, window_bounds = array<i64: 128, 32>}, {pipeline_mode = #tpu.pipeline_mode<synchronous>, transform_indices = @transform_24, window_bounds = array<i64: 1, 32>}, {pipeline_mode = #tpu.pipeline_mode<synchronous>, transform_indices = @transform_25, window_bounds = array<i64: 32, 10>}, {pipeline_mode = #tpu.pipeline_mode<synchronous>, transform_indices = @transform_26, window_bounds = array<i64: 1, 10>}, {transform_indices = @transform_27, window_bounds = array<i64: 1, 1, 10>}]} {
    %c0 = arith.constant 0 : index
    %c0_0 = arith.constant 0 : index
    %c0_1 = arith.constant 0 : index
    %0 = tpu.strided_load %arg1[%c0, %c0_0, %c0_1] {strides = array<i32: 1, 2, 1>} : memref<1x1024x2xf32, #tpu.memory_space<vmem>>, vector<1x511x2xf32>
    %1 = vector.shape_cast %0 : vector<1x511x2xf32> to vector<511x2xf32>
    %c0_2 = arith.constant 0 : index
    %c0_3 = arith.constant 0 : index
    %c0_4 = arith.constant 0 : index
    %2 = vector.load %arg2[%c0_2, %c0_3, %c0_4] : memref<3x2x3xf32, #tpu.memory_space<vmem>>, vector<1x2x3xf32>
    %3 = vector.shape_cast %2 : vector<1x2x3xf32> to vector<2x3xf32>
    %cst = arith.constant dense<0.000000e+00> : vector<511x3xf32>
    %4 = tpu.matmul %1, %3, %cst {dimension_numbers = #tpu.dot_dimension_numbers<[1], [0], [0], [1], [0, 0, 1, 1], [], []>} : vector<511x2xf32>, vector<2x3xf32>, vector<511x3xf32> -> vector<511x3xf32>
    %c0_5 = arith.constant 0 : index
    %c1 = arith.constant 1 : index
    %c0_6 = arith.constant 0 : index
    %5 = tpu.strided_load %arg1[%c0_5, %c1, %c0_6] {strides = array<i32: 1, 2, 1>} : memref<1x1024x2xf32, #tpu.memory_space<vmem>>, vector<1x511x2xf32>
    %6 = vector.shape_cast %5 : vector<1x511x2xf32> to vector<511x2xf32>
    %c1_7 = arith.constant 1 : index
    %c0_8 = arith.constant 0 : index
    %c0_9 = arith.constant 0 : index
    %7 = vector.load %arg2[%c1_7, %c0_8, %c0_9] : memref<3x2x3xf32, #tpu.memory_space<vmem>>, vector<1x2x3xf32>
    %8 = vector.shape_cast %7 : vector<1x2x3xf32> to vector<2x3xf32>
    %cst_10 = arith.constant dense<0.000000e+00> : vector<511x3xf32>
    %9 = tpu.matmul %6, %8, %cst_10 {dimension_numbers = #tpu.dot_dimension_numbers<[1], [0], [0], [1], [0, 0, 1, 1], [], []>} : vector<511x2xf32>, vector<2x3xf32>, vector<511x3xf32> -> vector<511x3xf32>
    %10 = arith.addf %4, %9 : vector<511x3xf32>
    %c0_11 = arith.constant 0 : index
    %c2 = arith.constant 2 : index
    %c0_12 = arith.constant 0 : index
    %11 = tpu.strided_load %arg1[%c0_11, %c2, %c0_12] {strides = array<i32: 1, 2, 1>} : memref<1x1024x2xf32, #tpu.memory_space<vmem>>, vector<1x511x2xf32>
    %12 = vector.shape_cast %11 : vector<1x511x2xf32> to vector<511x2xf32>
    %c2_13 = arith.constant 2 : index
    %c0_14 = arith.constant 0 : index
    %c0_15 = arith.constant 0 : index
    %13 = vector.load %arg2[%c2_13, %c0_14, %c0_15] : memref<3x2x3xf32, #tpu.memory_space<vmem>>, vector<1x2x3xf32>
    %14 = vector.shape_cast %13 : vector<1x2x3xf32> to vector<2x3xf32>
    %cst_16 = arith.constant dense<0.000000e+00> : vector<511x3xf32>
    %15 = tpu.matmul %12, %14, %cst_16 {dimension_numbers = #tpu.dot_dimension_numbers<[1], [0], [0], [1], [0, 0, 1, 1], [], []>} : vector<511x2xf32>, vector<2x3xf32>, vector<511x3xf32> -> vector<511x3xf32>
    %16 = arith.addf %10, %15 : vector<511x3xf32>
    %c0_17 = arith.constant 0 : index
    %c0_18 = arith.constant 0 : index
    %17 = vector.load %arg3[%c0_17, %c0_18] : memref<1x3xf32, #tpu.memory_space<vmem>>, vector<1x3xf32>
    %18 = vector.broadcast %17 : vector<1x3xf32> to vector<511x3xf32>
    %19 = arith.addf %16, %18 : vector<511x3xf32>
    %cst_19 = arith.constant 0.000000e+00 : f32
    %20 = vector.broadcast %cst_19 : f32 to vector<511x3xf32>
    %21 = arith.maximumf %19, %20 : vector<511x3xf32>
    %c0_20 = arith.constant 0 : index
    %c0_21 = arith.constant 0 : index
    %22 = vector.load %arg29[%c0_20, %c0_21] : memref<511x3xf32, #tpu.memory_space<vmem>>, vector<511x3xf32>
    tpu.vector_store %arg29[%c0_20, %c0_21], %21 {strides = array<i32>} : memref<511x3xf32, #tpu.memory_space<vmem>>, vector<511x3xf32>,
    %c0_22 = arith.constant 0 : index
    %c0_23 = arith.constant 0 : index
    %23 = tpu.strided_load %arg29[%c0_22, %c0_23] {strides = array<i32: 2, 1>} : memref<511x3xf32, #tpu.memory_space<vmem>>, vector<255x3xf32>
    %c0_24 = arith.constant 0 : index
    %c0_25 = arith.constant 0 : index
    %c0_26 = arith.constant 0 : index
    %24 = vector.load %arg4[%c0_24, %c0_25, %c0_26] : memref<3x3x16xf32, #tpu.memory_space<vmem>>, vector<1x3x16xf32>
    %25 = vector.shape_cast %24 : vector<1x3x16xf32> to vector<3x16xf32>
    %cst_27 = arith.constant dense<0.000000e+00> : vector<255x16xf32>
    %26 = tpu.matmul %23, %25, %cst_27 {dimension_numbers = #tpu.dot_dimension_numbers<[1], [0], [0], [1], [0, 0, 1, 1], [], []>} : vector<255x3xf32>, vector<3x16xf32>, vector<255x16xf32> -> vector<255x16xf32>
    %c1_28 = arith.constant 1 : index
    %c0_29 = arith.constant 0 : index
    %27 = tpu.strided_load %arg29[%c1_28, %c0_29] {strides = array<i32: 2, 1>} : memref<511x3xf32, #tpu.memory_space<vmem>>, vector<255x3xf32>
    %c1_30 = arith.constant 1 : index
    %c0_31 = arith.constant 0 : index
    %c0_32 = arith.constant 0 : index
    %28 = vector.load %arg4[%c1_30, %c0_31, %c0_32] : memref<3x3x16xf32, #tpu.memory_space<vmem>>, vector<1x3x16xf32>
    %29 = vector.shape_cast %28 : vector<1x3x16xf32> to vector<3x16xf32>
    %cst_33 = arith.constant dense<0.000000e+00> : vector<255x16xf32>
    %30 = tpu.matmul %27, %29, %cst_33 {dimension_numbers = #tpu.dot_dimension_numbers<[1], [0], [0], [1], [0, 0, 1, 1], [], []>} : vector<255x3xf32>, vector<3x16xf32>, vector<255x16xf32> -> vector<255x16xf32>
    %31 = arith.addf %26, %30 : vector<255x16xf32>
    %c2_34 = arith.constant 2 : index
    %c0_35 = arith.constant 0 : index
    %32 = tpu.strided_load %arg29[%c2_34, %c0_35] {strides = array<i32: 2, 1>} : memref<511x3xf32, #tpu.memory_space<vmem>>, vector<255x3xf32>
    %c2_36 = arith.constant 2 : index
    %c0_37 = arith.constant 0 : index
    %c0_38 = arith.constant 0 : index
    %33 = vector.load %arg4[%c2_36, %c0_37, %c0_38] : memref<3x3x16xf32, #tpu.memory_space<vmem>>, vector<1x3x16xf32>
    %34 = vector.shape_cast %33 : vector<1x3x16xf32> to vector<3x16xf32>
    %cst_39 = arith.constant dense<0.000000e+00> : vector<255x16xf32>
    %35 = tpu.matmul %32, %34, %cst_39 {dimension_numbers = #tpu.dot_dimension_numbers<[1], [0], [0], [1], [0, 0, 1, 1], [], []>} : vector<255x3xf32>, vector<3x16xf32>, vector<255x16xf32> -> vector<255x16xf32>
    %36 = arith.addf %31, %35 : vector<255x16xf32>
    %c0_40 = arith.constant 0 : index
    %c0_41 = arith.constant 0 : index
    %37 = vector.load %arg5[%c0_40, %c0_41] : memref<1x16xf32, #tpu.memory_space<vmem>>, vector<1x16xf32>
    %38 = vector.broadcast %37 : vector<1x16xf32> to vector<255x16xf32>
    %39 = arith.addf %36, %38 : vector<255x16xf32>
    %cst_42 = arith.constant 0.000000e+00 : f32
    %40 = vector.broadcast %cst_42 : f32 to vector<255x16xf32>
    %41 = arith.maximumf %39, %40 : vector<255x16xf32>
    %c0_43 = arith.constant 0 : index
    %c0_44 = arith.constant 0 : index
    %42 = vector.load %arg30[%c0_43, %c0_44] : memref<255x16xf32, #tpu.memory_space<vmem>>, vector<255x16xf32>
    tpu.vector_store %arg30[%c0_43, %c0_44], %41 {strides = array<i32>} : memref<255x16xf32, #tpu.memory_space<vmem>>, vector<255x16xf32>,
    %c0_45 = arith.constant 0 : index
    %c0_46 = arith.constant 0 : index
    %43 = tpu.strided_load %arg30[%c0_45, %c0_46] {strides = array<i32: 2, 1>} : memref<255x16xf32, #tpu.memory_space<vmem>>, vector<127x16xf32>
    %c0_47 = arith.constant 0 : index
    %c0_48 = arith.constant 0 : index
    %c0_49 = arith.constant 0 : index
    %44 = vector.load %arg6[%c0_47, %c0_48, %c0_49] : memref<3x16x16xf32, #tpu.memory_space<vmem>>, vector<1x16x16xf32>
    %45 = vector.shape_cast %44 : vector<1x16x16xf32> to vector<16x16xf32>
    %cst_50 = arith.constant dense<0.000000e+00> : vector<127x16xf32>
    %46 = tpu.matmul %43, %45, %cst_50 {dimension_numbers = #tpu.dot_dimension_numbers<[1], [0], [0], [1], [0, 0, 1, 1], [], []>} : vector<127x16xf32>, vector<16x16xf32>, vector<127x16xf32> -> vector<127x16xf32>
    %c1_51 = arith.constant 1 : index
    %c0_52 = arith.constant 0 : index
    %47 = tpu.strided_load %arg30[%c1_51, %c0_52] {strides = array<i32: 2, 1>} : memref<255x16xf32, #tpu.memory_space<vmem>>, vector<127x16xf32>
    %c1_53 = arith.constant 1 : index
    %c0_54 = arith.constant 0 : index
    %c0_55 = arith.constant 0 : index
    %48 = vector.load %arg6[%c1_53, %c0_54, %c0_55] : memref<3x16x16xf32, #tpu.memory_space<vmem>>, vector<1x16x16xf32>
    %49 = vector.shape_cast %48 : vector<1x16x16xf32> to vector<16x16xf32>
    %cst_56 = arith.constant dense<0.000000e+00> : vector<127x16xf32>
    %50 = tpu.matmul %47, %49, %cst_56 {dimension_numbers = #tpu.dot_dimension_numbers<[1], [0], [0], [1], [0, 0, 1, 1], [], []>} : vector<127x16xf32>, vector<16x16xf32>, vector<127x16xf32> -> vector<127x16xf32>
    %51 = arith.addf %46, %50 : vector<127x16xf32>
    %c2_57 = arith.constant 2 : index
    %c0_58 = arith.constant 0 : index
    %52 = tpu.strided_load %arg30[%c2_57, %c0_58] {strides = array<i32: 2, 1>} : memref<255x16xf32, #tpu.memory_space<vmem>>, vector<127x16xf32>
    %c2_59 = arith.constant 2 : index
    %c0_60 = arith.constant 0 : index
    %c0_61 = arith.constant 0 : index
    %53 = vector.load %arg6[%c2_59, %c0_60, %c0_61] : memref<3x16x16xf32, #tpu.memory_space<vmem>>, vector<1x16x16xf32>
    %54 = vector.shape_cast %53 : vector<1x16x16xf32> to vector<16x16xf32>
    %cst_62 = arith.constant dense<0.000000e+00> : vector<127x16xf32>
    %55 = tpu.matmul %52, %54, %cst_62 {dimension_numbers = #tpu.dot_dimension_numbers<[1], [0], [0], [1], [0, 0, 1, 1], [], []>} : vector<127x16xf32>, vector<16x16xf32>, vector<127x16xf32> -> vector<127x16xf32>
    %56 = arith.addf %51, %55 : vector<127x16xf32>
    %c0_63 = arith.constant 0 : index
    %c0_64 = arith.constant 0 : index
    %57 = vector.load %arg7[%c0_63, %c0_64] : memref<1x16xf32, #tpu.memory_space<vmem>>, vector<1x16xf32>
    %58 = vector.broadcast %57 : vector<1x16xf32> to vector<127x16xf32>
    %59 = arith.addf %56, %58 : vector<127x16xf32>
    %cst_65 = arith.constant 0.000000e+00 : f32
    %60 = vector.broadcast %cst_65 : f32 to vector<127x16xf32>
    %61 = arith.maximumf %59, %60 : vector<127x16xf32>
    %c0_66 = arith.constant 0 : index
    %c0_67 = arith.constant 0 : index
    %62 = vector.load %arg31[%c0_66, %c0_67] : memref<127x16xf32, #tpu.memory_space<vmem>>, vector<127x16xf32>
    tpu.vector_store %arg31[%c0_66, %c0_67], %61 {strides = array<i32>} : memref<127x16xf32, #tpu.memory_space<vmem>>, vector<127x16xf32>,
    %c0_68 = arith.constant 0 : index
    %c0_69 = arith.constant 0 : index
    %63 = tpu.strided_load %arg31[%c0_68, %c0_69] {strides = array<i32: 2, 1>} : memref<127x16xf32, #tpu.memory_space<vmem>>, vector<63x16xf32>
    %c0_70 = arith.constant 0 : index
    %c0_71 = arith.constant 0 : index
    %c0_72 = arith.constant 0 : index
    %64 = vector.load %arg8[%c0_70, %c0_71, %c0_72] : memref<3x16x32xf32, #tpu.memory_space<vmem>>, vector<1x16x32xf32>
    %65 = vector.shape_cast %64 : vector<1x16x32xf32> to vector<16x32xf32>
    %cst_73 = arith.constant dense<0.000000e+00> : vector<63x32xf32>
    %66 = tpu.matmul %63, %65, %cst_73 {dimension_numbers = #tpu.dot_dimension_numbers<[1], [0], [0], [1], [0, 0, 1, 1], [], []>} : vector<63x16xf32>, vector<16x32xf32>, vector<63x32xf32> -> vector<63x32xf32>
    %c1_74 = arith.constant 1 : index
    %c0_75 = arith.constant 0 : index
    %67 = tpu.strided_load %arg31[%c1_74, %c0_75] {strides = array<i32: 2, 1>} : memref<127x16xf32, #tpu.memory_space<vmem>>, vector<63x16xf32>
    %c1_76 = arith.constant 1 : index
    %c0_77 = arith.constant 0 : index
    %c0_78 = arith.constant 0 : index
    %68 = vector.load %arg8[%c1_76, %c0_77, %c0_78] : memref<3x16x32xf32, #tpu.memory_space<vmem>>, vector<1x16x32xf32>
    %69 = vector.shape_cast %68 : vector<1x16x32xf32> to vector<16x32xf32>
    %cst_79 = arith.constant dense<0.000000e+00> : vector<63x32xf32>
    %70 = tpu.matmul %67, %69, %cst_79 {dimension_numbers = #tpu.dot_dimension_numbers<[1], [0], [0], [1], [0, 0, 1, 1], [], []>} : vector<63x16xf32>, vector<16x32xf32>, vector<63x32xf32> -> vector<63x32xf32>
    %71 = arith.addf %66, %70 : vector<63x32xf32>
    %c2_80 = arith.constant 2 : index
    %c0_81 = arith.constant 0 : index
    %72 = tpu.strided_load %arg31[%c2_80, %c0_81] {strides = array<i32: 2, 1>} : memref<127x16xf32, #tpu.memory_space<vmem>>, vector<63x16xf32>
    %c2_82 = arith.constant 2 : index
    %c0_83 = arith.constant 0 : index
    %c0_84 = arith.constant 0 : index
    %73 = vector.load %arg8[%c2_82, %c0_83, %c0_84] : memref<3x16x32xf32, #tpu.memory_space<vmem>>, vector<1x16x32xf32>
    %74 = vector.shape_cast %73 : vector<1x16x32xf32> to vector<16x32xf32>
    %cst_85 = arith.constant dense<0.000000e+00> : vector<63x32xf32>
    %75 = tpu.matmul %72, %74, %cst_85 {dimension_numbers = #tpu.dot_dimension_numbers<[1], [0], [0], [1], [0, 0, 1, 1], [], []>} : vector<63x16xf32>, vector<16x32xf32>, vector<63x32xf32> -> vector<63x32xf32>
    %76 = arith.addf %71, %75 : vector<63x32xf32>
    %c0_86 = arith.constant 0 : index
    %c0_87 = arith.constant 0 : index
    %77 = vector.load %arg9[%c0_86, %c0_87] : memref<1x32xf32, #tpu.memory_space<vmem>>, vector<1x32xf32>
    %78 = vector.broadcast %77 : vector<1x32xf32> to vector<63x32xf32>
    %79 = arith.addf %76, %78 : vector<63x32xf32>
    %cst_88 = arith.constant 0.000000e+00 : f32
    %80 = vector.broadcast %cst_88 : f32 to vector<63x32xf32>
    %81 = arith.maximumf %79, %80 : vector<63x32xf32>
    %c0_89 = arith.constant 0 : index
    %c0_90 = arith.constant 0 : index
    %82 = vector.load %arg32[%c0_89, %c0_90] : memref<63x32xf32, #tpu.memory_space<vmem>>, vector<63x32xf32>
    tpu.vector_store %arg32[%c0_89, %c0_90], %81 {strides = array<i32>} : memref<63x32xf32, #tpu.memory_space<vmem>>, vector<63x32xf32>,
    %c0_91 = arith.constant 0 : index
    %c0_92 = arith.constant 0 : index
    %83 = tpu.strided_load %arg32[%c0_91, %c0_92] {strides = array<i32: 2, 1>} : memref<63x32xf32, #tpu.memory_space<vmem>>, vector<31x32xf32>
    %c0_93 = arith.constant 0 : index
    %c0_94 = arith.constant 0 : index
    %c0_95 = arith.constant 0 : index
    %84 = vector.load %arg10[%c0_93, %c0_94, %c0_95] : memref<3x32x32xf32, #tpu.memory_space<vmem>>, vector<1x32x32xf32>
    %85 = vector.shape_cast %84 : vector<1x32x32xf32> to vector<32x32xf32>
    %cst_96 = arith.constant dense<0.000000e+00> : vector<31x32xf32>
    %86 = tpu.matmul %83, %85, %cst_96 {dimension_numbers = #tpu.dot_dimension_numbers<[1], [0], [0], [1], [0, 0, 1, 1], [], []>} : vector<31x32xf32>, vector<32x32xf32>, vector<31x32xf32> -> vector<31x32xf32>
    %c1_97 = arith.constant 1 : index
    %c0_98 = arith.constant 0 : index
    %87 = tpu.strided_load %arg32[%c1_97, %c0_98] {strides = array<i32: 2, 1>} : memref<63x32xf32, #tpu.memory_space<vmem>>, vector<31x32xf32>
    %c1_99 = arith.constant 1 : index
    %c0_100 = arith.constant 0 : index
    %c0_101 = arith.constant 0 : index
    %88 = vector.load %arg10[%c1_99, %c0_100, %c0_101] : memref<3x32x32xf32, #tpu.memory_space<vmem>>, vector<1x32x32xf32>
    %89 = vector.shape_cast %88 : vector<1x32x32xf32> to vector<32x32xf32>
    %cst_102 = arith.constant dense<0.000000e+00> : vector<31x32xf32>
    %90 = tpu.matmul %87, %89, %cst_102 {dimension_numbers = #tpu.dot_dimension_numbers<[1], [0], [0], [1], [0, 0, 1, 1], [], []>} : vector<31x32xf32>, vector<32x32xf32>, vector<31x32xf32> -> vector<31x32xf32>
    %91 = arith.addf %86, %90 : vector<31x32xf32>
    %c2_103 = arith.constant 2 : index
    %c0_104 = arith.constant 0 : index
    %92 = tpu.strided_load %arg32[%c2_103, %c0_104] {strides = array<i32: 2, 1>} : memref<63x32xf32, #tpu.memory_space<vmem>>, vector<31x32xf32>
    %c2_105 = arith.constant 2 : index
    %c0_106 = arith.constant 0 : index
    %c0_107 = arith.constant 0 : index
    %93 = vector.load %arg10[%c2_105, %c0_106, %c0_107] : memref<3x32x32xf32, #tpu.memory_space<vmem>>, vector<1x32x32xf32>
    %94 = vector.shape_cast %93 : vector<1x32x32xf32> to vector<32x32xf32>
    %cst_108 = arith.constant dense<0.000000e+00> : vector<31x32xf32>
    %95 = tpu.matmul %92, %94, %cst_108 {dimension_numbers = #tpu.dot_dimension_numbers<[1], [0], [0], [1], [0, 0, 1, 1], [], []>} : vector<31x32xf32>, vector<32x32xf32>, vector<31x32xf32> -> vector<31x32xf32>
    %96 = arith.addf %91, %95 : vector<31x32xf32>
    %c0_109 = arith.constant 0 : index
    %c0_110 = arith.constant 0 : index
    %97 = vector.load %arg11[%c0_109, %c0_110] : memref<1x32xf32, #tpu.memory_space<vmem>>, vector<1x32xf32>
    %98 = vector.broadcast %97 : vector<1x32xf32> to vector<31x32xf32>
    %99 = arith.addf %96, %98 : vector<31x32xf32>
    %cst_111 = arith.constant 0.000000e+00 : f32
    %100 = vector.broadcast %cst_111 : f32 to vector<31x32xf32>
    %101 = arith.maximumf %99, %100 : vector<31x32xf32>
    %c0_112 = arith.constant 0 : index
    %c0_113 = arith.constant 0 : index
    %102 = vector.load %arg33[%c0_112, %c0_113] : memref<31x32xf32, #tpu.memory_space<vmem>>, vector<31x32xf32>
    tpu.vector_store %arg33[%c0_112, %c0_113], %101 {strides = array<i32>} : memref<31x32xf32, #tpu.memory_space<vmem>>, vector<31x32xf32>,
    %c0_114 = arith.constant 0 : index
    %c0_115 = arith.constant 0 : index
    %103 = tpu.strided_load %arg33[%c0_114, %c0_115] {strides = array<i32: 2, 1>} : memref<31x32xf32, #tpu.memory_space<vmem>>, vector<15x32xf32>
    %c0_116 = arith.constant 0 : index
    %c0_117 = arith.constant 0 : index
    %c0_118 = arith.constant 0 : index
    %104 = vector.load %arg12[%c0_116, %c0_117, %c0_118] : memref<3x32x64xf32, #tpu.memory_space<vmem>>, vector<1x32x64xf32>
    %105 = vector.shape_cast %104 : vector<1x32x64xf32> to vector<32x64xf32>
    %cst_119 = arith.constant dense<0.000000e+00> : vector<15x64xf32>
    %106 = tpu.matmul %103, %105, %cst_119 {dimension_numbers = #tpu.dot_dimension_numbers<[1], [0], [0], [1], [0, 0, 1, 1], [], []>} : vector<15x32xf32>, vector<32x64xf32>, vector<15x64xf32> -> vector<15x64xf32>
    %c1_120 = arith.constant 1 : index
    %c0_121 = arith.constant 0 : index
    %107 = tpu.strided_load %arg33[%c1_120, %c0_121] {strides = array<i32: 2, 1>} : memref<31x32xf32, #tpu.memory_space<vmem>>, vector<15x32xf32>
    %c1_122 = arith.constant 1 : index
    %c0_123 = arith.constant 0 : index
    %c0_124 = arith.constant 0 : index
    %108 = vector.load %arg12[%c1_122, %c0_123, %c0_124] : memref<3x32x64xf32, #tpu.memory_space<vmem>>, vector<1x32x64xf32>
    %109 = vector.shape_cast %108 : vector<1x32x64xf32> to vector<32x64xf32>
    %cst_125 = arith.constant dense<0.000000e+00> : vector<15x64xf32>
    %110 = tpu.matmul %107, %109, %cst_125 {dimension_numbers = #tpu.dot_dimension_numbers<[1], [0], [0], [1], [0, 0, 1, 1], [], []>} : vector<15x32xf32>, vector<32x64xf32>, vector<15x64xf32> -> vector<15x64xf32>
    %111 = arith.addf %106, %110 : vector<15x64xf32>
    %c2_126 = arith.constant 2 : index
    %c0_127 = arith.constant 0 : index
    %112 = tpu.strided_load %arg33[%c2_126, %c0_127] {strides = array<i32: 2, 1>} : memref<31x32xf32, #tpu.memory_space<vmem>>, vector<15x32xf32>
    %c2_128 = arith.constant 2 : index
    %c0_129 = arith.constant 0 : index
    %c0_130 = arith.constant 0 : index
    %113 = vector.load %arg12[%c2_128, %c0_129, %c0_130] : memref<3x32x64xf32, #tpu.memory_space<vmem>>, vector<1x32x64xf32>
    %114 = vector.shape_cast %113 : vector<1x32x64xf32> to vector<32x64xf32>
    %cst_131 = arith.constant dense<0.000000e+00> : vector<15x64xf32>
    %115 = tpu.matmul %112, %114, %cst_131 {dimension_numbers = #tpu.dot_dimension_numbers<[1], [0], [0], [1], [0, 0, 1, 1], [], []>} : vector<15x32xf32>, vector<32x64xf32>, vector<15x64xf32> -> vector<15x64xf32>
    %116 = arith.addf %111, %115 : vector<15x64xf32>
    %c0_132 = arith.constant 0 : index
    %c0_133 = arith.constant 0 : index
    %117 = vector.load %arg13[%c0_132, %c0_133] : memref<1x64xf32, #tpu.memory_space<vmem>>, vector<1x64xf32>
    %118 = vector.broadcast %117 : vector<1x64xf32> to vector<15x64xf32>
    %119 = arith.addf %116, %118 : vector<15x64xf32>
    %cst_134 = arith.constant 0.000000e+00 : f32
    %120 = vector.broadcast %cst_134 : f32 to vector<15x64xf32>
    %121 = arith.maximumf %119, %120 : vector<15x64xf32>
    %c0_135 = arith.constant 0 : index
    %c0_136 = arith.constant 0 : index
    %122 = vector.load %arg34[%c0_135, %c0_136] : memref<15x64xf32, #tpu.memory_space<vmem>>, vector<15x64xf32>
    tpu.vector_store %arg34[%c0_135, %c0_136], %121 {strides = array<i32>} : memref<15x64xf32, #tpu.memory_space<vmem>>, vector<15x64xf32>,
    %c0_137 = arith.constant 0 : index
    %c0_138 = arith.constant 0 : index
    %123 = tpu.strided_load %arg34[%c0_137, %c0_138] {strides = array<i32: 2, 1>} : memref<15x64xf32, #tpu.memory_space<vmem>>, vector<7x64xf32>
    %c0_139 = arith.constant 0 : index
    %c0_140 = arith.constant 0 : index
    %c0_141 = arith.constant 0 : index
    %124 = vector.load %arg14[%c0_139, %c0_140, %c0_141] : memref<3x64x64xf32, #tpu.memory_space<vmem>>, vector<1x64x64xf32>
    %125 = vector.shape_cast %124 : vector<1x64x64xf32> to vector<64x64xf32>
    %cst_142 = arith.constant dense<0.000000e+00> : vector<7x64xf32>
    %126 = tpu.matmul %123, %125, %cst_142 {dimension_numbers = #tpu.dot_dimension_numbers<[1], [0], [0], [1], [0, 0, 1, 1], [], []>} : vector<7x64xf32>, vector<64x64xf32>, vector<7x64xf32> -> vector<7x64xf32>
    %c1_143 = arith.constant 1 : index
    %c0_144 = arith.constant 0 : index
    %127 = tpu.strided_load %arg34[%c1_143, %c0_144] {strides = array<i32: 2, 1>} : memref<15x64xf32, #tpu.memory_space<vmem>>, vector<7x64xf32>
    %c1_145 = arith.constant 1 : index
    %c0_146 = arith.constant 0 : index
    %c0_147 = arith.constant 0 : index
    %128 = vector.load %arg14[%c1_145, %c0_146, %c0_147] : memref<3x64x64xf32, #tpu.memory_space<vmem>>, vector<1x64x64xf32>
    %129 = vector.shape_cast %128 : vector<1x64x64xf32> to vector<64x64xf32>
    %cst_148 = arith.constant dense<0.000000e+00> : vector<7x64xf32>
    %130 = tpu.matmul %127, %129, %cst_148 {dimension_numbers = #tpu.dot_dimension_numbers<[1], [0], [0], [1], [0, 0, 1, 1], [], []>} : vector<7x64xf32>, vector<64x64xf32>, vector<7x64xf32> -> vector<7x64xf32>
    %131 = arith.addf %126, %130 : vector<7x64xf32>
    %c2_149 = arith.constant 2 : index
    %c0_150 = arith.constant 0 : index
    %132 = tpu.strided_load %arg34[%c2_149, %c0_150] {strides = array<i32: 2, 1>} : memref<15x64xf32, #tpu.memory_space<vmem>>, vector<7x64xf32>
    %c2_151 = arith.constant 2 : index
    %c0_152 = arith.constant 0 : index
    %c0_153 = arith.constant 0 : index
    %133 = vector.load %arg14[%c2_151, %c0_152, %c0_153] : memref<3x64x64xf32, #tpu.memory_space<vmem>>, vector<1x64x64xf32>
    %134 = vector.shape_cast %133 : vector<1x64x64xf32> to vector<64x64xf32>
    %cst_154 = arith.constant dense<0.000000e+00> : vector<7x64xf32>
    %135 = tpu.matmul %132, %134, %cst_154 {dimension_numbers = #tpu.dot_dimension_numbers<[1], [0], [0], [1], [0, 0, 1, 1], [], []>} : vector<7x64xf32>, vector<64x64xf32>, vector<7x64xf32> -> vector<7x64xf32>
    %136 = arith.addf %131, %135 : vector<7x64xf32>
    %c0_155 = arith.constant 0 : index
    %c0_156 = arith.constant 0 : index
    %137 = vector.load %arg15[%c0_155, %c0_156] : memref<1x64xf32, #tpu.memory_space<vmem>>, vector<1x64xf32>
    %138 = vector.broadcast %137 : vector<1x64xf32> to vector<7x64xf32>
    %139 = arith.addf %136, %138 : vector<7x64xf32>
    %cst_157 = arith.constant 0.000000e+00 : f32
    %140 = vector.broadcast %cst_157 : f32 to vector<7x64xf32>
    %141 = arith.maximumf %139, %140 : vector<7x64xf32>
    %c0_158 = arith.constant 0 : index
    %c0_159 = arith.constant 0 : index
    %142 = vector.load %arg17[%c0_158, %c0_159] : memref<1x256xf32, #tpu.memory_space<vmem>>, vector<1x256xf32>
    %143 = vector.extract_strided_slice %141 {offsets = [0, 0], sizes = [1, 64], strides = [1, 1]} : vector<7x64xf32> to vector<1x64xf32>
    %c0_160 = arith.constant 0 : index
    %c0_161 = arith.constant 0 : index
    %c0_162 = arith.constant 0 : index
    %144 = vector.load %arg16[%c0_160, %c0_161, %c0_162] : memref<7x64x256xf32, #tpu.memory_space<vmem>>, vector<1x64x256xf32>
    %145 = vector.shape_cast %144 : vector<1x64x256xf32> to vector<64x256xf32>
    %cst_163 = arith.constant dense<0.000000e+00> : vector<1x256xf32>
    %146 = tpu.matmul %143, %145, %cst_163 {dimension_numbers = #tpu.dot_dimension_numbers<[1], [0], [0], [1], [0, 0, 1, 1], [], []>} : vector<1x64xf32>, vector<64x256xf32>, vector<1x256xf32> -> vector<1x256xf32>
    %147 = arith.addf %142, %146 : vector<1x256xf32>
    %148 = vector.extract_strided_slice %141 {offsets = [1, 0], sizes = [1, 64], strides = [1, 1]} : vector<7x64xf32> to vector<1x64xf32>
    %c1_164 = arith.constant 1 : index
    %c0_165 = arith.constant 0 : index
    %c0_166 = arith.constant 0 : index
    %149 = vector.load %arg16[%c1_164, %c0_165, %c0_166] : memref<7x64x256xf32, #tpu.memory_space<vmem>>, vector<1x64x256xf32>
    %150 = vector.shape_cast %149 : vector<1x64x256xf32> to vector<64x256xf32>
    %cst_167 = arith.constant dense<0.000000e+00> : vector<1x256xf32>
    %151 = tpu.matmul %148, %150, %cst_167 {dimension_numbers = #tpu.dot_dimension_numbers<[1], [0], [0], [1], [0, 0, 1, 1], [], []>} : vector<1x64xf32>, vector<64x256xf32>, vector<1x256xf32> -> vector<1x256xf32>
    %152 = arith.addf %147, %151 : vector<1x256xf32>
    %153 = vector.extract_strided_slice %141 {offsets = [2, 0], sizes = [1, 64], strides = [1, 1]} : vector<7x64xf32> to vector<1x64xf32>
    %c2_168 = arith.constant 2 : index
    %c0_169 = arith.constant 0 : index
    %c0_170 = arith.constant 0 : index
    %154 = vector.load %arg16[%c2_168, %c0_169, %c0_170] : memref<7x64x256xf32, #tpu.memory_space<vmem>>, vector<1x64x256xf32>
    %155 = vector.shape_cast %154 : vector<1x64x256xf32> to vector<64x256xf32>
    %cst_171 = arith.constant dense<0.000000e+00> : vector<1x256xf32>
    %156 = tpu.matmul %153, %155, %cst_171 {dimension_numbers = #tpu.dot_dimension_numbers<[1], [0], [0], [1], [0, 0, 1, 1], [], []>} : vector<1x64xf32>, vector<64x256xf32>, vector<1x256xf32> -> vector<1x256xf32>
    %157 = arith.addf %152, %156 : vector<1x256xf32>
    %158 = vector.extract_strided_slice %141 {offsets = [3, 0], sizes = [1, 64], strides = [1, 1]} : vector<7x64xf32> to vector<1x64xf32>
    %c3 = arith.constant 3 : index
    %c0_172 = arith.constant 0 : index
    %c0_173 = arith.constant 0 : index
    %159 = vector.load %arg16[%c3, %c0_172, %c0_173] : memref<7x64x256xf32, #tpu.memory_space<vmem>>, vector<1x64x256xf32>
    %160 = vector.shape_cast %159 : vector<1x64x256xf32> to vector<64x256xf32>
    %cst_174 = arith.constant dense<0.000000e+00> : vector<1x256xf32>
    %161 = tpu.matmul %158, %160, %cst_174 {dimension_numbers = #tpu.dot_dimension_numbers<[1], [0], [0], [1], [0, 0, 1, 1], [], []>} : vector<1x64xf32>, vector<64x256xf32>, vector<1x256xf32> -> vector<1x256xf32>
    %162 = arith.addf %157, %161 : vector<1x256xf32>
    %163 = vector.extract_strided_slice %141 {offsets = [4, 0], sizes = [1, 64], strides = [1, 1]} : vector<7x64xf32> to vector<1x64xf32>
    %c4 = arith.constant 4 : index
    %c0_175 = arith.constant 0 : index
    %c0_176 = arith.constant 0 : index
    %164 = vector.load %arg16[%c4, %c0_175, %c0_176] : memref<7x64x256xf32, #tpu.memory_space<vmem>>, vector<1x64x256xf32>
    %165 = vector.shape_cast %164 : vector<1x64x256xf32> to vector<64x256xf32>
    %cst_177 = arith.constant dense<0.000000e+00> : vector<1x256xf32>
    %166 = tpu.matmul %163, %165, %cst_177 {dimension_numbers = #tpu.dot_dimension_numbers<[1], [0], [0], [1], [0, 0, 1, 1], [], []>} : vector<1x64xf32>, vector<64x256xf32>, vector<1x256xf32> -> vector<1x256xf32>
    %167 = arith.addf %162, %166 : vector<1x256xf32>
    %168 = vector.extract_strided_slice %141 {offsets = [5, 0], sizes = [1, 64], strides = [1, 1]} : vector<7x64xf32> to vector<1x64xf32>
    %c5 = arith.constant 5 : index
    %c0_178 = arith.constant 0 : index
    %c0_179 = arith.constant 0 : index
    %169 = vector.load %arg16[%c5, %c0_178, %c0_179] : memref<7x64x256xf32, #tpu.memory_space<vmem>>, vector<1x64x256xf32>
    %170 = vector.shape_cast %169 : vector<1x64x256xf32> to vector<64x256xf32>
    %cst_180 = arith.constant dense<0.000000e+00> : vector<1x256xf32>
    %171 = tpu.matmul %168, %170, %cst_180 {dimension_numbers = #tpu.dot_dimension_numbers<[1], [0], [0], [1], [0, 0, 1, 1], [], []>} : vector<1x64xf32>, vector<64x256xf32>, vector<1x256xf32> -> vector<1x256xf32>
    %172 = arith.addf %167, %171 : vector<1x256xf32>
    %173 = vector.extract_strided_slice %141 {offsets = [6, 0], sizes = [1, 64], strides = [1, 1]} : vector<7x64xf32> to vector<1x64xf32>
    %c6 = arith.constant 6 : index
    %c0_181 = arith.constant 0 : index
    %c0_182 = arith.constant 0 : index
    %174 = vector.load %arg16[%c6, %c0_181, %c0_182] : memref<7x64x256xf32, #tpu.memory_space<vmem>>, vector<1x64x256xf32>
    %175 = vector.shape_cast %174 : vector<1x64x256xf32> to vector<64x256xf32>
    %cst_183 = arith.constant dense<0.000000e+00> : vector<1x256xf32>
    %176 = tpu.matmul %173, %175, %cst_183 {dimension_numbers = #tpu.dot_dimension_numbers<[1], [0], [0], [1], [0, 0, 1, 1], [], []>} : vector<1x64xf32>, vector<64x256xf32>, vector<1x256xf32> -> vector<1x256xf32>
    %177 = arith.addf %172, %176 : vector<1x256xf32>
    %cst_184 = arith.constant 0.000000e+00 : f32
    %178 = vector.broadcast %cst_184 : f32 to vector<1x256xf32>
    %179 = arith.maximumf %177, %178 : vector<1x256xf32>
    %c0_185 = arith.constant 0 : index
    %c0_186 = arith.constant 0 : index
    %180 = vector.load %arg18[%c0_185, %c0_186] : memref<256x256xf32, #tpu.memory_space<vmem>>, vector<256x256xf32>
    %cst_187 = arith.constant dense<0.000000e+00> : vector<1x256xf32>
    %181 = tpu.matmul %179, %180, %cst_187 {dimension_numbers = #tpu.dot_dimension_numbers<[1], [0], [0], [1], [0, 0, 1, 1], [], []>} : vector<1x256xf32>, vector<256x256xf32>, vector<1x256xf32> -> vector<1x256xf32>
    %c0_188 = arith.constant 0 : index
    %c0_189 = arith.constant 0 : index
    %182 = vector.load %arg19[%c0_188, %c0_189] : memref<1x256xf32, #tpu.memory_space<vmem>>, vector<1x256xf32>
    %183 = arith.addf %181, %182 : vector<1x256xf32>
    %cst_190 = arith.constant 0.000000e+00 : f32
    %184 = vector.broadcast %cst_190 : f32 to vector<1x256xf32>
    %185 = arith.maximumf %183, %184 : vector<1x256xf32>
    %c0_191 = arith.constant 0 : index
    %c0_192 = arith.constant 0 : index
    %186 = vector.load %arg20[%c0_191, %c0_192] : memref<256x256xf32, #tpu.memory_space<vmem>>, vector<256x256xf32>
    %cst_193 = arith.constant dense<0.000000e+00> : vector<1x256xf32>
    %187 = tpu.matmul %185, %186, %cst_193 {dimension_numbers = #tpu.dot_dimension_numbers<[1], [0], [0], [1], [0, 0, 1, 1], [], []>} : vector<1x256xf32>, vector<256x256xf32>, vector<1x256xf32> -> vector<1x256xf32>
    %c0_194 = arith.constant 0 : index
    %c0_195 = arith.constant 0 : index
    %188 = vector.load %arg21[%c0_194, %c0_195] : memref<1x256xf32, #tpu.memory_space<vmem>>, vector<1x256xf32>
    %189 = arith.addf %187, %188 : vector<1x256xf32>
    %cst_196 = arith.constant 0.000000e+00 : f32
    %190 = vector.broadcast %cst_196 : f32 to vector<1x256xf32>
    %191 = arith.maximumf %189, %190 : vector<1x256xf32>
    %c0_197 = arith.constant 0 : index
    %c0_198 = arith.constant 0 : index
    %192 = vector.load %arg22[%c0_197, %c0_198] : memref<256x128xf32, #tpu.memory_space<vmem>>, vector<256x128xf32>
    %cst_199 = arith.constant dense<0.000000e+00> : vector<1x128xf32>
    %193 = tpu.matmul %191, %192, %cst_199 {dimension_numbers = #tpu.dot_dimension_numbers<[1], [0], [0], [1], [0, 0, 1, 1], [], []>} : vector<1x256xf32>, vector<256x128xf32>, vector<1x128xf32> -> vector<1x128xf32>
    %c0_200 = arith.constant 0 : index
    %c0_201 = arith.constant 0 : index
    %194 = vector.load %arg23[%c0_200, %c0_201] : memref<1x128xf32, #tpu.memory_space<vmem>>, vector<1x128xf32>
    %195 = arith.addf %193, %194 : vector<1x128xf32>
    %cst_202 = arith.constant 0.000000e+00 : f32
    %196 = vector.broadcast %cst_202 : f32 to vector<1x128xf32>
    %197 = arith.maximumf %195, %196 : vector<1x128xf32>
    %c0_203 = arith.constant 0 : index
    %c0_204 = arith.constant 0 : index
    %198 = vector.load %arg24[%c0_203, %c0_204] : memref<128x32xf32, #tpu.memory_space<vmem>>, vector<128x32xf32>
    %cst_205 = arith.constant dense<0.000000e+00> : vector<1x32xf32>
    %199 = tpu.matmul %197, %198, %cst_205 {dimension_numbers = #tpu.dot_dimension_numbers<[1], [0], [0], [1], [0, 0, 1, 1], [], []>} : vector<1x128xf32>, vector<128x32xf32>, vector<1x32xf32> -> vector<1x32xf32>
    %c0_206 = arith.constant 0 : index
    %c0_207 = arith.constant 0 : index
    %200 = vector.load %arg25[%c0_206, %c0_207] : memref<1x32xf32, #tpu.memory_space<vmem>>, vector<1x32xf32>
    %201 = arith.addf %199, %200 : vector<1x32xf32>
    %cst_208 = arith.constant 0.000000e+00 : f32
    %202 = vector.broadcast %cst_208 : f32 to vector<1x32xf32>
    %203 = arith.maximumf %201, %202 : vector<1x32xf32>
    %c0_209 = arith.constant 0 : index
    %c0_210 = arith.constant 0 : index
    %204 = vector.load %arg26[%c0_209, %c0_210] : memref<32x10xf32, #tpu.memory_space<vmem>>, vector<32x10xf32>
    %cst_211 = arith.constant dense<0.000000e+00> : vector<1x10xf32>
    %205 = tpu.matmul %203, %204, %cst_211 {dimension_numbers = #tpu.dot_dimension_numbers<[1], [0], [0], [1], [0, 0, 1, 1], [], []>} : vector<1x32xf32>, vector<32x10xf32>, vector<1x10xf32> -> vector<1x10xf32>
    %c0_212 = arith.constant 0 : index
    %c0_213 = arith.constant 0 : index
    %206 = vector.load %arg27[%c0_212, %c0_213] : memref<1x10xf32, #tpu.memory_space<vmem>>, vector<1x10xf32>
    %207 = arith.addf %205, %206 : vector<1x10xf32>
    %c0_214 = arith.constant 0 : index
    %c0_215 = arith.constant 0 : index
    %c0_216 = arith.constant 0 : index
    %208 = vector.load %arg28[%c0_214, %c0_215, %c0_216] : memref<1x1x10xf32, #tpu.memory_space<vmem>>, vector<1x1x10xf32>
    %209 = vector.shape_cast %208 : vector<1x1x10xf32> to vector<1x10xf32>
    %210 = vector.shape_cast %207 : vector<1x10xf32> to vector<1x1x10xf32>
    tpu.vector_store %arg28[%c0_214, %c0_215, %c0_216], %210 {strides = array<i32>} : memref<1x1x10xf32, #tpu.memory_space<vmem>>, vector<1x1x10xf32>,
    return
  }
  func.func @transform_0(%arg0: i32) -> (i32, i32, i32) {
    %c0_i32 = arith.constant 0 : i32
    %c0_i32_0 = arith.constant 0 : i32
    %c0_i32_1 = arith.constant 0 : i32
    return %arg0, %c0_i32, %c0_i32_0 : i32, i32, i32
  }
  func.func @transform_1(%arg0: i32) -> (i32, i32, i32) {
    %c0_i32 = arith.constant 0 : i32
    %c0_i32_0 = arith.constant 0 : i32
    %c0_i32_1 = arith.constant 0 : i32
    %c0_i32_2 = arith.constant 0 : i32
    return %c0_i32, %c0_i32_0, %c0_i32_1 : i32, i32, i32
  }
  func.func @transform_2(%arg0: i32) -> (i32, i32) {
    %c0_i32 = arith.constant 0 : i32
    %c0_i32_0 = arith.constant 0 : i32
    %c0_i32_1 = arith.constant 0 : i32
    return %c0_i32, %c0_i32_0 : i32, i32
  }
  func.func @transform_3(%arg0: i32) -> (i32, i32, i32) {
    %c0_i32 = arith.constant 0 : i32
    %c0_i32_0 = arith.constant 0 : i32
    %c0_i32_1 = arith.constant 0 : i32
    %c0_i32_2 = arith.constant 0 : i32
    return %c0_i32, %c0_i32_0, %c0_i32_1 : i32, i32, i32
  }
  func.func @transform_4(%arg0: i32) -> (i32, i32) {
    %c0_i32 = arith.constant 0 : i32
    %c0_i32_0 = arith.constant 0 : i32
    %c0_i32_1 = arith.constant 0 : i32
    return %c0_i32, %c0_i32_0 : i32, i32
  }
  func.func @transform_5(%arg0: i32) -> (i32, i32, i32) {
    %c0_i32 = arith.constant 0 : i32
    %c0_i32_0 = arith.constant 0 : i32
    %c0_i32_1 = arith.constant 0 : i32
    %c0_i32_2 = arith.constant 0 : i32
    return %c0_i32, %c0_i32_0, %c0_i32_1 : i32, i32, i32
  }
  func.func @transform_6(%arg0: i32) -> (i32, i32) {
    %c0_i32 = arith.constant 0 : i32
    %c0_i32_0 = arith.constant 0 : i32
    %c0_i32_1 = arith.constant 0 : i32
    return %c0_i32, %c0_i32_0 : i32, i32
  }
  func.func @transform_7(%arg0: i32) -> (i32, i32, i32) {
    %c0_i32 = arith.constant 0 : i32
    %c0_i32_0 = arith.constant 0 : i32
    %c0_i32_1 = arith.constant 0 : i32
    %c0_i32_2 = arith.constant 0 : i32
    return %c0_i32, %c0_i32_0, %c0_i32_1 : i32, i32, i32
  }
  func.func @transform_8(%arg0: i32) -> (i32, i32) {
    %c0_i32 = arith.constant 0 : i32
    %c0_i32_0 = arith.constant 0 : i32
    %c0_i32_1 = arith.constant 0 : i32
    return %c0_i32, %c0_i32_0 : i32, i32
  }
  func.func @transform_9(%arg0: i32) -> (i32, i32, i32) {
    %c0_i32 = arith.constant 0 : i32
    %c0_i32_0 = arith.constant 0 : i32
    %c0_i32_1 = arith.constant 0 : i32
    %c0_i32_2 = arith.constant 0 : i32
    return %c0_i32, %c0_i32_0, %c0_i32_1 : i32, i32, i32
  }
  func.func @transform_10(%arg0: i32) -> (i32, i32) {
    %c0_i32 = arith.constant 0 : i32
    %c0_i32_0 = arith.constant 0 : i32
    %c0_i32_1 = arith.constant 0 : i32
    return %c0_i32, %c0_i32_0 : i32, i32
  }
  func.func @transform_11(%arg0: i32) -> (i32, i32, i32) {
    %c0_i32 = arith.constant 0 : i32
    %c0_i32_0 = arith.constant 0 : i32
    %c0_i32_1 = arith.constant 0 : i32
    %c0_i32_2 = arith.constant 0 : i32
    return %c0_i32, %c0_i32_0, %c0_i32_1 : i32, i32, i32
  }
  func.func @transform_12(%arg0: i32) -> (i32, i32) {
    %c0_i32 = arith.constant 0 : i32
    %c0_i32_0 = arith.constant 0 : i32
    %c0_i32_1 = arith.constant 0 : i32
    return %c0_i32, %c0_i32_0 : i32, i32
  }
  func.func @transform_13(%arg0: i32) -> (i32, i32, i32) {
    %c0_i32 = arith.constant 0 : i32
    %c0_i32_0 = arith.constant 0 : i32
    %c0_i32_1 = arith.constant 0 : i32
    %c0_i32_2 = arith.constant 0 : i32
    return %c0_i32, %c0_i32_0, %c0_i32_1 : i32, i32, i32
  }
  func.func @transform_14(%arg0: i32) -> (i32, i32) {
    %c0_i32 = arith.constant 0 : i32
    %c0_i32_0 = arith.constant 0 : i32
    %c0_i32_1 = arith.constant 0 : i32
    return %c0_i32, %c0_i32_0 : i32, i32
  }
  func.func @transform_15(%arg0: i32) -> (i32, i32, i32) {
    %c0_i32 = arith.constant 0 : i32
    %c0_i32_0 = arith.constant 0 : i32
    %c0_i32_1 = arith.constant 0 : i32
    %c0_i32_2 = arith.constant 0 : i32
    return %c0_i32, %c0_i32_0, %c0_i32_1 : i32, i32, i32
  }
  func.func @transform_16(%arg0: i32) -> (i32, i32) {
    %c0_i32 = arith.constant 0 : i32
    %c0_i32_0 = arith.constant 0 : i32
    %c0_i32_1 = arith.constant 0 : i32
    return %c0_i32, %c0_i32_0 : i32, i32
  }
  func.func @transform_17(%arg0: i32) -> (i32, i32) {
    %c0_i32 = arith.constant 0 : i32
    %c0_i32_0 = arith.constant 0 : i32
    %c0_i32_1 = arith.constant 0 : i32
    return %c0_i32, %c0_i32_0 : i32, i32
  }
  func.func @transform_18(%arg0: i32) -> (i32, i32) {
    %c0_i32 = arith.constant 0 : i32
    %c0_i32_0 = arith.constant 0 : i32
    %c0_i32_1 = arith.constant 0 : i32
    return %c0_i32, %c0_i32_0 : i32, i32
  }
  func.func @transform_19(%arg0: i32) -> (i32, i32) {
    %c0_i32 = arith.constant 0 : i32
    %c0_i32_0 = arith.constant 0 : i32
    %c0_i32_1 = arith.constant 0 : i32
    return %c0_i32, %c0_i32_0 : i32, i32
  }
  func.func @transform_20(%arg0: i32) -> (i32, i32) {
    %c0_i32 = arith.constant 0 : i32
    %c0_i32_0 = arith.constant 0 : i32
    %c0_i32_1 = arith.constant 0 : i32
    return %c0_i32, %c0_i32_0 : i32, i32
  }
  func.func @transform_21(%arg0: i32) -> (i32, i32) {
    %c0_i32 = arith.constant 0 : i32
    %c0_i32_0 = arith.constant 0 : i32
    %c0_i32_1 = arith.constant 0 : i32
    return %c0_i32, %c0_i32_0 : i32, i32
  }
  func.func @transform_22(%arg0: i32) -> (i32, i32) {
    %c0_i32 = arith.constant 0 : i32
    %c0_i32_0 = arith.constant 0 : i32
    %c0_i32_1 = arith.constant 0 : i32
    return %c0_i32, %c0_i32_0 : i32, i32
  }
  func.func @transform_23(%arg0: i32) -> (i32, i32) {
    %c0_i32 = arith.constant 0 : i32
    %c0_i32_0 = arith.constant 0 : i32
    %c0_i32_1 = arith.constant 0 : i32
    return %c0_i32, %c0_i32_0 : i32, i32
  }
  func.func @transform_24(%arg0: i32) -> (i32, i32) {
    %c0_i32 = arith.constant 0 : i32
    %c0_i32_0 = arith.constant 0 : i32
    %c0_i32_1 = arith.constant 0 : i32
    return %c0_i32, %c0_i32_0 : i32, i32
  }
  func.func @transform_25(%arg0: i32) -> (i32, i32) {
    %c0_i32 = arith.constant 0 : i32
    %c0_i32_0 = arith.constant 0 : i32
    %c0_i32_1 = arith.constant 0 : i32
    return %c0_i32, %c0_i32_0 : i32, i32
  }
  func.func @transform_26(%arg0: i32) -> (i32, i32) {
    %c0_i32 = arith.constant 0 : i32
    %c0_i32_0 = arith.constant 0 : i32
    %c0_i32_1 = arith.constant 0 : i32
    return %c0_i32, %c0_i32_0 : i32, i32
  }
  func.func @transform_27(%arg0: i32) -> (i32, i32, i32) {
    %c0_i32 = arith.constant 0 : i32
    %c0_i32_0 = arith.constant 0 : i32
    %c0_i32_1 = arith.constant 0 : i32
    return %arg0, %c0_i32, %c0_i32_0 : i32, i32, i32
  }
}

</mosaic_0001>

<llo_original>
// kernel: net_forward.1
$region0: #{net_forward.1}
  #allocation0 [shape = 'u32[]', space=smem, size = 0x4, offset = 0x4, fixed_abs, tag = 'smem constant byte address 0x4 - core index']
  #allocation1 [shape = 'u32[72,128]{1,0:T(1,128)}', space=vmem, size = 0x9000, scoped, tag = 'internal scratch']
  #allocation2 [shape = 'f32[511,3]{1,0:T(8,128)}', space=vmem, size = 0x40000, scoped, tag = 'scratch operand']
  #allocation3 [shape = 'f32[255,16]{1,0:T(8,128)}', space=vmem, size = 0x20000, scoped, tag = 'scratch operand']
  #allocation4 [shape = 'f32[127,16]{1,0:T(8,128)}', space=vmem, size = 0x10000, scoped, tag = 'scratch operand']
  #allocation5 [shape = 'f32[63,32]{1,0:T(8,128)}', space=vmem, size = 0x8000, scoped, tag = 'scratch operand']
  #allocation6 [shape = 'f32[31,32]{1,0:T(8,128)}', space=vmem, size = 0x4000, scoped, tag = 'scratch operand']
  #allocation7 [shape = 'f32[15,64]{1,0:T(8,128)}', space=vmem, size = 0x2000, scoped, tag = 'scratch operand']
  %s0 = inlined_call_operand.vmem [shape: f32[2,1024,2], index: 0, kind: input, shape index: {}]
  %s1 = inlined_call_operand.vmem [shape: f32[3,2,3], index: 1, kind: input, shape index: {}]
  %s2 = inlined_call_operand.hbm [shape: f32[1,3], index: 2, kind: input, shape index: {}]
  %s3 = inlined_call_operand.hbm [shape: f32[3,3,16], index: 3, kind: input, shape index: {}]
  %s4 = inlined_call_operand.hbm [shape: f32[1,16], index: 4, kind: input, shape index: {}]
  %s5 = inlined_call_operand.vmem [shape: f32[3,16,16], index: 5, kind: input, shape index: {}]
  %s6 = inlined_call_operand.hbm [shape: f32[1,16], index: 6, kind: input, shape index: {}]
  %s7 = inlined_call_operand.hbm [shape: f32[3,16,32], index: 7, kind: input, shape index: {}]
  %s8 = inlined_call_operand.hbm [shape: f32[1,32], index: 8, kind: input, shape index: {}]
  %s9 = inlined_call_operand.hbm [shape: f32[3,32,32], index: 9, kind: input, shape index: {}]
  %s10 = inlined_call_operand.hbm [shape: f32[1,32], index: 10, kind: input, shape index: {}]
  %s11 = inlined_call_operand.hbm [shape: f32[3,32,64], index: 11, kind: input, shape index: {}]
  %s12 = inlined_call_operand.hbm [shape: f32[1,64], index: 12, kind: input, shape index: {}]
  %s13 = inlined_call_operand.hbm [shape: f32[3,64,64], index: 13, kind: input, shape index: {}]
  %s14 = inlined_call_operand.hbm [shape: f32[1,64], index: 14, kind: input, shape index: {}]
  %s15 = inlined_call_operand.vmem [shape: f32[7,64,256], index: 15, kind: input, shape index: {}]
  %s16 = inlined_call_operand.vmem [shape: f32[1,256], index: 16, kind: input, shape index: {}]
  %s17 = inlined_call_operand.vmem [shape: f32[256,256], index: 17, kind: input, shape index: {}]
  %s18 = inlined_call_operand.hbm [shape: f32[1,256], index: 18, kind: input, shape index: {}]
  %s19 = inlined_call_operand.vmem [shape: f32[256,256], index: 19, kind: input, shape index: {}]
  %s20 = inlined_call_operand.hbm [shape: f32[1,256], index: 20, kind: input, shape index: {}]
  %s21 = inlined_call_operand.vmem [shape: f32[256,128], index: 21, kind: input, shape index: {}]
  %s22 = inlined_call_operand.hbm [shape: f32[1,128], index: 22, kind: input, shape index: {}]
  %s23 = inlined_call_operand.vmem [shape: f32[128,32], index: 23, kind: input, shape index: {}]
  %s24 = inlined_call_operand.hbm [shape: f32[1,32], index: 24, kind: input, shape index: {}]
  %s25 = inlined_call_operand.vmem [shape: f32[32,10], index: 25, kind: input, shape index: {}]
  %s26 = inlined_call_operand.hbm [shape: f32[1,10], index: 26, kind: input, shape index: {}]
  %s27 = inlined_call_operand.hbm [shape: f32[2,1,10], index: 27, kind: output, shape index: {}]
  %s28 = sld [smem:[#allocation0]]
  $region209: #{net_forward.1} parent=0
    _
  %s30 = ssub.s32 1, %s28
  %s31 = scalar_select 0, %s30, %s28
  $region1: #{net_forward.1} parent=0
    #allocation8 [shape = 'u8[512]{0}', space=vmem, size = 0x400, scoped, tag = 'input window, operand 2, single buffered']
    #allocation9 [shape = 's32[2]{0}', space=sflag, size = 0x8, scoped, tag = 'scoped memory for net_forward.1']
    #allocation10 [shape = 's32[2]{0}', space=sflag, size = 0x8, scoped, tag = 'scoped memory for net_forward.1']
    #allocation11 [shape = 'u8[6144]{0}', space=vmem, size = 0x1800, scoped, tag = 'input window, operand 3, single buffered']
    #allocation12 [shape = 's32[1]{0}', space=sflag, size = 0x4, scoped, tag = 'scoped memory for net_forward.1']
    #allocation13 [shape = 'u8[512]{0}', space=vmem, size = 0x400, scoped, tag = 'input window, operand 4, single buffered']
    #allocation14 [shape = 'u8[512]{0}', space=vmem, size = 0x400, scoped, tag = 'input window, operand 6, single buffered']
    #allocation15 [shape = 's32[1]{0}', space=sflag, size = 0x4, scoped, tag = 'scoped memory for net_forward.1']
    #allocation16 [shape = 'u8[24576]{0}', space=vmem, size = 0x6000, scoped, tag = 'input window, operand 7, single buffered']
    #allocation17 [shape = 'u8[512]{0}', space=vmem, size = 0x400, scoped, tag = 'input window, operand 8, single buffered']
    #allocation18 [shape = 's32[1]{0}', space=sflag, size = 0x4, scoped, tag = 'scoped memory for net_forward.1']
    #allocation19 [shape = 'u8[49152]{0}', space=vmem, size = 0xc000, scoped, tag = 'input window, operand 9, single buffered']
    #allocation20 [shape = 'u8[512]{0}', space=vmem, size = 0x400, scoped, tag = 'input window, operand 10, single buffered']
    #allocation21 [shape = 's32[1]{0}', space=sflag, size = 0x4, scoped, tag = 'scoped memory for net_forward.1']
    #allocation22 [shape = 'u8[49152]{0}', space=vmem, size = 0xc000, scoped, tag = 'input window, operand 11, single buffered']
    #allocation23 [shape = 'u8[512]{0}', space=vmem, size = 0x400, scoped, tag = 'input window, operand 12, single buffered']
    #allocation24 [shape = 's32[1]{0}', space=sflag, size = 0x4, scoped, tag = 'scoped memory for net_forward.1']
    #allocation25 [shape = 'u8[98304]{0}', space=vmem, size = 0x18000, scoped, tag = 'input window, operand 13, single buffered']
    #allocation26 [shape = 'u8[512]{0}', space=vmem, size = 0x400, scoped, tag = 'input window, operand 14, single buffered']
    #allocation27 [shape = 's32[1]{0}', space=sflag, size = 0x4, scoped, tag = 'scoped memory for net_forward.1']
    #allocation28 [shape = 'u8[1024]{0}', space=vmem, size = 0x400, scoped, tag = 'input window, operand 18, single buffered']
    #allocation29 [shape = 'u8[1024]{0}', space=vmem, size = 0x400, scoped, tag = 'input window, operand 20, single buffered']
    #allocation30 [shape = 's32[1]{0}', space=sflag, size = 0x4, scoped, tag = 'scoped memory for net_forward.1']
    #allocation31 [shape = 'u8[512]{0}', space=vmem, size = 0x400, scoped, tag = 'input window, operand 22, single buffered']
    #allocation32 [shape = 'u8[512]{0}', space=vmem, size = 0x400, scoped, tag = 'input window, operand 24, single buffered']
    #allocation33 [shape = 's32[1]{0}', space=sflag, size = 0x4, scoped, tag = 'scoped memory for net_forward.1']
    #allocation34 [shape = 'u8[512]{0}', space=vmem, size = 0x400, scoped, tag = 'input window, operand 26, single buffered']
    #allocation35 [shape = 'u8[1024]{0}', space=vmem, size = 0x400, scoped, tag = 'output window, operand 0']
    %32 = vsyncpa [#allocation9], 0
    %33 = vsyncpa [#allocation12], 0
    %34 = vsyncpa [#allocation15], 0
    %35 = vsyncpa [#allocation18], 0
    %36 = vsyncpa [#allocation21], 0
    %37 = vsyncpa [#allocation24], 0
    %38 = vsyncpa [#allocation27], 0
    %39 = vsyncpa [#allocation30], 0
    %40 = vsyncpa [#allocation33], 0
    %41 = vsyncpa [#allocation10], 0
    %s42 = scalar_lea.sflag [#allocation10], 1
    %43 = vsyncpa %s42, 0
    loop: start=0, step=1, limit=4
    $region2: #{net_forward.1} parent=1 // loop_pre_header
      _
    $region3: #{net_forward.1} parent=1 // loop_header
      %s45 = sphi 0, %s49
      %p46 = scmp.ge.s32.totalorder %s45, 4
      %s55 = sphi 0, %s57
      %s58 = sphi 0, %s55
      %s59 = sphi 0, %s58
      %s75 = sphi 0, %s59
      %s79 = sphi 0, %s79
      %s81 = sphi 0, %s79
      %s82 = sphi 0, %s81
      %s96 = sphi 0, %s82
      %s100 = sphi 0, %s100
      %s102 = sphi 0, %s100
      %s103 = sphi 0, %s102
      %s117 = sphi 0, %s103
      %s121 = sphi 0, %s121
      %s123 = sphi 0, %s121
      %s124 = sphi 0, %s123
      %s138 = sphi 0, %s124
      %s142 = sphi 0, %s142
      %s144 = sphi 0, %s142
      %s145 = sphi 0, %s144
      %s159 = sphi 0, %s145
      %s163 = sphi 0, %s163
      %s165 = sphi 0, %s163
      %s166 = sphi 0, %s165
      %s180 = sphi 0, %s166
      %s184 = sphi 0, %s184
      %s186 = sphi 0, %s184
      %s187 = sphi 0, %s186
      %s201 = sphi 0, %s187
      %s205 = sphi 0, %s205
      %s207 = sphi 0, %s205
      %s208 = sphi 0, %s207
      %s222 = sphi 0, %s208
      %s226 = sphi 0, %s226
      %s228 = sphi 0, %s226
      %s229 = sphi 0, %s228
      %s243 = sphi 0, %s229
      %s247 = sphi 0, %s247
      %s249 = sphi 0, %s247
      %s250 = sphi 0, %s249
      %s264 = sphi 0, %s250
      %s268 = sphi 0, %s268
      %s270 = sphi 0, %s268
      %s271 = sphi 0, %s270
      %s285 = sphi 0, %s271
      %s289 = sphi 0, %s289
      %s291 = sphi 0, %s289
      %s292 = sphi 0, %s291
      %s306 = sphi 0, %s292
      %s310 = sphi 0, %s310
      %s312 = sphi 0, %s310
      %s313 = sphi 0, %s312
      %s327 = sphi 0, %s313
      %s331 = sphi 0, %s331
      %s333 = sphi 0, %s331
      %s334 = sphi 0, %s333
      %s348 = sphi 0, %s334
      %s352 = sphi 0, %s352
      %s354 = sphi 0, %s352
      %s355 = sphi 0, %s354
      %s369 = sphi 0, %s355
      %s373 = sphi 0, %s373
      %s375 = sphi 0, %s373
      %s376 = sphi 0, %s375
      %s390 = sphi 0, %s376
      %s394 = sphi 0, %s394
      %s396 = sphi 0, %s394
      %s397 = sphi 0, %s396
      %s411 = sphi 0, %s397
      %s415 = sphi 0, %s415
      %s417 = sphi 0, %s415
      %s418 = sphi 0, %s417
      %s432 = sphi 0, %s418
      %s436 = sphi 0, %s436
      %s438 = sphi 0, %s436
      %s439 = sphi 0, %s438
      %s453 = sphi 0, %s439
      %s457 = sphi 0, %s457
      %s459 = sphi 0, %s457
      %s460 = sphi 0, %s459
      %s474 = sphi 0, %s460
      %s478 = sphi 0, %s478
      %s480 = sphi 0, %s478
      %s481 = sphi 0, %s480
      %s495 = sphi 0, %s481
      %s499 = sphi 0, %s499
      %s501 = sphi 0, %s499
      %s502 = sphi 0, %s501
      %s516 = sphi 0, %s502
      %s520 = sphi 0, %s520
      %s522 = sphi 0, %s520
      %s523 = sphi 0, %s522
      %s537 = sphi 0, %s523
      %s541 = sphi 0, %s541
      %s543 = sphi 0, %s541
      %s544 = sphi 0, %s543
      %s558 = sphi 0, %s544
      %s562 = sphi 0, %s562
      %s564 = sphi 0, %s562
      %s565 = sphi 0, %s564
      %s579 = sphi 0, %s565
      %s583 = sphi 0, %s583
      %s585 = sphi 0, %s583
      %s586 = sphi 0, %s585
      %s600 = sphi 0, %s586
      %s604 = sphi 0, %s604
      %s606 = sphi 0, %s604
      %s607 = sphi 0, %s606
      %s621 = sphi 0, %s607
      %s627 = sphi 0, %s629
      %s630 = sphi 0, %s627
      %s631 = sphi 0, %s630
      %s647 = sphi 0, %s631
    $region4: #{net_forward.1} parent=1 // loop_header_branch
      %48 = sbr.rel (%p46) target = $region8
    $region5: #{net_forward.1} parent=1 // loop_body
      %s50 = ssub.s32 %s45, 1
      %s51 = ssub.s32 %s45, 2
      %s52 = sadd.s32 %s45, 1
      %s53 = ssub.s32 %s45, %s52
      %p54 = scmp.eq.s32.totalorder %s53, 0
      %s56 = sadd.s32 %s55, 1
      %s57 = scalar_select %p54, %s55, %s56
      %p60 = pneg %p54
      %p61 = scmp.eq.s32.totalorder %s45, 1
      %p62 = por %p60, %p61
      %p63 = scmp.ne.s32.totalorder %s55, %s58
      %p64 = scmp.eq.s32.totalorder %s45, 0
      %p65 = por %p63, %p64
      %p66 = scmp.ne.s32.totalorder %s55, %s58
      %p67 = scmp.eq.s32.totalorder %s50, 1
      %p68 = por %p66, %p67
      %p69 = scmp.ne.s32.totalorder %s58, %s59
      %p70 = scmp.eq.s32.totalorder %s50, 0
      %p71 = por %p69, %p70
      %p72 = scmp.ne.s32.totalorder %s58, %s59
      %p73 = scmp.eq.s32.totalorder %s51, 1
      %p74 = por %p72, %p73
      %p76 = scmp.ne.s32.totalorder %s59, %s75
      %p77 = scmp.eq.s32.totalorder %s51, 0
      %p78 = por %p76, %p77
      %s80 = sadd.s32 %s79, 1
      %p83 = scmp.eq.s32.totalorder %s45, 1
      %p84 = scmp.ne.s32.totalorder %s79, %s81
      %p85 = scmp.eq.s32.totalorder %s45, 0
      %p86 = por %p84, %p85
      %p87 = scmp.ne.s32.totalorder %s79, %s81
      %p88 = scmp.eq.s32.totalorder %s50, 1
      %p89 = por %p87, %p88
      %p90 = scmp.ne.s32.totalorder %s81, %s82
      %p91 = scmp.eq.s32.totalorder %s50, 0
      %p92 = por %p90, %p91
      %p93 = scmp.ne.s32.totalorder %s81, %s82
      %p94 = scmp.eq.s32.totalorder %s51, 1
      %p95 = por %p93, %p94
      %p97 = scmp.ne.s32.totalorder %s82, %s96
      %p98 = scmp.eq.s32.totalorder %s51, 0
      %p99 = por %p97, %p98
      %s101 = sadd.s32 %s100, 1
      %p104 = scmp.eq.s32.totalorder %s45, 1
      %p105 = scmp.ne.s32.totalorder %s100, %s102
      %p106 = scmp.eq.s32.totalorder %s45, 0
      %p107 = por %p105, %p106
      %p108 = scmp.ne.s32.totalorder %s100, %s102
      %p109 = scmp.eq.s32.totalorder %s50, 1
      %p110 = por %p108, %p109
      %p111 = scmp.ne.s32.totalorder %s102, %s103
      %p112 = scmp.eq.s32.totalorder %s50, 0
      %p113 = por %p111, %p112
      %p114 = scmp.ne.s32.totalorder %s102, %s103
      %p115 = scmp.eq.s32.totalorder %s51, 1
      %p116 = por %p114, %p115
      %p118 = scmp.ne.s32.totalorder %s103, %s117
      %p119 = scmp.eq.s32.totalorder %s51, 0
      %p120 = por %p118, %p119
      %s122 = sadd.s32 %s121, 1
      %p125 = scmp.eq.s32.totalorder %s45, 1
      %p126 = scmp.ne.s32.totalorder %s121, %s123
      %p127 = scmp.eq.s32.totalorder %s45, 0
      %p128 = por %p126, %p127
      %p129 = scmp.ne.s32.totalorder %s121, %s123
      %p130 = scmp.eq.s32.totalorder %s50, 1
      %p131 = por %p129, %p130
      %p132 = scmp.ne.s32.totalorder %s123, %s124
      %p133 = scmp.eq.s32.totalorder %s50, 0
      %p134 = por %p132, %p133
      %p135 = scmp.ne.s32.totalorder %s123, %s124
      %p136 = scmp.eq.s32.totalorder %s51, 1
      %p137 = por %p135, %p136
      %p139 = scmp.ne.s32.totalorder %s124, %s138
      %p140 = scmp.eq.s32.totalorder %s51, 0
      %p141 = por %p139, %p140
      %s143 = sadd.s32 %s142, 1
      %p146 = scmp.eq.s32.totalorder %s45, 1
      %p147 = scmp.ne.s32.totalorder %s142, %s144
      %p148 = scmp.eq.s32.totalorder %s45, 0
      %p149 = por %p147, %p148
      %p150 = scmp.ne.s32.totalorder %s142, %s144
      %p151 = scmp.eq.s32.totalorder %s50, 1
      %p152 = por %p150, %p151
      %p153 = scmp.ne.s32.totalorder %s144, %s145
      %p154 = scmp.eq.s32.totalorder %s50, 0
      %p155 = por %p153, %p154
      %p156 = scmp.ne.s32.totalorder %s144, %s145
      %p157 = scmp.eq.s32.totalorder %s51, 1
      %p158 = por %p156, %p157
      %p160 = scmp.ne.s32.totalorder %s145, %s159
      %p161 = scmp.eq.s32.totalorder %s51, 0
      %p162 = por %p160, %p161
      %s164 = sadd.s32 %s163, 1
      %p167 = scmp.eq.s32.totalorder %s45, 1
      %p168 = scmp.ne.s32.totalorder %s163, %s165
      %p169 = scmp.eq.s32.totalorder %s45, 0
      %p170 = por %p168, %p169
      %p171 = scmp.ne.s32.totalorder %s163, %s165
      %p172 = scmp.eq.s32.totalorder %s50, 1
      %p173 = por %p171, %p172
      %p174 = scmp.ne.s32.totalorder %s165, %s166
      %p175 = scmp.eq.s32.totalorder %s50, 0
      %p176 = por %p174, %p175
      %p177 = scmp.ne.s32.totalorder %s165, %s166
      %p178 = scmp.eq.s32.totalorder %s51, 1
      %p179 = por %p177, %p178
      %p181 = scmp.ne.s32.totalorder %s166, %s180
      %p182 = scmp.eq.s32.totalorder %s51, 0
      %p183 = por %p181, %p182
      %s185 = sadd.s32 %s184, 1
      %p188 = scmp.eq.s32.totalorder %s45, 1
      %p189 = scmp.ne.s32.totalorder %s184, %s186
      %p190 = scmp.eq.s32.totalorder %s45, 0
      %p191 = por %p189, %p190
      %p192 = scmp.ne.s32.totalorder %s184, %s186
      %p193 = scmp.eq.s32.totalorder %s50, 1
      %p194 = por %p192, %p193
      %p195 = scmp.ne.s32.totalorder %s186, %s187
      %p196 = scmp.eq.s32.totalorder %s50, 0
      %p197 = por %p195, %p196
      %p198 = scmp.ne.s32.totalorder %s186, %s187
      %p199 = scmp.eq.s32.totalorder %s51, 1
      %p200 = por %p198, %p199
      %p202 = scmp.ne.s32.totalorder %s187, %s201
      %p203 = scmp.eq.s32.totalorder %s51, 0
      %p204 = por %p202, %p203
      %s206 = sadd.s32 %s205, 1
      %p209 = scmp.eq.s32.totalorder %s45, 1
      %p210 = scmp.ne.s32.totalorder %s205, %s207
      %p211 = scmp.eq.s32.totalorder %s45, 0
      %p212 = por %p210, %p211
      %p213 = scmp.ne.s32.totalorder %s205, %s207
      %p214 = scmp.eq.s32.totalorder %s50, 1
      %p215 = por %p213, %p214
      %p216 = scmp.ne.s32.totalorder %s207, %s208
      %p217 = scmp.eq.s32.totalorder %s50, 0
      %p218 = por %p216, %p217
      %p219 = scmp.ne.s32.totalorder %s207, %s208
      %p220 = scmp.eq.s32.totalorder %s51, 1
      %p221 = por %p219, %p220
      %p223 = scmp.ne.s32.totalorder %s208, %s222
      %p224 = scmp.eq.s32.totalorder %s51, 0
      %p225 = por %p223, %p224
      %s227 = sadd.s32 %s226, 1
      %p230 = scmp.eq.s32.totalorder %s45, 1
      %p231 = scmp.ne.s32.totalorder %s226, %s228
      %p232 = scmp.eq.s32.totalorder %s45, 0
      %p233 = por %p231, %p232
      %p234 = scmp.ne.s32.totalorder %s226, %s228
      %p235 = scmp.eq.s32.totalorder %s50, 1
      %p236 = por %p234, %p235
      %p237 = scmp.ne.s32.totalorder %s228, %s229
      %p238 = scmp.eq.s32.totalorder %s50, 0
      %p239 = por %p237, %p238
      %p240 = scmp.ne.s32.totalorder %s228, %s229
      %p241 = scmp.eq.s32.totalorder %s51, 1
      %p242 = por %p240, %p241
      %p244 = scmp.ne.s32.totalorder %s229, %s243
      %p245 = scmp.eq.s32.totalorder %s51, 0
      %p246 = por %p244, %p245
      %s248 = sadd.s32 %s247, 1
      %p251 = scmp.eq.s32.totalorder %s45, 1
      %p252 = scmp.ne.s32.totalorder %s247, %s249
      %p253 = scmp.eq.s32.totalorder %s45, 0
      %p254 = por %p252, %p253
      %p255 = scmp.ne.s32.totalorder %s247, %s249
      %p256 = scmp.eq.s32.totalorder %s50, 1
      %p257 = por %p255, %p256
      %p258 = scmp.ne.s32.totalorder %s249, %s250
      %p259 = scmp.eq.s32.totalorder %s50, 0
      %p260 = por %p258, %p259
      %p261 = scmp.ne.s32.totalorder %s249, %s250
      %p262 = scmp.eq.s32.totalorder %s51, 1
      %p263 = por %p261, %p262
      %p265 = scmp.ne.s32.totalorder %s250, %s264
      %p266 = scmp.eq.s32.totalorder %s51, 0
      %p267 = por %p265, %p266
      %s269 = sadd.s32 %s268, 1
      %p272 = scmp.eq.s32.totalorder %s45, 1
      %p273 = scmp.ne.s32.totalorder %s268, %s270
      %p274 = scmp.eq.s32.totalorder %s45, 0
      %p275 = por %p273, %p274
      %p276 = scmp.ne.s32.totalorder %s268, %s270
      %p277 = scmp.eq.s32.totalorder %s50, 1
      %p278 = por %p276, %p277
      %p279 = scmp.ne.s32.totalorder %s270, %s271
      %p280 = scmp.eq.s32.totalorder %s50, 0
      %p281 = por %p279, %p280
      %p282 = scmp.ne.s32.totalorder %s270, %s271
      %p283 = scmp.eq.s32.totalorder %s51, 1
      %p284 = por %p282, %p283
      %p286 = scmp.ne.s32.totalorder %s271, %s285
      %p287 = scmp.eq.s32.totalorder %s51, 0
      %p288 = por %p286, %p287
      %s290 = sadd.s32 %s289, 1
      %p293 = scmp.eq.s32.totalorder %s45, 1
      %p294 = scmp.ne.s32.totalorder %s289, %s291
      %p295 = scmp.eq.s32.totalorder %s45, 0
      %p296 = por %p294, %p295
      %p297 = scmp.ne.s32.totalorder %s289, %s291
      %p298 = scmp.eq.s32.totalorder %s50, 1
      %p299 = por %p297, %p298
      %p300 = scmp.ne.s32.totalorder %s291, %s292
      %p301 = scmp.eq.s32.totalorder %s50, 0
      %p302 = por %p300, %p301
      %p303 = scmp.ne.s32.totalorder %s291, %s292
      %p304 = scmp.eq.s32.totalorder %s51, 1
      %p305 = por %p303, %p304
      %p307 = scmp.ne.s32.totalorder %s292, %s306
      %p308 = scmp.eq.s32.totalorder %s51, 0
      %p309 = por %p307, %p308
      %s311 = sadd.s32 %s310, 1
      %p314 = scmp.eq.s32.totalorder %s45, 1
      %p315 = scmp.ne.s32.totalorder %s310, %s312
      %p316 = scmp.eq.s32.totalorder %s45, 0
      %p317 = por %p315, %p316
      %p318 = scmp.ne.s32.totalorder %s310, %s312
      %p319 = scmp.eq.s32.totalorder %s50, 1
      %p320 = por %p318, %p319
      %p321 = scmp.ne.s32.totalorder %s312, %s313
      %p322 = scmp.eq.s32.totalorder %s50, 0
      %p323 = por %p321, %p322
      %p324 = scmp.ne.s32.totalorder %s312, %s313
      %p325 = scmp.eq.s32.totalorder %s51, 1
      %p326 = por %p324, %p325
      %p328 = scmp.ne.s32.totalorder %s313, %s327
      %p329 = scmp.eq.s32.totalorder %s51, 0
      %p330 = por %p328, %p329
      %s332 = sadd.s32 %s331, 1
      %p335 = scmp.eq.s32.totalorder %s45, 1
      %p336 = scmp.ne.s32.totalorder %s331, %s333
      %p337 = scmp.eq.s32.totalorder %s45, 0
      %p338 = por %p336, %p337
      %p339 = scmp.ne.s32.totalorder %s331, %s333
      %p340 = scmp.eq.s32.totalorder %s50, 1
      %p341 = por %p339, %p340
      %p342 = scmp.ne.s32.totalorder %s333, %s334
      %p343 = scmp.eq.s32.totalorder %s50, 0
      %p344 = por %p342, %p343
      %p345 = scmp.ne.s32.totalorder %s333, %s334
      %p346 = scmp.eq.s32.totalorder %s51, 1
      %p347 = por %p345, %p346
      %p349 = scmp.ne.s32.totalorder %s334, %s348
      %p350 = scmp.eq.s32.totalorder %s51, 0
      %p351 = por %p349, %p350
      %s353 = sadd.s32 %s352, 1
      %p356 = scmp.eq.s32.totalorder %s45, 1
      %p357 = scmp.ne.s32.totalorder %s352, %s354
      %p358 = scmp.eq.s32.totalorder %s45, 0
      %p359 = por %p357, %p358
      %p360 = scmp.ne.s32.totalorder %s352, %s354
      %p361 = scmp.eq.s32.totalorder %s50, 1
      %p362 = por %p360, %p361
      %p363 = scmp.ne.s32.totalorder %s354, %s355
      %p364 = scmp.eq.s32.totalorder %s50, 0
      %p365 = por %p363, %p364
      %p366 = scmp.ne.s32.totalorder %s354, %s355
      %p367 = scmp.eq.s32.totalorder %s51, 1
      %p368 = por %p366, %p367
      %p370 = scmp.ne.s32.totalorder %s355, %s369
      %p371 = scmp.eq.s32.totalorder %s51, 0
      %p372 = por %p370, %p371
      %s374 = sadd.s32 %s373, 1
      %p377 = scmp.eq.s32.totalorder %s45, 1
      %p378 = scmp.ne.s32.totalorder %s373, %s375
      %p379 = scmp.eq.s32.totalorder %s45, 0
      %p380 = por %p378, %p379
      %p381 = scmp.ne.s32.totalorder %s373, %s375
      %p382 = scmp.eq.s32.totalorder %s50, 1
      %p383 = por %p381, %p382
      %p384 = scmp.ne.s32.totalorder %s375, %s376
      %p385 = scmp.eq.s32.totalorder %s50, 0
      %p386 = por %p384, %p385
      %p387 = scmp.ne.s32.totalorder %s375, %s376
      %p388 = scmp.eq.s32.totalorder %s51, 1
      %p389 = por %p387, %p388
      %p391 = scmp.ne.s32.totalorder %s376, %s390
      %p392 = scmp.eq.s32.totalorder %s51, 0
      %p393 = por %p391, %p392
      %s395 = sadd.s32 %s394, 1
      %p398 = scmp.eq.s32.totalorder %s45, 1
      %p399 = scmp.ne.s32.totalorder %s394, %s396
      %p400 = scmp.eq.s32.totalorder %s45, 0
      %p401 = por %p399, %p400
      %p402 = scmp.ne.s32.totalorder %s394, %s396
      %p403 = scmp.eq.s32.totalorder %s50, 1
      %p404 = por %p402, %p403
      %p405 = scmp.ne.s32.totalorder %s396, %s397
      %p406 = scmp.eq.s32.totalorder %s50, 0
      %p407 = por %p405, %p406
      %p408 = scmp.ne.s32.totalorder %s396, %s397
      %p409 = scmp.eq.s32.totalorder %s51, 1
      %p410 = por %p408, %p409
      %p412 = scmp.ne.s32.totalorder %s397, %s411
      %p413 = scmp.eq.s32.totalorder %s51, 0
      %p414 = por %p412, %p413
      %s416 = sadd.s32 %s415, 1
      %p419 = scmp.eq.s32.totalorder %s45, 1
      %p420 = scmp.ne.s32.totalorder %s415, %s417
      %p421 = scmp.eq.s32.totalorder %s45, 0
      %p422 = por %p420, %p421
      %p423 = scmp.ne.s32.totalorder %s415, %s417
      %p424 = scmp.eq.s32.totalorder %s50, 1
      %p425 = por %p423, %p424
      %p426 = scmp.ne.s32.totalorder %s417, %s418
      %p427 = scmp.eq.s32.totalorder %s50, 0
      %p428 = por %p426, %p427
      %p429 = scmp.ne.s32.totalorder %s417, %s418
      %p430 = scmp.eq.s32.totalorder %s51, 1
      %p431 = por %p429, %p430
      %p433 = scmp.ne.s32.totalorder %s418, %s432
      %p434 = scmp.eq.s32.totalorder %s51, 0
      %p435 = por %p433, %p434
      %s437 = sadd.s32 %s436, 1
      %p440 = scmp.eq.s32.totalorder %s45, 1
      %p441 = scmp.ne.s32.totalorder %s436, %s438
      %p442 = scmp.eq.s32.totalorder %s45, 0
      %p443 = por %p441, %p442
      %p444 = scmp.ne.s32.totalorder %s436, %s438
      %p445 = scmp.eq.s32.totalorder %s50, 1
      %p446 = por %p444, %p445
      %p447 = scmp.ne.s32.totalorder %s438, %s439
      %p448 = scmp.eq.s32.totalorder %s50, 0
      %p449 = por %p447, %p448
      %p450 = scmp.ne.s32.totalorder %s438, %s439
      %p451 = scmp.eq.s32.totalorder %s51, 1
      %p452 = por %p450, %p451
      %p454 = scmp.ne.s32.totalorder %s439, %s453
      %p455 = scmp.eq.s32.totalorder %s51, 0
      %p456 = por %p454, %p455
      %s458 = sadd.s32 %s457, 1
      %p461 = scmp.eq.s32.totalorder %s45, 1
      %p462 = scmp.ne.s32.totalorder %s457, %s459
      %p463 = scmp.eq.s32.totalorder %s45, 0
      %p464 = por %p462, %p463
      %p465 = scmp.ne.s32.totalorder %s457, %s459
      %p466 = scmp.eq.s32.totalorder %s50, 1
      %p467 = por %p465, %p466
      %p468 = scmp.ne.s32.totalorder %s459, %s460
      %p469 = scmp.eq.s32.totalorder %s50, 0
      %p470 = por %p468, %p469
      %p471 = scmp.ne.s32.totalorder %s459, %s460
      %p472 = scmp.eq.s32.totalorder %s51, 1
      %p473 = por %p471, %p472
      %p475 = scmp.ne.s32.totalorder %s460, %s474
      %p476 = scmp.eq.s32.totalorder %s51, 0
      %p477 = por %p475, %p476
      %s479 = sadd.s32 %s478, 1
      %p482 = scmp.eq.s32.totalorder %s45, 1
      %p483 = scmp.ne.s32.totalorder %s478, %s480
      %p484 = scmp.eq.s32.totalorder %s45, 0
      %p485 = por %p483, %p484
      %p486 = scmp.ne.s32.totalorder %s478, %s480
      %p487 = scmp.eq.s32.totalorder %s50, 1
      %p488 = por %p486, %p487
      %p489 = scmp.ne.s32.totalorder %s480, %s481
      %p490 = scmp.eq.s32.totalorder %s50, 0
      %p491 = por %p489, %p490
      %p492 = scmp.ne.s32.totalorder %s480, %s481
      %p493 = scmp.eq.s32.totalorder %s51, 1
      %p494 = por %p492, %p493
      %p496 = scmp.ne.s32.totalorder %s481, %s495
      %p497 = scmp.eq.s32.totalorder %s51, 0
      %p498 = por %p496, %p497
      %s500 = sadd.s32 %s499, 1
      %p503 = scmp.eq.s32.totalorder %s45, 1
      %p504 = scmp.ne.s32.totalorder %s499, %s501
      %p505 = scmp.eq.s32.totalorder %s45, 0
      %p506 = por %p504, %p505
      %p507 = scmp.ne.s32.totalorder %s499, %s501
      %p508 = scmp.eq.s32.totalorder %s50, 1
      %p509 = por %p507, %p508
      %p510 = scmp.ne.s32.totalorder %s501, %s502
      %p511 = scmp.eq.s32.totalorder %s50, 0
      %p512 = por %p510, %p511
      %p513 = scmp.ne.s32.totalorder %s501, %s502
      %p514 = scmp.eq.s32.totalorder %s51, 1
      %p515 = por %p513, %p514
      %p517 = scmp.ne.s32.totalorder %s502, %s516
      %p518 = scmp.eq.s32.totalorder %s51, 0
      %p519 = por %p517, %p518
      %s521 = sadd.s32 %s520, 1
      %p524 = scmp.eq.s32.totalorder %s45, 1
      %p525 = scmp.ne.s32.totalorder %s520, %s522
      %p526 = scmp.eq.s32.totalorder %s45, 0
      %p527 = por %p525, %p526
      %p528 = scmp.ne.s32.totalorder %s520, %s522
      %p529 = scmp.eq.s32.totalorder %s50, 1
      %p530 = por %p528, %p529
      %p531 = scmp.ne.s32.totalorder %s522, %s523
      %p532 = scmp.eq.s32.totalorder %s50, 0
      %p533 = por %p531, %p532
      %p534 = scmp.ne.s32.totalorder %s522, %s523
      %p535 = scmp.eq.s32.totalorder %s51, 1
      %p536 = por %p534, %p535
      %p538 = scmp.ne.s32.totalorder %s523, %s537
      %p539 = scmp.eq.s32.totalorder %s51, 0
      %p540 = por %p538, %p539
      %s542 = sadd.s32 %s541, 1
      %p545 = scmp.eq.s32.totalorder %s45, 1
      %p546 = scmp.ne.s32.totalorder %s541, %s543
      %p547 = scmp.eq.s32.totalorder %s45, 0
      %p548 = por %p546, %p547
      %p549 = scmp.ne.s32.totalorder %s541, %s543
      %p550 = scmp.eq.s32.totalorder %s50, 1
      %p551 = por %p549, %p550
      %p552 = scmp.ne.s32.totalorder %s543, %s544
      %p553 = scmp.eq.s32.totalorder %s50, 0
      %p554 = por %p552, %p553
      %p555 = scmp.ne.s32.totalorder %s543, %s544
      %p556 = scmp.eq.s32.totalorder %s51, 1
      %p557 = por %p555, %p556
      %p559 = scmp.ne.s32.totalorder %s544, %s558
      %p560 = scmp.eq.s32.totalorder %s51, 0
      %p561 = por %p559, %p560
      %s563 = sadd.s32 %s562, 1
      %p566 = scmp.eq.s32.totalorder %s45, 1
      %p567 = scmp.ne.s32.totalorder %s562, %s564
      %p568 = scmp.eq.s32.totalorder %s45, 0
      %p569 = por %p567, %p568
      %p570 = scmp.ne.s32.totalorder %s562, %s564
      %p571 = scmp.eq.s32.totalorder %s50, 1
      %p572 = por %p570, %p571
      %p573 = scmp.ne.s32.totalorder %s564, %s565
      %p574 = scmp.eq.s32.totalorder %s50, 0
      %p575 = por %p573, %p574
      %p576 = scmp.ne.s32.totalorder %s564, %s565
      %p577 = scmp.eq.s32.totalorder %s51, 1
      %p578 = por %p576, %p577
      %p580 = scmp.ne.s32.totalorder %s565, %s579
      %p581 = scmp.eq.s32.totalorder %s51, 0
      %p582 = por %p580, %p581
      %s584 = sadd.s32 %s583, 1
      %p587 = scmp.eq.s32.totalorder %s45, 1
      %p588 = scmp.ne.s32.totalorder %s583, %s585
      %p589 = scmp.eq.s32.totalorder %s45, 0
      %p590 = por %p588, %p589
      %p591 = scmp.ne.s32.totalorder %s583, %s585
      %p592 = scmp.eq.s32.totalorder %s50, 1
      %p593 = por %p591, %p592
      %p594 = scmp.ne.s32.totalorder %s585, %s586
      %p595 = scmp.eq.s32.totalorder %s50, 0
      %p596 = por %p594, %p595
      %p597 = scmp.ne.s32.totalorder %s585, %s586
      %p598 = scmp.eq.s32.totalorder %s51, 1
      %p599 = por %p597, %p598
      %p601 = scmp.ne.s32.totalorder %s586, %s600
      %p602 = scmp.eq.s32.totalorder %s51, 0
      %p603 = por %p601, %p602
      %s605 = sadd.s32 %s604, 1
      %p608 = scmp.eq.s32.totalorder %s45, 1
      %p609 = scmp.ne.s32.totalorder %s604, %s606
      %p610 = scmp.eq.s32.totalorder %s45, 0
      %p611 = por %p609, %p610
      %p612 = scmp.ne.s32.totalorder %s604, %s606
      %p613 = scmp.eq.s32.totalorder %s50, 1
      %p614 = por %p612, %p613
      %p615 = scmp.ne.s32.totalorder %s606, %s607
      %p616 = scmp.eq.s32.totalorder %s50, 0
      %p617 = por %p615, %p616
      %p618 = scmp.ne.s32.totalorder %s606, %s607
      %p619 = scmp.eq.s32.totalorder %s51, 1
      %p620 = por %p618, %p619
      %p622 = scmp.ne.s32.totalorder %s607, %s621
      %p623 = scmp.eq.s32.totalorder %s51, 0
      %p624 = por %p622, %p623
      %s625 = ssub.s32 %s45, %s52
      %p626 = scmp.eq.s32.totalorder %s625, 0
      %s628 = sadd.s32 %s627, 1
      %s629 = scalar_select %p626, %s627, %s628
      %p632 = pneg %p626
      %p633 = scmp.eq.s32.totalorder %s45, 1
      %p634 = por %p632, %p633
      %p635 = scmp.ne.s32.totalorder %s627, %s630
      %p636 = scmp.eq.s32.totalorder %s45, 0
      %p637 = por %p635, %p636
      %p638 = scmp.ne.s32.totalorder %s627, %s630
      %p639 = scmp.eq.s32.totalorder %s50, 1
      %p640 = por %p638, %p639
      %p641 = scmp.ne.s32.totalorder %s630, %s631
      %p642 = scmp.eq.s32.totalorder %s50, 0
      %p643 = por %p641, %p642
      %p644 = scmp.ne.s32.totalorder %s630, %s631
      %p645 = scmp.eq.s32.totalorder %s51, 1
      %p646 = por %p644, %p645
      %p648 = scmp.ne.s32.totalorder %s631, %s647
      %p649 = scmp.eq.s32.totalorder %s51, 0
      %p650 = por %p648, %p649
      %p651 = scmp.le.s32.totalorder 1, %s45
      %p652 = scmp.lt.s32.totalorder %s45, 3
      %p653 = pnand %p651, %p652
      %p654 = pneg %p653
      // Predicated region
      $region9: #{net_forward.1} parent=5 // pred_check
        _
      $region10: #{net_forward.1} parent=5 // pred_check_branch
        %656 = sbr.rel (%p653) target = $region12
      $region11: #{net_forward.1} parent=5 // pred_region
        %s657 = ssub.s32 %s45, 1
        // Predicated region
        $region13: #{net_forward.1} parent=11 // pred_check
          %p658 = pneg %p92
        $region14: #{net_forward.1} parent=11 // pred_check_branch
          %660 = sbr.rel (%p658) target = $region16
        $region15: #{net_forward.1} parent=11 // pred_region
          _
        $region16: #{net_forward.1} parent=11 // pred_fallthru
          _
        // Predicated region
        $region17: #{net_forward.1} parent=11 // pred_check
          %p661 = pneg %p113
        $region18: #{net_forward.1} parent=11 // pred_check_branch
          %663 = sbr.rel (%p661) target = $region20
        $region19: #{net_forward.1} parent=11 // pred_region
          %665 = vsyncadd [#allocation9], 0
          %s667 = sshll.u32 %s2, 4
          %s668 = int_to_ptr.hbm [resolvable:$true] %s667
          %s669 = sshll.u32 [#allocation8], 4
          %s670 = int_to_ptr.vmem [resolvable:$true] %s669
          %672 = dma.hbm_to_vmem [thread:$0]  %s668, 16, %s670, [#allocation9]
        $region20: #{net_forward.1} parent=11 // pred_fallthru
          _
        // Predicated region
        $region21: #{net_forward.1} parent=11 // pred_check
          %p673 = pneg %p134
        $region22: #{net_forward.1} parent=11 // pred_check_branch
          %675 = sbr.rel (%p673) target = $region24
        $region23: #{net_forward.1} parent=11 // pred_region
          %677 = vsyncadd [#allocation12], 0
          %s678 = sshll.u32 %s3, 4
          %s679 = int_to_ptr.hbm [resolvable:$true] %s678
          %s680 = sshll.u32 [#allocation11], 4
          %s681 = int_to_ptr.vmem [resolvable:$true] %s680
          %686 = dma.hbm_to_vmem [thread:$0]  %s679, 192, %s681, [#allocation12], 64, 64, 4
        $region24: #{net_forward.1} parent=11 // pred_fallthru
          _
        // Predicated region
        $region25: #{net_forward.1} parent=11 // pred_check
          %p687 = pneg %p155
        $region26: #{net_forward.1} parent=11 // pred_check_branch
          %689 = sbr.rel (%p687) target = $region28
        $region27: #{net_forward.1} parent=11 // pred_region
          %691 = vsyncadd [#allocation12], 0
          %s693 = sshll.u32 %s4, 4
          %s694 = int_to_ptr.hbm [resolvable:$true] %s693
          %s695 = sshll.u32 [#allocation13], 4
          %s696 = int_to_ptr.vmem [resolvable:$true] %s695
          %698 = dma.hbm_to_vmem [thread:$0]  %s694, 16, %s696, [#allocation12]
        $region28: #{net_forward.1} parent=11 // pred_fallthru
          _
        // Predicated region
        $region29: #{net_forward.1} parent=11 // pred_check
          %p699 = pneg %p176
        $region30: #{net_forward.1} parent=11 // pred_check_branch
          %701 = sbr.rel (%p699) target = $region32
        $region31: #{net_forward.1} parent=11 // pred_region
          _
        $region32: #{net_forward.1} parent=11 // pred_fallthru
          _
        // Predicated region
        $region33: #{net_forward.1} parent=11 // pred_check
          %p702 = pneg %p197
        $region34: #{net_forward.1} parent=11 // pred_check_branch
          %704 = sbr.rel (%p702) target = $region36
        $region35: #{net_forward.1} parent=11 // pred_region
          %706 = vsyncadd [#allocation15], 0
          %s708 = sshll.u32 %s6, 4
          %s709 = int_to_ptr.hbm [resolvable:$true] %s708
          %s710 = sshll.u32 [#allocation14], 4
          %s711 = int_to_ptr.vmem [resolvable:$true] %s710
          %713 = dma.hbm_to_vmem [thread:$0]  %s709, 16, %s711, [#allocation15]
        $region36: #{net_forward.1} parent=11 // pred_fallthru
          _
        // Predicated region
        $region37: #{net_forward.1} parent=11 // pred_check
          %p714 = pneg %p218
        $region38: #{net_forward.1} parent=11 // pred_check_branch
          %716 = sbr.rel (%p714) target = $region40
        $region39: #{net_forward.1} parent=11 // pred_region
          %718 = vsyncadd [#allocation15], 0
          %s719 = sshll.u32 %s7, 4
          %s720 = int_to_ptr.hbm [resolvable:$true] %s719
          %s721 = sshll.u32 [#allocation16], 4
          %s722 = int_to_ptr.vmem [resolvable:$true] %s721
          %727 = dma.hbm_to_vmem [thread:$0]  %s720, 768, %s722, [#allocation15], 128, 128, 8
        $region40: #{net_forward.1} parent=11 // pred_fallthru
          _
        // Predicated region
        $region41: #{net_forward.1} parent=11 // pred_check
          %p728 = pneg %p239
        $region42: #{net_forward.1} parent=11 // pred_check_branch
          %730 = sbr.rel (%p728) target = $region44
        $region43: #{net_forward.1} parent=11 // pred_region
          %732 = vsyncadd [#allocation18], 0
          %s734 = sshll.u32 %s8, 4
          %s735 = int_to_ptr.hbm [resolvable:$true] %s734
          %s736 = sshll.u32 [#allocation17], 4
          %s737 = int_to_ptr.vmem [resolvable:$true] %s736
          %739 = dma.hbm_to_vmem [thread:$0]  %s735, 16, %s737, [#allocation18]
        $region44: #{net_forward.1} parent=11 // pred_fallthru
          _
        // Predicated region
        $region45: #{net_forward.1} parent=11 // pred_check
          %p740 = pneg %p260
        $region46: #{net_forward.1} parent=11 // pred_check_branch
          %742 = sbr.rel (%p740) target = $region48
        $region47: #{net_forward.1} parent=11 // pred_region
          %744 = vsyncadd [#allocation18], 0
          %s745 = sshll.u32 %s9, 4
          %s746 = int_to_ptr.hbm [resolvable:$true] %s745
          %s747 = sshll.u32 [#allocation19], 4
          %s748 = int_to_ptr.vmem [resolvable:$true] %s747
          %753 = dma.hbm_to_vmem [thread:$0]  %s746, 1536, %s748, [#allocation18], 128, 128, 8
        $region48: #{net_forward.1} parent=11 // pred_fallthru
          _
        // Predicated region
        $region49: #{net_forward.1} parent=11 // pred_check
          %p754 = pneg %p281
        $region50: #{net_forward.1} parent=11 // pred_check_branch
          %756 = sbr.rel (%p754) target = $region52
        $region51: #{net_forward.1} parent=11 // pred_region
          %758 = vsyncadd [#allocation21], 0
          %s760 = sshll.u32 %s10, 4
          %s761 = int_to_ptr.hbm [resolvable:$true] %s760
          %s762 = sshll.u32 [#allocation20], 4
          %s763 = int_to_ptr.vmem [resolvable:$true] %s762
          %765 = dma.hbm_to_vmem [thread:$0]  %s761, 16, %s763, [#allocation21]
        $region52: #{net_forward.1} parent=11 // pred_fallthru
          _
        // Predicated region
        $region53: #{net_forward.1} parent=11 // pred_check
          %p766 = pneg %p302
        $region54: #{net_forward.1} parent=11 // pred_check_branch
          %768 = sbr.rel (%p766) target = $region56
        $region55: #{net_forward.1} parent=11 // pred_region
          %770 = vsyncadd [#allocation21], 0
          %s771 = sshll.u32 %s11, 4
          %s772 = int_to_ptr.hbm [resolvable:$true] %s771
          %s773 = sshll.u32 [#allocation22], 4
          %s774 = int_to_ptr.vmem [resolvable:$true] %s773
          %779 = dma.hbm_to_vmem [thread:$0]  %s772, 1536, %s774, [#allocation21], 128, 128, 8
        $region56: #{net_forward.1} parent=11 // pred_fallthru
          _
        // Predicated region
        $region57: #{net_forward.1} parent=11 // pred_check
          %p780 = pneg %p323
        $region58: #{net_forward.1} parent=11 // pred_check_branch
          %782 = sbr.rel (%p780) target = $region60
        $region59: #{net_forward.1} parent=11 // pred_region
          %784 = vsyncadd [#allocation24], 0
          %s786 = sshll.u32 %s12, 4
          %s787 = int_to_ptr.hbm [resolvable:$true] %s786
          %s788 = sshll.u32 [#allocation23], 4
          %s789 = int_to_ptr.vmem [resolvable:$true] %s788
          %791 = dma.hbm_to_vmem [thread:$0]  %s787, 16, %s789, [#allocation24]
        $region60: #{net_forward.1} parent=11 // pred_fallthru
          _
        // Predicated region
        $region61: #{net_forward.1} parent=11 // pred_check
          %p792 = pneg %p344
        $region62: #{net_forward.1} parent=11 // pred_check_branch
          %794 = sbr.rel (%p792) target = $region64
        $region63: #{net_forward.1} parent=11 // pred_region
          %796 = vsyncadd [#allocation24], 0
          %s797 = sshll.u32 %s13, 4
          %s798 = int_to_ptr.hbm [resolvable:$true] %s797
          %s799 = sshll.u32 [#allocation25], 4
          %s800 = int_to_ptr.vmem [resolvable:$true] %s799
          %805 = dma.hbm_to_vmem [thread:$0]  %s798, 3072, %s800, [#allocation24], 128, 128, 8
        $region64: #{net_forward.1} parent=11 // pred_fallthru
          _
        // Predicated region
        $region65: #{net_forward.1} parent=11 // pred_check
          %p806 = pneg %p365
        $region66: #{net_forward.1} parent=11 // pred_check_branch
          %808 = sbr.rel (%p806) target = $region68
        $region67: #{net_forward.1} parent=11 // pred_region
          %810 = vsyncadd [#allocation27], 0
          %s812 = sshll.u32 %s14, 4
          %s813 = int_to_ptr.hbm [resolvable:$true] %s812
          %s814 = sshll.u32 [#allocation26], 4
          %s815 = int_to_ptr.vmem [resolvable:$true] %s814
          %817 = dma.hbm_to_vmem [thread:$0]  %s813, 16, %s815, [#allocation27]
        $region68: #{net_forward.1} parent=11 // pred_fallthru
          _
        // Predicated region
        $region69: #{net_forward.1} parent=11 // pred_check
          %p818 = pneg %p386
        $region70: #{net_forward.1} parent=11 // pred_check_branch
          %820 = sbr.rel (%p818) target = $region72
        $region71: #{net_forward.1} parent=11 // pred_region
          _
        $region72: #{net_forward.1} parent=11 // pred_fallthru
          _
        // Predicated region
        $region73: #{net_forward.1} parent=11 // pred_check
          %p821 = pneg %p407
        $region74: #{net_forward.1} parent=11 // pred_check_branch
          %823 = sbr.rel (%p821) target = $region76
        $region75: #{net_forward.1} parent=11 // pred_region
          _
        $region76: #{net_forward.1} parent=11 // pred_fallthru
          _
        // Predicated region
        $region77: #{net_forward.1} parent=11 // pred_check
          %p824 = pneg %p428
        $region78: #{net_forward.1} parent=11 // pred_check_branch
          %826 = sbr.rel (%p824) target = $region80
        $region79: #{net_forward.1} parent=11 // pred_region
          _
        $region80: #{net_forward.1} parent=11 // pred_fallthru
          _
        // Predicated region
        $region81: #{net_forward.1} parent=11 // pred_check
          %p827 = pneg %p449
        $region82: #{net_forward.1} parent=11 // pred_check_branch
          %829 = sbr.rel (%p827) target = $region84
        $region83: #{net_forward.1} parent=11 // pred_region
          %831 = vsyncadd [#allocation27], 0
          %s833 = sshll.u32 %s18, 4
          %s834 = int_to_ptr.hbm [resolvable:$true] %s833
          %s835 = sshll.u32 [#allocation28], 4
          %s836 = int_to_ptr.vmem [resolvable:$true] %s835
          %838 = dma.hbm_to_vmem [thread:$0]  %s834, 32, %s836, [#allocation27]
        $region84: #{net_forward.1} parent=11 // pred_fallthru
          _
        // Predicated region
        $region85: #{net_forward.1} parent=11 // pred_check
          %p839 = pneg %p470
        $region86: #{net_forward.1} parent=11 // pred_check_branch
          %841 = sbr.rel (%p839) target = $region88
        $region87: #{net_forward.1} parent=11 // pred_region
          _
        $region88: #{net_forward.1} parent=11 // pred_fallthru
          _
        // Predicated region
        $region89: #{net_forward.1} parent=11 // pred_check
          %p842 = pneg %p491
        $region90: #{net_forward.1} parent=11 // pred_check_branch
          %844 = sbr.rel (%p842) target = $region92
        $region91: #{net_forward.1} parent=11 // pred_region
          %846 = vsyncadd [#allocation30], 0
          %s848 = sshll.u32 %s20, 4
          %s849 = int_to_ptr.hbm [resolvable:$true] %s848
          %s850 = sshll.u32 [#allocation29], 4
          %s851 = int_to_ptr.vmem [resolvable:$true] %s850
          %853 = dma.hbm_to_vmem [thread:$0]  %s849, 32, %s851, [#allocation30]
        $region92: #{net_forward.1} parent=11 // pred_fallthru
          _
        // Predicated region
        $region93: #{net_forward.1} parent=11 // pred_check
          %p854 = pneg %p512
        $region94: #{net_forward.1} parent=11 // pred_check_branch
          %856 = sbr.rel (%p854) target = $region96
        $region95: #{net_forward.1} parent=11 // pred_region
          _
        $region96: #{net_forward.1} parent=11 // pred_fallthru
          _
        // Predicated region
        $region97: #{net_forward.1} parent=11 // pred_check
          %p857 = pneg %p533
        $region98: #{net_forward.1} parent=11 // pred_check_branch
          %859 = sbr.rel (%p857) target = $region100
        $region99: #{net_forward.1} parent=11 // pred_region
          %861 = vsyncadd [#allocation30], 0
          %s863 = sshll.u32 %s22, 4
          %s864 = int_to_ptr.hbm [resolvable:$true] %s863
          %s865 = sshll.u32 [#allocation31], 4
          %s866 = int_to_ptr.vmem [resolvable:$true] %s865
          %868 = dma.hbm_to_vmem [thread:$0]  %s864, 16, %s866, [#allocation30]
        $region100: #{net_forward.1} parent=11 // pred_fallthru
          _
        // Predicated region
        $region101: #{net_forward.1} parent=11 // pred_check
          %p869 = pneg %p554
        $region102: #{net_forward.1} parent=11 // pred_check_branch
          %871 = sbr.rel (%p869) target = $region104
        $region103: #{net_forward.1} parent=11 // pred_region
          _
        $region104: #{net_forward.1} parent=11 // pred_fallthru
          _
        // Predicated region
        $region105: #{net_forward.1} parent=11 // pred_check
          %p872 = pneg %p575
        $region106: #{net_forward.1} parent=11 // pred_check_branch
          %874 = sbr.rel (%p872) target = $region108
        $region107: #{net_forward.1} parent=11 // pred_region
          %876 = vsyncadd [#allocation33], 0
          %s878 = sshll.u32 %s24, 4
          %s879 = int_to_ptr.hbm [resolvable:$true] %s878
          %s880 = sshll.u32 [#allocation32], 4
          %s881 = int_to_ptr.vmem [resolvable:$true] %s880
          %883 = dma.hbm_to_vmem [thread:$0]  %s879, 16, %s881, [#allocation33]
        $region108: #{net_forward.1} parent=11 // pred_fallthru
          _
        // Predicated region
        $region109: #{net_forward.1} parent=11 // pred_check
          %p884 = pneg %p596
        $region110: #{net_forward.1} parent=11 // pred_check_branch
          %886 = sbr.rel (%p884) target = $region112
        $region111: #{net_forward.1} parent=11 // pred_region
          _
        $region112: #{net_forward.1} parent=11 // pred_fallthru
          _
        // Predicated region
        $region113: #{net_forward.1} parent=11 // pred_check
          %p887 = pneg %p617
        $region114: #{net_forward.1} parent=11 // pred_check_branch
          %889 = sbr.rel (%p887) target = $region116
        $region115: #{net_forward.1} parent=11 // pred_region
          %891 = vsyncadd [#allocation33], 0
          %s893 = sshll.u32 %s26, 4
          %s894 = int_to_ptr.hbm [resolvable:$true] %s893
          %s895 = sshll.u32 [#allocation34], 4
          %s896 = int_to_ptr.vmem [resolvable:$true] %s895
          %898 = dma.hbm_to_vmem [thread:$0]  %s894, 16, %s896, [#allocation33]
        $region116: #{net_forward.1} parent=11 // pred_fallthru
          _
      $region12: #{net_forward.1} parent=5 // pred_fallthru
        _
      %p899 = scmp.lt.s32.totalorder %s45, 2
      // Predicated region
      $region117: #{net_forward.1} parent=5 // pred_check
        %p900 = pneg %p899
      $region118: #{net_forward.1} parent=5 // pred_check_branch
        %902 = sbr.rel (%p900) target = $region120
      $region119: #{net_forward.1} parent=5 // pred_region
        // Predicated region
        $region121: #{net_forward.1} parent=119 // pred_check
          %p903 = pneg %p65
        $region122: #{net_forward.1} parent=119 // pred_check_branch
          %905 = sbr.rel (%p903) target = $region124
        $region123: #{net_forward.1} parent=119 // pred_region
          %p906 = scmp.lt.s32.totalorder %s45, 1
          %s907 = scalar_select %p906, %s45, 1
          %s908 = smul.addr %s907, 128
          %s909 = smul.addr %s908, 8
          %s910 = scalar_lea.vmem %s0, %s909
        $region124: #{net_forward.1} parent=119 // pred_fallthru
          _
      $region120: #{net_forward.1} parent=5 // pred_fallthru
        _
      %p911 = scmp.le.s32.totalorder 1, %s45
      %p912 = scmp.lt.s32.totalorder %s45, 3
      %p913 = pnand %p911, %p912
      %p914 = pneg %p913
      // Predicated region
      $region125: #{net_forward.1} parent=5 // pred_check
        _
      $region126: #{net_forward.1} parent=5 // pred_check_branch
        %916 = sbr.rel (%p913) target = $region128
      $region127: #{net_forward.1} parent=5 // pred_region
        %s917 = ssub.s32 %s45, 1
        // Predicated region
        $region129: #{net_forward.1} parent=127 // pred_check
          %p918 = pneg %p113
        $region130: #{net_forward.1} parent=127 // pred_check_branch
          %920 = sbr.rel (%p918) target = $region132
        $region131: #{net_forward.1} parent=127 // pred_region
          %922 = dma.done [#allocation9], 16
        $region132: #{net_forward.1} parent=127 // pred_fallthru
          _
        // Predicated region
        $region133: #{net_forward.1} parent=127 // pred_check
          %p923 = pneg %p134
        $region134: #{net_forward.1} parent=127 // pred_check_branch
          %925 = sbr.rel (%p923) target = $region136
        $region135: #{net_forward.1} parent=127 // pred_region
          %927 = dma.done [#allocation12], 192
        $region136: #{net_forward.1} parent=127 // pred_fallthru
          _
        // Predicated region
        $region137: #{net_forward.1} parent=127 // pred_check
          %p928 = pneg %p155
        $region138: #{net_forward.1} parent=127 // pred_check_branch
          %930 = sbr.rel (%p928) target = $region140
        $region139: #{net_forward.1} parent=127 // pred_region
          %932 = dma.done [#allocation12], 16
        $region140: #{net_forward.1} parent=127 // pred_fallthru
          _
        // Predicated region
        $region141: #{net_forward.1} parent=127 // pred_check
          %p933 = pneg %p197
        $region142: #{net_forward.1} parent=127 // pred_check_branch
          %935 = sbr.rel (%p933) target = $region144
        $region143: #{net_forward.1} parent=127 // pred_region
          %937 = dma.done [#allocation15], 16
        $region144: #{net_forward.1} parent=127 // pred_fallthru
          _
        // Predicated region
        $region145: #{net_forward.1} parent=127 // pred_check
          %p938 = pneg %p218
        $region146: #{net_forward.1} parent=127 // pred_check_branch
          %940 = sbr.rel (%p938) target = $region148
        $region147: #{net_forward.1} parent=127 // pred_region
          %942 = dma.done [#allocation15], 768
        $region148: #{net_forward.1} parent=127 // pred_fallthru
          _
        // Predicated region
        $region149: #{net_forward.1} parent=127 // pred_check
          %p943 = pneg %p239
        $region150: #{net_forward.1} parent=127 // pred_check_branch
          %945 = sbr.rel (%p943) target = $region152
        $region151: #{net_forward.1} parent=127 // pred_region
          %947 = dma.done [#allocation18], 16
        $region152: #{net_forward.1} parent=127 // pred_fallthru
          _
        // Predicated region
        $region153: #{net_forward.1} parent=127 // pred_check
          %p948 = pneg %p260
        $region154: #{net_forward.1} parent=127 // pred_check_branch
          %950 = sbr.rel (%p948) target = $region156
        $region155: #{net_forward.1} parent=127 // pred_region
          %952 = dma.done [#allocation18], 1536
        $region156: #{net_forward.1} parent=127 // pred_fallthru
          _
        // Predicated region
        $region157: #{net_forward.1} parent=127 // pred_check
          %p953 = pneg %p281
        $region158: #{net_forward.1} parent=127 // pred_check_branch
          %955 = sbr.rel (%p953) target = $region160
        $region159: #{net_forward.1} parent=127 // pred_region
          %957 = dma.done [#allocation21], 16
        $region160: #{net_forward.1} parent=127 // pred_fallthru
          _
        // Predicated region
        $region161: #{net_forward.1} parent=127 // pred_check
          %p958 = pneg %p302
        $region162: #{net_forward.1} parent=127 // pred_check_branch
          %960 = sbr.rel (%p958) target = $region164
        $region163: #{net_forward.1} parent=127 // pred_region
          %962 = dma.done [#allocation21], 1536
        $region164: #{net_forward.1} parent=127 // pred_fallthru
          _
        // Predicated region
        $region165: #{net_forward.1} parent=127 // pred_check
          %p963 = pneg %p323
        $region166: #{net_forward.1} parent=127 // pred_check_branch
          %965 = sbr.rel (%p963) target = $region168
        $region167: #{net_forward.1} parent=127 // pred_region
          %967 = dma.done [#allocation24], 16
        $region168: #{net_forward.1} parent=127 // pred_fallthru
          _
        // Predicated region
        $region169: #{net_forward.1} parent=127 // pred_check
          %p968 = pneg %p344
        $region170: #{net_forward.1} parent=127 // pred_check_branch
          %970 = sbr.rel (%p968) target = $region172
        $region171: #{net_forward.1} parent=127 // pred_region
          %972 = dma.done [#allocation24], 3072
        $region172: #{net_forward.1} parent=127 // pred_fallthru
          _
        // Predicated region
        $region173: #{net_forward.1} parent=127 // pred_check
          %p973 = pneg %p365
        $region174: #{net_forward.1} parent=127 // pred_check_branch
          %975 = sbr.rel (%p973) target = $region176
        $region175: #{net_forward.1} parent=127 // pred_region
          %977 = dma.done [#allocation27], 16
        $region176: #{net_forward.1} parent=127 // pred_fallthru
          _
        // Predicated region
        $region177: #{net_forward.1} parent=127 // pred_check
          %p978 = pneg %p449
        $region178: #{net_forward.1} parent=127 // pred_check_branch
          %980 = sbr.rel (%p978) target = $region180
        $region179: #{net_forward.1} parent=127 // pred_region
          %982 = dma.done [#allocation27], 32
        $region180: #{net_forward.1} parent=127 // pred_fallthru
          _
        // Predicated region
        $region181: #{net_forward.1} parent=127 // pred_check
          %p983 = pneg %p491
        $region182: #{net_forward.1} parent=127 // pred_check_branch
          %985 = sbr.rel (%p983) target = $region184
        $region183: #{net_forward.1} parent=127 // pred_region
          %987 = dma.done [#allocation30], 32
        $region184: #{net_forward.1} parent=127 // pred_fallthru
          _
        // Predicated region
        $region185: #{net_forward.1} parent=127 // pred_check
          %p988 = pneg %p533
        $region186: #{net_forward.1} parent=127 // pred_check_branch
          %990 = sbr.rel (%p988) target = $region188
        $region187: #{net_forward.1} parent=127 // pred_region
          %992 = dma.done [#allocation30], 16
        $region188: #{net_forward.1} parent=127 // pred_fallthru
          _
        // Predicated region
        $region189: #{net_forward.1} parent=127 // pred_check
          %p993 = pneg %p575
        $region190: #{net_forward.1} parent=127 // pred_check_branch
          %995 = sbr.rel (%p993) target = $region192
        $region191: #{net_forward.1} parent=127 // pred_region
          %997 = dma.done [#allocation33], 16
        $region192: #{net_forward.1} parent=127 // pred_fallthru
          _
        // Predicated region
        $region193: #{net_forward.1} parent=127 // pred_check
          %p998 = pneg %p617
        $region194: #{net_forward.1} parent=127 // pred_check_branch
          %1000 = sbr.rel (%p998) target = $region196
        $region195: #{net_forward.1} parent=127 // pred_region
          %1002 = dma.done [#allocation33], 16
        $region196: #{net_forward.1} parent=127 // pred_fallthru
          _
        %p1003 = scmp.lt.s32.totalorder %s50, 1
        %s1004 = scalar_select %p1003, %s50, 1
        %s1005 = smul.addr %s1004, 128
        %s1006 = smul.addr %s1005, 8
        %s1007 = scalar_lea.vmem %s0, %s1006
        %p1008 = pneg %p71
        %p1009 = pneg %p68
        %p1010 = pneg %p92
        %p1011 = pneg %p89
        %p1012 = pneg %p113
        %p1013 = pneg %p110
        %p1014 = pneg %p134
        %p1015 = pneg %p131
        %p1016 = pneg %p155
        %p1017 = pneg %p152
        %p1018 = pneg %p176
        %p1019 = pneg %p173
        %p1020 = pneg %p197
        %p1021 = pneg %p194
        %p1022 = pneg %p218
        %p1023 = pneg %p215
        %p1024 = pneg %p239
        %p1025 = pneg %p236
        %p1026 = pneg %p260
        %p1027 = pneg %p257
        %p1028 = pneg %p281
        %p1029 = pneg %p278
        %p1030 = pneg %p302
        %p1031 = pneg %p299
        %p1032 = pneg %p323
        %p1033 = pneg %p320
        %p1034 = pneg %p344
        %p1035 = pneg %p341
        %p1036 = pneg %p365
        %p1037 = pneg %p362
        %p1038 = pneg %p386
        %p1039 = pneg %p383
        %p1040 = pneg %p407
        %p1041 = pneg %p404
        %p1042 = pneg %p428
        %p1043 = pneg %p425
        %p1044 = pneg %p449
        %p1045 = pneg %p446
        %p1046 = pneg %p470
        %p1047 = pneg %p467
        %p1048 = pneg %p491
        %p1049 = pneg %p488
        %p1050 = pneg %p512
        %p1051 = pneg %p509
        %p1052 = pneg %p533
        %p1053 = pneg %p530
        %p1054 = pneg %p554
        %p1055 = pneg %p551
        %p1056 = pneg %p575
        %p1057 = pneg %p572
        %p1058 = pneg %p596
        %p1059 = pneg %p593
        %p1060 = pneg %p617
        %p1061 = pneg %p614
        %p1062 = pneg %p643
        %p1063 = pneg %p640
        %s1064 = sand.u32 %s630, 1
        %s1065 = scalar_lea.sflag [#allocation10], %s1064
        %s1066 = sand.u32 %s630, 1
        %s1067 = scalar_lea.vmem [#allocation35], %s1066
        %p1068 = scmp.lt.s32.totalorder %s50, 1
        %s1069 = scalar_select %p1068, %s50, 1
        %s1070 = smul.addr %s1069, 128
        %s1071 = smul.addr %s1070, 8
        %s1072 = scalar_lea.vmem %s0, %s1071
        %v1073 = vld [vmem:[%s1072] ss:$2 sm:$0xff]
        %s1074 = scalar_lea.vmem %s1072, 16
        %v1075 = vld [vmem:[%s1074] ss:$2 sm:$0xff]
        %s1076 = scalar_lea.vmem %s1072, 32
        %v1077 = vld [vmem:[%s1076] ss:$2 sm:$0xff]
        %s1078 = scalar_lea.vmem %s1072, 48
        %v1079 = vld [vmem:[%s1078] ss:$2 sm:$0xff]
        %s1080 = scalar_lea.vmem %s1072, 64
        %v1081 = vld [vmem:[%s1080] ss:$2 sm:$0xff]
        %s1082 = scalar_lea.vmem %s1072, 80
        %v1083 = vld [vmem:[%s1082] ss:$2 sm:$0xff]
        %s1084 = scalar_lea.vmem %s1072, 96
        %v1085 = vld [vmem:[%s1084] ss:$2 sm:$0xff]
        %s1086 = scalar_lea.vmem %s1072, 112
        %v1087 = vld [vmem:[%s1086] ss:$2 sm:$0xff]
        %s1088 = scalar_lea.vmem %s1072, 128
        %v1089 = vld [vmem:[%s1088] ss:$2 sm:$0xff]
        %s1090 = scalar_lea.vmem %s1072, 144
        %v1091 = vld [vmem:[%s1090] ss:$2 sm:$0xff]
        %s1092 = scalar_lea.vmem %s1072, 160
        %v1093 = vld [vmem:[%s1092] ss:$2 sm:$0xff]
        %s1094 = scalar_lea.vmem %s1072, 176
        %v1095 = vld [vmem:[%s1094] ss:$2 sm:$0xff]
        %s1096 = scalar_lea.vmem %s1072, 192
        %v1097 = vld [vmem:[%s1096] ss:$2 sm:$0xff]
        %s1098 = scalar_lea.vmem %s1072, 208
        %v1099 = vld [vmem:[%s1098] ss:$2 sm:$0xff]
        %s1100 = scalar_lea.vmem %s1072, 224
        %v1101 = vld [vmem:[%s1100] ss:$2 sm:$0xff]
        %s1102 = scalar_lea.vmem %s1072, 240
        %v1103 = vld [vmem:[%s1102] ss:$2 sm:$0xff]
        %s1104 = scalar_lea.vmem %s1072, 256
        %v1105 = vld [vmem:[%s1104] ss:$2 sm:$0xff]
        %s1106 = scalar_lea.vmem %s1072, 272
        %v1107 = vld [vmem:[%s1106] ss:$2 sm:$0xff]
        %s1108 = scalar_lea.vmem %s1072, 288
        %v1109 = vld [vmem:[%s1108] ss:$2 sm:$0xff]
        %s1110 = scalar_lea.vmem %s1072, 304
        %v1111 = vld [vmem:[%s1110] ss:$2 sm:$0xff]
        %s1112 = scalar_lea.vmem %s1072, 320
        %v1113 = vld [vmem:[%s1112] ss:$2 sm:$0xff]
        %s1114 = scalar_lea.vmem %s1072, 336
        %v1115 = vld [vmem:[%s1114] ss:$2 sm:$0xff]
        %s1116 = scalar_lea.vmem %s1072, 352
        %v1117 = vld [vmem:[%s1116] ss:$2 sm:$0xff]
        %s1118 = scalar_lea.vmem %s1072, 368
        %v1119 = vld [vmem:[%s1118] ss:$2 sm:$0xff]
        %s1120 = scalar_lea.vmem %s1072, 384
        %v1121 = vld [vmem:[%s1120] ss:$2 sm:$0xff]
        %s1122 = scalar_lea.vmem %s1072, 400
        %v1123 = vld [vmem:[%s1122] ss:$2 sm:$0xff]
        %s1124 = scalar_lea.vmem %s1072, 416
        %v1125 = vld [vmem:[%s1124] ss:$2 sm:$0xff]
        %s1126 = scalar_lea.vmem %s1072, 432
        %v1127 = vld [vmem:[%s1126] ss:$2 sm:$0xff]
        %s1128 = scalar_lea.vmem %s1072, 448
        %v1129 = vld [vmem:[%s1128] ss:$2 sm:$0xff]
        %s1130 = scalar_lea.vmem %s1072, 464
        %v1131 = vld [vmem:[%s1130] ss:$2 sm:$0xff]
        %s1132 = scalar_lea.vmem %s1072, 480
        %v1133 = vld [vmem:[%s1132] ss:$2 sm:$0xff]
        %s1134 = scalar_lea.vmem %s1072, 496
        %v1135 = vld [vmem:[%s1134] ss:$2 sm:$0xff]
        %s1136 = scalar_lea.vmem %s1072, 512
        %v1137 = vld [vmem:[%s1136] ss:$2 sm:$0xff]
        %s1138 = scalar_lea.vmem %s1072, 528
        %v1139 = vld [vmem:[%s1138] ss:$2 sm:$0xff]
        %s1140 = scalar_lea.vmem %s1072, 544
        %v1141 = vld [vmem:[%s1140] ss:$2 sm:$0xff]
        %s1142 = scalar_lea.vmem %s1072, 560
        %v1143 = vld [vmem:[%s1142] ss:$2 sm:$0xff]
        %s1144 = scalar_lea.vmem %s1072, 576
        %v1145 = vld [vmem:[%s1144] ss:$2 sm:$0xff]
        %s1146 = scalar_lea.vmem %s1072, 592
        %v1147 = vld [vmem:[%s1146] ss:$2 sm:$0xff]
        %s1148 = scalar_lea.vmem %s1072, 608
        %v1149 = vld [vmem:[%s1148] ss:$2 sm:$0xff]
        %s1150 = scalar_lea.vmem %s1072, 624
        %v1151 = vld [vmem:[%s1150] ss:$2 sm:$0xff]
        %s1152 = scalar_lea.vmem %s1072, 640
        %v1153 = vld [vmem:[%s1152] ss:$2 sm:$0xff]
        %s1154 = scalar_lea.vmem %s1072, 656
        %v1155 = vld [vmem:[%s1154] ss:$2 sm:$0xff]
        %s1156 = scalar_lea.vmem %s1072, 672
        %v1157 = vld [vmem:[%s1156] ss:$2 sm:$0xff]
        %s1158 = scalar_lea.vmem %s1072, 688
        %v1159 = vld [vmem:[%s1158] ss:$2 sm:$0xff]
        %s1160 = scalar_lea.vmem %s1072, 704
        %v1161 = vld [vmem:[%s1160] ss:$2 sm:$0xff]
        %s1162 = scalar_lea.vmem %s1072, 720
        %v1163 = vld [vmem:[%s1162] ss:$2 sm:$0xff]
        %s1164 = scalar_lea.vmem %s1072, 736
        %v1165 = vld [vmem:[%s1164] ss:$2 sm:$0xff]
        %s1166 = scalar_lea.vmem %s1072, 752
        %v1167 = vld [vmem:[%s1166] ss:$2 sm:$0xff]
        %s1168 = scalar_lea.vmem %s1072, 768
        %v1169 = vld [vmem:[%s1168] ss:$2 sm:$0xff]
        %s1170 = scalar_lea.vmem %s1072, 784
        %v1171 = vld [vmem:[%s1170] ss:$2 sm:$0xff]
        %s1172 = scalar_lea.vmem %s1072, 800
        %v1173 = vld [vmem:[%s1172] ss:$2 sm:$0xff]
        %s1174 = scalar_lea.vmem %s1072, 816
        %v1175 = vld [vmem:[%s1174] ss:$2 sm:$0xff]
        %s1176 = scalar_lea.vmem %s1072, 832
        %v1177 = vld [vmem:[%s1176] ss:$2 sm:$0xff]
        %s1178 = scalar_lea.vmem %s1072, 848
        %v1179 = vld [vmem:[%s1178] ss:$2 sm:$0xff]
        %s1180 = scalar_lea.vmem %s1072, 864
        %v1181 = vld [vmem:[%s1180] ss:$2 sm:$0xff]
        %s1182 = scalar_lea.vmem %s1072, 880
        %v1183 = vld [vmem:[%s1182] ss:$2 sm:$0xff]
        %s1184 = scalar_lea.vmem %s1072, 896
        %v1185 = vld [vmem:[%s1184] ss:$2 sm:$0xff]
        %s1186 = scalar_lea.vmem %s1072, 912
        %v1187 = vld [vmem:[%s1186] ss:$2 sm:$0xff]
        %s1188 = scalar_lea.vmem %s1072, 928
        %v1189 = vld [vmem:[%s1188] ss:$2 sm:$0xff]
        %s1190 = scalar_lea.vmem %s1072, 944
        %v1191 = vld [vmem:[%s1190] ss:$2 sm:$0xff]
        %s1192 = scalar_lea.vmem %s1072, 960
        %v1193 = vld [vmem:[%s1192] ss:$2 sm:$0xff]
        %s1194 = scalar_lea.vmem %s1072, 976
        %v1195 = vld [vmem:[%s1194] ss:$2 sm:$0xff]
        %s1196 = scalar_lea.vmem %s1072, 992
        %v1197 = vld [vmem:[%s1196] ss:$2 sm:$0xff]
        %s1198 = scalar_lea.vmem %s1072, 1008
        %v1199 = vld [vmem:[%s1198] ss:$2 sm:$0x7f]
        %v1200 = vld [vmem:[%s1] sm:$0x3]
        %s1201 = scalar_lea.vmem %s1072, 1
        %v1202 = vld [vmem:[%s1201] ss:$2 sm:$0xff]
        %s1203 = scalar_lea.vmem %s1072, 17
        %v1204 = vld [vmem:[%s1203] ss:$2 sm:$0xff]
        %s1205 = scalar_lea.vmem %s1072, 33
        %v1206 = vld [vmem:[%s1205] ss:$2 sm:$0xff]
        %s1207 = scalar_lea.vmem %s1072, 49
        %v1208 = vld [vmem:[%s1207] ss:$2 sm:$0xff]
        %s1209 = scalar_lea.vmem %s1072, 65
        %v1210 = vld [vmem:[%s1209] ss:$2 sm:$0xff]
        %s1211 = scalar_lea.vmem %s1072, 81
        %v1212 = vld [vmem:[%s1211] ss:$2 sm:$0xff]
        %s1213 = scalar_lea.vmem %s1072, 97
        %v1214 = vld [vmem:[%s1213] ss:$2 sm:$0xff]
        %s1215 = scalar_lea.vmem %s1072, 113
        %v1216 = vld [vmem:[%s1215] ss:$2 sm:$0xff]
        %s1217 = scalar_lea.vmem %s1072, 129
        %v1218 = vld [vmem:[%s1217] ss:$2 sm:$0xff]
        %s1219 = scalar_lea.vmem %s1072, 145
        %v1220 = vld [vmem:[%s1219] ss:$2 sm:$0xff]
        %s1221 = scalar_lea.vmem %s1072, 161
        %v1222 = vld [vmem:[%s1221] ss:$2 sm:$0xff]
        %s1223 = scalar_lea.vmem %s1072, 177
        %v1224 = vld [vmem:[%s1223] ss:$2 sm:$0xff]
        %s1225 = scalar_lea.vmem %s1072, 193
        %v1226 = vld [vmem:[%s1225] ss:$2 sm:$0xff]
        %s1227 = scalar_lea.vmem %s1072, 209
        %v1228 = vld [vmem:[%s1227] ss:$2 sm:$0xff]
        %s1229 = scalar_lea.vmem %s1072, 225
        %v1230 = vld [vmem:[%s1229] ss:$2 sm:$0xff]
        %s1231 = scalar_lea.vmem %s1072, 241
        %v1232 = vld [vmem:[%s1231] ss:$2 sm:$0xff]
        %s1233 = scalar_lea.vmem %s1072, 257
        %v1234 = vld [vmem:[%s1233] ss:$2 sm:$0xff]
        %s1235 = scalar_lea.vmem %s1072, 273
        %v1236 = vld [vmem:[%s1235] ss:$2 sm:$0xff]
        %s1237 = scalar_lea.vmem %s1072, 289
        %v1238 = vld [vmem:[%s1237] ss:$2 sm:$0xff]
        %s1239 = scalar_lea.vmem %s1072, 305
        %v1240 = vld [vmem:[%s1239] ss:$2 sm:$0xff]
        %s1241 = scalar_lea.vmem %s1072, 321
        %v1242 = vld [vmem:[%s1241] ss:$2 sm:$0xff]
        %s1243 = scalar_lea.vmem %s1072, 337
        %v1244 = vld [vmem:[%s1243] ss:$2 sm:$0xff]
        %s1245 = scalar_lea.vmem %s1072, 353
        %v1246 = vld [vmem:[%s1245] ss:$2 sm:$0xff]
        %s1247 = scalar_lea.vmem %s1072, 369
        %v1248 = vld [vmem:[%s1247] ss:$2 sm:$0xff]
        %s1249 = scalar_lea.vmem %s1072, 385
        %v1250 = vld [vmem:[%s1249] ss:$2 sm:$0xff]
        %s1251 = scalar_lea.vmem %s1072, 401
        %v1252 = vld [vmem:[%s1251] ss:$2 sm:$0xff]
        %s1253 = scalar_lea.vmem %s1072, 417
        %v1254 = vld [vmem:[%s1253] ss:$2 sm:$0xff]
        %s1255 = scalar_lea.vmem %s1072, 433
        %v1256 = vld [vmem:[%s1255] ss:$2 sm:$0xff]
        %s1257 = scalar_lea.vmem %s1072, 449
        %v1258 = vld [vmem:[%s1257] ss:$2 sm:$0xff]
        %s1259 = scalar_lea.vmem %s1072, 465
        %v1260 = vld [vmem:[%s1259] ss:$2 sm:$0xff]
        %s1261 = scalar_lea.vmem %s1072, 481
        %v1262 = vld [vmem:[%s1261] ss:$2 sm:$0xff]
        %s1263 = scalar_lea.vmem %s1072, 497
        %v1264 = vld [vmem:[%s1263] ss:$2 sm:$0xff]
        %s1265 = scalar_lea.vmem %s1072, 513
        %v1266 = vld [vmem:[%s1265] ss:$2 sm:$0xff]
        %s1267 = scalar_lea.vmem %s1072, 529
        %v1268 = vld [vmem:[%s1267] ss:$2 sm:$0xff]
        %s1269 = scalar_lea.vmem %s1072, 545
        %v1270 = vld [vmem:[%s1269] ss:$2 sm:$0xff]
        %s1271 = scalar_lea.vmem %s1072, 561
        %v1272 = vld [vmem:[%s1271] ss:$2 sm:$0xff]
        %s1273 = scalar_lea.vmem %s1072, 577
        %v1274 = vld [vmem:[%s1273] ss:$2 sm:$0xff]
        %s1275 = scalar_lea.vmem %s1072, 593
        %v1276 = vld [vmem:[%s1275] ss:$2 sm:$0xff]
        %s1277 = scalar_lea.vmem %s1072, 609
        %v1278 = vld [vmem:[%s1277] ss:$2 sm:$0xff]
        %s1279 = scalar_lea.vmem %s1072, 625
        %v1280 = vld [vmem:[%s1279] ss:$2 sm:$0xff]
        %s1281 = scalar_lea.vmem %s1072, 641
        %v1282 = vld [vmem:[%s1281] ss:$2 sm:$0xff]
        %s1283 = scalar_lea.vmem %s1072, 657
        %v1284 = vld [vmem:[%s1283] ss:$2 sm:$0xff]
        %s1285 = scalar_lea.vmem %s1072, 673
        %v1286 = vld [vmem:[%s1285] ss:$2 sm:$0xff]
        %s1287 = scalar_lea.vmem %s1072, 689
        %v1288 = vld [vmem:[%s1287] ss:$2 sm:$0xff]
        %s1289 = scalar_lea.vmem %s1072, 705
        %v1290 = vld [vmem:[%s1289] ss:$2 sm:$0xff]
        %s1291 = scalar_lea.vmem %s1072, 721
        %v1292 = vld [vmem:[%s1291] ss:$2 sm:$0xff]
        %s1293 = scalar_lea.vmem %s1072, 737
        %v1294 = vld [vmem:[%s1293] ss:$2 sm:$0xff]
        %s1295 = scalar_lea.vmem %s1072, 753
        %v1296 = vld [vmem:[%s1295] ss:$2 sm:$0xff]
        %s1297 = scalar_lea.vmem %s1072, 769
        %v1298 = vld [vmem:[%s1297] ss:$2 sm:$0xff]
        %s1299 = scalar_lea.vmem %s1072, 785
        %v1300 = vld [vmem:[%s1299] ss:$2 sm:$0xff]
        %s1301 = scalar_lea.vmem %s1072, 801
        %v1302 = vld [vmem:[%s1301] ss:$2 sm:$0xff]
        %s1303 = scalar_lea.vmem %s1072, 817
        %v1304 = vld [vmem:[%s1303] ss:$2 sm:$0xff]
        %s1305 = scalar_lea.vmem %s1072, 833
        %v1306 = vld [vmem:[%s1305] ss:$2 sm:$0xff]
        %s1307 = scalar_lea.vmem %s1072, 849
        %v1308 = vld [vmem:[%s1307] ss:$2 sm:$0xff]
        %s1309 = scalar_lea.vmem %s1072, 865
        %v1310 = vld [vmem:[%s1309] ss:$2 sm:$0xff]
        %s1311 = scalar_lea.vmem %s1072, 881
        %v1312 = vld [vmem:[%s1311] ss:$2 sm:$0xff]
        %s1313 = scalar_lea.vmem %s1072, 897
        %v1314 = vld [vmem:[%s1313] ss:$2 sm:$0xff]
        %s1315 = scalar_lea.vmem %s1072, 913
        %v1316 = vld [vmem:[%s1315] ss:$2 sm:$0xff]
        %s1317 = scalar_lea.vmem %s1072, 929
        %v1318 = vld [vmem:[%s1317] ss:$2 sm:$0xff]
        %s1319 = scalar_lea.vmem %s1072, 945
        %v1320 = vld [vmem:[%s1319] ss:$2 sm:$0xff]
        %s1321 = scalar_lea.vmem %s1072, 961
        %v1322 = vld [vmem:[%s1321] ss:$2 sm:$0xff]
        %s1323 = scalar_lea.vmem %s1072, 977
        %v1324 = vld [vmem:[%s1323] ss:$2 sm:$0xff]
        %s1325 = scalar_lea.vmem %s1072, 993
        %v1326 = vld [vmem:[%s1325] ss:$2 sm:$0xff]
        %s1327 = scalar_lea.vmem %s1072, 1009
        %v1328 = vld [vmem:[%s1327] ss:$2 sm:$0x7f]
        %s1329 = scalar_lea.vmem %s1, 2
        %v1330 = vld [vmem:[%s1329] sm:$0x3]
        %vm1331 = vcmask 15360
        %v1333 = vsel %vm1331, %v1202, 0
        %v1336 = vsel %vm1331, %v1204, 0
        %v1339 = vsel %vm1331, %v1206, 0
        %v1342 = vsel %vm1331, %v1208, 0
        %v1345 = vsel %vm1331, %v1210, 0
        %v1348 = vsel %vm1331, %v1212, 0
        %v1351 = vsel %vm1331, %v1214, 0
        %v1354 = vsel %vm1331, %v1216, 0
        %v1357 = vsel %vm1331, %v1218, 0
        %v1360 = vsel %vm1331, %v1220, 0
        %v1363 = vsel %vm1331, %v1222, 0
        %v1366 = vsel %vm1331, %v1224, 0
        %v1369 = vsel %vm1331, %v1226, 0
        %v1372 = vsel %vm1331, %v1228, 0
        %v1375 = vsel %vm1331, %v1230, 0
        %v1378 = vsel %vm1331, %v1232, 0
        %v1381 = vsel %vm1331, %v1234, 0
        %v1384 = vsel %vm1331, %v1236, 0
        %v1387 = vsel %vm1331, %v1238, 0
        %v1390 = vsel %vm1331, %v1240, 0
        %v1393 = vsel %vm1331, %v1242, 0
        %v1396 = vsel %vm1331, %v1244, 0
        %v1399 = vsel %vm1331, %v1246, 0
        %v1402 = vsel %vm1331, %v1248, 0
        %v1405 = vsel %vm1331, %v1250, 0
        %v1408 = vsel %vm1331, %v1252, 0
        %v1411 = vsel %vm1331, %v1254, 0
        %v1414 = vsel %vm1331, %v1256, 0
        %v1417 = vsel %vm1331, %v1258, 0
        %v1420 = vsel %vm1331, %v1260, 0
        %v1423 = vsel %vm1331, %v1262, 0
        %v1426 = vsel %vm1331, %v1264, 0
        %v1429 = vsel %vm1331, %v1266, 0
        %v1432 = vsel %vm1331, %v1268, 0
        %v1435 = vsel %vm1331, %v1270, 0
        %v1438 = vsel %vm1331, %v1272, 0
        %v1441 = vsel %vm1331, %v1274, 0
        %v1444 = vsel %vm1331, %v1276, 0
        %v1447 = vsel %vm1331, %v1278, 0
        %v1450 = vsel %vm1331, %v1280, 0
        %v1453 = vsel %vm1331, %v1282, 0
        %v1456 = vsel %vm1331, %v1284, 0
        %v1459 = vsel %vm1331, %v1286, 0
        %v1462 = vsel %vm1331, %v1288, 0
        %v1465 = vsel %vm1331, %v1290, 0
        %v1468 = vsel %vm1331, %v1292, 0
        %v1471 = vsel %vm1331, %v1294, 0
        %v1474 = vsel %vm1331, %v1296, 0
        %v1477 = vsel %vm1331, %v1298, 0
        %v1480 = vsel %vm1331, %v1300, 0
        %v1483 = vsel %vm1331, %v1302, 0
        %v1486 = vsel %vm1331, %v1304, 0
        %v1489 = vsel %vm1331, %v1306, 0
        %v1492 = vsel %vm1331, %v1308, 0
        %v1495 = vsel %vm1331, %v1310, 0
        %v1498 = vsel %vm1331, %v1312, 0
        %v1501 = vsel %vm1331, %v1314, 0
        %v1504 = vsel %vm1331, %v1316, 0
        %v1507 = vsel %vm1331, %v1318, 0
        %v1510 = vsel %vm1331, %v1320, 0
        %v1513 = vsel %vm1331, %v1322, 0
        %v1516 = vsel %vm1331, %v1324, 0
        %v1519 = vsel %vm1331, %v1326, 0
        %v1522 = vsel %vm1331, %v1328, 0
        %vm1524 = vcmask 1041408
        %v1526 = vsel %vm1524, %v1330, 0
        %1528 = vmatpush.msra.mxu0 0.0
        %1529 = vmatpush.msra.mxu0 0.0
        %1530 = vmatpush.msra.mxu0 0.0
        %1531 = vmatpush.msra.mxu0 0.0
        %1532 = vmatpush.msra.mxu0 0.0
        %1533 = vmatpush.msra.mxu0 0.0
        %1534 = vmatpush.msra.mxu0 0.0
        %1535 = vmatpush.msra.mxu0 0.0
        %1536 = vmatpush.msra.mxu0 0.0
        %1537 = vmatpush.msra.mxu0 0.0
        %1538 = vmatpush.msra.mxu0 0.0
        %1539 = vmatpush.msra.mxu0 0.0
        %1540 = vmatpush.msra.mxu0 0.0
        %1541 = vmatpush.msra.mxu0 0.0
        %1542 = vmatpush.msra.mxu0 0.0
        %1543 = vmatpush.msra.mxu0 %v1526
        %1544 = vmatmul.f32.gmra.mxu0 %v1333
        %v1545 = vpop.f32.mrf.mxu0
        %v1546 = vadd.f32 0.0, %v1545
        %1547 = vmatmul.f32.gmra.mxu0 %v1336
        %v1548 = vpop.f32.mrf.mxu0
        %v1549 = vadd.f32 0.0, %v1548
        %1550 = vmatmul.f32.gmra.mxu0 %v1339
        %v1551 = vpop.f32.mrf.mxu0
        %v1552 = vadd.f32 0.0, %v1551
        %1553 = vmatmul.f32.gmra.mxu0 %v1342
        %v1554 = vpop.f32.mrf.mxu0
        %v1555 = vadd.f32 0.0, %v1554
        %1556 = vmatmul.f32.gmra.mxu0 %v1345
        %v1557 = vpop.f32.mrf.mxu0
        %v1558 = vadd.f32 0.0, %v1557
        %1559 = vmatmul.f32.gmra.mxu0 %v1348
        %v1560 = vpop.f32.mrf.mxu0
        %v1561 = vadd.f32 0.0, %v1560
        %1562 = vmatmul.f32.gmra.mxu0 %v1351
        %v1563 = vpop.f32.mrf.mxu0
        %v1564 = vadd.f32 0.0, %v1563
        %1565 = vmatmul.f32.gmra.mxu0 %v1354
        %v1566 = vpop.f32.mrf.mxu0
        %v1567 = vadd.f32 0.0, %v1566
        %1568 = vmatmul.f32.gmra.mxu0 %v1357
        %v1569 = vpop.f32.mrf.mxu0
        %v1570 = vadd.f32 0.0, %v1569
        %1571 = vmatmul.f32.gmra.mxu0 %v1360
        %v1572 = vpop.f32.mrf.mxu0
        %v1573 = vadd.f32 0.0, %v1572
        %1574 = vmatmul.f32.gmra.mxu0 %v1363
        %v1575 = vpop.f32.mrf.mxu0
        %v1576 = vadd.f32 0.0, %v1575
        %1577 = vmatmul.f32.gmra.mxu0 %v1366
        %v1578 = vpop.f32.mrf.mxu0
        %v1579 = vadd.f32 0.0, %v1578
        %1580 = vmatmul.f32.gmra.mxu0 %v1369
        %v1581 = vpop.f32.mrf.mxu0
        %v1582 = vadd.f32 0.0, %v1581
        %1583 = vmatmul.f32.gmra.mxu0 %v1372
        %v1584 = vpop.f32.mrf.mxu0
        %v1585 = vadd.f32 0.0, %v1584
        %1586 = vmatmul.f32.gmra.mxu0 %v1375
        %v1587 = vpop.f32.mrf.mxu0
        %v1588 = vadd.f32 0.0, %v1587
        %1589 = vmatmul.f32.gmra.mxu0 %v1378
        %v1590 = vpop.f32.mrf.mxu0
        %v1591 = vadd.f32 0.0, %v1590
        %1592 = vmatmul.f32.gmra.mxu0 %v1381
        %v1593 = vpop.f32.mrf.mxu0
        %v1594 = vadd.f32 0.0, %v1593
        %1595 = vmatmul.f32.gmra.mxu0 %v1384
        %v1596 = vpop.f32.mrf.mxu0
        %v1597 = vadd.f32 0.0, %v1596
        %1598 = vmatmul.f32.gmra.mxu0 %v1387
        %v1599 = vpop.f32.mrf.mxu0
        %v1600 = vadd.f32 0.0, %v1599
        %1601 = vmatmul.f32.gmra.mxu0 %v1390
        %v1602 = vpop.f32.mrf.mxu0
        %v1603 = vadd.f32 0.0, %v1602
        %1604 = vmatmul.f32.gmra.mxu0 %v1393
        %v1605 = vpop.f32.mrf.mxu0
        %v1606 = vadd.f32 0.0, %v1605
        %1607 = vmatmul.f32.gmra.mxu0 %v1396
        %v1608 = vpop.f32.mrf.mxu0
        %v1609 = vadd.f32 0.0, %v1608
        %1610 = vmatmul.f32.gmra.mxu0 %v1399
        %v1611 = vpop.f32.mrf.mxu0
        %v1612 = vadd.f32 0.0, %v1611
        %1613 = vmatmul.f32.gmra.mxu0 %v1402
        %v1614 = vpop.f32.mrf.mxu0
        %v1615 = vadd.f32 0.0, %v1614
        %1616 = vmatmul.f32.gmra.mxu0 %v1405
        %v1617 = vpop.f32.mrf.mxu0
        %v1618 = vadd.f32 0.0, %v1617
        %1619 = vmatmul.f32.gmra.mxu0 %v1408
        %v1620 = vpop.f32.mrf.mxu0
        %v1621 = vadd.f32 0.0, %v1620
        %1622 = vmatmul.f32.gmra.mxu0 %v1411
        %v1623 = vpop.f32.mrf.mxu0
        %v1624 = vadd.f32 0.0, %v1623
        %1625 = vmatmul.f32.gmra.mxu0 %v1414
        %v1626 = vpop.f32.mrf.mxu0
        %v1627 = vadd.f32 0.0, %v1626
        %1628 = vmatmul.f32.gmra.mxu0 %v1417
        %v1629 = vpop.f32.mrf.mxu0
        %v1630 = vadd.f32 0.0, %v1629
        %1631 = vmatmul.f32.gmra.mxu0 %v1420
        %v1632 = vpop.f32.mrf.mxu0
        %v1633 = vadd.f32 0.0, %v1632
        %1634 = vmatmul.f32.gmra.mxu0 %v1423
        %v1635 = vpop.f32.mrf.mxu0
        %v1636 = vadd.f32 0.0, %v1635
        %1637 = vmatmul.f32.gmra.mxu0 %v1426
        %v1638 = vpop.f32.mrf.mxu0
        %v1639 = vadd.f32 0.0, %v1638
        %1640 = vmatmul.f32.gmra.mxu0 %v1429
        %v1641 = vpop.f32.mrf.mxu0
        %v1642 = vadd.f32 0.0, %v1641
        %1643 = vmatmul.f32.gmra.mxu0 %v1432
        %v1644 = vpop.f32.mrf.mxu0
        %v1645 = vadd.f32 0.0, %v1644
        %1646 = vmatmul.f32.gmra.mxu0 %v1435
        %v1647 = vpop.f32.mrf.mxu0
        %v1648 = vadd.f32 0.0, %v1647
        %1649 = vmatmul.f32.gmra.mxu0 %v1438
        %v1650 = vpop.f32.mrf.mxu0
        %v1651 = vadd.f32 0.0, %v1650
        %1652 = vmatmul.f32.gmra.mxu0 %v1441
        %v1653 = vpop.f32.mrf.mxu0
        %v1654 = vadd.f32 0.0, %v1653
        %1655 = vmatmul.f32.gmra.mxu0 %v1444
        %v1656 = vpop.f32.mrf.mxu0
        %v1657 = vadd.f32 0.0, %v1656
        %1658 = vmatmul.f32.gmra.mxu0 %v1447
        %v1659 = vpop.f32.mrf.mxu0
        %v1660 = vadd.f32 0.0, %v1659
        %1661 = vmatmul.f32.gmra.mxu0 %v1450
        %v1662 = vpop.f32.mrf.mxu0
        %v1663 = vadd.f32 0.0, %v1662
        %1664 = vmatmul.f32.gmra.mxu0 %v1453
        %v1665 = vpop.f32.mrf.mxu0
        %v1666 = vadd.f32 0.0, %v1665
        %1667 = vmatmul.f32.gmra.mxu0 %v1456
        %v1668 = vpop.f32.mrf.mxu0
        %v1669 = vadd.f32 0.0, %v1668
        %1670 = vmatmul.f32.gmra.mxu0 %v1459
        %v1671 = vpop.f32.mrf.mxu0
        %v1672 = vadd.f32 0.0, %v1671
        %1673 = vmatmul.f32.gmra.mxu0 %v1462
        %v1674 = vpop.f32.mrf.mxu0
        %v1675 = vadd.f32 0.0, %v1674
        %1676 = vmatmul.f32.gmra.mxu0 %v1465
        %v1677 = vpop.f32.mrf.mxu0
        %v1678 = vadd.f32 0.0, %v1677
        %1679 = vmatmul.f32.gmra.mxu0 %v1468
        %v1680 = vpop.f32.mrf.mxu0
        %v1681 = vadd.f32 0.0, %v1680
        %1682 = vmatmul.f32.gmra.mxu0 %v1471
        %v1683 = vpop.f32.mrf.mxu0
        %v1684 = vadd.f32 0.0, %v1683
        %1685 = vmatmul.f32.gmra.mxu0 %v1474
        %v1686 = vpop.f32.mrf.mxu0
        %v1687 = vadd.f32 0.0, %v1686
        %1688 = vmatmul.f32.gmra.mxu0 %v1477
        %v1689 = vpop.f32.mrf.mxu0
        %v1690 = vadd.f32 0.0, %v1689
        %1691 = vmatmul.f32.gmra.mxu0 %v1480
        %v1692 = vpop.f32.mrf.mxu0
        %v1693 = vadd.f32 0.0, %v1692
        %1694 = vmatmul.f32.gmra.mxu0 %v1483
        %v1695 = vpop.f32.mrf.mxu0
        %v1696 = vadd.f32 0.0, %v1695
        %1697 = vmatmul.f32.gmra.mxu0 %v1486
        %v1698 = vpop.f32.mrf.mxu0
        %v1699 = vadd.f32 0.0, %v1698
        %1700 = vmatmul.f32.gmra.mxu0 %v1489
        %v1701 = vpop.f32.mrf.mxu0
        %v1702 = vadd.f32 0.0, %v1701
        %1703 = vmatmul.f32.gmra.mxu0 %v1492
        %v1704 = vpop.f32.mrf.mxu0
        %v1705 = vadd.f32 0.0, %v1704
        %1706 = vmatmul.f32.gmra.mxu0 %v1495
        %v1707 = vpop.f32.mrf.mxu0
        %v1708 = vadd.f32 0.0, %v1707
        %1709 = vmatmul.f32.gmra.mxu0 %v1498
        %v1710 = vpop.f32.mrf.mxu0
        %v1711 = vadd.f32 0.0, %v1710
        %1712 = vmatmul.f32.gmra.mxu0 %v1501
        %v1713 = vpop.f32.mrf.mxu0
        %v1714 = vadd.f32 0.0, %v1713
        %1715 = vmatmul.f32.gmra.mxu0 %v1504
        %v1716 = vpop.f32.mrf.mxu0
        %v1717 = vadd.f32 0.0, %v1716
        %1718 = vmatmul.f32.gmra.mxu0 %v1507
        %v1719 = vpop.f32.mrf.mxu0
        %v1720 = vadd.f32 0.0, %v1719
        %1721 = vmatmul.f32.gmra.mxu0 %v1510
        %v1722 = vpop.f32.mrf.mxu0
        %v1723 = vadd.f32 0.0, %v1722
        %1724 = vmatmul.f32.gmra.mxu0 %v1513
        %v1725 = vpop.f32.mrf.mxu0
        %v1726 = vadd.f32 0.0, %v1725
        %1727 = vmatmul.f32.gmra.mxu0 %v1516
        %v1728 = vpop.f32.mrf.mxu0
        %v1729 = vadd.f32 0.0, %v1728
        %1730 = vmatmul.f32.gmra.mxu0 %v1519
        %v1731 = vpop.f32.mrf.mxu0
        %v1732 = vadd.f32 0.0, %v1731
        %1733 = vmatmul.f32.gmra.mxu0 %v1522
        %v1734 = vpop.f32.mrf.mxu0
        %v1735 = vadd.f32 0.0, %v1734
        %1736 = vdwg.mxu0
        %v1738 = vsel %vm1331, %v1073, 0
        %v1741 = vsel %vm1331, %v1075, 0
        %v1744 = vsel %vm1331, %v1077, 0
        %v1747 = vsel %vm1331, %v1079, 0
        %v1750 = vsel %vm1331, %v1081, 0
        %v1753 = vsel %vm1331, %v1083, 0
        %v1756 = vsel %vm1331, %v1085, 0
        %v1759 = vsel %vm1331, %v1087, 0
        %v1762 = vsel %vm1331, %v1089, 0
        %v1765 = vsel %vm1331, %v1091, 0
        %v1768 = vsel %vm1331, %v1093, 0
        %v1771 = vsel %vm1331, %v1095, 0
        %v1774 = vsel %vm1331, %v1097, 0
        %v1777 = vsel %vm1331, %v1099, 0
        %v1780 = vsel %vm1331, %v1101, 0
        %v1783 = vsel %vm1331, %v1103, 0
        %v1786 = vsel %vm1331, %v1105, 0
        %v1789 = vsel %vm1331, %v1107, 0
        %v1792 = vsel %vm1331, %v1109, 0
        %v1795 = vsel %vm1331, %v1111, 0
        %v1798 = vsel %vm1331, %v1113, 0
        %v1801 = vsel %vm1331, %v1115, 0
        %v1804 = vsel %vm1331, %v1117, 0
        %v1807 = vsel %vm1331, %v1119, 0
        %v1810 = vsel %vm1331, %v1121, 0
        %v1813 = vsel %vm1331, %v1123, 0
        %v1816 = vsel %vm1331, %v1125, 0
        %v1819 = vsel %vm1331, %v1127, 0
        %v1822 = vsel %vm1331, %v1129, 0
        %v1825 = vsel %vm1331, %v1131, 0
        %v1828 = vsel %vm1331, %v1133, 0
        %v1831 = vsel %vm1331, %v1135, 0
        %v1834 = vsel %vm1331, %v1137, 0
        %v1837 = vsel %vm1331, %v1139, 0
        %v1840 = vsel %vm1331, %v1141, 0
        %v1843 = vsel %vm1331, %v1143, 0
        %v1846 = vsel %vm1331, %v1145, 0
        %v1849 = vsel %vm1331, %v1147, 0
        %v1852 = vsel %vm1331, %v1149, 0
        %v1855 = vsel %vm1331, %v1151, 0
        %v1858 = vsel %vm1331, %v1153, 0
        %v1861 = vsel %vm1331, %v1155, 0
        %v1864 = vsel %vm1331, %v1157, 0
        %v1867 = vsel %vm1331, %v1159, 0
        %v1870 = vsel %vm1331, %v1161, 0
        %v1873 = vsel %vm1331, %v1163, 0
        %v1876 = vsel %vm1331, %v1165, 0
        %v1879 = vsel %vm1331, %v1167, 0
        %v1882 = vsel %vm1331, %v1169, 0
        %v1885 = vsel %vm1331, %v1171, 0
        %v1888 = vsel %vm1331, %v1173, 0
        %v1891 = vsel %vm1331, %v1175, 0
        %v1894 = vsel %vm1331, %v1177, 0
        %v1897 = vsel %vm1331, %v1179, 0
        %v1900 = vsel %vm1331, %v1181, 0
        %v1903 = vsel %vm1331, %v1183, 0
        %v1906 = vsel %vm1331, %v1185, 0
        %v1909 = vsel %vm1331, %v1187, 0
        %v1912 = vsel %vm1331, %v1189, 0
        %v1915 = vsel %vm1331, %v1191, 0
        %v1918 = vsel %vm1331, %v1193, 0
        %v1921 = vsel %vm1331, %v1195, 0
        %v1924 = vsel %vm1331, %v1197, 0
        %v1927 = vsel %vm1331, %v1199, 0
        %v1930 = vsel %vm1524, %v1200, 0
        %1932 = vmatpush.msra.mxu0 0.0
        %1933 = vmatpush.msra.mxu0 0.0
        %1934 = vmatpush.msra.mxu0 0.0
        %1935 = vmatpush.msra.mxu0 0.0
        %1936 = vmatpush.msra.mxu0 0.0
        %1937 = vmatpush.msra.mxu0 0.0
        %1938 = vmatpush.msra.mxu0 0.0
        %1939 = vmatpush.msra.mxu0 0.0
        %1940 = vmatpush.msra.mxu0 0.0
        %1941 = vmatpush.msra.mxu0 0.0
        %1942 = vmatpush.msra.mxu0 0.0
        %1943 = vmatpush.msra.mxu0 0.0
        %1944 = vmatpush.msra.mxu0 0.0
        %1945 = vmatpush.msra.mxu0 0.0
        %1946 = vmatpush.msra.mxu0 0.0
        %1947 = vmatpush.msra.mxu0 %v1930
        %1948 = vmatmul.f32.gmra.mxu0 %v1738
        %v1949 = vpop.f32.mrf.mxu0
        %v1950 = vadd.f32 %v1546, %v1949
        %1951 = vmatmul.f32.gmra.mxu0 %v1741
        %v1952 = vpop.f32.mrf.mxu0
        %v1953 = vadd.f32 %v1549, %v1952
        %1954 = vmatmul.f32.gmra.mxu0 %v1744
        %v1955 = vpop.f32.mrf.mxu0
        %v1956 = vadd.f32 %v1552, %v1955
        %1957 = vmatmul.f32.gmra.mxu0 %v1747
        %v1958 = vpop.f32.mrf.mxu0
        %v1959 = vadd.f32 %v1555, %v1958
        %1960 = vmatmul.f32.gmra.mxu0 %v1750
        %v1961 = vpop.f32.mrf.mxu0
        %v1962 = vadd.f32 %v1558, %v1961
        %1963 = vmatmul.f32.gmra.mxu0 %v1753
        %v1964 = vpop.f32.mrf.mxu0
        %v1965 = vadd.f32 %v1561, %v1964
        %1966 = vmatmul.f32.gmra.mxu0 %v1756
        %v1967 = vpop.f32.mrf.mxu0
        %v1968 = vadd.f32 %v1564, %v1967
        %1969 = vmatmul.f32.gmra.mxu0 %v1759
        %v1970 = vpop.f32.mrf.mxu0
        %v1971 = vadd.f32 %v1567, %v1970
        %1972 = vmatmul.f32.gmra.mxu0 %v1762
        %v1973 = vpop.f32.mrf.mxu0
        %v1974 = vadd.f32 %v1570, %v1973
        %1975 = vmatmul.f32.gmra.mxu0 %v1765
        %v1976 = vpop.f32.mrf.mxu0
        %v1977 = vadd.f32 %v1573, %v1976
        %1978 = vmatmul.f32.gmra.mxu0 %v1768
        %v1979 = vpop.f32.mrf.mxu0
        %v1980 = vadd.f32 %v1576, %v1979
        %1981 = vmatmul.f32.gmra.mxu0 %v1771
        %v1982 = vpop.f32.mrf.mxu0
        %v1983 = vadd.f32 %v1579, %v1982
        %1984 = vmatmul.f32.gmra.mxu0 %v1774
        %v1985 = vpop.f32.mrf.mxu0
        %v1986 = vadd.f32 %v1582, %v1985
        %1987 = vmatmul.f32.gmra.mxu0 %v1777
        %v1988 = vpop.f32.mrf.mxu0
        %v1989 = vadd.f32 %v1585, %v1988
        %1990 = vmatmul.f32.gmra.mxu0 %v1780
        %v1991 = vpop.f32.mrf.mxu0
        %v1992 = vadd.f32 %v1588, %v1991
        %1993 = vmatmul.f32.gmra.mxu0 %v1783
        %v1994 = vpop.f32.mrf.mxu0
        %v1995 = vadd.f32 %v1591, %v1994
        %1996 = vmatmul.f32.gmra.mxu0 %v1786
        %v1997 = vpop.f32.mrf.mxu0
        %v1998 = vadd.f32 %v1594, %v1997
        %1999 = vmatmul.f32.gmra.mxu0 %v1789
        %v2000 = vpop.f32.mrf.mxu0
        %v2001 = vadd.f32 %v1597, %v2000
        %2002 = vmatmul.f32.gmra.mxu0 %v1792
        %v2003 = vpop.f32.mrf.mxu0
        %v2004 = vadd.f32 %v1600, %v2003
        %2005 = vmatmul.f32.gmra.mxu0 %v1795
        %v2006 = vpop.f32.mrf.mxu0
        %v2007 = vadd.f32 %v1603, %v2006
        %2008 = vmatmul.f32.gmra.mxu0 %v1798
        %v2009 = vpop.f32.mrf.mxu0
        %v2010 = vadd.f32 %v1606, %v2009
        %2011 = vmatmul.f32.gmra.mxu0 %v1801
        %v2012 = vpop.f32.mrf.mxu0
        %v2013 = vadd.f32 %v1609, %v2012
        %2014 = vmatmul.f32.gmra.mxu0 %v1804
        %v2015 = vpop.f32.mrf.mxu0
        %v2016 = vadd.f32 %v1612, %v2015
        %2017 = vmatmul.f32.gmra.mxu0 %v1807
        %v2018 = vpop.f32.mrf.mxu0
        %v2019 = vadd.f32 %v1615, %v2018
        %2020 = vmatmul.f32.gmra.mxu0 %v1810
        %v2021 = vpop.f32.mrf.mxu0
        %v2022 = vadd.f32 %v1618, %v2021
        %2023 = vmatmul.f32.gmra.mxu0 %v1813
        %v2024 = vpop.f32.mrf.mxu0
        %v2025 = vadd.f32 %v1621, %v2024
        %2026 = vmatmul.f32.gmra.mxu0 %v1816
        %v2027 = vpop.f32.mrf.mxu0
        %v2028 = vadd.f32 %v1624, %v2027
        %2029 = vmatmul.f32.gmra.mxu0 %v1819
        %v2030 = vpop.f32.mrf.mxu0
        %v2031 = vadd.f32 %v1627, %v2030
        %2032 = vmatmul.f32.gmra.mxu0 %v1822
        %v2033 = vpop.f32.mrf.mxu0
        %v2034 = vadd.f32 %v1630, %v2033
        %2035 = vmatmul.f32.gmra.mxu0 %v1825
        %v2036 = vpop.f32.mrf.mxu0
        %v2037 = vadd.f32 %v1633, %v2036
        %2038 = vmatmul.f32.gmra.mxu0 %v1828
        %v2039 = vpop.f32.mrf.mxu0
        %v2040 = vadd.f32 %v1636, %v2039
        %2041 = vmatmul.f32.gmra.mxu0 %v1831
        %v2042 = vpop.f32.mrf.mxu0
        %v2043 = vadd.f32 %v1639, %v2042
        %2044 = vmatmul.f32.gmra.mxu0 %v1834
        %v2045 = vpop.f32.mrf.mxu0
        %v2046 = vadd.f32 %v1642, %v2045
        %2047 = vmatmul.f32.gmra.mxu0 %v1837
        %v2048 = vpop.f32.mrf.mxu0
        %v2049 = vadd.f32 %v1645, %v2048
        %2050 = vmatmul.f32.gmra.mxu0 %v1840
        %v2051 = vpop.f32.mrf.mxu0
        %v2052 = vadd.f32 %v1648, %v2051
        %2053 = vmatmul.f32.gmra.mxu0 %v1843
        %v2054 = vpop.f32.mrf.mxu0
        %v2055 = vadd.f32 %v1651, %v2054
        %2056 = vmatmul.f32.gmra.mxu0 %v1846
        %v2057 = vpop.f32.mrf.mxu0
        %v2058 = vadd.f32 %v1654, %v2057
        %2059 = vmatmul.f32.gmra.mxu0 %v1849
        %v2060 = vpop.f32.mrf.mxu0
        %v2061 = vadd.f32 %v1657, %v2060
        %2062 = vmatmul.f32.gmra.mxu0 %v1852
        %v2063 = vpop.f32.mrf.mxu0
        %v2064 = vadd.f32 %v1660, %v2063
        %2065 = vmatmul.f32.gmra.mxu0 %v1855
        %v2066 = vpop.f32.mrf.mxu0
        %v2067 = vadd.f32 %v1663, %v2066
        %2068 = vmatmul.f32.gmra.mxu0 %v1858
        %v2069 = vpop.f32.mrf.mxu0
        %v2070 = vadd.f32 %v1666, %v2069
        %2071 = vmatmul.f32.gmra.mxu0 %v1861
        %v2072 = vpop.f32.mrf.mxu0
        %v2073 = vadd.f32 %v1669, %v2072
        %2074 = vmatmul.f32.gmra.mxu0 %v1864
        %v2075 = vpop.f32.mrf.mxu0
        %v2076 = vadd.f32 %v1672, %v2075
        %2077 = vmatmul.f32.gmra.mxu0 %v1867
        %v2078 = vpop.f32.mrf.mxu0
        %v2079 = vadd.f32 %v1675, %v2078
        %2080 = vmatmul.f32.gmra.mxu0 %v1870
        %v2081 = vpop.f32.mrf.mxu0
        %v2082 = vadd.f32 %v1678, %v2081
        %2083 = vmatmul.f32.gmra.mxu0 %v1873
        %v2084 = vpop.f32.mrf.mxu0
        %v2085 = vadd.f32 %v1681, %v2084
        %2086 = vmatmul.f32.gmra.mxu0 %v1876
        %v2087 = vpop.f32.mrf.mxu0
        %v2088 = vadd.f32 %v1684, %v2087
        %2089 = vmatmul.f32.gmra.mxu0 %v1879
        %v2090 = vpop.f32.mrf.mxu0
        %v2091 = vadd.f32 %v1687, %v2090
        %2092 = vmatmul.f32.gmra.mxu0 %v1882
        %v2093 = vpop.f32.mrf.mxu0
        %v2094 = vadd.f32 %v1690, %v2093
        %2095 = vmatmul.f32.gmra.mxu0 %v1885
        %v2096 = vpop.f32.mrf.mxu0
        %v2097 = vadd.f32 %v1693, %v2096
        %2098 = vmatmul.f32.gmra.mxu0 %v1888
        %v2099 = vpop.f32.mrf.mxu0
        %v2100 = vadd.f32 %v1696, %v2099
        %2101 = vmatmul.f32.gmra.mxu0 %v1891
        %v2102 = vpop.f32.mrf.mxu0
        %v2103 = vadd.f32 %v1699, %v2102
        %2104 = vmatmul.f32.gmra.mxu0 %v1894
        %v2105 = vpop.f32.mrf.mxu0
        %v2106 = vadd.f32 %v1702, %v2105
        %2107 = vmatmul.f32.gmra.mxu0 %v1897
        %v2108 = vpop.f32.mrf.mxu0
        %v2109 = vadd.f32 %v1705, %v2108
        %2110 = vmatmul.f32.gmra.mxu0 %v1900
        %v2111 = vpop.f32.mrf.mxu0
        %v2112 = vadd.f32 %v1708, %v2111
        %2113 = vmatmul.f32.gmra.mxu0 %v1903
        %v2114 = vpop.f32.mrf.mxu0
        %v2115 = vadd.f32 %v1711, %v2114
        %2116 = vmatmul.f32.gmra.mxu0 %v1906
        %v2117 = vpop.f32.mrf.mxu0
        %v2118 = vadd.f32 %v1714, %v2117
        %2119 = vmatmul.f32.gmra.mxu0 %v1909
        %v2120 = vpop.f32.mrf.mxu0
        %v2121 = vadd.f32 %v1717, %v2120
        %2122 = vmatmul.f32.gmra.mxu0 %v1912
        %v2123 = vpop.f32.mrf.mxu0
        %v2124 = vadd.f32 %v1720, %v2123
        %2125 = vmatmul.f32.gmra.mxu0 %v1915
        %v2126 = vpop.f32.mrf.mxu0
        %v2127 = vadd.f32 %v1723, %v2126
        %2128 = vmatmul.f32.gmra.mxu0 %v1918
        %v2129 = vpop.f32.mrf.mxu0
        %v2130 = vadd.f32 %v1726, %v2129
        %2131 = vmatmul.f32.gmra.mxu0 %v1921
        %v2132 = vpop.f32.mrf.mxu0
        %v2133 = vadd.f32 %v1729, %v2132
        %2134 = vmatmul.f32.gmra.mxu0 %v1924
        %v2135 = vpop.f32.mrf.mxu0
        %v2136 = vadd.f32 %v1732, %v2135
        %2137 = vmatmul.f32.gmra.mxu0 %v1927
        %v2138 = vpop.f32.mrf.mxu0
        %v2139 = vadd.f32 %v1735, %v2138
        %2140 = vdwg.mxu0
        %s2141 = scalar_lea.vmem %s1072, 2
        %v2142 = vld [vmem:[%s2141] ss:$2 sm:$0xff]
        %s2143 = scalar_lea.vmem %s1072, 18
        %v2144 = vld [vmem:[%s2143] ss:$2 sm:$0xff]
        %s2145 = scalar_lea.vmem %s1072, 34
        %v2146 = vld [vmem:[%s2145] ss:$2 sm:$0xff]
        %s2147 = scalar_lea.vmem %s1072, 50
        %v2148 = vld [vmem:[%s2147] ss:$2 sm:$0xff]
        %s2149 = scalar_lea.vmem %s1072, 66
        %v2150 = vld [vmem:[%s2149] ss:$2 sm:$0xff]
        %s2151 = scalar_lea.vmem %s1072, 82
        %v2152 = vld [vmem:[%s2151] ss:$2 sm:$0xff]
        %s2153 = scalar_lea.vmem %s1072, 98
        %v2154 = vld [vmem:[%s2153] ss:$2 sm:$0xff]
        %s2155 = scalar_lea.vmem %s1072, 114
        %v2156 = vld [vmem:[%s2155] ss:$2 sm:$0xff]
        %s2157 = scalar_lea.vmem %s1072, 130
        %v2158 = vld [vmem:[%s2157] ss:$2 sm:$0xff]
        %s2159 = scalar_lea.vmem %s1072, 146
        %v2160 = vld [vmem:[%s2159] ss:$2 sm:$0xff]
        %s2161 = scalar_lea.vmem %s1072, 162
        %v2162 = vld [vmem:[%s2161] ss:$2 sm:$0xff]
        %s2163 = scalar_lea.vmem %s1072, 178
        %v2164 = vld [vmem:[%s2163] ss:$2 sm:$0xff]
        %s2165 = scalar_lea.vmem %s1072, 194
        %v2166 = vld [vmem:[%s2165] ss:$2 sm:$0xff]
        %s2167 = scalar_lea.vmem %s1072, 210
        %v2168 = vld [vmem:[%s2167] ss:$2 sm:$0xff]
        %s2169 = scalar_lea.vmem %s1072, 226
        %v2170 = vld [vmem:[%s2169] ss:$2 sm:$0xff]
        %s2171 = scalar_lea.vmem %s1072, 242
        %v2172 = vld [vmem:[%s2171] ss:$2 sm:$0xff]
        %s2173 = scalar_lea.vmem %s1072, 258
        %v2174 = vld [vmem:[%s2173] ss:$2 sm:$0xff]
        %s2175 = scalar_lea.vmem %s1072, 274
        %v2176 = vld [vmem:[%s2175] ss:$2 sm:$0xff]
        %s2177 = scalar_lea.vmem %s1072, 290
        %v2178 = vld [vmem:[%s2177] ss:$2 sm:$0xff]
        %s2179 = scalar_lea.vmem %s1072, 306
        %v2180 = vld [vmem:[%s2179] ss:$2 sm:$0xff]
        %s2181 = scalar_lea.vmem %s1072, 322
        %v2182 = vld [vmem:[%s2181] ss:$2 sm:$0xff]
        %s2183 = scalar_lea.vmem %s1072, 338
        %v2184 = vld [vmem:[%s2183] ss:$2 sm:$0xff]
        %s2185 = scalar_lea.vmem %s1072, 354
        %v2186 = vld [vmem:[%s2185] ss:$2 sm:$0xff]
        %s2187 = scalar_lea.vmem %s1072, 370
        %v2188 = vld [vmem:[%s2187] ss:$2 sm:$0xff]
        %s2189 = scalar_lea.vmem %s1072, 386
        %v2190 = vld [vmem:[%s2189] ss:$2 sm:$0xff]
        %s2191 = scalar_lea.vmem %s1072, 402
        %v2192 = vld [vmem:[%s2191] ss:$2 sm:$0xff]
        %s2193 = scalar_lea.vmem %s1072, 418
        %v2194 = vld [vmem:[%s2193] ss:$2 sm:$0xff]
        %s2195 = scalar_lea.vmem %s1072, 434
        %v2196 = vld [vmem:[%s2195] ss:$2 sm:$0xff]
        %s2197 = scalar_lea.vmem %s1072, 450
        %v2198 = vld [vmem:[%s2197] ss:$2 sm:$0xff]
        %s2199 = scalar_lea.vmem %s1072, 466
        %v2200 = vld [vmem:[%s2199] ss:$2 sm:$0xff]
        %s2201 = scalar_lea.vmem %s1072, 482
        %v2202 = vld [vmem:[%s2201] ss:$2 sm:$0xff]
        %s2203 = scalar_lea.vmem %s1072, 498
        %v2204 = vld [vmem:[%s2203] ss:$2 sm:$0xff]
        %s2205 = scalar_lea.vmem %s1072, 514
        %v2206 = vld [vmem:[%s2205] ss:$2 sm:$0xff]
        %s2207 = scalar_lea.vmem %s1072, 530
        %v2208 = vld [vmem:[%s2207] ss:$2 sm:$0xff]
        %s2209 = scalar_lea.vmem %s1072, 546
        %v2210 = vld [vmem:[%s2209] ss:$2 sm:$0xff]
        %s2211 = scalar_lea.vmem %s1072, 562
        %v2212 = vld [vmem:[%s2211] ss:$2 sm:$0xff]
        %s2213 = scalar_lea.vmem %s1072, 578
        %v2214 = vld [vmem:[%s2213] ss:$2 sm:$0xff]
        %s2215 = scalar_lea.vmem %s1072, 594
        %v2216 = vld [vmem:[%s2215] ss:$2 sm:$0xff]
        %s2217 = scalar_lea.vmem %s1072, 610
        %v2218 = vld [vmem:[%s2217] ss:$2 sm:$0xff]
        %s2219 = scalar_lea.vmem %s1072, 626
        %v2220 = vld [vmem:[%s2219] ss:$2 sm:$0xff]
        %s2221 = scalar_lea.vmem %s1072, 642
        %v2222 = vld [vmem:[%s2221] ss:$2 sm:$0xff]
        %s2223 = scalar_lea.vmem %s1072, 658
        %v2224 = vld [vmem:[%s2223] ss:$2 sm:$0xff]
        %s2225 = scalar_lea.vmem %s1072, 674
        %v2226 = vld [vmem:[%s2225] ss:$2 sm:$0xff]
        %s2227 = scalar_lea.vmem %s1072, 690
        %v2228 = vld [vmem:[%s2227] ss:$2 sm:$0xff]
        %s2229 = scalar_lea.vmem %s1072, 706
        %v2230 = vld [vmem:[%s2229] ss:$2 sm:$0xff]
        %s2231 = scalar_lea.vmem %s1072, 722
        %v2232 = vld [vmem:[%s2231] ss:$2 sm:$0xff]
        %s2233 = scalar_lea.vmem %s1072, 738
        %v2234 = vld [vmem:[%s2233] ss:$2 sm:$0xff]
        %s2235 = scalar_lea.vmem %s1072, 754
        %v2236 = vld [vmem:[%s2235] ss:$2 sm:$0xff]
        %s2237 = scalar_lea.vmem %s1072, 770
        %v2238 = vld [vmem:[%s2237] ss:$2 sm:$0xff]
        %s2239 = scalar_lea.vmem %s1072, 786
        %v2240 = vld [vmem:[%s2239] ss:$2 sm:$0xff]
        %s2241 = scalar_lea.vmem %s1072, 802
        %v2242 = vld [vmem:[%s2241] ss:$2 sm:$0xff]
        %s2243 = scalar_lea.vmem %s1072, 818
        %v2244 = vld [vmem:[%s2243] ss:$2 sm:$0xff]
        %s2245 = scalar_lea.vmem %s1072, 834
        %v2246 = vld [vmem:[%s2245] ss:$2 sm:$0xff]
        %s2247 = scalar_lea.vmem %s1072, 850
        %v2248 = vld [vmem:[%s2247] ss:$2 sm:$0xff]
        %s2249 = scalar_lea.vmem %s1072, 866
        %v2250 = vld [vmem:[%s2249] ss:$2 sm:$0xff]
        %s2251 = scalar_lea.vmem %s1072, 882
        %v2252 = vld [vmem:[%s2251] ss:$2 sm:$0xff]
        %s2253 = scalar_lea.vmem %s1072, 898
        %v2254 = vld [vmem:[%s2253] ss:$2 sm:$0xff]
        %s2255 = scalar_lea.vmem %s1072, 914
        %v2256 = vld [vmem:[%s2255] ss:$2 sm:$0xff]
        %s2257 = scalar_lea.vmem %s1072, 930
        %v2258 = vld [vmem:[%s2257] ss:$2 sm:$0xff]
        %s2259 = scalar_lea.vmem %s1072, 946
        %v2260 = vld [vmem:[%s2259] ss:$2 sm:$0xff]
        %s2261 = scalar_lea.vmem %s1072, 962
        %v2262 = vld [vmem:[%s2261] ss:$2 sm:$0xff]
        %s2263 = scalar_lea.vmem %s1072, 978
        %v2264 = vld [vmem:[%s2263] ss:$2 sm:$0xff]
        %s2265 = scalar_lea.vmem %s1072, 994
        %v2266 = vld [vmem:[%s2265] ss:$2 sm:$0xff]
        %s2267 = scalar_lea.vmem %s1072, 1010
        %v2268 = vld [vmem:[%s2267] ss:$2 sm:$0x7f]
        %s2269 = scalar_lea.vmem %s1, 4
        %v2270 = vld [vmem:[%s2269] sm:$0x3]
        %v2272 = vsel %vm1331, %v2142, 0
        %v2275 = vsel %vm1331, %v2144, 0
        %v2278 = vsel %vm1331, %v2146, 0
        %v2281 = vsel %vm1331, %v2148, 0
        %v2284 = vsel %vm1331, %v2150, 0
        %v2287 = vsel %vm1331, %v2152, 0
        %v2290 = vsel %vm1331, %v2154, 0
        %v2293 = vsel %vm1331, %v2156, 0
        %v2296 = vsel %vm1331, %v2158, 0
        %v2299 = vsel %vm1331, %v2160, 0
        %v2302 = vsel %vm1331, %v2162, 0
        %v2305 = vsel %vm1331, %v2164, 0
        %v2308 = vsel %vm1331, %v2166, 0
        %v2311 = vsel %vm1331, %v2168, 0
        %v2314 = vsel %vm1331, %v2170, 0
        %v2317 = vsel %vm1331, %v2172, 0
        %v2320 = vsel %vm1331, %v2174, 0
        %v2323 = vsel %vm1331, %v2176, 0
        %v2326 = vsel %vm1331, %v2178, 0
        %v2329 = vsel %vm1331, %v2180, 0
        %v2332 = vsel %vm1331, %v2182, 0
        %v2335 = vsel %vm1331, %v2184, 0
        %v2338 = vsel %vm1331, %v2186, 0
        %v2341 = vsel %vm1331, %v2188, 0
        %v2344 = vsel %vm1331, %v2190, 0
        %v2347 = vsel %vm1331, %v2192, 0
        %v2350 = vsel %vm1331, %v2194, 0
        %v2353 = vsel %vm1331, %v2196, 0
        %v2356 = vsel %vm1331, %v2198, 0
        %v2359 = vsel %vm1331, %v2200, 0
        %v2362 = vsel %vm1331, %v2202, 0
        %v2365 = vsel %vm1331, %v2204, 0
        %v2368 = vsel %vm1331, %v2206, 0
        %v2371 = vsel %vm1331, %v2208, 0
        %v2374 = vsel %vm1331, %v2210, 0
        %v2377 = vsel %vm1331, %v2212, 0
        %v2380 = vsel %vm1331, %v2214, 0
        %v2383 = vsel %vm1331, %v2216, 0
        %v2386 = vsel %vm1331, %v2218, 0
        %v2389 = vsel %vm1331, %v2220, 0
        %v2392 = vsel %vm1331, %v2222, 0
        %v2395 = vsel %vm1331, %v2224, 0
        %v2398 = vsel %vm1331, %v2226, 0
        %v2401 = vsel %vm1331, %v2228, 0
        %v2404 = vsel %vm1331, %v2230, 0
        %v2407 = vsel %vm1331, %v2232, 0
        %v2410 = vsel %vm1331, %v2234, 0
        %v2413 = vsel %vm1331, %v2236, 0
        %v2416 = vsel %vm1331, %v2238, 0
        %v2419 = vsel %vm1331, %v2240, 0
        %v2422 = vsel %vm1331, %v2242, 0
        %v2425 = vsel %vm1331, %v2244, 0
        %v2428 = vsel %vm1331, %v2246, 0
        %v2431 = vsel %vm1331, %v2248, 0
        %v2434 = vsel %vm1331, %v2250, 0
        %v2437 = vsel %vm1331, %v2252, 0
        %v2440 = vsel %vm1331, %v2254, 0
        %v2443 = vsel %vm1331, %v2256, 0
        %v2446 = vsel %vm1331, %v2258, 0
        %v2449 = vsel %vm1331, %v2260, 0
        %v2452 = vsel %vm1331, %v2262, 0
        %v2455 = vsel %vm1331, %v2264, 0
        %v2458 = vsel %vm1331, %v2266, 0
        %v2461 = vsel %vm1331, %v2268, 0
        %v2464 = vsel %vm1524, %v2270, 0
        %2466 = vmatpush.msra.mxu0 0.0
        %2467 = vmatpush.msra.mxu0 0.0
        %2468 = vmatpush.msra.mxu0 0.0
        %2469 = vmatpush.msra.mxu0 0.0
        %2470 = vmatpush.msra.mxu0 0.0
        %2471 = vmatpush.msra.mxu0 0.0
        %2472 = vmatpush.msra.mxu0 0.0
        %2473 = vmatpush.msra.mxu0 0.0
        %2474 = vmatpush.msra.mxu0 0.0
        %2475 = vmatpush.msra.mxu0 0.0
        %2476 = vmatpush.msra.mxu0 0.0
        %2477 = vmatpush.msra.mxu0 0.0
        %2478 = vmatpush.msra.mxu0 0.0
        %2479 = vmatpush.msra.mxu0 0.0
        %2480 = vmatpush.msra.mxu0 0.0
        %2481 = vmatpush.msra.mxu0 %v2464
        %2482 = vmatmul.f32.gmra.mxu0 %v2272
        %v2483 = vpop.f32.mrf.mxu0
        %v2484 = vadd.f32 0.0, %v2483
        %2485 = vmatmul.f32.gmra.mxu0 %v2275
        %v2486 = vpop.f32.mrf.mxu0
        %v2487 = vadd.f32 0.0, %v2486
        %2488 = vmatmul.f32.gmra.mxu0 %v2278
        %v2489 = vpop.f32.mrf.mxu0
        %v2490 = vadd.f32 0.0, %v2489
        %2491 = vmatmul.f32.gmra.mxu0 %v2281
        %v2492 = vpop.f32.mrf.mxu0
        %v2493 = vadd.f32 0.0, %v2492
        %2494 = vmatmul.f32.gmra.mxu0 %v2284
        %v2495 = vpop.f32.mrf.mxu0
        %v2496 = vadd.f32 0.0, %v2495
        %2497 = vmatmul.f32.gmra.mxu0 %v2287
        %v2498 = vpop.f32.mrf.mxu0
        %v2499 = vadd.f32 0.0, %v2498
        %2500 = vmatmul.f32.gmra.mxu0 %v2290
        %v2501 = vpop.f32.mrf.mxu0
        %v2502 = vadd.f32 0.0, %v2501
        %2503 = vmatmul.f32.gmra.mxu0 %v2293
        %v2504 = vpop.f32.mrf.mxu0
        %v2505 = vadd.f32 0.0, %v2504
        %2506 = vmatmul.f32.gmra.mxu0 %v2296
        %v2507 = vpop.f32.mrf.mxu0
        %v2508 = vadd.f32 0.0, %v2507
        %2509 = vmatmul.f32.gmra.mxu0 %v2299
        %v2510 = vpop.f32.mrf.mxu0
        %v2511 = vadd.f32 0.0, %v2510
        %2512 = vmatmul.f32.gmra.mxu0 %v2302
        %v2513 = vpop.f32.mrf.mxu0
        %v2514 = vadd.f32 0.0, %v2513
        %2515 = vmatmul.f32.gmra.mxu0 %v2305
        %v2516 = vpop.f32.mrf.mxu0
        %v2517 = vadd.f32 0.0, %v2516
        %2518 = vmatmul.f32.gmra.mxu0 %v2308
        %v2519 = vpop.f32.mrf.mxu0
        %v2520 = vadd.f32 0.0, %v2519
        %2521 = vmatmul.f32.gmra.mxu0 %v2311
        %v2522 = vpop.f32.mrf.mxu0
        %v2523 = vadd.f32 0.0, %v2522
        %2524 = vmatmul.f32.gmra.mxu0 %v2314
        %v2525 = vpop.f32.mrf.mxu0
        %v2526 = vadd.f32 0.0, %v2525
        %2527 = vmatmul.f32.gmra.mxu0 %v2317
        %v2528 = vpop.f32.mrf.mxu0
        %v2529 = vadd.f32 0.0, %v2528
        %2530 = vmatmul.f32.gmra.mxu0 %v2320
        %v2531 = vpop.f32.mrf.mxu0
        %v2532 = vadd.f32 0.0, %v2531
        %2533 = vmatmul.f32.gmra.mxu0 %v2323
        %v2534 = vpop.f32.mrf.mxu0
        %v2535 = vadd.f32 0.0, %v2534
        %2536 = vmatmul.f32.gmra.mxu0 %v2326
        %v2537 = vpop.f32.mrf.mxu0
        %v2538 = vadd.f32 0.0, %v2537
        %2539 = vmatmul.f32.gmra.mxu0 %v2329
        %v2540 = vpop.f32.mrf.mxu0
        %v2541 = vadd.f32 0.0, %v2540
        %2542 = vmatmul.f32.gmra.mxu0 %v2332
        %v2543 = vpop.f32.mrf.mxu0
        %v2544 = vadd.f32 0.0, %v2543
        %2545 = vmatmul.f32.gmra.mxu0 %v2335
        %v2546 = vpop.f32.mrf.mxu0
        %v2547 = vadd.f32 0.0, %v2546
        %2548 = vmatmul.f32.gmra.mxu0 %v2338
        %v2549 = vpop.f32.mrf.mxu0
        %v2550 = vadd.f32 0.0, %v2549
        %2551 = vmatmul.f32.gmra.mxu0 %v2341
        %v2552 = vpop.f32.mrf.mxu0
        %v2553 = vadd.f32 0.0, %v2552
        %2554 = vmatmul.f32.gmra.mxu0 %v2344
        %v2555 = vpop.f32.mrf.mxu0
        %v2556 = vadd.f32 0.0, %v2555
        %2557 = vmatmul.f32.gmra.mxu0 %v2347
        %v2558 = vpop.f32.mrf.mxu0
        %v2559 = vadd.f32 0.0, %v2558
        %2560 = vmatmul.f32.gmra.mxu0 %v2350
        %v2561 = vpop.f32.mrf.mxu0
        %v2562 = vadd.f32 0.0, %v2561
        %2563 = vmatmul.f32.gmra.mxu0 %v2353
        %v2564 = vpop.f32.mrf.mxu0
        %v2565 = vadd.f32 0.0, %v2564
        %2566 = vmatmul.f32.gmra.mxu0 %v2356
        %v2567 = vpop.f32.mrf.mxu0
        %v2568 = vadd.f32 0.0, %v2567
        %2569 = vmatmul.f32.gmra.mxu0 %v2359
        %v2570 = vpop.f32.mrf.mxu0
        %v2571 = vadd.f32 0.0, %v2570
        %2572 = vmatmul.f32.gmra.mxu0 %v2362
        %v2573 = vpop.f32.mrf.mxu0
        %v2574 = vadd.f32 0.0, %v2573
        %2575 = vmatmul.f32.gmra.mxu0 %v2365
        %v2576 = vpop.f32.mrf.mxu0
        %v2577 = vadd.f32 0.0, %v2576
        %2578 = vmatmul.f32.gmra.mxu0 %v2368
        %v2579 = vpop.f32.mrf.mxu0
        %v2580 = vadd.f32 0.0, %v2579
        %2581 = vmatmul.f32.gmra.mxu0 %v2371
        %v2582 = vpop.f32.mrf.mxu0
        %v2583 = vadd.f32 0.0, %v2582
        %2584 = vmatmul.f32.gmra.mxu0 %v2374
        %v2585 = vpop.f32.mrf.mxu0
        %v2586 = vadd.f32 0.0, %v2585
        %2587 = vmatmul.f32.gmra.mxu0 %v2377
        %v2588 = vpop.f32.mrf.mxu0
        %v2589 = vadd.f32 0.0, %v2588
        %2590 = vmatmul.f32.gmra.mxu0 %v2380
        %v2591 = vpop.f32.mrf.mxu0
        %v2592 = vadd.f32 0.0, %v2591
        %2593 = vmatmul.f32.gmra.mxu0 %v2383
        %v2594 = vpop.f32.mrf.mxu0
        %v2595 = vadd.f32 0.0, %v2594
        %2596 = vmatmul.f32.gmra.mxu0 %v2386
        %v2597 = vpop.f32.mrf.mxu0
        %v2598 = vadd.f32 0.0, %v2597
        %2599 = vmatmul.f32.gmra.mxu0 %v2389
        %v2600 = vpop.f32.mrf.mxu0
        %v2601 = vadd.f32 0.0, %v2600
        %2602 = vmatmul.f32.gmra.mxu0 %v2392
        %v2603 = vpop.f32.mrf.mxu0
        %v2604 = vadd.f32 0.0, %v2603
        %2605 = vmatmul.f32.gmra.mxu0 %v2395
        %v2606 = vpop.f32.mrf.mxu0
        %v2607 = vadd.f32 0.0, %v2606
        %2608 = vmatmul.f32.gmra.mxu0 %v2398
        %v2609 = vpop.f32.mrf.mxu0
        %v2610 = vadd.f32 0.0, %v2609
        %2611 = vmatmul.f32.gmra.mxu0 %v2401
        %v2612 = vpop.f32.mrf.mxu0
        %v2613 = vadd.f32 0.0, %v2612
        %2614 = vmatmul.f32.gmra.mxu0 %v2404
        %v2615 = vpop.f32.mrf.mxu0
        %v2616 = vadd.f32 0.0, %v2615
        %2617 = vmatmul.f32.gmra.mxu0 %v2407
        %v2618 = vpop.f32.mrf.mxu0
        %v2619 = vadd.f32 0.0, %v2618
        %2620 = vmatmul.f32.gmra.mxu0 %v2410
        %v2621 = vpop.f32.mrf.mxu0
        %v2622 = vadd.f32 0.0, %v2621
        %2623 = vmatmul.f32.gmra.mxu0 %v2413
        %v2624 = vpop.f32.mrf.mxu0
        %v2625 = vadd.f32 0.0, %v2624
        %2626 = vmatmul.f32.gmra.mxu0 %v2416
        %v2627 = vpop.f32.mrf.mxu0
        %v2628 = vadd.f32 0.0, %v2627
        %2629 = vmatmul.f32.gmra.mxu0 %v2419
        %v2630 = vpop.f32.mrf.mxu0
        %v2631 = vadd.f32 0.0, %v2630
        %2632 = vmatmul.f32.gmra.mxu0 %v2422
        %v2633 = vpop.f32.mrf.mxu0
        %v2634 = vadd.f32 0.0, %v2633
        %2635 = vmatmul.f32.gmra.mxu0 %v2425
        %v2636 = vpop.f32.mrf.mxu0
        %v2637 = vadd.f32 0.0, %v2636
        %2638 = vmatmul.f32.gmra.mxu0 %v2428
        %v2639 = vpop.f32.mrf.mxu0
        %v2640 = vadd.f32 0.0, %v2639
        %2641 = vmatmul.f32.gmra.mxu0 %v2431
        %v2642 = vpop.f32.mrf.mxu0
        %v2643 = vadd.f32 0.0, %v2642
        %2644 = vmatmul.f32.gmra.mxu0 %v2434
        %v2645 = vpop.f32.mrf.mxu0
        %v2646 = vadd.f32 0.0, %v2645
        %2647 = vmatmul.f32.gmra.mxu0 %v2437
        %v2648 = vpop.f32.mrf.mxu0
        %v2649 = vadd.f32 0.0, %v2648
        %2650 = vmatmul.f32.gmra.mxu0 %v2440
        %v2651 = vpop.f32.mrf.mxu0
        %v2652 = vadd.f32 0.0, %v2651
        %2653 = vmatmul.f32.gmra.mxu0 %v2443
        %v2654 = vpop.f32.mrf.mxu0
        %v2655 = vadd.f32 0.0, %v2654
        %2656 = vmatmul.f32.gmra.mxu0 %v2446
        %v2657 = vpop.f32.mrf.mxu0
        %v2658 = vadd.f32 0.0, %v2657
        %2659 = vmatmul.f32.gmra.mxu0 %v2449
        %v2660 = vpop.f32.mrf.mxu0
        %v2661 = vadd.f32 0.0, %v2660
        %2662 = vmatmul.f32.gmra.mxu0 %v2452
        %v2663 = vpop.f32.mrf.mxu0
        %v2664 = vadd.f32 0.0, %v2663
        %2665 = vmatmul.f32.gmra.mxu0 %v2455
        %v2666 = vpop.f32.mrf.mxu0
        %v2667 = vadd.f32 0.0, %v2666
        %2668 = vmatmul.f32.gmra.mxu0 %v2458
        %v2669 = vpop.f32.mrf.mxu0
        %v2670 = vadd.f32 0.0, %v2669
        %2671 = vmatmul.f32.gmra.mxu0 %v2461
        %v2672 = vpop.f32.mrf.mxu0
        %v2673 = vadd.f32 0.0, %v2672
        %2674 = vdwg.mxu0
        %v2675 = vadd.f32 %v1950, %v2484
        %v2676 = vadd.f32 %v1953, %v2487
        %v2677 = vadd.f32 %v1956, %v2490
        %v2678 = vadd.f32 %v1959, %v2493
        %v2679 = vadd.f32 %v1962, %v2496
        %v2680 = vadd.f32 %v1965, %v2499
        %v2681 = vadd.f32 %v1968, %v2502
        %v2682 = vadd.f32 %v1971, %v2505
        %v2683 = vadd.f32 %v1974, %v2508
        %v2684 = vadd.f32 %v1977, %v2511
        %v2685 = vadd.f32 %v1980, %v2514
        %v2686 = vadd.f32 %v1983, %v2517
        %v2687 = vadd.f32 %v1986, %v2520
        %v2688 = vadd.f32 %v1989, %v2523
        %v2689 = vadd.f32 %v1992, %v2526
        %v2690 = vadd.f32 %v1995, %v2529
        %v2691 = vadd.f32 %v1998, %v2532
        %v2692 = vadd.f32 %v2001, %v2535
        %v2693 = vadd.f32 %v2004, %v2538
        %v2694 = vadd.f32 %v2007, %v2541
        %v2695 = vadd.f32 %v2010, %v2544
        %v2696 = vadd.f32 %v2013, %v2547
        %v2697 = vadd.f32 %v2016, %v2550
        %v2698 = vadd.f32 %v2019, %v2553
        %v2699 = vadd.f32 %v2022, %v2556
        %v2700 = vadd.f32 %v2025, %v2559
        %v2701 = vadd.f32 %v2028, %v2562
        %v2702 = vadd.f32 %v2031, %v2565
        %v2703 = vadd.f32 %v2034, %v2568
        %v2704 = vadd.f32 %v2037, %v2571
        %v2705 = vadd.f32 %v2040, %v2574
        %v2706 = vadd.f32 %v2043, %v2577
        %v2707 = vadd.f32 %v2046, %v2580
        %v2708 = vadd.f32 %v2049, %v2583
        %v2709 = vadd.f32 %v2052, %v2586
        %v2710 = vadd.f32 %v2055, %v2589
        %v2711 = vadd.f32 %v2058, %v2592
        %v2712 = vadd.f32 %v2061, %v2595
        %v2713 = vadd.f32 %v2064, %v2598
        %v2714 = vadd.f32 %v2067, %v2601
        %v2715 = vadd.f32 %v2070, %v2604
        %v2716 = vadd.f32 %v2073, %v2607
        %v2717 = vadd.f32 %v2076, %v2610
        %v2718 = vadd.f32 %v2079, %v2613
        %v2719 = vadd.f32 %v2082, %v2616
        %v2720 = vadd.f32 %v2085, %v2619
        %v2721 = vadd.f32 %v2088, %v2622
        %v2722 = vadd.f32 %v2091, %v2625
        %v2723 = vadd.f32 %v2094, %v2628
        %v2724 = vadd.f32 %v2097, %v2631
        %v2725 = vadd.f32 %v2100, %v2634
        %v2726 = vadd.f32 %v2103, %v2637
        %v2727 = vadd.f32 %v2106, %v2640
        %v2728 = vadd.f32 %v2109, %v2643
        %v2729 = vadd.f32 %v2112, %v2646
        %v2730 = vadd.f32 %v2115, %v2649
        %v2731 = vadd.f32 %v2118, %v2652
        %v2732 = vadd.f32 %v2121, %v2655
        %v2733 = vadd.f32 %v2124, %v2658
        %v2734 = vadd.f32 %v2127, %v2661
        %v2735 = vadd.f32 %v2130, %v2664
        %v2736 = vadd.f32 %v2133, %v2667
        %v2737 = vadd.f32 %v2136, %v2670
        %v2738 = vadd.f32 %v2139, %v2673
        %v2739 = vld [vmem:[#allocation8] sm:$0x1]
        %v2741 = vperm.slane %v2739, 0
        %v2743 = vadd.f32 %v2675, %v2741
        %v2744 = vadd.f32 %v2676, %v2741
        %v2745 = vadd.f32 %v2677, %v2741
        %v2746 = vadd.f32 %v2678, %v2741
        %v2747 = vadd.f32 %v2679, %v2741
        %v2748 = vadd.f32 %v2680, %v2741
        %v2749 = vadd.f32 %v2681, %v2741
        %v2750 = vadd.f32 %v2682, %v2741
        %v2751 = vadd.f32 %v2683, %v2741
        %v2752 = vadd.f32 %v2684, %v2741
        %v2753 = vadd.f32 %v2685, %v2741
        %v2754 = vadd.f32 %v2686, %v2741
        %v2755 = vadd.f32 %v2687, %v2741
        %v2756 = vadd.f32 %v2688, %v2741
        %v2757 = vadd.f32 %v2689, %v2741
        %v2758 = vadd.f32 %v2690, %v2741
        %v2759 = vadd.f32 %v2691, %v2741
        %v2760 = vadd.f32 %v2692, %v2741
        %v2761 = vadd.f32 %v2693, %v2741
        %v2762 = vadd.f32 %v2694, %v2741
        %v2763 = vadd.f32 %v2695, %v2741
        %v2764 = vadd.f32 %v2696, %v2741
        %v2765 = vadd.f32 %v2697, %v2741
        %v2766 = vadd.f32 %v2698, %v2741
        %v2767 = vadd.f32 %v2699, %v2741
        %v2768 = vadd.f32 %v2700, %v2741
        %v2769 = vadd.f32 %v2701, %v2741
        %v2770 = vadd.f32 %v2702, %v2741
        %v2771 = vadd.f32 %v2703, %v2741
        %v2772 = vadd.f32 %v2704, %v2741
        %v2773 = vadd.f32 %v2705, %v2741
        %v2774 = vadd.f32 %v2706, %v2741
        %v2775 = vadd.f32 %v2707, %v2741
        %v2776 = vadd.f32 %v2708, %v2741
        %v2777 = vadd.f32 %v2709, %v2741
        %v2778 = vadd.f32 %v2710, %v2741
        %v2779 = vadd.f32 %v2711, %v2741
        %v2780 = vadd.f32 %v2712, %v2741
        %v2781 = vadd.f32 %v2713, %v2741
        %v2782 = vadd.f32 %v2714, %v2741
        %v2783 = vadd.f32 %v2715, %v2741
        %v2784 = vadd.f32 %v2716, %v2741
        %v2785 = vadd.f32 %v2717, %v2741
        %v2786 = vadd.f32 %v2718, %v2741
        %v2787 = vadd.f32 %v2719, %v2741
        %v2788 = vadd.f32 %v2720, %v2741
        %v2789 = vadd.f32 %v2721, %v2741
        %v2790 = vadd.f32 %v2722, %v2741
        %v2791 = vadd.f32 %v2723, %v2741
        %v2792 = vadd.f32 %v2724, %v2741
        %v2793 = vadd.f32 %v2725, %v2741
        %v2794 = vadd.f32 %v2726, %v2741
        %v2795 = vadd.f32 %v2727, %v2741
        %v2796 = vadd.f32 %v2728, %v2741
        %v2797 = vadd.f32 %v2729, %v2741
        %v2798 = vadd.f32 %v2730, %v2741
        %v2799 = vadd.f32 %v2731, %v2741
        %v2800 = vadd.f32 %v2732, %v2741
        %v2801 = vadd.f32 %v2733, %v2741
        %v2802 = vadd.f32 %v2734, %v2741
        %v2803 = vadd.f32 %v2735, %v2741
        %v2804 = vadd.f32 %v2736, %v2741
        %v2805 = vadd.f32 %v2737, %v2741
        %v2806 = vadd.f32 %v2738, %v2741
        %v2807 = vmax.f32 %v2743, 0.0
        %v2808 = vmax.f32 %v2744, 0.0
        %v2809 = vmax.f32 %v2745, 0.0
        %v2810 = vmax.f32 %v2746, 0.0
        %v2811 = vmax.f32 %v2747, 0.0
        %v2812 = vmax.f32 %v2748, 0.0
        %v2813 = vmax.f32 %v2749, 0.0
        %v2814 = vmax.f32 %v2750, 0.0
        %v2815 = vmax.f32 %v2751, 0.0
        %v2816 = vmax.f32 %v2752, 0.0
        %v2817 = vmax.f32 %v2753, 0.0
        %v2818 = vmax.f32 %v2754, 0.0
        %v2819 = vmax.f32 %v2755, 0.0
        %v2820 = vmax.f32 %v2756, 0.0
        %v2821 = vmax.f32 %v2757, 0.0
        %v2822 = vmax.f32 %v2758, 0.0
        %v2823 = vmax.f32 %v2759, 0.0
        %v2824 = vmax.f32 %v2760, 0.0
        %v2825 = vmax.f32 %v2761, 0.0
        %v2826 = vmax.f32 %v2762, 0.0
        %v2827 = vmax.f32 %v2763, 0.0
        %v2828 = vmax.f32 %v2764, 0.0
        %v2829 = vmax.f32 %v2765, 0.0
        %v2830 = vmax.f32 %v2766, 0.0
        %v2831 = vmax.f32 %v2767, 0.0
        %v2832 = vmax.f32 %v2768, 0.0
        %v2833 = vmax.f32 %v2769, 0.0
        %v2834 = vmax.f32 %v2770, 0.0
        %v2835 = vmax.f32 %v2771, 0.0
        %v2836 = vmax.f32 %v2772, 0.0
        %v2837 = vmax.f32 %v2773, 0.0
        %v2838 = vmax.f32 %v2774, 0.0
        %v2839 = vmax.f32 %v2775, 0.0
        %v2840 = vmax.f32 %v2776, 0.0
        %v2841 = vmax.f32 %v2777, 0.0
        %v2842 = vmax.f32 %v2778, 0.0
        %v2843 = vmax.f32 %v2779, 0.0
        %v2844 = vmax.f32 %v2780, 0.0
        %v2845 = vmax.f32 %v2781, 0.0
        %v2846 = vmax.f32 %v2782, 0.0
        %v2847 = vmax.f32 %v2783, 0.0
        %v2848 = vmax.f32 %v2784, 0.0
        %v2849 = vmax.f32 %v2785, 0.0
        %v2850 = vmax.f32 %v2786, 0.0
        %v2851 = vmax.f32 %v2787, 0.0
        %v2852 = vmax.f32 %v2788, 0.0
        %v2853 = vmax.f32 %v2789, 0.0
        %v2854 = vmax.f32 %v2790, 0.0
        %v2855 = vmax.f32 %v2791, 0.0
        %v2856 = vmax.f32 %v2792, 0.0
        %v2857 = vmax.f32 %v2793, 0.0
        %v2858 = vmax.f32 %v2794, 0.0
        %v2859 = vmax.f32 %v2795, 0.0
        %v2860 = vmax.f32 %v2796, 0.0
        %v2861 = vmax.f32 %v2797, 0.0
        %v2862 = vmax.f32 %v2798, 0.0
        %v2863 = vmax.f32 %v2799, 0.0
        %v2864 = vmax.f32 %v2800, 0.0
        %v2865 = vmax.f32 %v2801, 0.0
        %v2866 = vmax.f32 %v2802, 0.0
        %v2867 = vmax.f32 %v2803, 0.0
        %v2868 = vmax.f32 %v2804, 0.0
        %v2869 = vmax.f32 %v2805, 0.0
        %v2870 = vmax.f32 %v2806, 0.0
        %vm2871 = vcmask 23552
        %2872 = vst.msk [vmem:[#allocation2] sm:$0xff] %vm2871, %v2807
        %2873 = vst.msk [vmem:[#allocation2 + $0x8] sm:$0xff] %vm2871, %v2808
        %2874 = vst.msk [vmem:[#allocation2 + $0x10] sm:$0xff] %vm2871, %v2809
        %2875 = vst.msk [vmem:[#allocation2 + $0x18] sm:$0xff] %vm2871, %v2810
        %2876 = vst.msk [vmem:[#allocation2 + $0x20] sm:$0xff] %vm2871, %v2811
        %2877 = vst.msk [vmem:[#allocation2 + $0x28] sm:$0xff] %vm2871, %v2812
        %2878 = vst.msk [vmem:[#allocation2 + $0x30] sm:$0xff] %vm2871, %v2813
        %2879 = vst.msk [vmem:[#allocation2 + $0x38] sm:$0xff] %vm2871, %v2814
        %2880 = vst.msk [vmem:[#allocation2 + $0x40] sm:$0xff] %vm2871, %v2815
        %2881 = vst.msk [vmem:[#allocation2 + $0x48] sm:$0xff] %vm2871, %v2816
        %2882 = vst.msk [vmem:[#allocation2 + $0x50] sm:$0xff] %vm2871, %v2817
        %2883 = vst.msk [vmem:[#allocation2 + $0x58] sm:$0xff] %vm2871, %v2818
        %2884 = vst.msk [vmem:[#allocation2 + $0x60] sm:$0xff] %vm2871, %v2819
        %2885 = vst.msk [vmem:[#allocation2 + $0x68] sm:$0xff] %vm2871, %v2820
        %2886 = vst.msk [vmem:[#allocation2 + $0x70] sm:$0xff] %vm2871, %v2821
        %2887 = vst.msk [vmem:[#allocation2 + $0x78] sm:$0xff] %vm2871, %v2822
        %2888 = vst.msk [vmem:[#allocation2 + $0x80] sm:$0xff] %vm2871, %v2823
        %2889 = vst.msk [vmem:[#allocation2 + $0x88] sm:$0xff] %vm2871, %v2824
        %2890 = vst.msk [vmem:[#allocation2 + $0x90] sm:$0xff] %vm2871, %v2825
        %2891 = vst.msk [vmem:[#allocation2 + $0x98] sm:$0xff] %vm2871, %v2826
        %2892 = vst.msk [vmem:[#allocation2 + $0xa0] sm:$0xff] %vm2871, %v2827
        %2893 = vst.msk [vmem:[#allocation2 + $0xa8] sm:$0xff] %vm2871, %v2828
        %2894 = vst.msk [vmem:[#allocation2 + $0xb0] sm:$0xff] %vm2871, %v2829
        %2895 = vst.msk [vmem:[#allocation2 + $0xb8] sm:$0xff] %vm2871, %v2830
        %2896 = vst.msk [vmem:[#allocation2 + $0xc0] sm:$0xff] %vm2871, %v2831
        %2897 = vst.msk [vmem:[#allocation2 + $0xc8] sm:$0xff] %vm2871, %v2832
        %2898 = vst.msk [vmem:[#allocation2 + $0xd0] sm:$0xff] %vm2871, %v2833
        %2899 = vst.msk [vmem:[#allocation2 + $0xd8] sm:$0xff] %vm2871, %v2834
        %2900 = vst.msk [vmem:[#allocation2 + $0xe0] sm:$0xff] %vm2871, %v2835
        %2901 = vst.msk [vmem:[#allocation2 + $0xe8] sm:$0xff] %vm2871, %v2836
        %2902 = vst.msk [vmem:[#allocation2 + $0xf0] sm:$0xff] %vm2871, %v2837
        %2903 = vst.msk [vmem:[#allocation2 + $0xf8] sm:$0xff] %vm2871, %v2838
        %2904 = vst.msk [vmem:[#allocation2 + $0x100] sm:$0xff] %vm2871, %v2839
        %2905 = vst.msk [vmem:[#allocation2 + $0x108] sm:$0xff] %vm2871, %v2840
        %2906 = vst.msk [vmem:[#allocation2 + $0x110] sm:$0xff] %vm2871, %v2841
        %2907 = vst.msk [vmem:[#allocation2 + $0x118] sm:$0xff] %vm2871, %v2842
        %2908 = vst.msk [vmem:[#allocation2 + $0x120] sm:$0xff] %vm2871, %v2843
        %2909 = vst.msk [vmem:[#allocation2 + $0x128] sm:$0xff] %vm2871, %v2844
        %2910 = vst.msk [vmem:[#allocation2 + $0x130] sm:$0xff] %vm2871, %v2845
        %2911 = vst.msk [vmem:[#allocation2 + $0x138] sm:$0xff] %vm2871, %v2846
        %2912 = vst.msk [vmem:[#allocation2 + $0x140] sm:$0xff] %vm2871, %v2847
        %2913 = vst.msk [vmem:[#allocation2 + $0x148] sm:$0xff] %vm2871, %v2848
        %2914 = vst.msk [vmem:[#allocation2 + $0x150] sm:$0xff] %vm2871, %v2849
        %2915 = vst.msk [vmem:[#allocation2 + $0x158] sm:$0xff] %vm2871, %v2850
        %2916 = vst.msk [vmem:[#allocation2 + $0x160] sm:$0xff] %vm2871, %v2851
        %2917 = vst.msk [vmem:[#allocation2 + $0x168] sm:$0xff] %vm2871, %v2852
        %2918 = vst.msk [vmem:[#allocation2 + $0x170] sm:$0xff] %vm2871, %v2853
        %2919 = vst.msk [vmem:[#allocation2 + $0x178] sm:$0xff] %vm2871, %v2854
        %2920 = vst.msk [vmem:[#allocation2 + $0x180] sm:$0xff] %vm2871, %v2855
        %2921 = vst.msk [vmem:[#allocation2 + $0x188] sm:$0xff] %vm2871, %v2856
        %2922 = vst.msk [vmem:[#allocation2 + $0x190] sm:$0xff] %vm2871, %v2857
        %2923 = vst.msk [vmem:[#allocation2 + $0x198] sm:$0xff] %vm2871, %v2858
        %2924 = vst.msk [vmem:[#allocation2 + $0x1a0] sm:$0xff] %vm2871, %v2859
        %2925 = vst.msk [vmem:[#allocation2 + $0x1a8] sm:$0xff] %vm2871, %v2860
        %2926 = vst.msk [vmem:[#allocation2 + $0x1b0] sm:$0xff] %vm2871, %v2861
        %2927 = vst.msk [vmem:[#allocation2 + $0x1b8] sm:$0xff] %vm2871, %v2862
        %2928 = vst.msk [vmem:[#allocation2 + $0x1c0] sm:$0xff] %vm2871, %v2863
        %2929 = vst.msk [vmem:[#allocation2 + $0x1c8] sm:$0xff] %vm2871, %v2864
        %2930 = vst.msk [vmem:[#allocation2 + $0x1d0] sm:$0xff] %vm2871, %v2865
        %2931 = vst.msk [vmem:[#allocation2 + $0x1d8] sm:$0xff] %vm2871, %v2866
        %2932 = vst.msk [vmem:[#allocation2 + $0x1e0] sm:$0xff] %vm2871, %v2867
        %2933 = vst.msk [vmem:[#allocation2 + $0x1e8] sm:$0xff] %vm2871, %v2868
        %2934 = vst.msk [vmem:[#allocation2 + $0x1f0] sm:$0xff] %vm2871, %v2869
        %vm2935 = vcmask 22528
        %2936 = vst.msk [vmem:[#allocation2 + $0x1f8] sm:$0x7f] %vm2935, %v2870
        %v2937 = vld [vmem:[#allocation2] ss:$2 sm:$0xff]
        %s2938 = scalar_lea.vmem [#allocation2], 16
        %v2939 = vld [vmem:[%s2938] ss:$2 sm:$0xff]
        %s2940 = scalar_lea.vmem [#allocation2], 32
        %v2941 = vld [vmem:[%s2940] ss:$2 sm:$0xff]
        %s2942 = scalar_lea.vmem [#allocation2], 48
        %v2943 = vld [vmem:[%s2942] ss:$2 sm:$0xff]
        %s2944 = scalar_lea.vmem [#allocation2], 64
        %v2945 = vld [vmem:[%s2944] ss:$2 sm:$0xff]
        %s2946 = scalar_lea.vmem [#allocation2], 80
        %v2947 = vld [vmem:[%s2946] ss:$2 sm:$0xff]
        %s2948 = scalar_lea.vmem [#allocation2], 96
        %v2949 = vld [vmem:[%s2948] ss:$2 sm:$0xff]
        %s2950 = scalar_lea.vmem [#allocation2], 112
        %v2951 = vld [vmem:[%s2950] ss:$2 sm:$0xff]
        %s2952 = scalar_lea.vmem [#allocation2], 128
        %v2953 = vld [vmem:[%s2952] ss:$2 sm:$0xff]
        %s2954 = scalar_lea.vmem [#allocation2], 144
        %v2955 = vld [vmem:[%s2954] ss:$2 sm:$0xff]
        %s2956 = scalar_lea.vmem [#allocation2], 160
        %v2957 = vld [vmem:[%s2956] ss:$2 sm:$0xff]
        %s2958 = scalar_lea.vmem [#allocation2], 176
        %v2959 = vld [vmem:[%s2958] ss:$2 sm:$0xff]
        %s2960 = scalar_lea.vmem [#allocation2], 192
        %v2961 = vld [vmem:[%s2960] ss:$2 sm:$0xff]
        %s2962 = scalar_lea.vmem [#allocation2], 208
        %v2963 = vld [vmem:[%s2962] ss:$2 sm:$0xff]
        %s2964 = scalar_lea.vmem [#allocation2], 224
        %v2965 = vld [vmem:[%s2964] ss:$2 sm:$0xff]
        %s2966 = scalar_lea.vmem [#allocation2], 240
        %v2967 = vld [vmem:[%s2966] ss:$2 sm:$0xff]
        %s2968 = scalar_lea.vmem [#allocation2], 256
        %v2969 = vld [vmem:[%s2968] ss:$2 sm:$0xff]
        %s2970 = scalar_lea.vmem [#allocation2], 272
        %v2971 = vld [vmem:[%s2970] ss:$2 sm:$0xff]
        %s2972 = scalar_lea.vmem [#allocation2], 288
        %v2973 = vld [vmem:[%s2972] ss:$2 sm:$0xff]
        %s2974 = scalar_lea.vmem [#allocation2], 304
        %v2975 = vld [vmem:[%s2974] ss:$2 sm:$0xff]
        %s2976 = scalar_lea.vmem [#allocation2], 320
        %v2977 = vld [vmem:[%s2976] ss:$2 sm:$0xff]
        %s2978 = scalar_lea.vmem [#allocation2], 336
        %v2979 = vld [vmem:[%s2978] ss:$2 sm:$0xff]
        %s2980 = scalar_lea.vmem [#allocation2], 352
        %v2981 = vld [vmem:[%s2980] ss:$2 sm:$0xff]
        %s2982 = scalar_lea.vmem [#allocation2], 368
        %v2983 = vld [vmem:[%s2982] ss:$2 sm:$0xff]
        %s2984 = scalar_lea.vmem [#allocation2], 384
        %v2985 = vld [vmem:[%s2984] ss:$2 sm:$0xff]
        %s2986 = scalar_lea.vmem [#allocation2], 400
        %v2987 = vld [vmem:[%s2986] ss:$2 sm:$0xff]
        %s2988 = scalar_lea.vmem [#allocation2], 416
        %v2989 = vld [vmem:[%s2988] ss:$2 sm:$0xff]
        %s2990 = scalar_lea.vmem [#allocation2], 432
        %v2991 = vld [vmem:[%s2990] ss:$2 sm:$0xff]
        %s2992 = scalar_lea.vmem [#allocation2], 448
        %v2993 = vld [vmem:[%s2992] ss:$2 sm:$0xff]
        %s2994 = scalar_lea.vmem [#allocation2], 464
        %v2995 = vld [vmem:[%s2994] ss:$2 sm:$0xff]
        %s2996 = scalar_lea.vmem [#allocation2], 480
        %v2997 = vld [vmem:[%s2996] ss:$2 sm:$0xff]
        %s2998 = scalar_lea.vmem [#allocation2], 496
        %v2999 = vld [vmem:[%s2998] ss:$2 sm:$0x7f]
        %v3000 = vld [vmem:[#allocation11] sm:$0x7]
        %s3001 = scalar_lea.vmem [#allocation2], 1
        %v3002 = vld [vmem:[%s3001] ss:$2 sm:$0xff]
        %s3003 = scalar_lea.vmem [#allocation2], 17
        %v3004 = vld [vmem:[%s3003] ss:$2 sm:$0xff]
        %s3005 = scalar_lea.vmem [#allocation2], 33
        %v3006 = vld [vmem:[%s3005] ss:$2 sm:$0xff]
        %s3007 = scalar_lea.vmem [#allocation2], 49
        %v3008 = vld [vmem:[%s3007] ss:$2 sm:$0xff]
        %s3009 = scalar_lea.vmem [#allocation2], 65
        %v3010 = vld [vmem:[%s3009] ss:$2 sm:$0xff]
        %s3011 = scalar_lea.vmem [#allocation2], 81
        %v3012 = vld [vmem:[%s3011] ss:$2 sm:$0xff]
        %s3013 = scalar_lea.vmem [#allocation2], 97
        %v3014 = vld [vmem:[%s3013] ss:$2 sm:$0xff]
        %s3015 = scalar_lea.vmem [#allocation2], 113
        %v3016 = vld [vmem:[%s3015] ss:$2 sm:$0xff]
        %s3017 = scalar_lea.vmem [#allocation2], 129
        %v3018 = vld [vmem:[%s3017] ss:$2 sm:$0xff]
        %s3019 = scalar_lea.vmem [#allocation2], 145
        %v3020 = vld [vmem:[%s3019] ss:$2 sm:$0xff]
        %s3021 = scalar_lea.vmem [#allocation2], 161
        %v3022 = vld [vmem:[%s3021] ss:$2 sm:$0xff]
        %s3023 = scalar_lea.vmem [#allocation2], 177
        %v3024 = vld [vmem:[%s3023] ss:$2 sm:$0xff]
        %s3025 = scalar_lea.vmem [#allocation2], 193
        %v3026 = vld [vmem:[%s3025] ss:$2 sm:$0xff]
        %s3027 = scalar_lea.vmem [#allocation2], 209
        %v3028 = vld [vmem:[%s3027] ss:$2 sm:$0xff]
        %s3029 = scalar_lea.vmem [#allocation2], 225
        %v3030 = vld [vmem:[%s3029] ss:$2 sm:$0xff]
        %s3031 = scalar_lea.vmem [#allocation2], 241
        %v3032 = vld [vmem:[%s3031] ss:$2 sm:$0xff]
        %s3033 = scalar_lea.vmem [#allocation2], 257
        %v3034 = vld [vmem:[%s3033] ss:$2 sm:$0xff]
        %s3035 = scalar_lea.vmem [#allocation2], 273
        %v3036 = vld [vmem:[%s3035] ss:$2 sm:$0xff]
        %s3037 = scalar_lea.vmem [#allocation2], 289
        %v3038 = vld [vmem:[%s3037] ss:$2 sm:$0xff]
        %s3039 = scalar_lea.vmem [#allocation2], 305
        %v3040 = vld [vmem:[%s3039] ss:$2 sm:$0xff]
        %s3041 = scalar_lea.vmem [#allocation2], 321
        %v3042 = vld [vmem:[%s3041] ss:$2 sm:$0xff]
        %s3043 = scalar_lea.vmem [#allocation2], 337
        %v3044 = vld [vmem:[%s3043] ss:$2 sm:$0xff]
        %s3045 = scalar_lea.vmem [#allocation2], 353
        %v3046 = vld [vmem:[%s3045] ss:$2 sm:$0xff]
        %s3047 = scalar_lea.vmem [#allocation2], 369
        %v3048 = vld [vmem:[%s3047] ss:$2 sm:$0xff]
        %s3049 = scalar_lea.vmem [#allocation2], 385
        %v3050 = vld [vmem:[%s3049] ss:$2 sm:$0xff]
        %s3051 = scalar_lea.vmem [#allocation2], 401
        %v3052 = vld [vmem:[%s3051] ss:$2 sm:$0xff]
        %s3053 = scalar_lea.vmem [#allocation2], 417
        %v3054 = vld [vmem:[%s3053] ss:$2 sm:$0xff]
        %s3055 = scalar_lea.vmem [#allocation2], 433
        %v3056 = vld [vmem:[%s3055] ss:$2 sm:$0xff]
        %s3057 = scalar_lea.vmem [#allocation2], 449
        %v3058 = vld [vmem:[%s3057] ss:$2 sm:$0xff]
        %s3059 = scalar_lea.vmem [#allocation2], 465
        %v3060 = vld [vmem:[%s3059] ss:$2 sm:$0xff]
        %s3061 = scalar_lea.vmem [#allocation2], 481
        %v3062 = vld [vmem:[%s3061] ss:$2 sm:$0xff]
        %s3063 = scalar_lea.vmem [#allocation2], 497
        %v3064 = vld [vmem:[%s3063] ss:$2 sm:$0x7f]
        %s3065 = scalar_lea.vmem [#allocation11], 4
        %v3066 = vld [vmem:[%s3065] sm:$0x7]
        %v3068 = vsel %vm2871, %v3002, 0
        %v3071 = vsel %vm2871, %v3004, 0
        %v3074 = vsel %vm2871, %v3006, 0
        %v3077 = vsel %vm2871, %v3008, 0
        %v3080 = vsel %vm2871, %v3010, 0
        %v3083 = vsel %vm2871, %v3012, 0
        %v3086 = vsel %vm2871, %v3014, 0
        %v3089 = vsel %vm2871, %v3016, 0
        %v3092 = vsel %vm2871, %v3018, 0
        %v3095 = vsel %vm2871, %v3020, 0
        %v3098 = vsel %vm2871, %v3022, 0
        %v3101 = vsel %vm2871, %v3024, 0
        %v3104 = vsel %vm2871, %v3026, 0
        %v3107 = vsel %vm2871, %v3028, 0
        %v3110 = vsel %vm2871, %v3030, 0
        %v3113 = vsel %vm2871, %v3032, 0
        %v3116 = vsel %vm2871, %v3034, 0
        %v3119 = vsel %vm2871, %v3036, 0
        %v3122 = vsel %vm2871, %v3038, 0
        %v3125 = vsel %vm2871, %v3040, 0
        %v3128 = vsel %vm2871, %v3042, 0
        %v3131 = vsel %vm2871, %v3044, 0
        %v3134 = vsel %vm2871, %v3046, 0
        %v3137 = vsel %vm2871, %v3048, 0
        %v3140 = vsel %vm2871, %v3050, 0
        %v3143 = vsel %vm2871, %v3052, 0
        %v3146 = vsel %vm2871, %v3054, 0
        %v3149 = vsel %vm2871, %v3056, 0
        %v3152 = vsel %vm2871, %v3058, 0
        %v3155 = vsel %vm2871, %v3060, 0
        %v3158 = vsel %vm2871, %v3062, 0
        %v3161 = vsel %vm2871, %v3064, 0
        %vm3163 = vcmask 1042432
        %v3165 = vsel %vm3163, %v3066, 0
        %3167 = vmatpush.msra.mxu0 0.0
        %3168 = vmatpush.msra.mxu0 0.0
        %3169 = vmatpush.msra.mxu0 0.0
        %3170 = vmatpush.msra.mxu0 0.0
        %3171 = vmatpush.msra.mxu0 0.0
        %3172 = vmatpush.msra.mxu0 0.0
        %3173 = vmatpush.msra.mxu0 0.0
        %3174 = vmatpush.msra.mxu0 0.0
        %3175 = vmatpush.msra.mxu0 0.0
        %3176 = vmatpush.msra.mxu0 0.0
        %3177 = vmatpush.msra.mxu0 0.0
        %3178 = vmatpush.msra.mxu0 0.0
        %3179 = vmatpush.msra.mxu0 0.0
        %3180 = vmatpush.msra.mxu0 0.0
        %3181 = vmatpush.msra.mxu0 0.0
        %3182 = vmatpush.msra.mxu0 %v3165
        %3183 = vmatmul.f32.gmra.mxu0 %v3068
        %v3184 = vpop.f32.mrf.mxu0
        %v3185 = vadd.f32 0.0, %v3184
        %3186 = vmatmul.f32.gmra.mxu0 %v3071
        %v3187 = vpop.f32.mrf.mxu0
        %v3188 = vadd.f32 0.0, %v3187
        %3189 = vmatmul.f32.gmra.mxu0 %v3074
        %v3190 = vpop.f32.mrf.mxu0
        %v3191 = vadd.f32 0.0, %v3190
        %3192 = vmatmul.f32.gmra.mxu0 %v3077
        %v3193 = vpop.f32.mrf.mxu0
        %v3194 = vadd.f32 0.0, %v3193
        %3195 = vmatmul.f32.gmra.mxu0 %v3080
        %v3196 = vpop.f32.mrf.mxu0
        %v3197 = vadd.f32 0.0, %v3196
        %3198 = vmatmul.f32.gmra.mxu0 %v3083
        %v3199 = vpop.f32.mrf.mxu0
        %v3200 = vadd.f32 0.0, %v3199
        %3201 = vmatmul.f32.gmra.mxu0 %v3086
        %v3202 = vpop.f32.mrf.mxu0
        %v3203 = vadd.f32 0.0, %v3202
        %3204 = vmatmul.f32.gmra.mxu0 %v3089
        %v3205 = vpop.f32.mrf.mxu0
        %v3206 = vadd.f32 0.0, %v3205
        %3207 = vmatmul.f32.gmra.mxu0 %v3092
        %v3208 = vpop.f32.mrf.mxu0
        %v3209 = vadd.f32 0.0, %v3208
        %3210 = vmatmul.f32.gmra.mxu0 %v3095
        %v3211 = vpop.f32.mrf.mxu0
        %v3212 = vadd.f32 0.0, %v3211
        %3213 = vmatmul.f32.gmra.mxu0 %v3098
        %v3214 = vpop.f32.mrf.mxu0
        %v3215 = vadd.f32 0.0, %v3214
        %3216 = vmatmul.f32.gmra.mxu0 %v3101
        %v3217 = vpop.f32.mrf.mxu0
        %v3218 = vadd.f32 0.0, %v3217
        %3219 = vmatmul.f32.gmra.mxu0 %v3104
        %v3220 = vpop.f32.mrf.mxu0
        %v3221 = vadd.f32 0.0, %v3220
        %3222 = vmatmul.f32.gmra.mxu0 %v3107
        %v3223 = vpop.f32.mrf.mxu0
        %v3224 = vadd.f32 0.0, %v3223
        %3225 = vmatmul.f32.gmra.mxu0 %v3110
        %v3226 = vpop.f32.mrf.mxu0
        %v3227 = vadd.f32 0.0, %v3226
        %3228 = vmatmul.f32.gmra.mxu0 %v3113
        %v3229 = vpop.f32.mrf.mxu0
        %v3230 = vadd.f32 0.0, %v3229
        %3231 = vmatmul.f32.gmra.mxu0 %v3116
        %v3232 = vpop.f32.mrf.mxu0
        %v3233 = vadd.f32 0.0, %v3232
        %3234 = vmatmul.f32.gmra.mxu0 %v3119
        %v3235 = vpop.f32.mrf.mxu0
        %v3236 = vadd.f32 0.0, %v3235
        %3237 = vmatmul.f32.gmra.mxu0 %v3122
        %v3238 = vpop.f32.mrf.mxu0
        %v3239 = vadd.f32 0.0, %v3238
        %3240 = vmatmul.f32.gmra.mxu0 %v3125
        %v3241 = vpop.f32.mrf.mxu0
        %v3242 = vadd.f32 0.0, %v3241
        %3243 = vmatmul.f32.gmra.mxu0 %v3128
        %v3244 = vpop.f32.mrf.mxu0
        %v3245 = vadd.f32 0.0, %v3244
        %3246 = vmatmul.f32.gmra.mxu0 %v3131
        %v3247 = vpop.f32.mrf.mxu0
        %v3248 = vadd.f32 0.0, %v3247
        %3249 = vmatmul.f32.gmra.mxu0 %v3134
        %v3250 = vpop.f32.mrf.mxu0
        %v3251 = vadd.f32 0.0, %v3250
        %3252 = vmatmul.f32.gmra.mxu0 %v3137
        %v3253 = vpop.f32.mrf.mxu0
        %v3254 = vadd.f32 0.0, %v3253
        %3255 = vmatmul.f32.gmra.mxu0 %v3140
        %v3256 = vpop.f32.mrf.mxu0
        %v3257 = vadd.f32 0.0, %v3256
        %3258 = vmatmul.f32.gmra.mxu0 %v3143
        %v3259 = vpop.f32.mrf.mxu0
        %v3260 = vadd.f32 0.0, %v3259
        %3261 = vmatmul.f32.gmra.mxu0 %v3146
        %v3262 = vpop.f32.mrf.mxu0
        %v3263 = vadd.f32 0.0, %v3262
        %3264 = vmatmul.f32.gmra.mxu0 %v3149
        %v3265 = vpop.f32.mrf.mxu0
        %v3266 = vadd.f32 0.0, %v3265
        %3267 = vmatmul.f32.gmra.mxu0 %v3152
        %v3268 = vpop.f32.mrf.mxu0
        %v3269 = vadd.f32 0.0, %v3268
        %3270 = vmatmul.f32.gmra.mxu0 %v3155
        %v3271 = vpop.f32.mrf.mxu0
        %v3272 = vadd.f32 0.0, %v3271
        %3273 = vmatmul.f32.gmra.mxu0 %v3158
        %v3274 = vpop.f32.mrf.mxu0
        %v3275 = vadd.f32 0.0, %v3274
        %3276 = vmatmul.f32.gmra.mxu0 %v3161
        %v3277 = vpop.f32.mrf.mxu0
        %v3278 = vadd.f32 0.0, %v3277
        %3279 = vdwg.mxu0
        %v3281 = vsel %vm2871, %v2937, 0
        %v3284 = vsel %vm2871, %v2939, 0
        %v3287 = vsel %vm2871, %v2941, 0
        %v3290 = vsel %vm2871, %v2943, 0
        %v3293 = vsel %vm2871, %v2945, 0
        %v3296 = vsel %vm2871, %v2947, 0
        %v3299 = vsel %vm2871, %v2949, 0
        %v3302 = vsel %vm2871, %v2951, 0
        %v3305 = vsel %vm2871, %v2953, 0
        %v3308 = vsel %vm2871, %v2955, 0
        %v3311 = vsel %vm2871, %v2957, 0
        %v3314 = vsel %vm2871, %v2959, 0
        %v3317 = vsel %vm2871, %v2961, 0
        %v3320 = vsel %vm2871, %v2963, 0
        %v3323 = vsel %vm2871, %v2965, 0
        %v3326 = vsel %vm2871, %v2967, 0
        %v3329 = vsel %vm2871, %v2969, 0
        %v3332 = vsel %vm2871, %v2971, 0
        %v3335 = vsel %vm2871, %v2973, 0
        %v3338 = vsel %vm2871, %v2975, 0
        %v3341 = vsel %vm2871, %v2977, 0
        %v3344 = vsel %vm2871, %v2979, 0
        %v3347 = vsel %vm2871, %v2981, 0
        %v3350 = vsel %vm2871, %v2983, 0
        %v3353 = vsel %vm2871, %v2985, 0
        %v3356 = vsel %vm2871, %v2987, 0
        %v3359 = vsel %vm2871, %v2989, 0
        %v3362 = vsel %vm2871, %v2991, 0
        %v3365 = vsel %vm2871, %v2993, 0
        %v3368 = vsel %vm2871, %v2995, 0
        %v3371 = vsel %vm2871, %v2997, 0
        %v3374 = vsel %vm2871, %v2999, 0
        %v3377 = vsel %vm3163, %v3000, 0
        %3379 = vmatpush.msra.mxu0 0.0
        %3380 = vmatpush.msra.mxu0 0.0
        %3381 = vmatpush.msra.mxu0 0.0
        %3382 = vmatpush.msra.mxu0 0.0
        %3383 = vmatpush.msra.mxu0 0.0
        %3384 = vmatpush.msra.mxu0 0.0
        %3385 = vmatpush.msra.mxu0 0.0
        %3386 = vmatpush.msra.mxu0 0.0
        %3387 = vmatpush.msra.mxu0 0.0
        %3388 = vmatpush.msra.mxu0 0.0
        %3389 = vmatpush.msra.mxu0 0.0
        %3390 = vmatpush.msra.mxu0 0.0
        %3391 = vmatpush.msra.mxu0 0.0
        %3392 = vmatpush.msra.mxu0 0.0
        %3393 = vmatpush.msra.mxu0 0.0
        %3394 = vmatpush.msra.mxu0 %v3377
        %3395 = vmatmul.f32.gmra.mxu0 %v3281
        %v3396 = vpop.f32.mrf.mxu0
        %v3397 = vadd.f32 %v3185, %v3396
        %3398 = vmatmul.f32.gmra.mxu0 %v3284
        %v3399 = vpop.f32.mrf.mxu0
        %v3400 = vadd.f32 %v3188, %v3399
        %3401 = vmatmul.f32.gmra.mxu0 %v3287
        %v3402 = vpop.f32.mrf.mxu0
        %v3403 = vadd.f32 %v3191, %v3402
        %3404 = vmatmul.f32.gmra.mxu0 %v3290
        %v3405 = vpop.f32.mrf.mxu0
        %v3406 = vadd.f32 %v3194, %v3405
        %3407 = vmatmul.f32.gmra.mxu0 %v3293
        %v3408 = vpop.f32.mrf.mxu0
        %v3409 = vadd.f32 %v3197, %v3408
        %3410 = vmatmul.f32.gmra.mxu0 %v3296
        %v3411 = vpop.f32.mrf.mxu0
        %v3412 = vadd.f32 %v3200, %v3411
        %3413 = vmatmul.f32.gmra.mxu0 %v3299
        %v3414 = vpop.f32.mrf.mxu0
        %v3415 = vadd.f32 %v3203, %v3414
        %3416 = vmatmul.f32.gmra.mxu0 %v3302
        %v3417 = vpop.f32.mrf.mxu0
        %v3418 = vadd.f32 %v3206, %v3417
        %3419 = vmatmul.f32.gmra.mxu0 %v3305
        %v3420 = vpop.f32.mrf.mxu0
        %v3421 = vadd.f32 %v3209, %v3420
        %3422 = vmatmul.f32.gmra.mxu0 %v3308
        %v3423 = vpop.f32.mrf.mxu0
        %v3424 = vadd.f32 %v3212, %v3423
        %3425 = vmatmul.f32.gmra.mxu0 %v3311
        %v3426 = vpop.f32.mrf.mxu0
        %v3427 = vadd.f32 %v3215, %v3426
        %3428 = vmatmul.f32.gmra.mxu0 %v3314
        %v3429 = vpop.f32.mrf.mxu0
        %v3430 = vadd.f32 %v3218, %v3429
        %3431 = vmatmul.f32.gmra.mxu0 %v3317
        %v3432 = vpop.f32.mrf.mxu0
        %v3433 = vadd.f32 %v3221, %v3432
        %3434 = vmatmul.f32.gmra.mxu0 %v3320
        %v3435 = vpop.f32.mrf.mxu0
        %v3436 = vadd.f32 %v3224, %v3435
        %3437 = vmatmul.f32.gmra.mxu0 %v3323
        %v3438 = vpop.f32.mrf.mxu0
        %v3439 = vadd.f32 %v3227, %v3438
        %3440 = vmatmul.f32.gmra.mxu0 %v3326
        %v3441 = vpop.f32.mrf.mxu0
        %v3442 = vadd.f32 %v3230, %v3441
        %3443 = vmatmul.f32.gmra.mxu0 %v3329
        %v3444 = vpop.f32.mrf.mxu0
        %v3445 = vadd.f32 %v3233, %v3444
        %3446 = vmatmul.f32.gmra.mxu0 %v3332
        %v3447 = vpop.f32.mrf.mxu0
        %v3448 = vadd.f32 %v3236, %v3447
        %3449 = vmatmul.f32.gmra.mxu0 %v3335
        %v3450 = vpop.f32.mrf.mxu0
        %v3451 = vadd.f32 %v3239, %v3450
        %3452 = vmatmul.f32.gmra.mxu0 %v3338
        %v3453 = vpop.f32.mrf.mxu0
        %v3454 = vadd.f32 %v3242, %v3453
        %3455 = vmatmul.f32.gmra.mxu0 %v3341
        %v3456 = vpop.f32.mrf.mxu0
        %v3457 = vadd.f32 %v3245, %v3456
        %3458 = vmatmul.f32.gmra.mxu0 %v3344
        %v3459 = vpop.f32.mrf.mxu0
        %v3460 = vadd.f32 %v3248, %v3459
        %3461 = vmatmul.f32.gmra.mxu0 %v3347
        %v3462 = vpop.f32.mrf.mxu0
        %v3463 = vadd.f32 %v3251, %v3462
        %3464 = vmatmul.f32.gmra.mxu0 %v3350
        %v3465 = vpop.f32.mrf.mxu0
        %v3466 = vadd.f32 %v3254, %v3465
        %3467 = vmatmul.f32.gmra.mxu0 %v3353
        %v3468 = vpop.f32.mrf.mxu0
        %v3469 = vadd.f32 %v3257, %v3468
        %3470 = vmatmul.f32.gmra.mxu0 %v3356
        %v3471 = vpop.f32.mrf.mxu0
        %v3472 = vadd.f32 %v3260, %v3471
        %3473 = vmatmul.f32.gmra.mxu0 %v3359
        %v3474 = vpop.f32.mrf.mxu0
        %v3475 = vadd.f32 %v3263, %v3474
        %3476 = vmatmul.f32.gmra.mxu0 %v3362
        %v3477 = vpop.f32.mrf.mxu0
        %v3478 = vadd.f32 %v3266, %v3477
        %3479 = vmatmul.f32.gmra.mxu0 %v3365
        %v3480 = vpop.f32.mrf.mxu0
        %v3481 = vadd.f32 %v3269, %v3480
        %3482 = vmatmul.f32.gmra.mxu0 %v3368
        %v3483 = vpop.f32.mrf.mxu0
        %v3484 = vadd.f32 %v3272, %v3483
        %3485 = vmatmul.f32.gmra.mxu0 %v3371
        %v3486 = vpop.f32.mrf.mxu0
        %v3487 = vadd.f32 %v3275, %v3486
        %3488 = vmatmul.f32.gmra.mxu0 %v3374
        %v3489 = vpop.f32.mrf.mxu0
        %v3490 = vadd.f32 %v3278, %v3489
        %3491 = vdwg.mxu0
        %s3492 = scalar_lea.vmem [#allocation2], 2
        %v3493 = vld [vmem:[%s3492] ss:$2 sm:$0xff]
        %s3494 = scalar_lea.vmem [#allocation2], 18
        %v3495 = vld [vmem:[%s3494] ss:$2 sm:$0xff]
        %s3496 = scalar_lea.vmem [#allocation2], 34
        %v3497 = vld [vmem:[%s3496] ss:$2 sm:$0xff]
        %s3498 = scalar_lea.vmem [#allocation2], 50
        %v3499 = vld [vmem:[%s3498] ss:$2 sm:$0xff]
        %s3500 = scalar_lea.vmem [#allocation2], 66
        %v3501 = vld [vmem:[%s3500] ss:$2 sm:$0xff]
        %s3502 = scalar_lea.vmem [#allocation2], 82
        %v3503 = vld [vmem:[%s3502] ss:$2 sm:$0xff]
        %s3504 = scalar_lea.vmem [#allocation2], 98
        %v3505 = vld [vmem:[%s3504] ss:$2 sm:$0xff]
        %s3506 = scalar_lea.vmem [#allocation2], 114
        %v3507 = vld [vmem:[%s3506] ss:$2 sm:$0xff]
        %s3508 = scalar_lea.vmem [#allocation2], 130
        %v3509 = vld [vmem:[%s3508] ss:$2 sm:$0xff]
        %s3510 = scalar_lea.vmem [#allocation2], 146
        %v3511 = vld [vmem:[%s3510] ss:$2 sm:$0xff]
        %s3512 = scalar_lea.vmem [#allocation2], 162
        %v3513 = vld [vmem:[%s3512] ss:$2 sm:$0xff]
        %s3514 = scalar_lea.vmem [#allocation2], 178
        %v3515 = vld [vmem:[%s3514] ss:$2 sm:$0xff]
        %s3516 = scalar_lea.vmem [#allocation2], 194
        %v3517 = vld [vmem:[%s3516] ss:$2 sm:$0xff]
        %s3518 = scalar_lea.vmem [#allocation2], 210
        %v3519 = vld [vmem:[%s3518] ss:$2 sm:$0xff]
        %s3520 = scalar_lea.vmem [#allocation2], 226
        %v3521 = vld [vmem:[%s3520] ss:$2 sm:$0xff]
        %s3522 = scalar_lea.vmem [#allocation2], 242
        %v3523 = vld [vmem:[%s3522] ss:$2 sm:$0xff]
        %s3524 = scalar_lea.vmem [#allocation2], 258
        %v3525 = vld [vmem:[%s3524] ss:$2 sm:$0xff]
        %s3526 = scalar_lea.vmem [#allocation2], 274
        %v3527 = vld [vmem:[%s3526] ss:$2 sm:$0xff]
        %s3528 = scalar_lea.vmem [#allocation2], 290
        %v3529 = vld [vmem:[%s3528] ss:$2 sm:$0xff]
        %s3530 = scalar_lea.vmem [#allocation2], 306
        %v3531 = vld [vmem:[%s3530] ss:$2 sm:$0xff]
        %s3532 = scalar_lea.vmem [#allocation2], 322
        %v3533 = vld [vmem:[%s3532] ss:$2 sm:$0xff]
        %s3534 = scalar_lea.vmem [#allocation2], 338
        %v3535 = vld [vmem:[%s3534] ss:$2 sm:$0xff]
        %s3536 = scalar_lea.vmem [#allocation2], 354
        %v3537 = vld [vmem:[%s3536] ss:$2 sm:$0xff]
        %s3538 = scalar_lea.vmem [#allocation2], 370
        %v3539 = vld [vmem:[%s3538] ss:$2 sm:$0xff]
        %s3540 = scalar_lea.vmem [#allocation2], 386
        %v3541 = vld [vmem:[%s3540] ss:$2 sm:$0xff]
        %s3542 = scalar_lea.vmem [#allocation2], 402
        %v3543 = vld [vmem:[%s3542] ss:$2 sm:$0xff]
        %s3544 = scalar_lea.vmem [#allocation2], 418
        %v3545 = vld [vmem:[%s3544] ss:$2 sm:$0xff]
        %s3546 = scalar_lea.vmem [#allocation2], 434
        %v3547 = vld [vmem:[%s3546] ss:$2 sm:$0xff]
        %s3548 = scalar_lea.vmem [#allocation2], 450
        %v3549 = vld [vmem:[%s3548] ss:$2 sm:$0xff]
        %s3550 = scalar_lea.vmem [#allocation2], 466
        %v3551 = vld [vmem:[%s3550] ss:$2 sm:$0xff]
        %s3552 = scalar_lea.vmem [#allocation2], 482
        %v3553 = vld [vmem:[%s3552] ss:$2 sm:$0xff]
        %s3554 = scalar_lea.vmem [#allocation2], 498
        %v3555 = vld [vmem:[%s3554] ss:$2 sm:$0x7f]
        %s3556 = scalar_lea.vmem [#allocation11], 8
        %v3557 = vld [vmem:[%s3556] sm:$0x7]
        %v3559 = vsel %vm2871, %v3493, 0
        %v3562 = vsel %vm2871, %v3495, 0
        %v3565 = vsel %vm2871, %v3497, 0
        %v3568 = vsel %vm2871, %v3499, 0
        %v3571 = vsel %vm2871, %v3501, 0
        %v3574 = vsel %vm2871, %v3503, 0
        %v3577 = vsel %vm2871, %v3505, 0
        %v3580 = vsel %vm2871, %v3507, 0
        %v3583 = vsel %vm2871, %v3509, 0
        %v3586 = vsel %vm2871, %v3511, 0
        %v3589 = vsel %vm2871, %v3513, 0
        %v3592 = vsel %vm2871, %v3515, 0
        %v3595 = vsel %vm2871, %v3517, 0
        %v3598 = vsel %vm2871, %v3519, 0
        %v3601 = vsel %vm2871, %v3521, 0
        %v3604 = vsel %vm2871, %v3523, 0
        %v3607 = vsel %vm2871, %v3525, 0
        %v3610 = vsel %vm2871, %v3527, 0
        %v3613 = vsel %vm2871, %v3529, 0
        %v3616 = vsel %vm2871, %v3531, 0
        %v3619 = vsel %vm2871, %v3533, 0
        %v3622 = vsel %vm2871, %v3535, 0
        %v3625 = vsel %vm2871, %v3537, 0
        %v3628 = vsel %vm2871, %v3539, 0
        %v3631 = vsel %vm2871, %v3541, 0
        %v3634 = vsel %vm2871, %v3543, 0
        %v3637 = vsel %vm2871, %v3545, 0
        %v3640 = vsel %vm2871, %v3547, 0
        %v3643 = vsel %vm2871, %v3549, 0
        %v3646 = vsel %vm2871, %v3551, 0
        %v3649 = vsel %vm2871, %v3553, 0
        %v3652 = vsel %vm2871, %v3555, 0
        %v3655 = vsel %vm3163, %v3557, 0
        %3657 = vmatpush.msra.mxu0 0.0
        %3658 = vmatpush.msra.mxu0 0.0
        %3659 = vmatpush.msra.mxu0 0.0
        %3660 = vmatpush.msra.mxu0 0.0
        %3661 = vmatpush.msra.mxu0 0.0
        %3662 = vmatpush.msra.mxu0 0.0
        %3663 = vmatpush.msra.mxu0 0.0
        %3664 = vmatpush.msra.mxu0 0.0
        %3665 = vmatpush.msra.mxu0 0.0
        %3666 = vmatpush.msra.mxu0 0.0
        %3667 = vmatpush.msra.mxu0 0.0
        %3668 = vmatpush.msra.mxu0 0.0
        %3669 = vmatpush.msra.mxu0 0.0
        %3670 = vmatpush.msra.mxu0 0.0
        %3671 = vmatpush.msra.mxu0 0.0
        %3672 = vmatpush.msra.mxu0 %v3655
        %3673 = vmatmul.f32.gmra.mxu0 %v3559
        %v3674 = vpop.f32.mrf.mxu0
        %v3675 = vadd.f32 0.0, %v3674
        %3676 = vmatmul.f32.gmra.mxu0 %v3562
        %v3677 = vpop.f32.mrf.mxu0
        %v3678 = vadd.f32 0.0, %v3677
        %3679 = vmatmul.f32.gmra.mxu0 %v3565
        %v3680 = vpop.f32.mrf.mxu0
        %v3681 = vadd.f32 0.0, %v3680
        %3682 = vmatmul.f32.gmra.mxu0 %v3568
        %v3683 = vpop.f32.mrf.mxu0
        %v3684 = vadd.f32 0.0, %v3683
        %3685 = vmatmul.f32.gmra.mxu0 %v3571
        %v3686 = vpop.f32.mrf.mxu0
        %v3687 = vadd.f32 0.0, %v3686
        %3688 = vmatmul.f32.gmra.mxu0 %v3574
        %v3689 = vpop.f32.mrf.mxu0
        %v3690 = vadd.f32 0.0, %v3689
        %3691 = vmatmul.f32.gmra.mxu0 %v3577
        %v3692 = vpop.f32.mrf.mxu0
        %v3693 = vadd.f32 0.0, %v3692
        %3694 = vmatmul.f32.gmra.mxu0 %v3580
        %v3695 = vpop.f32.mrf.mxu0
        %v3696 = vadd.f32 0.0, %v3695
        %3697 = vmatmul.f32.gmra.mxu0 %v3583
        %v3698 = vpop.f32.mrf.mxu0
        %v3699 = vadd.f32 0.0, %v3698
        %3700 = vmatmul.f32.gmra.mxu0 %v3586
        %v3701 = vpop.f32.mrf.mxu0
        %v3702 = vadd.f32 0.0, %v3701
        %3703 = vmatmul.f32.gmra.mxu0 %v3589
        %v3704 = vpop.f32.mrf.mxu0
        %v3705 = vadd.f32 0.0, %v3704
        %3706 = vmatmul.f32.gmra.mxu0 %v3592
        %v3707 = vpop.f32.mrf.mxu0
        %v3708 = vadd.f32 0.0, %v3707
        %3709 = vmatmul.f32.gmra.mxu0 %v3595
        %v3710 = vpop.f32.mrf.mxu0
        %v3711 = vadd.f32 0.0, %v3710
        %3712 = vmatmul.f32.gmra.mxu0 %v3598
        %v3713 = vpop.f32.mrf.mxu0
        %v3714 = vadd.f32 0.0, %v3713
        %3715 = vmatmul.f32.gmra.mxu0 %v3601
        %v3716 = vpop.f32.mrf.mxu0
        %v3717 = vadd.f32 0.0, %v3716
        %3718 = vmatmul.f32.gmra.mxu0 %v3604
        %v3719 = vpop.f32.mrf.mxu0
        %v3720 = vadd.f32 0.0, %v3719
        %3721 = vmatmul.f32.gmra.mxu0 %v3607
        %v3722 = vpop.f32.mrf.mxu0
        %v3723 = vadd.f32 0.0, %v3722
        %3724 = vmatmul.f32.gmra.mxu0 %v3610
        %v3725 = vpop.f32.mrf.mxu0
        %v3726 = vadd.f32 0.0, %v3725
        %3727 = vmatmul.f32.gmra.mxu0 %v3613
        %v3728 = vpop.f32.mrf.mxu0
        %v3729 = vadd.f32 0.0, %v3728
        %3730 = vmatmul.f32.gmra.mxu0 %v3616
        %v3731 = vpop.f32.mrf.mxu0
        %v3732 = vadd.f32 0.0, %v3731
        %3733 = vmatmul.f32.gmra.mxu0 %v3619
        %v3734 = vpop.f32.mrf.mxu0
        %v3735 = vadd.f32 0.0, %v3734
        %3736 = vmatmul.f32.gmra.mxu0 %v3622
        %v3737 = vpop.f32.mrf.mxu0
        %v3738 = vadd.f32 0.0, %v3737
        %3739 = vmatmul.f32.gmra.mxu0 %v3625
        %v3740 = vpop.f32.mrf.mxu0
        %v3741 = vadd.f32 0.0, %v3740
        %3742 = vmatmul.f32.gmra.mxu0 %v3628
        %v3743 = vpop.f32.mrf.mxu0
        %v3744 = vadd.f32 0.0, %v3743
        %3745 = vmatmul.f32.gmra.mxu0 %v3631
        %v3746 = vpop.f32.mrf.mxu0
        %v3747 = vadd.f32 0.0, %v3746
        %3748 = vmatmul.f32.gmra.mxu0 %v3634
        %v3749 = vpop.f32.mrf.mxu0
        %v3750 = vadd.f32 0.0, %v3749
        %3751 = vmatmul.f32.gmra.mxu0 %v3637
        %v3752 = vpop.f32.mrf.mxu0
        %v3753 = vadd.f32 0.0, %v3752
        %3754 = vmatmul.f32.gmra.mxu0 %v3640
        %v3755 = vpop.f32.mrf.mxu0
        %v3756 = vadd.f32 0.0, %v3755
        %3757 = vmatmul.f32.gmra.mxu0 %v3643
        %v3758 = vpop.f32.mrf.mxu0
        %v3759 = vadd.f32 0.0, %v3758
        %3760 = vmatmul.f32.gmra.mxu0 %v3646
        %v3761 = vpop.f32.mrf.mxu0
        %v3762 = vadd.f32 0.0, %v3761
        %3763 = vmatmul.f32.gmra.mxu0 %v3649
        %v3764 = vpop.f32.mrf.mxu0
        %v3765 = vadd.f32 0.0, %v3764
        %3766 = vmatmul.f32.gmra.mxu0 %v3652
        %v3767 = vpop.f32.mrf.mxu0
        %v3768 = vadd.f32 0.0, %v3767
        %3769 = vdwg.mxu0
        %v3770 = vadd.f32 %v3397, %v3675
        %v3771 = vadd.f32 %v3400, %v3678
        %v3772 = vadd.f32 %v3403, %v3681
        %v3773 = vadd.f32 %v3406, %v3684
        %v3774 = vadd.f32 %v3409, %v3687
        %v3775 = vadd.f32 %v3412, %v3690
        %v3776 = vadd.f32 %v3415, %v3693
        %v3777 = vadd.f32 %v3418, %v3696
        %v3778 = vadd.f32 %v3421, %v3699
        %v3779 = vadd.f32 %v3424, %v3702
        %v3780 = vadd.f32 %v3427, %v3705
        %v3781 = vadd.f32 %v3430, %v3708
        %v3782 = vadd.f32 %v3433, %v3711
        %v3783 = vadd.f32 %v3436, %v3714
        %v3784 = vadd.f32 %v3439, %v3717
        %v3785 = vadd.f32 %v3442, %v3720
        %v3786 = vadd.f32 %v3445, %v3723
        %v3787 = vadd.f32 %v3448, %v3726
        %v3788 = vadd.f32 %v3451, %v3729
        %v3789 = vadd.f32 %v3454, %v3732
        %v3790 = vadd.f32 %v3457, %v3735
        %v3791 = vadd.f32 %v3460, %v3738
        %v3792 = vadd.f32 %v3463, %v3741
        %v3793 = vadd.f32 %v3466, %v3744
        %v3794 = vadd.f32 %v3469, %v3747
        %v3795 = vadd.f32 %v3472, %v3750
        %v3796 = vadd.f32 %v3475, %v3753
        %v3797 = vadd.f32 %v3478, %v3756
        %v3798 = vadd.f32 %v3481, %v3759
        %v3799 = vadd.f32 %v3484, %v3762
        %v3800 = vadd.f32 %v3487, %v3765
        %v3801 = vadd.f32 %v3490, %v3768
        %v3802 = vld [vmem:[#allocation13] sm:$0x1]
        %v3804 = vperm.slane %v3802, 0
        %v3806 = vadd.f32 %v3770, %v3804
        %v3807 = vadd.f32 %v3771, %v3804
        %v3808 = vadd.f32 %v3772, %v3804
        %v3809 = vadd.f32 %v3773, %v3804
        %v3810 = vadd.f32 %v3774, %v3804
        %v3811 = vadd.f32 %v3775, %v3804
        %v3812 = vadd.f32 %v3776, %v3804
        %v3813 = vadd.f32 %v3777, %v3804
        %v3814 = vadd.f32 %v3778, %v3804
        %v3815 = vadd.f32 %v3779, %v3804
        %v3816 = vadd.f32 %v3780, %v3804
        %v3817 = vadd.f32 %v3781, %v3804
        %v3818 = vadd.f32 %v3782, %v3804
        %v3819 = vadd.f32 %v3783, %v3804
        %v3820 = vadd.f32 %v3784, %v3804
        %v3821 = vadd.f32 %v3785, %v3804
        %v3822 = vadd.f32 %v3786, %v3804
        %v3823 = vadd.f32 %v3787, %v3804
        %v3824 = vadd.f32 %v3788, %v3804
        %v3825 = vadd.f32 %v3789, %v3804
        %v3826 = vadd.f32 %v3790, %v3804
        %v3827 = vadd.f32 %v3791, %v3804
        %v3828 = vadd.f32 %v3792, %v3804
        %v3829 = vadd.f32 %v3793, %v3804
        %v3830 = vadd.f32 %v3794, %v3804
        %v3831 = vadd.f32 %v3795, %v3804
        %v3832 = vadd.f32 %v3796, %v3804
        %v3833 = vadd.f32 %v3797, %v3804
        %v3834 = vadd.f32 %v3798, %v3804
        %v3835 = vadd.f32 %v3799, %v3804
        %v3836 = vadd.f32 %v3800, %v3804
        %v3837 = vadd.f32 %v3801, %v3804
        %v3838 = vmax.f32 %v3806, 0.0
        %v3839 = vmax.f32 %v3807, 0.0
        %v3840 = vmax.f32 %v3808, 0.0
        %v3841 = vmax.f32 %v3809, 0.0
        %v3842 = vmax.f32 %v3810, 0.0
        %v3843 = vmax.f32 %v3811, 0.0
        %v3844 = vmax.f32 %v3812, 0.0
        %v3845 = vmax.f32 %v3813, 0.0
        %v3846 = vmax.f32 %v3814, 0.0
        %v3847 = vmax.f32 %v3815, 0.0
        %v3848 = vmax.f32 %v3816, 0.0
        %v3849 = vmax.f32 %v3817, 0.0
        %v3850 = vmax.f32 %v3818, 0.0
        %v3851 = vmax.f32 %v3819, 0.0
        %v3852 = vmax.f32 %v3820, 0.0
        %v3853 = vmax.f32 %v3821, 0.0
        %v3854 = vmax.f32 %v3822, 0.0
        %v3855 = vmax.f32 %v3823, 0.0
        %v3856 = vmax.f32 %v3824, 0.0
        %v3857 = vmax.f32 %v3825, 0.0
        %v3858 = vmax.f32 %v3826, 0.0
        %v3859 = vmax.f32 %v3827, 0.0
        %v3860 = vmax.f32 %v3828, 0.0
        %v3861 = vmax.f32 %v3829, 0.0
        %v3862 = vmax.f32 %v3830, 0.0
        %v3863 = vmax.f32 %v3831, 0.0
        %v3864 = vmax.f32 %v3832, 0.0
        %v3865 = vmax.f32 %v3833, 0.0
        %v3866 = vmax.f32 %v3834, 0.0
        %v3867 = vmax.f32 %v3835, 0.0
        %v3868 = vmax.f32 %v3836, 0.0
        %v3869 = vmax.f32 %v3837, 0.0
        %vm3870 = vcmask 130048
        %3871 = vst.msk [vmem:[#allocation3] sm:$0xff] %vm3870, %v3838
        %3872 = vst.msk [vmem:[#allocation3 + $0x8] sm:$0xff] %vm3870, %v3839
        %3873 = vst.msk [vmem:[#allocation3 + $0x10] sm:$0xff] %vm3870, %v3840
        %3874 = vst.msk [vmem:[#allocation3 + $0x18] sm:$0xff] %vm3870, %v3841
        %3875 = vst.msk [vmem:[#allocation3 + $0x20] sm:$0xff] %vm3870, %v3842
        %3876 = vst.msk [vmem:[#allocation3 + $0x28] sm:$0xff] %vm3870, %v3843
        %3877 = vst.msk [vmem:[#allocation3 + $0x30] sm:$0xff] %vm3870, %v3844
        %3878 = vst.msk [vmem:[#allocation3 + $0x38] sm:$0xff] %vm3870, %v3845
        %3879 = vst.msk [vmem:[#allocation3 + $0x40] sm:$0xff] %vm3870, %v3846
        %3880 = vst.msk [vmem:[#allocation3 + $0x48] sm:$0xff] %vm3870, %v3847
        %3881 = vst.msk [vmem:[#allocation3 + $0x50] sm:$0xff] %vm3870, %v3848
        %3882 = vst.msk [vmem:[#allocation3 + $0x58] sm:$0xff] %vm3870, %v3849
        %3883 = vst.msk [vmem:[#allocation3 + $0x60] sm:$0xff] %vm3870, %v3850
        %3884 = vst.msk [vmem:[#allocation3 + $0x68] sm:$0xff] %vm3870, %v3851
        %3885 = vst.msk [vmem:[#allocation3 + $0x70] sm:$0xff] %vm3870, %v3852
        %3886 = vst.msk [vmem:[#allocation3 + $0x78] sm:$0xff] %vm3870, %v3853
        %3887 = vst.msk [vmem:[#allocation3 + $0x80] sm:$0xff] %vm3870, %v3854
        %3888 = vst.msk [vmem:[#allocation3 + $0x88] sm:$0xff] %vm3870, %v3855
        %3889 = vst.msk [vmem:[#allocation3 + $0x90] sm:$0xff] %vm3870, %v3856
        %3890 = vst.msk [vmem:[#allocation3 + $0x98] sm:$0xff] %vm3870, %v3857
        %3891 = vst.msk [vmem:[#allocation3 + $0xa0] sm:$0xff] %vm3870, %v3858
        %3892 = vst.msk [vmem:[#allocation3 + $0xa8] sm:$0xff] %vm3870, %v3859
        %3893 = vst.msk [vmem:[#allocation3 + $0xb0] sm:$0xff] %vm3870, %v3860
        %3894 = vst.msk [vmem:[#allocation3 + $0xb8] sm:$0xff] %vm3870, %v3861
        %3895 = vst.msk [vmem:[#allocation3 + $0xc0] sm:$0xff] %vm3870, %v3862
        %3896 = vst.msk [vmem:[#allocation3 + $0xc8] sm:$0xff] %vm3870, %v3863
        %3897 = vst.msk [vmem:[#allocation3 + $0xd0] sm:$0xff] %vm3870, %v3864
        %3898 = vst.msk [vmem:[#allocation3 + $0xd8] sm:$0xff] %vm3870, %v3865
        %3899 = vst.msk [vmem:[#allocation3 + $0xe0] sm:$0xff] %vm3870, %v3866
        %3900 = vst.msk [vmem:[#allocation3 + $0xe8] sm:$0xff] %vm3870, %v3867
        %3901 = vst.msk [vmem:[#allocation3 + $0xf0] sm:$0xff] %vm3870, %v3868
        %vm3902 = vcmask 129024
        %3903 = vst.msk [vmem:[#allocation3 + $0xf8] sm:$0x7f] %vm3902, %v3869
        %v3904 = vld [vmem:[#allocation3] ss:$2 sm:$0xff]
        %s3905 = scalar_lea.vmem [#allocation3], 16
        %v3906 = vld [vmem:[%s3905] ss:$2 sm:$0xff]
        %s3907 = scalar_lea.vmem [#allocation3], 32
        %v3908 = vld [vmem:[%s3907] ss:$2 sm:$0xff]
        %s3909 = scalar_lea.vmem [#allocation3], 48
        %v3910 = vld [vmem:[%s3909] ss:$2 sm:$0xff]
        %s3911 = scalar_lea.vmem [#allocation3], 64
        %v3912 = vld [vmem:[%s3911] ss:$2 sm:$0xff]
        %s3913 = scalar_lea.vmem [#allocation3], 80
        %v3914 = vld [vmem:[%s3913] ss:$2 sm:$0xff]
        %s3915 = scalar_lea.vmem [#allocation3], 96
        %v3916 = vld [vmem:[%s3915] ss:$2 sm:$0xff]
        %s3917 = scalar_lea.vmem [#allocation3], 112
        %v3918 = vld [vmem:[%s3917] ss:$2 sm:$0xff]
        %s3919 = scalar_lea.vmem [#allocation3], 128
        %v3920 = vld [vmem:[%s3919] ss:$2 sm:$0xff]
        %s3921 = scalar_lea.vmem [#allocation3], 144
        %v3922 = vld [vmem:[%s3921] ss:$2 sm:$0xff]
        %s3923 = scalar_lea.vmem [#allocation3], 160
        %v3924 = vld [vmem:[%s3923] ss:$2 sm:$0xff]
        %s3925 = scalar_lea.vmem [#allocation3], 176
        %v3926 = vld [vmem:[%s3925] ss:$2 sm:$0xff]
        %s3927 = scalar_lea.vmem [#allocation3], 192
        %v3928 = vld [vmem:[%s3927] ss:$2 sm:$0xff]
        %s3929 = scalar_lea.vmem [#allocation3], 208
        %v3930 = vld [vmem:[%s3929] ss:$2 sm:$0xff]
        %s3931 = scalar_lea.vmem [#allocation3], 224
        %v3932 = vld [vmem:[%s3931] ss:$2 sm:$0xff]
        %s3933 = scalar_lea.vmem [#allocation3], 240
        %v3934 = vld [vmem:[%s3933] ss:$2 sm:$0x7f]
        %v3935 = vld [vmem:[%s5] sm:$0xff]
        %v3936 = vld [vmem:[%s5 + $0x8] sm:$0xff]
        %s3937 = scalar_lea.vmem [#allocation3], 1
        %v3938 = vld [vmem:[%s3937] ss:$2 sm:$0xff]
        %s3939 = scalar_lea.vmem [#allocation3], 17
        %v3940 = vld [vmem:[%s3939] ss:$2 sm:$0xff]
        %s3941 = scalar_lea.vmem [#allocation3], 33
        %v3942 = vld [vmem:[%s3941] ss:$2 sm:$0xff]
        %s3943 = scalar_lea.vmem [#allocation3], 49
        %v3944 = vld [vmem:[%s3943] ss:$2 sm:$0xff]
        %s3945 = scalar_lea.vmem [#allocation3], 65
        %v3946 = vld [vmem:[%s3945] ss:$2 sm:$0xff]
        %s3947 = scalar_lea.vmem [#allocation3], 81
        %v3948 = vld [vmem:[%s3947] ss:$2 sm:$0xff]
        %s3949 = scalar_lea.vmem [#allocation3], 97
        %v3950 = vld [vmem:[%s3949] ss:$2 sm:$0xff]
        %s3951 = scalar_lea.vmem [#allocation3], 113
        %v3952 = vld [vmem:[%s3951] ss:$2 sm:$0xff]
        %s3953 = scalar_lea.vmem [#allocation3], 129
        %v3954 = vld [vmem:[%s3953] ss:$2 sm:$0xff]
        %s3955 = scalar_lea.vmem [#allocation3], 145
        %v3956 = vld [vmem:[%s3955] ss:$2 sm:$0xff]
        %s3957 = scalar_lea.vmem [#allocation3], 161
        %v3958 = vld [vmem:[%s3957] ss:$2 sm:$0xff]
        %s3959 = scalar_lea.vmem [#allocation3], 177
        %v3960 = vld [vmem:[%s3959] ss:$2 sm:$0xff]
        %s3961 = scalar_lea.vmem [#allocation3], 193
        %v3962 = vld [vmem:[%s3961] ss:$2 sm:$0xff]
        %s3963 = scalar_lea.vmem [#allocation3], 209
        %v3964 = vld [vmem:[%s3963] ss:$2 sm:$0xff]
        %s3965 = scalar_lea.vmem [#allocation3], 225
        %v3966 = vld [vmem:[%s3965] ss:$2 sm:$0xff]
        %s3967 = scalar_lea.vmem [#allocation3], 241
        %v3968 = vld [vmem:[%s3967] ss:$2 sm:$0x7f]
        %s3969 = scalar_lea.vmem %s5, 16
        %v3970 = vld [vmem:[%s3969] sm:$0xff]
        %v3971 = vld [vmem:[%s3969 + $0x8] sm:$0xff]
        %v3973 = vsel %vm3870, %v3938, 0
        %v3976 = vsel %vm3870, %v3940, 0
        %v3979 = vsel %vm3870, %v3942, 0
        %v3982 = vsel %vm3870, %v3944, 0
        %v3985 = vsel %vm3870, %v3946, 0
        %v3988 = vsel %vm3870, %v3948, 0
        %v3991 = vsel %vm3870, %v3950, 0
        %v3994 = vsel %vm3870, %v3952, 0
        %v3997 = vsel %vm3870, %v3954, 0
        %v4000 = vsel %vm3870, %v3956, 0
        %v4003 = vsel %vm3870, %v3958, 0
        %v4006 = vsel %vm3870, %v3960, 0
        %v4009 = vsel %vm3870, %v3962, 0
        %v4012 = vsel %vm3870, %v3964, 0
        %v4015 = vsel %vm3870, %v3966, 0
        %v4018 = vsel %vm3870, %v3968, 0
        %4020 = vmatpush.msra.mxu0 0.0
        %4021 = vmatpush.msra.mxu0 0.0
        %4022 = vmatpush.msra.mxu0 0.0
        %4023 = vmatpush.msra.mxu0 0.0
        %4024 = vmatpush.msra.mxu0 0.0
        %4025 = vmatpush.msra.mxu0 0.0
        %4026 = vmatpush.msra.mxu0 0.0
        %4027 = vmatpush.msra.mxu0 0.0
        %4028 = vmatpush.msra.mxu0 0.0
        %4029 = vmatpush.msra.mxu0 0.0
        %4030 = vmatpush.msra.mxu0 0.0
        %4031 = vmatpush.msra.mxu0 0.0
        %4032 = vmatpush.msra.mxu0 0.0
        %4033 = vmatpush.msra.mxu0 0.0
        %4034 = vmatpush.msra.mxu0 %v3971
        %4035 = vmatpush.msra.mxu0 %v3970
        %4036 = vmatmul.f32.gmra.mxu0 %v3973
        %v4037 = vpop.f32.mrf.mxu0
        %v4038 = vadd.f32 0.0, %v4037
        %4039 = vmatmul.f32.gmra.mxu0 %v3976
        %v4040 = vpop.f32.mrf.mxu0
        %v4041 = vadd.f32 0.0, %v4040
        %4042 = vmatmul.f32.gmra.mxu0 %v3979
        %v4043 = vpop.f32.mrf.mxu0
        %v4044 = vadd.f32 0.0, %v4043
        %4045 = vmatmul.f32.gmra.mxu0 %v3982
        %v4046 = vpop.f32.mrf.mxu0
        %v4047 = vadd.f32 0.0, %v4046
        %4048 = vmatmul.f32.gmra.mxu0 %v3985
        %v4049 = vpop.f32.mrf.mxu0
        %v4050 = vadd.f32 0.0, %v4049
        %4051 = vmatmul.f32.gmra.mxu0 %v3988
        %v4052 = vpop.f32.mrf.mxu0
        %v4053 = vadd.f32 0.0, %v4052
        %4054 = vmatmul.f32.gmra.mxu0 %v3991
        %v4055 = vpop.f32.mrf.mxu0
        %v4056 = vadd.f32 0.0, %v4055
        %4057 = vmatmul.f32.gmra.mxu0 %v3994
        %v4058 = vpop.f32.mrf.mxu0
        %v4059 = vadd.f32 0.0, %v4058
        %4060 = vmatmul.f32.gmra.mxu0 %v3997
        %v4061 = vpop.f32.mrf.mxu0
        %v4062 = vadd.f32 0.0, %v4061
        %4063 = vmatmul.f32.gmra.mxu0 %v4000
        %v4064 = vpop.f32.mrf.mxu0
        %v4065 = vadd.f32 0.0, %v4064
        %4066 = vmatmul.f32.gmra.mxu0 %v4003
        %v4067 = vpop.f32.mrf.mxu0
        %v4068 = vadd.f32 0.0, %v4067
        %4069 = vmatmul.f32.gmra.mxu0 %v4006
        %v4070 = vpop.f32.mrf.mxu0
        %v4071 = vadd.f32 0.0, %v4070
        %4072 = vmatmul.f32.gmra.mxu0 %v4009
        %v4073 = vpop.f32.mrf.mxu0
        %v4074 = vadd.f32 0.0, %v4073
        %4075 = vmatmul.f32.gmra.mxu0 %v4012
        %v4076 = vpop.f32.mrf.mxu0
        %v4077 = vadd.f32 0.0, %v4076
        %4078 = vmatmul.f32.gmra.mxu0 %v4015
        %v4079 = vpop.f32.mrf.mxu0
        %v4080 = vadd.f32 0.0, %v4079
        %4081 = vmatmul.f32.gmra.mxu0 %v4018
        %v4082 = vpop.f32.mrf.mxu0
        %v4083 = vadd.f32 0.0, %v4082
        %4084 = vdwg.mxu0
        %v4086 = vsel %vm3870, %v3904, 0
        %v4089 = vsel %vm3870, %v3906, 0
        %v4092 = vsel %vm3870, %v3908, 0
        %v4095 = vsel %vm3870, %v3910, 0
        %v4098 = vsel %vm3870, %v3912, 0
        %v4101 = vsel %vm3870, %v3914, 0
        %v4104 = vsel %vm3870, %v3916, 0
        %v4107 = vsel %vm3870, %v3918, 0
        %v4110 = vsel %vm3870, %v3920, 0
        %v4113 = vsel %vm3870, %v3922, 0
        %v4116 = vsel %vm3870, %v3924, 0
        %v4119 = vsel %vm3870, %v3926, 0
        %v4122 = vsel %vm3870, %v3928, 0
        %v4125 = vsel %vm3870, %v3930, 0
        %v4128 = vsel %vm3870, %v3932, 0
        %v4131 = vsel %vm3870, %v3934, 0
        %4133 = vmatpush.msra.mxu0 0.0
        %4134 = vmatpush.msra.mxu0 0.0
        %4135 = vmatpush.msra.mxu0 0.0
        %4136 = vmatpush.msra.mxu0 0.0
        %4137 = vmatpush.msra.mxu0 0.0
        %4138 = vmatpush.msra.mxu0 0.0
        %4139 = vmatpush.msra.mxu0 0.0
        %4140 = vmatpush.msra.mxu0 0.0
        %4141 = vmatpush.msra.mxu0 0.0
        %4142 = vmatpush.msra.mxu0 0.0
        %4143 = vmatpush.msra.mxu0 0.0
        %4144 = vmatpush.msra.mxu0 0.0
        %4145 = vmatpush.msra.mxu0 0.0
        %4146 = vmatpush.msra.mxu0 0.0
        %4147 = vmatpush.msra.mxu0 %v3936
        %4148 = vmatpush.msra.mxu0 %v3935
        %4149 = vmatmul.f32.gmra.mxu0 %v4086
        %v4150 = vpop.f32.mrf.mxu0
        %v4151 = vadd.f32 %v4038, %v4150
        %4152 = vmatmul.f32.gmra.mxu0 %v4089
        %v4153 = vpop.f32.mrf.mxu0
        %v4154 = vadd.f32 %v4041, %v4153
        %4155 = vmatmul.f32.gmra.mxu0 %v4092
        %v4156 = vpop.f32.mrf.mxu0
        %v4157 = vadd.f32 %v4044, %v4156
        %4158 = vmatmul.f32.gmra.mxu0 %v4095
        %v4159 = vpop.f32.mrf.mxu0
        %v4160 = vadd.f32 %v4047, %v4159
        %4161 = vmatmul.f32.gmra.mxu0 %v4098
        %v4162 = vpop.f32.mrf.mxu0
        %v4163 = vadd.f32 %v4050, %v4162
        %4164 = vmatmul.f32.gmra.mxu0 %v4101
        %v4165 = vpop.f32.mrf.mxu0
        %v4166 = vadd.f32 %v4053, %v4165
        %4167 = vmatmul.f32.gmra.mxu0 %v4104
        %v4168 = vpop.f32.mrf.mxu0
        %v4169 = vadd.f32 %v4056, %v4168
        %4170 = vmatmul.f32.gmra.mxu0 %v4107
        %v4171 = vpop.f32.mrf.mxu0
        %v4172 = vadd.f32 %v4059, %v4171
        %4173 = vmatmul.f32.gmra.mxu0 %v4110
        %v4174 = vpop.f32.mrf.mxu0
        %v4175 = vadd.f32 %v4062, %v4174
        %4176 = vmatmul.f32.gmra.mxu0 %v4113
        %v4177 = vpop.f32.mrf.mxu0
        %v4178 = vadd.f32 %v4065, %v4177
        %4179 = vmatmul.f32.gmra.mxu0 %v4116
        %v4180 = vpop.f32.mrf.mxu0
        %v4181 = vadd.f32 %v4068, %v4180
        %4182 = vmatmul.f32.gmra.mxu0 %v4119
        %v4183 = vpop.f32.mrf.mxu0
        %v4184 = vadd.f32 %v4071, %v4183
        %4185 = vmatmul.f32.gmra.mxu0 %v4122
        %v4186 = vpop.f32.mrf.mxu0
        %v4187 = vadd.f32 %v4074, %v4186
        %4188 = vmatmul.f32.gmra.mxu0 %v4125
        %v4189 = vpop.f32.mrf.mxu0
        %v4190 = vadd.f32 %v4077, %v4189
        %4191 = vmatmul.f32.gmra.mxu0 %v4128
        %v4192 = vpop.f32.mrf.mxu0
        %v4193 = vadd.f32 %v4080, %v4192
        %4194 = vmatmul.f32.gmra.mxu0 %v4131
        %v4195 = vpop.f32.mrf.mxu0
        %v4196 = vadd.f32 %v4083, %v4195
        %4197 = vdwg.mxu0
        %s4198 = scalar_lea.vmem [#allocation3], 2
        %v4199 = vld [vmem:[%s4198] ss:$2 sm:$0xff]
        %s4200 = scalar_lea.vmem [#allocation3], 18
        %v4201 = vld [vmem:[%s4200] ss:$2 sm:$0xff]
        %s4202 = scalar_lea.vmem [#allocation3], 34
        %v4203 = vld [vmem:[%s4202] ss:$2 sm:$0xff]
        %s4204 = scalar_lea.vmem [#allocation3], 50
        %v4205 = vld [vmem:[%s4204] ss:$2 sm:$0xff]
        %s4206 = scalar_lea.vmem [#allocation3], 66
        %v4207 = vld [vmem:[%s4206] ss:$2 sm:$0xff]
        %s4208 = scalar_lea.vmem [#allocation3], 82
        %v4209 = vld [vmem:[%s4208] ss:$2 sm:$0xff]
        %s4210 = scalar_lea.vmem [#allocation3], 98
        %v4211 = vld [vmem:[%s4210] ss:$2 sm:$0xff]
        %s4212 = scalar_lea.vmem [#allocation3], 114
        %v4213 = vld [vmem:[%s4212] ss:$2 sm:$0xff]
        %s4214 = scalar_lea.vmem [#allocation3], 130
        %v4215 = vld [vmem:[%s4214] ss:$2 sm:$0xff]
        %s4216 = scalar_lea.vmem [#allocation3], 146
        %v4217 = vld [vmem:[%s4216] ss:$2 sm:$0xff]
        %s4218 = scalar_lea.vmem [#allocation3], 162
        %v4219 = vld [vmem:[%s4218] ss:$2 sm:$0xff]
        %s4220 = scalar_lea.vmem [#allocation3], 178
        %v4221 = vld [vmem:[%s4220] ss:$2 sm:$0xff]
        %s4222 = scalar_lea.vmem [#allocation3], 194
        %v4223 = vld [vmem:[%s4222] ss:$2 sm:$0xff]
        %s4224 = scalar_lea.vmem [#allocation3], 210
        %v4225 = vld [vmem:[%s4224] ss:$2 sm:$0xff]
        %s4226 = scalar_lea.vmem [#allocation3], 226
        %v4227 = vld [vmem:[%s4226] ss:$2 sm:$0xff]
        %s4228 = scalar_lea.vmem [#allocation3], 242
        %v4229 = vld [vmem:[%s4228] ss:$2 sm:$0x7f]
        %s4230 = scalar_lea.vmem %s5, 32
        %v4231 = vld [vmem:[%s4230] sm:$0xff]
        %v4232 = vld [vmem:[%s4230 + $0x8] sm:$0xff]
        %v4234 = vsel %vm3870, %v4199, 0
        %v4237 = vsel %vm3870, %v4201, 0
        %v4240 = vsel %vm3870, %v4203, 0
        %v4243 = vsel %vm3870, %v4205, 0
        %v4246 = vsel %vm3870, %v4207, 0
        %v4249 = vsel %vm3870, %v4209, 0
        %v4252 = vsel %vm3870, %v4211, 0
        %v4255 = vsel %vm3870, %v4213, 0
        %v4258 = vsel %vm3870, %v4215, 0
        %v4261 = vsel %vm3870, %v4217, 0
        %v4264 = vsel %vm3870, %v4219, 0
        %v4267 = vsel %vm3870, %v4221, 0
        %v4270 = vsel %vm3870, %v4223, 0
        %v4273 = vsel %vm3870, %v4225, 0
        %v4276 = vsel %vm3870, %v4227, 0
        %v4279 = vsel %vm3870, %v4229, 0
        %4281 = vmatpush.msra.mxu0 0.0
        %4282 = vmatpush.msra.mxu0 0.0
        %4283 = vmatpush.msra.mxu0 0.0
        %4284 = vmatpush.msra.mxu0 0.0
        %4285 = vmatpush.msra.mxu0 0.0
        %4286 = vmatpush.msra.mxu0 0.0
        %4287 = vmatpush.msra.mxu0 0.0
        %4288 = vmatpush.msra.mxu0 0.0
        %4289 = vmatpush.msra.mxu0 0.0
        %4290 = vmatpush.msra.mxu0 0.0
        %4291 = vmatpush.msra.mxu0 0.0
        %4292 = vmatpush.msra.mxu0 0.0
        %4293 = vmatpush.msra.mxu0 0.0
        %4294 = vmatpush.msra.mxu0 0.0
        %4295 = vmatpush.msra.mxu0 %v4232
        %4296 = vmatpush.msra.mxu0 %v4231
        %4297 = vmatmul.f32.gmra.mxu0 %v4234
        %v4298 = vpop.f32.mrf.mxu0
        %v4299 = vadd.f32 0.0, %v4298
        %4300 = vmatmul.f32.gmra.mxu0 %v4237
        %v4301 = vpop.f32.mrf.mxu0
        %v4302 = vadd.f32 0.0, %v4301
        %4303 = vmatmul.f32.gmra.mxu0 %v4240
        %v4304 = vpop.f32.mrf.mxu0
        %v4305 = vadd.f32 0.0, %v4304
        %4306 = vmatmul.f32.gmra.mxu0 %v4243
        %v4307 = vpop.f32.mrf.mxu0
        %v4308 = vadd.f32 0.0, %v4307
        %4309 = vmatmul.f32.gmra.mxu0 %v4246
        %v4310 = vpop.f32.mrf.mxu0
        %v4311 = vadd.f32 0.0, %v4310
        %4312 = vmatmul.f32.gmra.mxu0 %v4249
        %v4313 = vpop.f32.mrf.mxu0
        %v4314 = vadd.f32 0.0, %v4313
        %4315 = vmatmul.f32.gmra.mxu0 %v4252
        %v4316 = vpop.f32.mrf.mxu0
        %v4317 = vadd.f32 0.0, %v4316
        %4318 = vmatmul.f32.gmra.mxu0 %v4255
        %v4319 = vpop.f32.mrf.mxu0
        %v4320 = vadd.f32 0.0, %v4319
        %4321 = vmatmul.f32.gmra.mxu0 %v4258
        %v4322 = vpop.f32.mrf.mxu0
        %v4323 = vadd.f32 0.0, %v4322
        %4324 = vmatmul.f32.gmra.mxu0 %v4261
        %v4325 = vpop.f32.mrf.mxu0
        %v4326 = vadd.f32 0.0, %v4325
        %4327 = vmatmul.f32.gmra.mxu0 %v4264
        %v4328 = vpop.f32.mrf.mxu0
        %v4329 = vadd.f32 0.0, %v4328
        %4330 = vmatmul.f32.gmra.mxu0 %v4267
        %v4331 = vpop.f32.mrf.mxu0
        %v4332 = vadd.f32 0.0, %v4331
        %4333 = vmatmul.f32.gmra.mxu0 %v4270
        %v4334 = vpop.f32.mrf.mxu0
        %v4335 = vadd.f32 0.0, %v4334
        %4336 = vmatmul.f32.gmra.mxu0 %v4273
        %v4337 = vpop.f32.mrf.mxu0
        %v4338 = vadd.f32 0.0, %v4337
        %4339 = vmatmul.f32.gmra.mxu0 %v4276
        %v4340 = vpop.f32.mrf.mxu0
        %v4341 = vadd.f32 0.0, %v4340
        %4342 = vmatmul.f32.gmra.mxu0 %v4279
        %v4343 = vpop.f32.mrf.mxu0
        %v4344 = vadd.f32 0.0, %v4343
        %4345 = vdwg.mxu0
        %v4346 = vadd.f32 %v4151, %v4299
        %v4347 = vadd.f32 %v4154, %v4302
        %v4348 = vadd.f32 %v4157, %v4305
        %v4349 = vadd.f32 %v4160, %v4308
        %v4350 = vadd.f32 %v4163, %v4311
        %v4351 = vadd.f32 %v4166, %v4314
        %v4352 = vadd.f32 %v4169, %v4317
        %v4353 = vadd.f32 %v4172, %v4320
        %v4354 = vadd.f32 %v4175, %v4323
        %v4355 = vadd.f32 %v4178, %v4326
        %v4356 = vadd.f32 %v4181, %v4329
        %v4357 = vadd.f32 %v4184, %v4332
        %v4358 = vadd.f32 %v4187, %v4335
        %v4359 = vadd.f32 %v4190, %v4338
        %v4360 = vadd.f32 %v4193, %v4341
        %v4361 = vadd.f32 %v4196, %v4344
        %v4362 = vld [vmem:[#allocation14] sm:$0x1]
        %v4364 = vperm.slane %v4362, 0
        %v4366 = vadd.f32 %v4346, %v4364
        %v4367 = vadd.f32 %v4347, %v4364
        %v4368 = vadd.f32 %v4348, %v4364
        %v4369 = vadd.f32 %v4349, %v4364
        %v4370 = vadd.f32 %v4350, %v4364
        %v4371 = vadd.f32 %v4351, %v4364
        %v4372 = vadd.f32 %v4352, %v4364
        %v4373 = vadd.f32 %v4353, %v4364
        %v4374 = vadd.f32 %v4354, %v4364
        %v4375 = vadd.f32 %v4355, %v4364
        %v4376 = vadd.f32 %v4356, %v4364
        %v4377 = vadd.f32 %v4357, %v4364
        %v4378 = vadd.f32 %v4358, %v4364
        %v4379 = vadd.f32 %v4359, %v4364
        %v4380 = vadd.f32 %v4360, %v4364
        %v4381 = vadd.f32 %v4361, %v4364
        %v4382 = vmax.f32 %v4366, 0.0
        %v4383 = vmax.f32 %v4367, 0.0
        %v4384 = vmax.f32 %v4368, 0.0
        %v4385 = vmax.f32 %v4369, 0.0
        %v4386 = vmax.f32 %v4370, 0.0
        %v4387 = vmax.f32 %v4371, 0.0
        %v4388 = vmax.f32 %v4372, 0.0
        %v4389 = vmax.f32 %v4373, 0.0
        %v4390 = vmax.f32 %v4374, 0.0
        %v4391 = vmax.f32 %v4375, 0.0
        %v4392 = vmax.f32 %v4376, 0.0
        %v4393 = vmax.f32 %v4377, 0.0
        %v4394 = vmax.f32 %v4378, 0.0
        %v4395 = vmax.f32 %v4379, 0.0
        %v4396 = vmax.f32 %v4380, 0.0
        %v4397 = vmax.f32 %v4381, 0.0
        %4398 = vst.msk [vmem:[#allocation4] sm:$0xff] %vm3870, %v4382
        %4399 = vst.msk [vmem:[#allocation4 + $0x8] sm:$0xff] %vm3870, %v4383
        %4400 = vst.msk [vmem:[#allocation4 + $0x10] sm:$0xff] %vm3870, %v4384
        %4401 = vst.msk [vmem:[#allocation4 + $0x18] sm:$0xff] %vm3870, %v4385
        %4402 = vst.msk [vmem:[#allocation4 + $0x20] sm:$0xff] %vm3870, %v4386
        %4403 = vst.msk [vmem:[#allocation4 + $0x28] sm:$0xff] %vm3870, %v4387
        %4404 = vst.msk [vmem:[#allocation4 + $0x30] sm:$0xff] %vm3870, %v4388
        %4405 = vst.msk [vmem:[#allocation4 + $0x38] sm:$0xff] %vm3870, %v4389
        %4406 = vst.msk [vmem:[#allocation4 + $0x40] sm:$0xff] %vm3870, %v4390
        %4407 = vst.msk [vmem:[#allocation4 + $0x48] sm:$0xff] %vm3870, %v4391
        %4408 = vst.msk [vmem:[#allocation4 + $0x50] sm:$0xff] %vm3870, %v4392
        %4409 = vst.msk [vmem:[#allocation4 + $0x58] sm:$0xff] %vm3870, %v4393
        %4410 = vst.msk [vmem:[#allocation4 + $0x60] sm:$0xff] %vm3870, %v4394
        %4411 = vst.msk [vmem:[#allocation4 + $0x68] sm:$0xff] %vm3870, %v4395
        %4412 = vst.msk [vmem:[#allocation4 + $0x70] sm:$0xff] %vm3870, %v4396
        %4413 = vst.msk [vmem:[#allocation4 + $0x78] sm:$0x7f] %vm3902, %v4397
        %v4414 = vld [vmem:[#allocation4] ss:$2 sm:$0xff]
        %s4415 = scalar_lea.vmem [#allocation4], 16
        %v4416 = vld [vmem:[%s4415] ss:$2 sm:$0xff]
        %s4417 = scalar_lea.vmem [#allocation4], 32
        %v4418 = vld [vmem:[%s4417] ss:$2 sm:$0xff]
        %s4419 = scalar_lea.vmem [#allocation4], 48
        %v4420 = vld [vmem:[%s4419] ss:$2 sm:$0xff]
        %s4421 = scalar_lea.vmem [#allocation4], 64
        %v4422 = vld [vmem:[%s4421] ss:$2 sm:$0xff]
        %s4423 = scalar_lea.vmem [#allocation4], 80
        %v4424 = vld [vmem:[%s4423] ss:$2 sm:$0xff]
        %s4425 = scalar_lea.vmem [#allocation4], 96
        %v4426 = vld [vmem:[%s4425] ss:$2 sm:$0xff]
        %s4427 = scalar_lea.vmem [#allocation4], 112
        %v4428 = vld [vmem:[%s4427] ss:$2 sm:$0x7f]
        %v4429 = vld [vmem:[#allocation16] sm:$0xff]
        %v4430 = vld [vmem:[#allocation16 + $0x8] sm:$0xff]
        %s4431 = scalar_lea.vmem [#allocation4], 1
        %v4432 = vld [vmem:[%s4431] ss:$2 sm:$0xff]
        %s4433 = scalar_lea.vmem [#allocation4], 17
        %v4434 = vld [vmem:[%s4433] ss:$2 sm:$0xff]
        %s4435 = scalar_lea.vmem [#allocation4], 33
        %v4436 = vld [vmem:[%s4435] ss:$2 sm:$0xff]
        %s4437 = scalar_lea.vmem [#allocation4], 49
        %v4438 = vld [vmem:[%s4437] ss:$2 sm:$0xff]
        %s4439 = scalar_lea.vmem [#allocation4], 65
        %v4440 = vld [vmem:[%s4439] ss:$2 sm:$0xff]
        %s4441 = scalar_lea.vmem [#allocation4], 81
        %v4442 = vld [vmem:[%s4441] ss:$2 sm:$0xff]
        %s4443 = scalar_lea.vmem [#allocation4], 97
        %v4444 = vld [vmem:[%s4443] ss:$2 sm:$0xff]
        %s4445 = scalar_lea.vmem [#allocation4], 113
        %v4446 = vld [vmem:[%s4445] ss:$2 sm:$0x7f]
        %s4447 = scalar_lea.vmem [#allocation16], 16
        %v4448 = vld [vmem:[%s4447] sm:$0xff]
        %v4449 = vld [vmem:[%s4447 + $0x8] sm:$0xff]
        %v4451 = vsel %vm3870, %v4432, 0
        %v4454 = vsel %vm3870, %v4434, 0
        %v4457 = vsel %vm3870, %v4436, 0
        %v4460 = vsel %vm3870, %v4438, 0
        %v4463 = vsel %vm3870, %v4440, 0
        %v4466 = vsel %vm3870, %v4442, 0
        %v4469 = vsel %vm3870, %v4444, 0
        %v4472 = vsel %vm3870, %v4446, 0
        %4474 = vmatpush.msra.mxu0 0.0
        %4475 = vmatpush.msra.mxu0 0.0
        %4476 = vmatpush.msra.mxu0 0.0
        %4477 = vmatpush.msra.mxu0 0.0
        %4478 = vmatpush.msra.mxu0 0.0
        %4479 = vmatpush.msra.mxu0 0.0
        %4480 = vmatpush.msra.mxu0 0.0
        %4481 = vmatpush.msra.mxu0 0.0
        %4482 = vmatpush.msra.mxu0 0.0
        %4483 = vmatpush.msra.mxu0 0.0
        %4484 = vmatpush.msra.mxu0 0.0
        %4485 = vmatpush.msra.mxu0 0.0
        %4486 = vmatpush.msra.mxu0 0.0
        %4487 = vmatpush.msra.mxu0 0.0
        %4488 = vmatpush.msra.mxu0 %v4449
        %4489 = vmatpush.msra.mxu0 %v4448
        %4490 = vmatmul.f32.gmra.mxu0 %v4451
        %v4491 = vpop.f32.mrf.mxu0
        %v4492 = vadd.f32 0.0, %v4491
        %4493 = vmatmul.f32.gmra.mxu0 %v4454
        %v4494 = vpop.f32.mrf.mxu0
        %v4495 = vadd.f32 0.0, %v4494
        %4496 = vmatmul.f32.gmra.mxu0 %v4457
        %v4497 = vpop.f32.mrf.mxu0
        %v4498 = vadd.f32 0.0, %v4497
        %4499 = vmatmul.f32.gmra.mxu0 %v4460
        %v4500 = vpop.f32.mrf.mxu0
        %v4501 = vadd.f32 0.0, %v4500
        %4502 = vmatmul.f32.gmra.mxu0 %v4463
        %v4503 = vpop.f32.mrf.mxu0
        %v4504 = vadd.f32 0.0, %v4503
        %4505 = vmatmul.f32.gmra.mxu0 %v4466
        %v4506 = vpop.f32.mrf.mxu0
        %v4507 = vadd.f32 0.0, %v4506
        %4508 = vmatmul.f32.gmra.mxu0 %v4469
        %v4509 = vpop.f32.mrf.mxu0
        %v4510 = vadd.f32 0.0, %v4509
        %4511 = vmatmul.f32.gmra.mxu0 %v4472
        %v4512 = vpop.f32.mrf.mxu0
        %v4513 = vadd.f32 0.0, %v4512
        %4514 = vdwg.mxu0
        %v4516 = vsel %vm3870, %v4414, 0
        %v4519 = vsel %vm3870, %v4416, 0
        %v4522 = vsel %vm3870, %v4418, 0
        %v4525 = vsel %vm3870, %v4420, 0
        %v4528 = vsel %vm3870, %v4422, 0
        %v4531 = vsel %vm3870, %v4424, 0
        %v4534 = vsel %vm3870, %v4426, 0
        %v4537 = vsel %vm3870, %v4428, 0
        %4539 = vmatpush.msra.mxu0 0.0
        %4540 = vmatpush.msra.mxu0 0.0
        %4541 = vmatpush.msra.mxu0 0.0
        %4542 = vmatpush.msra.mxu0 0.0
        %4543 = vmatpush.msra.mxu0 0.0
        %4544 = vmatpush.msra.mxu0 0.0
        %4545 = vmatpush.msra.mxu0 0.0
        %4546 = vmatpush.msra.mxu0 0.0
        %4547 = vmatpush.msra.mxu0 0.0
        %4548 = vmatpush.msra.mxu0 0.0
        %4549 = vmatpush.msra.mxu0 0.0
        %4550 = vmatpush.msra.mxu0 0.0
        %4551 = vmatpush.msra.mxu0 0.0
        %4552 = vmatpush.msra.mxu0 0.0
        %4553 = vmatpush.msra.mxu0 %v4430
        %4554 = vmatpush.msra.mxu0 %v4429
        %4555 = vmatmul.f32.gmra.mxu0 %v4516
        %v4556 = vpop.f32.mrf.mxu0
        %v4557 = vadd.f32 %v4492, %v4556
        %4558 = vmatmul.f32.gmra.mxu0 %v4519
        %v4559 = vpop.f32.mrf.mxu0
        %v4560 = vadd.f32 %v4495, %v4559
        %4561 = vmatmul.f32.gmra.mxu0 %v4522
        %v4562 = vpop.f32.mrf.mxu0
        %v4563 = vadd.f32 %v4498, %v4562
        %4564 = vmatmul.f32.gmra.mxu0 %v4525
        %v4565 = vpop.f32.mrf.mxu0
        %v4566 = vadd.f32 %v4501, %v4565
        %4567 = vmatmul.f32.gmra.mxu0 %v4528
        %v4568 = vpop.f32.mrf.mxu0
        %v4569 = vadd.f32 %v4504, %v4568
        %4570 = vmatmul.f32.gmra.mxu0 %v4531
        %v4571 = vpop.f32.mrf.mxu0
        %v4572 = vadd.f32 %v4507, %v4571
        %4573 = vmatmul.f32.gmra.mxu0 %v4534
        %v4574 = vpop.f32.mrf.mxu0
        %v4575 = vadd.f32 %v4510, %v4574
        %4576 = vmatmul.f32.gmra.mxu0 %v4537
        %v4577 = vpop.f32.mrf.mxu0
        %v4578 = vadd.f32 %v4513, %v4577
        %4579 = vdwg.mxu0
        %s4580 = scalar_lea.vmem [#allocation4], 2
        %v4581 = vld [vmem:[%s4580] ss:$2 sm:$0xff]
        %s4582 = scalar_lea.vmem [#allocation4], 18
        %v4583 = vld [vmem:[%s4582] ss:$2 sm:$0xff]
        %s4584 = scalar_lea.vmem [#allocation4], 34
        %v4585 = vld [vmem:[%s4584] ss:$2 sm:$0xff]
        %s4586 = scalar_lea.vmem [#allocation4], 50
        %v4587 = vld [vmem:[%s4586] ss:$2 sm:$0xff]
        %s4588 = scalar_lea.vmem [#allocation4], 66
        %v4589 = vld [vmem:[%s4588] ss:$2 sm:$0xff]
        %s4590 = scalar_lea.vmem [#allocation4], 82
        %v4591 = vld [vmem:[%s4590] ss:$2 sm:$0xff]
        %s4592 = scalar_lea.vmem [#allocation4], 98
        %v4593 = vld [vmem:[%s4592] ss:$2 sm:$0xff]
        %s4594 = scalar_lea.vmem [#allocation4], 114
        %v4595 = vld [vmem:[%s4594] ss:$2 sm:$0x7f]
        %s4596 = scalar_lea.vmem [#allocation16], 32
        %v4597 = vld [vmem:[%s4596] sm:$0xff]
        %v4598 = vld [vmem:[%s4596 + $0x8] sm:$0xff]
        %v4600 = vsel %vm3870, %v4581, 0
        %v4603 = vsel %vm3870, %v4583, 0
        %v4606 = vsel %vm3870, %v4585, 0
        %v4609 = vsel %vm3870, %v4587, 0
        %v4612 = vsel %vm3870, %v4589, 0
        %v4615 = vsel %vm3870, %v4591, 0
        %v4618 = vsel %vm3870, %v4593, 0
        %v4621 = vsel %vm3870, %v4595, 0
        %4623 = vmatpush.msra.mxu0 0.0
        %4624 = vmatpush.msra.mxu0 0.0
        %4625 = vmatpush.msra.mxu0 0.0
        %4626 = vmatpush.msra.mxu0 0.0
        %4627 = vmatpush.msra.mxu0 0.0
        %4628 = vmatpush.msra.mxu0 0.0
        %4629 = vmatpush.msra.mxu0 0.0
        %4630 = vmatpush.msra.mxu0 0.0
        %4631 = vmatpush.msra.mxu0 0.0
        %4632 = vmatpush.msra.mxu0 0.0
        %4633 = vmatpush.msra.mxu0 0.0
        %4634 = vmatpush.msra.mxu0 0.0
        %4635 = vmatpush.msra.mxu0 0.0
        %4636 = vmatpush.msra.mxu0 0.0
        %4637 = vmatpush.msra.mxu0 %v4598
        %4638 = vmatpush.msra.mxu0 %v4597
        %4639 = vmatmul.f32.gmra.mxu0 %v4600
        %v4640 = vpop.f32.mrf.mxu0
        %v4641 = vadd.f32 0.0, %v4640
        %4642 = vmatmul.f32.gmra.mxu0 %v4603
        %v4643 = vpop.f32.mrf.mxu0
        %v4644 = vadd.f32 0.0, %v4643
        %4645 = vmatmul.f32.gmra.mxu0 %v4606
        %v4646 = vpop.f32.mrf.mxu0
        %v4647 = vadd.f32 0.0, %v4646
        %4648 = vmatmul.f32.gmra.mxu0 %v4609
        %v4649 = vpop.f32.mrf.mxu0
        %v4650 = vadd.f32 0.0, %v4649
        %4651 = vmatmul.f32.gmra.mxu0 %v4612
        %v4652 = vpop.f32.mrf.mxu0
        %v4653 = vadd.f32 0.0, %v4652
        %4654 = vmatmul.f32.gmra.mxu0 %v4615
        %v4655 = vpop.f32.mrf.mxu0
        %v4656 = vadd.f32 0.0, %v4655
        %4657 = vmatmul.f32.gmra.mxu0 %v4618
        %v4658 = vpop.f32.mrf.mxu0
        %v4659 = vadd.f32 0.0, %v4658
        %4660 = vmatmul.f32.gmra.mxu0 %v4621
        %v4661 = vpop.f32.mrf.mxu0
        %v4662 = vadd.f32 0.0, %v4661
        %4663 = vdwg.mxu0
        %v4664 = vadd.f32 %v4557, %v4641
        %v4665 = vadd.f32 %v4560, %v4644
        %v4666 = vadd.f32 %v4563, %v4647
        %v4667 = vadd.f32 %v4566, %v4650
        %v4668 = vadd.f32 %v4569, %v4653
        %v4669 = vadd.f32 %v4572, %v4656
        %v4670 = vadd.f32 %v4575, %v4659
        %v4671 = vadd.f32 %v4578, %v4662
        %v4672 = vld [vmem:[#allocation17] sm:$0x1]
        %v4674 = vperm.slane %v4672, 0
        %v4676 = vadd.f32 %v4664, %v4674
        %v4677 = vadd.f32 %v4665, %v4674
        %v4678 = vadd.f32 %v4666, %v4674
        %v4679 = vadd.f32 %v4667, %v4674
        %v4680 = vadd.f32 %v4668, %v4674
        %v4681 = vadd.f32 %v4669, %v4674
        %v4682 = vadd.f32 %v4670, %v4674
        %v4683 = vadd.f32 %v4671, %v4674
        %v4684 = vmax.f32 %v4676, 0.0
        %v4685 = vmax.f32 %v4677, 0.0
        %v4686 = vmax.f32 %v4678, 0.0
        %v4687 = vmax.f32 %v4679, 0.0
        %v4688 = vmax.f32 %v4680, 0.0
        %v4689 = vmax.f32 %v4681, 0.0
        %v4690 = vmax.f32 %v4682, 0.0
        %v4691 = vmax.f32 %v4683, 0.0
        %vm4692 = vcmask 261120
        %4693 = vst.msk [vmem:[#allocation5] sm:$0xff] %vm4692, %v4684
        %4694 = vst.msk [vmem:[#allocation5 + $0x8] sm:$0xff] %vm4692, %v4685
        %4695 = vst.msk [vmem:[#allocation5 + $0x10] sm:$0xff] %vm4692, %v4686
        %4696 = vst.msk [vmem:[#allocation5 + $0x18] sm:$0xff] %vm4692, %v4687
        %4697 = vst.msk [vmem:[#allocation5 + $0x20] sm:$0xff] %vm4692, %v4688
        %4698 = vst.msk [vmem:[#allocation5 + $0x28] sm:$0xff] %vm4692, %v4689
        %4699 = vst.msk [vmem:[#allocation5 + $0x30] sm:$0xff] %vm4692, %v4690
        %vm4700 = vcmask 260096
        %4701 = vst.msk [vmem:[#allocation5 + $0x38] sm:$0x7f] %vm4700, %v4691
        %v4702 = vld [vmem:[#allocation5] ss:$2 sm:$0xff]
        %s4703 = scalar_lea.vmem [#allocation5], 16
        %v4704 = vld [vmem:[%s4703] ss:$2 sm:$0xff]
        %s4705 = scalar_lea.vmem [#allocation5], 32
        %v4706 = vld [vmem:[%s4705] ss:$2 sm:$0xff]
        %s4707 = scalar_lea.vmem [#allocation5], 48
        %v4708 = vld [vmem:[%s4707] ss:$2 sm:$0x7f]
        %v4709 = vld [vmem:[#allocation19] sm:$0xff]
        %v4710 = vld [vmem:[#allocation19 + $0x8] sm:$0xff]
        %v4711 = vld [vmem:[#allocation19 + $0x10] sm:$0xff]
        %v4712 = vld [vmem:[#allocation19 + $0x18] sm:$0xff]
        %s4713 = scalar_lea.vmem [#allocation5], 1
        %v4714 = vld [vmem:[%s4713] ss:$2 sm:$0xff]
        %s4715 = scalar_lea.vmem [#allocation5], 17
        %v4716 = vld [vmem:[%s4715] ss:$2 sm:$0xff]
        %s4717 = scalar_lea.vmem [#allocation5], 33
        %v4718 = vld [vmem:[%s4717] ss:$2 sm:$0xff]
        %s4719 = scalar_lea.vmem [#allocation5], 49
        %v4720 = vld [vmem:[%s4719] ss:$2 sm:$0x7f]
        %s4721 = scalar_lea.vmem [#allocation19], 32
        %v4722 = vld [vmem:[%s4721] sm:$0xff]
        %v4723 = vld [vmem:[%s4721 + $0x8] sm:$0xff]
        %v4724 = vld [vmem:[%s4721 + $0x10] sm:$0xff]
        %v4725 = vld [vmem:[%s4721 + $0x18] sm:$0xff]
        %v4727 = vsel %vm4692, %v4714, 0
        %v4730 = vsel %vm4692, %v4716, 0
        %v4733 = vsel %vm4692, %v4718, 0
        %v4736 = vsel %vm4692, %v4720, 0
        %4738 = vmatpush.msra.mxu0 0.0
        %4739 = vmatpush.msra.mxu0 0.0
        %4740 = vmatpush.msra.mxu0 0.0
        %4741 = vmatpush.msra.mxu0 0.0
        %4742 = vmatpush.msra.mxu0 0.0
        %4743 = vmatpush.msra.mxu0 0.0
        %4744 = vmatpush.msra.mxu0 0.0
        %4745 = vmatpush.msra.mxu0 0.0
        %4746 = vmatpush.msra.mxu0 0.0
        %4747 = vmatpush.msra.mxu0 0.0
        %4748 = vmatpush.msra.mxu0 0.0
        %4749 = vmatpush.msra.mxu0 0.0
        %4750 = vmatpush.msra.mxu0 %v4725
        %4751 = vmatpush.msra.mxu0 %v4724
        %4752 = vmatpush.msra.mxu0 %v4723
        %4753 = vmatpush.msra.mxu0 %v4722
        %4754 = vmatmul.f32.gmra.mxu0 %v4727
        %v4755 = vpop.f32.mrf.mxu0
        %v4756 = vadd.f32 0.0, %v4755
        %4757 = vmatmul.f32.gmra.mxu0 %v4730
        %v4758 = vpop.f32.mrf.mxu0
        %v4759 = vadd.f32 0.0, %v4758
        %4760 = vmatmul.f32.gmra.mxu0 %v4733
        %v4761 = vpop.f32.mrf.mxu0
        %v4762 = vadd.f32 0.0, %v4761
        %4763 = vmatmul.f32.gmra.mxu0 %v4736
        %v4764 = vpop.f32.mrf.mxu0
        %v4765 = vadd.f32 0.0, %v4764
        %4766 = vdwg.mxu0
        %v4768 = vsel %vm4692, %v4702, 0
        %v4771 = vsel %vm4692, %v4704, 0
        %v4774 = vsel %vm4692, %v4706, 0
        %v4777 = vsel %vm4692, %v4708, 0
        %4779 = vmatpush.msra.mxu0 0.0
        %4780 = vmatpush.msra.mxu0 0.0
        %4781 = vmatpush.msra.mxu0 0.0
        %4782 = vmatpush.msra.mxu0 0.0
        %4783 = vmatpush.msra.mxu0 0.0
        %4784 = vmatpush.msra.mxu0 0.0
        %4785 = vmatpush.msra.mxu0 0.0
        %4786 = vmatpush.msra.mxu0 0.0
        %4787 = vmatpush.msra.mxu0 0.0
        %4788 = vmatpush.msra.mxu0 0.0
        %4789 = vmatpush.msra.mxu0 0.0
        %4790 = vmatpush.msra.mxu0 0.0
        %4791 = vmatpush.msra.mxu0 %v4712
        %4792 = vmatpush.msra.mxu0 %v4711
        %4793 = vmatpush.msra.mxu0 %v4710
        %4794 = vmatpush.msra.mxu0 %v4709
        %4795 = vmatmul.f32.gmra.mxu0 %v4768
        %v4796 = vpop.f32.mrf.mxu0
        %v4797 = vadd.f32 %v4756, %v4796
        %4798 = vmatmul.f32.gmra.mxu0 %v4771
        %v4799 = vpop.f32.mrf.mxu0
        %v4800 = vadd.f32 %v4759, %v4799
        %4801 = vmatmul.f32.gmra.mxu0 %v4774
        %v4802 = vpop.f32.mrf.mxu0
        %v4803 = vadd.f32 %v4762, %v4802
        %4804 = vmatmul.f32.gmra.mxu0 %v4777
        %v4805 = vpop.f32.mrf.mxu0
        %v4806 = vadd.f32 %v4765, %v4805
        %4807 = vdwg.mxu0
        %s4808 = scalar_lea.vmem [#allocation5], 2
        %v4809 = vld [vmem:[%s4808] ss:$2 sm:$0xff]
        %s4810 = scalar_lea.vmem [#allocation5], 18
        %v4811 = vld [vmem:[%s4810] ss:$2 sm:$0xff]
        %s4812 = scalar_lea.vmem [#allocation5], 34
        %v4813 = vld [vmem:[%s4812] ss:$2 sm:$0xff]
        %s4814 = scalar_lea.vmem [#allocation5], 50
        %v4815 = vld [vmem:[%s4814] ss:$2 sm:$0x7f]
        %s4816 = scalar_lea.vmem [#allocation19], 64
        %v4817 = vld [vmem:[%s4816] sm:$0xff]
        %v4818 = vld [vmem:[%s4816 + $0x8] sm:$0xff]
        %v4819 = vld [vmem:[%s4816 + $0x10] sm:$0xff]
        %v4820 = vld [vmem:[%s4816 + $0x18] sm:$0xff]
        %v4822 = vsel %vm4692, %v4809, 0
        %v4825 = vsel %vm4692, %v4811, 0
        %v4828 = vsel %vm4692, %v4813, 0
        %v4831 = vsel %vm4692, %v4815, 0
        %4833 = vmatpush.msra.mxu0 0.0
        %4834 = vmatpush.msra.mxu0 0.0
        %4835 = vmatpush.msra.mxu0 0.0
        %4836 = vmatpush.msra.mxu0 0.0
        %4837 = vmatpush.msra.mxu0 0.0
        %4838 = vmatpush.msra.mxu0 0.0
        %4839 = vmatpush.msra.mxu0 0.0
        %4840 = vmatpush.msra.mxu0 0.0
        %4841 = vmatpush.msra.mxu0 0.0
        %4842 = vmatpush.msra.mxu0 0.0
        %4843 = vmatpush.msra.mxu0 0.0
        %4844 = vmatpush.msra.mxu0 0.0
        %4845 = vmatpush.msra.mxu0 %v4820
        %4846 = vmatpush.msra.mxu0 %v4819
        %4847 = vmatpush.msra.mxu0 %v4818
        %4848 = vmatpush.msra.mxu0 %v4817
        %4849 = vmatmul.f32.gmra.mxu0 %v4822
        %v4850 = vpop.f32.mrf.mxu0
        %v4851 = vadd.f32 0.0, %v4850
        %4852 = vmatmul.f32.gmra.mxu0 %v4825
        %v4853 = vpop.f32.mrf.mxu0
        %v4854 = vadd.f32 0.0, %v4853
        %4855 = vmatmul.f32.gmra.mxu0 %v4828
        %v4856 = vpop.f32.mrf.mxu0
        %v4857 = vadd.f32 0.0, %v4856
        %4858 = vmatmul.f32.gmra.mxu0 %v4831
        %v4859 = vpop.f32.mrf.mxu0
        %v4860 = vadd.f32 0.0, %v4859
        %4861 = vdwg.mxu0
        %v4862 = vadd.f32 %v4797, %v4851
        %v4863 = vadd.f32 %v4800, %v4854
        %v4864 = vadd.f32 %v4803, %v4857
        %v4865 = vadd.f32 %v4806, %v4860
        %v4866 = vld [vmem:[#allocation20] sm:$0x1]
        %v4868 = vperm.slane %v4866, 0
        %v4870 = vadd.f32 %v4862, %v4868
        %v4871 = vadd.f32 %v4863, %v4868
        %v4872 = vadd.f32 %v4864, %v4868
        %v4873 = vadd.f32 %v4865, %v4868
        %v4874 = vmax.f32 %v4870, 0.0
        %v4875 = vmax.f32 %v4871, 0.0
        %v4876 = vmax.f32 %v4872, 0.0
        %v4877 = vmax.f32 %v4873, 0.0
        %4878 = vst.msk [vmem:[#allocation6] sm:$0xff] %vm4692, %v4874
        %4879 = vst.msk [vmem:[#allocation6 + $0x8] sm:$0xff] %vm4692, %v4875
        %4880 = vst.msk [vmem:[#allocation6 + $0x10] sm:$0xff] %vm4692, %v4876
        %4881 = vst.msk [vmem:[#allocation6 + $0x18] sm:$0x7f] %vm4700, %v4877
        %v4882 = vld [vmem:[#allocation6] ss:$2 sm:$0xff]
        %s4883 = scalar_lea.vmem [#allocation6], 16
        %v4884 = vld [vmem:[%s4883] ss:$2 sm:$0x7f]
        %v4885 = vld [vmem:[#allocation22] sm:$0xff]
        %v4886 = vld [vmem:[#allocation22 + $0x8] sm:$0xff]
        %v4887 = vld [vmem:[#allocation22 + $0x10] sm:$0xff]
        %v4888 = vld [vmem:[#allocation22 + $0x18] sm:$0xff]
        %s4889 = scalar_lea.vmem [#allocation6], 1
        %v4890 = vld [vmem:[%s4889] ss:$2 sm:$0xff]
        %s4891 = scalar_lea.vmem [#allocation6], 17
        %v4892 = vld [vmem:[%s4891] ss:$2 sm:$0x7f]
        %s4893 = scalar_lea.vmem [#allocation22], 32
        %v4894 = vld [vmem:[%s4893] sm:$0xff]
        %v4895 = vld [vmem:[%s4893 + $0x8] sm:$0xff]
        %v4896 = vld [vmem:[%s4893 + $0x10] sm:$0xff]
        %v4897 = vld [vmem:[%s4893 + $0x18] sm:$0xff]
        %v4899 = vsel %vm4692, %v4890, 0
        %v4902 = vsel %vm4692, %v4892, 0
        %4904 = vmatpush.msra.mxu0 0.0
        %4905 = vmatpush.msra.mxu0 0.0
        %4906 = vmatpush.msra.mxu0 0.0
        %4907 = vmatpush.msra.mxu0 0.0
        %4908 = vmatpush.msra.mxu0 0.0
        %4909 = vmatpush.msra.mxu0 0.0
        %4910 = vmatpush.msra.mxu0 0.0
        %4911 = vmatpush.msra.mxu0 0.0
        %4912 = vmatpush.msra.mxu0 0.0
        %4913 = vmatpush.msra.mxu0 0.0
        %4914 = vmatpush.msra.mxu0 0.0
        %4915 = vmatpush.msra.mxu0 0.0
        %4916 = vmatpush.msra.mxu0 %v4897
        %4917 = vmatpush.msra.mxu0 %v4896
        %4918 = vmatpush.msra.mxu0 %v4895
        %4919 = vmatpush.msra.mxu0 %v4894
        %4920 = vmatmul.f32.gmra.mxu0 %v4899
        %v4921 = vpop.f32.mrf.mxu0
        %v4922 = vadd.f32 0.0, %v4921
        %4923 = vmatmul.f32.gmra.mxu0 %v4902
        %v4924 = vpop.f32.mrf.mxu0
        %v4925 = vadd.f32 0.0, %v4924
        %4926 = vdwg.mxu0
        %v4928 = vsel %vm4692, %v4882, 0
        %v4931 = vsel %vm4692, %v4884, 0
        %4933 = vmatpush.msra.mxu0 0.0
        %4934 = vmatpush.msra.mxu0 0.0
        %4935 = vmatpush.msra.mxu0 0.0
        %4936 = vmatpush.msra.mxu0 0.0
        %4937 = vmatpush.msra.mxu0 0.0
        %4938 = vmatpush.msra.mxu0 0.0
        %4939 = vmatpush.msra.mxu0 0.0
        %4940 = vmatpush.msra.mxu0 0.0
        %4941 = vmatpush.msra.mxu0 0.0
        %4942 = vmatpush.msra.mxu0 0.0
        %4943 = vmatpush.msra.mxu0 0.0
        %4944 = vmatpush.msra.mxu0 0.0
        %4945 = vmatpush.msra.mxu0 %v4888
        %4946 = vmatpush.msra.mxu0 %v4887
        %4947 = vmatpush.msra.mxu0 %v4886
        %4948 = vmatpush.msra.mxu0 %v4885
        %4949 = vmatmul.f32.gmra.mxu0 %v4928
        %v4950 = vpop.f32.mrf.mxu0
        %v4951 = vadd.f32 %v4922, %v4950
        %4952 = vmatmul.f32.gmra.mxu0 %v4931
        %v4953 = vpop.f32.mrf.mxu0
        %v4954 = vadd.f32 %v4925, %v4953
        %4955 = vdwg.mxu0
        %s4956 = scalar_lea.vmem [#allocation6], 2
        %v4957 = vld [vmem:[%s4956] ss:$2 sm:$0xff]
        %s4958 = scalar_lea.vmem [#allocation6], 18
        %v4959 = vld [vmem:[%s4958] ss:$2 sm:$0x7f]
        %s4960 = scalar_lea.vmem [#allocation22], 64
        %v4961 = vld [vmem:[%s4960] sm:$0xff]
        %v4962 = vld [vmem:[%s4960 + $0x8] sm:$0xff]
        %v4963 = vld [vmem:[%s4960 + $0x10] sm:$0xff]
        %v4964 = vld [vmem:[%s4960 + $0x18] sm:$0xff]
        %v4966 = vsel %vm4692, %v4957, 0
        %v4969 = vsel %vm4692, %v4959, 0
        %4971 = vmatpush.msra.mxu0 0.0
        %4972 = vmatpush.msra.mxu0 0.0
        %4973 = vmatpush.msra.mxu0 0.0
        %4974 = vmatpush.msra.mxu0 0.0
        %4975 = vmatpush.msra.mxu0 0.0
        %4976 = vmatpush.msra.mxu0 0.0
        %4977 = vmatpush.msra.mxu0 0.0
        %4978 = vmatpush.msra.mxu0 0.0
        %4979 = vmatpush.msra.mxu0 0.0
        %4980 = vmatpush.msra.mxu0 0.0
        %4981 = vmatpush.msra.mxu0 0.0
        %4982 = vmatpush.msra.mxu0 0.0
        %4983 = vmatpush.msra.mxu0 %v4964
        %4984 = vmatpush.msra.mxu0 %v4963
        %4985 = vmatpush.msra.mxu0 %v4962
        %4986 = vmatpush.msra.mxu0 %v4961
        %4987 = vmatmul.f32.gmra.mxu0 %v4966
        %v4988 = vpop.f32.mrf.mxu0
        %v4989 = vadd.f32 0.0, %v4988
        %4990 = vmatmul.f32.gmra.mxu0 %v4969
        %v4991 = vpop.f32.mrf.mxu0
        %v4992 = vadd.f32 0.0, %v4991
        %4993 = vdwg.mxu0
        %v4994 = vadd.f32 %v4951, %v4989
        %v4995 = vadd.f32 %v4954, %v4992
        %v4996 = vld [vmem:[#allocation23] sm:$0x1]
        %v4998 = vperm.slane %v4996, 0
        %v5000 = vadd.f32 %v4994, %v4998
        %v5001 = vadd.f32 %v4995, %v4998
        %v5002 = vmax.f32 %v5000, 0.0
        %v5003 = vmax.f32 %v5001, 0.0
        %vm5004 = vcmask 523264
        %5005 = vst.msk [vmem:[#allocation7] sm:$0xff] %vm5004, %v5002
        %vm5006 = vcmask 522240
        %5007 = vst.msk [vmem:[#allocation7 + $0x8] sm:$0x7f] %vm5006, %v5003
        %v5008 = vld [vmem:[#allocation7] ss:$2 sm:$0x7f]
        %v5009 = vld [vmem:[#allocation25] sm:$0xff]
        %v5010 = vld [vmem:[#allocation25 + $0x8] sm:$0xff]
        %v5011 = vld [vmem:[#allocation25 + $0x10] sm:$0xff]
        %v5012 = vld [vmem:[#allocation25 + $0x18] sm:$0xff]
        %v5013 = vld [vmem:[#allocation25 + $0x20] sm:$0xff]
        %v5014 = vld [vmem:[#allocation25 + $0x28] sm:$0xff]
        %v5015 = vld [vmem:[#allocation25 + $0x30] sm:$0xff]
        %v5016 = vld [vmem:[#allocation25 + $0x38] sm:$0xff]
        %s5017 = scalar_lea.vmem [#allocation7], 1
        %v5018 = vld [vmem:[%s5017] ss:$2 sm:$0x7f]
        %s5019 = scalar_lea.vmem [#allocation25], 64
        %v5020 = vld [vmem:[%s5019] sm:$0xff]
        %v5021 = vld [vmem:[%s5019 + $0x8] sm:$0xff]
        %v5022 = vld [vmem:[%s5019 + $0x10] sm:$0xff]
        %v5023 = vld [vmem:[%s5019 + $0x18] sm:$0xff]
        %v5024 = vld [vmem:[%s5019 + $0x20] sm:$0xff]
        %v5025 = vld [vmem:[%s5019 + $0x28] sm:$0xff]
        %v5026 = vld [vmem:[%s5019 + $0x30] sm:$0xff]
        %v5027 = vld [vmem:[%s5019 + $0x38] sm:$0xff]
        %v5029 = vsel %vm5004, %v5018, 0
        %5031 = vmatpush.msra.mxu0 0.0
        %5032 = vmatpush.msra.mxu0 0.0
        %5033 = vmatpush.msra.mxu0 0.0
        %5034 = vmatpush.msra.mxu0 0.0
        %5035 = vmatpush.msra.mxu0 0.0
        %5036 = vmatpush.msra.mxu0 0.0
        %5037 = vmatpush.msra.mxu0 0.0
        %5038 = vmatpush.msra.mxu0 0.0
        %5039 = vmatpush.msra.mxu0 %v5027
        %5040 = vmatpush.msra.mxu0 %v5026
        %5041 = vmatpush.msra.mxu0 %v5025
        %5042 = vmatpush.msra.mxu0 %v5024
        %5043 = vmatpush.msra.mxu0 %v5023
        %5044 = vmatpush.msra.mxu0 %v5022
        %5045 = vmatpush.msra.mxu0 %v5021
        %5046 = vmatpush.msra.mxu0 %v5020
        %5047 = vmatmul.f32.gmra.mxu0 %v5029
        %v5048 = vpop.f32.mrf.mxu0
        %v5049 = vadd.f32 0.0, %v5048
        %5050 = vdwg.mxu0
        %v5052 = vsel %vm5004, %v5008, 0
        %5054 = vmatpush.msra.mxu0 0.0
        %5055 = vmatpush.msra.mxu0 0.0
        %5056 = vmatpush.msra.mxu0 0.0
        %5057 = vmatpush.msra.mxu0 0.0
        %5058 = vmatpush.msra.mxu0 0.0
        %5059 = vmatpush.msra.mxu0 0.0
        %5060 = vmatpush.msra.mxu0 0.0
        %5061 = vmatpush.msra.mxu0 0.0
        %5062 = vmatpush.msra.mxu0 %v5016
        %5063 = vmatpush.msra.mxu0 %v5015
        %5064 = vmatpush.msra.mxu0 %v5014
        %5065 = vmatpush.msra.mxu0 %v5013
        %5066 = vmatpush.msra.mxu0 %v5012
        %5067 = vmatpush.msra.mxu0 %v5011
        %5068 = vmatpush.msra.mxu0 %v5010
        %5069 = vmatpush.msra.mxu0 %v5009
        %5070 = vmatmul.f32.gmra.mxu0 %v5052
        %v5071 = vpop.f32.mrf.mxu0
        %v5072 = vadd.f32 %v5049, %v5071
        %5073 = vdwg.mxu0
        %s5074 = scalar_lea.vmem [#allocation7], 2
        %v5075 = vld [vmem:[%s5074] ss:$2 sm:$0x7f]
        %s5076 = scalar_lea.vmem [#allocation25], 128
        %v5077 = vld [vmem:[%s5076] sm:$0xff]
        %v5078 = vld [vmem:[%s5076 + $0x8] sm:$0xff]
        %v5079 = vld [vmem:[%s5076 + $0x10] sm:$0xff]
        %v5080 = vld [vmem:[%s5076 + $0x18] sm:$0xff]
        %v5081 = vld [vmem:[%s5076 + $0x20] sm:$0xff]
        %v5082 = vld [vmem:[%s5076 + $0x28] sm:$0xff]
        %v5083 = vld [vmem:[%s5076 + $0x30] sm:$0xff]
        %v5084 = vld [vmem:[%s5076 + $0x38] sm:$0xff]
        %v5086 = vsel %vm5004, %v5075, 0
        %5088 = vmatpush.msra.mxu0 0.0
        %5089 = vmatpush.msra.mxu0 0.0
        %5090 = vmatpush.msra.mxu0 0.0
        %5091 = vmatpush.msra.mxu0 0.0
        %5092 = vmatpush.msra.mxu0 0.0
        %5093 = vmatpush.msra.mxu0 0.0
        %5094 = vmatpush.msra.mxu0 0.0
        %5095 = vmatpush.msra.mxu0 0.0
        %5096 = vmatpush.msra.mxu0 %v5084
        %5097 = vmatpush.msra.mxu0 %v5083
        %5098 = vmatpush.msra.mxu0 %v5082
        %5099 = vmatpush.msra.mxu0 %v5081
        %5100 = vmatpush.msra.mxu0 %v5080
        %5101 = vmatpush.msra.mxu0 %v5079
        %5102 = vmatpush.msra.mxu0 %v5078
        %5103 = vmatpush.msra.mxu0 %v5077
        %5104 = vmatmul.f32.gmra.mxu0 %v5086
        %v5105 = vpop.f32.mrf.mxu0
        %v5106 = vadd.f32 0.0, %v5105
        %5107 = vdwg.mxu0
        %v5108 = vadd.f32 %v5072, %v5106
        %v5109 = vld [vmem:[#allocation26] sm:$0x1]
        %v5111 = vperm.slane %v5109, 0
        %v5113 = vadd.f32 %v5108, %v5111
        %v5114 = vmax.f32 %v5113, 0.0
        %v5115 = vld [vmem:[%s16] sm:$0x3]
        %v5116 = vld [vmem:[%s15] sm:$0xff]
        %v5117 = vld [vmem:[%s15 + $0x8] sm:$0xff]
        %v5118 = vld [vmem:[%s15 + $0x10] sm:$0xff]
        %v5119 = vld [vmem:[%s15 + $0x18] sm:$0xff]
        %v5120 = vld [vmem:[%s15 + $0x20] sm:$0xff]
        %v5121 = vld [vmem:[%s15 + $0x28] sm:$0xff]
        %v5122 = vld [vmem:[%s15 + $0x30] sm:$0xff]
        %v5123 = vld [vmem:[%s15 + $0x38] sm:$0xff]
        %v5124 = vld [vmem:[%s15 + $0x40] sm:$0xff]
        %v5125 = vld [vmem:[%s15 + $0x48] sm:$0xff]
        %v5126 = vld [vmem:[%s15 + $0x50] sm:$0xff]
        %v5127 = vld [vmem:[%s15 + $0x58] sm:$0xff]
        %v5128 = vld [vmem:[%s15 + $0x60] sm:$0xff]
        %v5129 = vld [vmem:[%s15 + $0x68] sm:$0xff]
        %v5130 = vld [vmem:[%s15 + $0x70] sm:$0xff]
        %v5131 = vld [vmem:[%s15 + $0x78] sm:$0xff]
        %v5133 = vsel %vm5004, %v5114, 0
        %5135 = vmatpush.msra.mxu0 0.0
        %5136 = vmatpush.msra.mxu0 0.0
        %5137 = vmatpush.msra.mxu0 0.0
        %5138 = vmatpush.msra.mxu0 0.0
        %5139 = vmatpush.msra.mxu0 0.0
        %5140 = vmatpush.msra.mxu0 0.0
        %5141 = vmatpush.msra.mxu0 0.0
        %5142 = vmatpush.msra.mxu0 0.0
        %5143 = vmatpush.msra.mxu0 %v5130
        %5144 = vmatpush.msra.mxu0 %v5128
        %5145 = vmatpush.msra.mxu0 %v5126
        %5146 = vmatpush.msra.mxu0 %v5124
        %5147 = vmatpush.msra.mxu0 %v5122
        %5148 = vmatpush.msra.mxu0 %v5120
        %5149 = vmatpush.msra.mxu0 %v5118
        %5150 = vmatpush.msra.mxu0 %v5116
        %5151 = vmatmul.f32.gmra.mxu0 %v5133
        %v5152 = vpop.f32.mrf.mxu0
        %v5153 = vadd.f32 0.0, %v5152
        %5154 = vdwg.mxu0
        %5155 = vmatpush.msra.mxu0 0.0
        %5156 = vmatpush.msra.mxu0 0.0
        %5157 = vmatpush.msra.mxu0 0.0
        %5158 = vmatpush.msra.mxu0 0.0
        %5159 = vmatpush.msra.mxu0 0.0
        %5160 = vmatpush.msra.mxu0 0.0
        %5161 = vmatpush.msra.mxu0 0.0
        %5162 = vmatpush.msra.mxu0 0.0
        %5163 = vmatpush.msra.mxu0 %v5131
        %5164 = vmatpush.msra.mxu0 %v5129
        %5165 = vmatpush.msra.mxu0 %v5127
        %5166 = vmatpush.msra.mxu0 %v5125
        %5167 = vmatpush.msra.mxu0 %v5123
        %5168 = vmatpush.msra.mxu0 %v5121
        %5169 = vmatpush.msra.mxu0 %v5119
        %5170 = vmatpush.msra.mxu0 %v5117
        %5171 = vmatmul.f32.gmra.mxu0 %v5133
        %v5172 = vpop.f32.mrf.mxu0
        %v5173 = vadd.f32 0.0, %v5172
        %5174 = vdwg.mxu0
        %v5177 = vrot.slane %v5173, 7
        %vm5178 = vcmask 1040384
        %v5179 = vsel %vm5178, %v5153, %v5177
        %v5181 = vadd.f32 %v5115, %v5179
        %s5182 = scalar_lea.vmem %s15, 128
        %v5183 = vld [vmem:[%s5182] sm:$0xff]
        %v5184 = vld [vmem:[%s5182 + $0x8] sm:$0xff]
        %v5185 = vld [vmem:[%s5182 + $0x10] sm:$0xff]
        %v5186 = vld [vmem:[%s5182 + $0x18] sm:$0xff]
        %v5187 = vld [vmem:[%s5182 + $0x20] sm:$0xff]
        %v5188 = vld [vmem:[%s5182 + $0x28] sm:$0xff]
        %v5189 = vld [vmem:[%s5182 + $0x30] sm:$0xff]
        %v5190 = vld [vmem:[%s5182 + $0x38] sm:$0xff]
        %v5191 = vld [vmem:[%s5182 + $0x40] sm:$0xff]
        %v5192 = vld [vmem:[%s5182 + $0x48] sm:$0xff]
        %v5193 = vld [vmem:[%s5182 + $0x50] sm:$0xff]
        %v5194 = vld [vmem:[%s5182 + $0x58] sm:$0xff]
        %v5195 = vld [vmem:[%s5182 + $0x60] sm:$0xff]
        %v5196 = vld [vmem:[%s5182 + $0x68] sm:$0xff]
        %v5197 = vld [vmem:[%s5182 + $0x70] sm:$0xff]
        %v5198 = vld [vmem:[%s5182 + $0x78] sm:$0xff]
        %v5199 = vrot.slane %v5114, 1
        %v5200 = vsel %vm5004, %v5199, 0
        %5202 = vmatpush.msra.mxu0 0.0
        %5203 = vmatpush.msra.mxu0 0.0
        %5204 = vmatpush.msra.mxu0 0.0
        %5205 = vmatpush.msra.mxu0 0.0
        %5206 = vmatpush.msra.mxu0 0.0
        %5207 = vmatpush.msra.mxu0 0.0
        %5208 = vmatpush.msra.mxu0 0.0
        %5209 = vmatpush.msra.mxu0 0.0
        %5210 = vmatpush.msra.mxu0 %v5197
        %5211 = vmatpush.msra.mxu0 %v5195
        %5212 = vmatpush.msra.mxu0 %v5193
        %5213 = vmatpush.msra.mxu0 %v5191
        %5214 = vmatpush.msra.mxu0 %v5189
        %5215 = vmatpush.msra.mxu0 %v5187
        %5216 = vmatpush.msra.mxu0 %v5185
        %5217 = vmatpush.msra.mxu0 %v5183
        %5218 = vmatmul.f32.gmra.mxu0 %v5200
        %v5219 = vpop.f32.mrf.mxu0
        %v5220 = vadd.f32 0.0, %v5219
        %5221 = vdwg.mxu0
        %5222 = vmatpush.msra.mxu0 0.0
        %5223 = vmatpush.msra.mxu0 0.0
        %5224 = vmatpush.msra.mxu0 0.0
        %5225 = vmatpush.msra.mxu0 0.0
        %5226 = vmatpush.msra.mxu0 0.0
        %5227 = vmatpush.msra.mxu0 0.0
        %5228 = vmatpush.msra.mxu0 0.0
        %5229 = vmatpush.msra.mxu0 0.0
        %5230 = vmatpush.msra.mxu0 %v5198
        %5231 = vmatpush.msra.mxu0 %v5196
        %5232 = vmatpush.msra.mxu0 %v5194
        %5233 = vmatpush.msra.mxu0 %v5192
        %5234 = vmatpush.msra.mxu0 %v5190
        %5235 = vmatpush.msra.mxu0 %v5188
        %5236 = vmatpush.msra.mxu0 %v5186
        %5237 = vmatpush.msra.mxu0 %v5184
        %5238 = vmatmul.f32.gmra.mxu0 %v5200
        %v5239 = vpop.f32.mrf.mxu0
        %v5240 = vadd.f32 0.0, %v5239
        %5241 = vdwg.mxu0
        %v5244 = vrot.slane %v5240, 7
        %v5245 = vsel %vm5178, %v5220, %v5244
        %v5247 = vadd.f32 %v5181, %v5245
        %s5248 = scalar_lea.vmem %s15, 256
        %v5249 = vld [vmem:[%s5248] sm:$0xff]
        %v5250 = vld [vmem:[%s5248 + $0x8] sm:$0xff]
        %v5251 = vld [vmem:[%s5248 + $0x10] sm:$0xff]
        %v5252 = vld [vmem:[%s5248 + $0x18] sm:$0xff]
        %v5253 = vld [vmem:[%s5248 + $0x20] sm:$0xff]
        %v5254 = vld [vmem:[%s5248 + $0x28] sm:$0xff]
        %v5255 = vld [vmem:[%s5248 + $0x30] sm:$0xff]
        %v5256 = vld [vmem:[%s5248 + $0x38] sm:$0xff]
        %v5257 = vld [vmem:[%s5248 + $0x40] sm:$0xff]
        %v5258 = vld [vmem:[%s5248 + $0x48] sm:$0xff]
        %v5259 = vld [vmem:[%s5248 + $0x50] sm:$0xff]
        %v5260 = vld [vmem:[%s5248 + $0x58] sm:$0xff]
        %v5261 = vld [vmem:[%s5248 + $0x60] sm:$0xff]
        %v5262 = vld [vmem:[%s5248 + $0x68] sm:$0xff]
        %v5263 = vld [vmem:[%s5248 + $0x70] sm:$0xff]
        %v5264 = vld [vmem:[%s5248 + $0x78] sm:$0xff]
        %v5265 = vrot.slane %v5114, 2
        %v5266 = vsel %vm5004, %v5265, 0
        %5268 = vmatpush.msra.mxu0 0.0
        %5269 = vmatpush.msra.mxu0 0.0
        %5270 = vmatpush.msra.mxu0 0.0
        %5271 = vmatpush.msra.mxu0 0.0
        %5272 = vmatpush.msra.mxu0 0.0
        %5273 = vmatpush.msra.mxu0 0.0
        %5274 = vmatpush.msra.mxu0 0.0
        %5275 = vmatpush.msra.mxu0 0.0
        %5276 = vmatpush.msra.mxu0 %v5263
        %5277 = vmatpush.msra.mxu0 %v5261
        %5278 = vmatpush.msra.mxu0 %v5259
        %5279 = vmatpush.msra.mxu0 %v5257
        %5280 = vmatpush.msra.mxu0 %v5255
        %5281 = vmatpush.msra.mxu0 %v5253
        %5282 = vmatpush.msra.mxu0 %v5251
        %5283 = vmatpush.msra.mxu0 %v5249
        %5284 = vmatmul.f32.gmra.mxu0 %v5266
        %v5285 = vpop.f32.mrf.mxu0
        %v5286 = vadd.f32 0.0, %v5285
        %5287 = vdwg.mxu0
        %5288 = vmatpush.msra.mxu0 0.0
        %5289 = vmatpush.msra.mxu0 0.0
        %5290 = vmatpush.msra.mxu0 0.0
        %5291 = vmatpush.msra.mxu0 0.0
        %5292 = vmatpush.msra.mxu0 0.0
        %5293 = vmatpush.msra.mxu0 0.0
        %5294 = vmatpush.msra.mxu0 0.0
        %5295 = vmatpush.msra.mxu0 0.0
        %5296 = vmatpush.msra.mxu0 %v5264
        %5297 = vmatpush.msra.mxu0 %v5262
        %5298 = vmatpush.msra.mxu0 %v5260
        %5299 = vmatpush.msra.mxu0 %v5258
        %5300 = vmatpush.msra.mxu0 %v5256
        %5301 = vmatpush.msra.mxu0 %v5254
        %5302 = vmatpush.msra.mxu0 %v5252
        %5303 = vmatpush.msra.mxu0 %v5250
        %5304 = vmatmul.f32.gmra.mxu0 %v5266
        %v5305 = vpop.f32.mrf.mxu0
        %v5306 = vadd.f32 0.0, %v5305
        %5307 = vdwg.mxu0
        %v5310 = vrot.slane %v5306, 7
        %v5311 = vsel %vm5178, %v5286, %v5310
        %v5313 = vadd.f32 %v5247, %v5311
        %s5314 = scalar_lea.vmem %s15, 384
        %v5315 = vld [vmem:[%s5314] sm:$0xff]
        %v5316 = vld [vmem:[%s5314 + $0x8] sm:$0xff]
        %v5317 = vld [vmem:[%s5314 + $0x10] sm:$0xff]
        %v5318 = vld [vmem:[%s5314 + $0x18] sm:$0xff]
        %v5319 = vld [vmem:[%s5314 + $0x20] sm:$0xff]
        %v5320 = vld [vmem:[%s5314 + $0x28] sm:$0xff]
        %v5321 = vld [vmem:[%s5314 + $0x30] sm:$0xff]
        %v5322 = vld [vmem:[%s5314 + $0x38] sm:$0xff]
        %v5323 = vld [vmem:[%s5314 + $0x40] sm:$0xff]
        %v5324 = vld [vmem:[%s5314 + $0x48] sm:$0xff]
        %v5325 = vld [vmem:[%s5314 + $0x50] sm:$0xff]
        %v5326 = vld [vmem:[%s5314 + $0x58] sm:$0xff]
        %v5327 = vld [vmem:[%s5314 + $0x60] sm:$0xff]
        %v5328 = vld [vmem:[%s5314 + $0x68] sm:$0xff]
        %v5329 = vld [vmem:[%s5314 + $0x70] sm:$0xff]
        %v5330 = vld [vmem:[%s5314 + $0x78] sm:$0xff]
        %v5331 = vrot.slane %v5114, 3
        %v5332 = vsel %vm5004, %v5331, 0
        %5334 = vmatpush.msra.mxu0 0.0
        %5335 = vmatpush.msra.mxu0 0.0
        %5336 = vmatpush.msra.mxu0 0.0
        %5337 = vmatpush.msra.mxu0 0.0
        %5338 = vmatpush.msra.mxu0 0.0
        %5339 = vmatpush.msra.mxu0 0.0
        %5340 = vmatpush.msra.mxu0 0.0
        %5341 = vmatpush.msra.mxu0 0.0
        %5342 = vmatpush.msra.mxu0 %v5329
        %5343 = vmatpush.msra.mxu0 %v5327
        %5344 = vmatpush.msra.mxu0 %v5325
        %5345 = vmatpush.msra.mxu0 %v5323
        %5346 = vmatpush.msra.mxu0 %v5321
        %5347 = vmatpush.msra.mxu0 %v5319
        %5348 = vmatpush.msra.mxu0 %v5317
        %5349 = vmatpush.msra.mxu0 %v5315
        %5350 = vmatmul.f32.gmra.mxu0 %v5332
        %v5351 = vpop.f32.mrf.mxu0
        %v5352 = vadd.f32 0.0, %v5351
        %5353 = vdwg.mxu0
        %5354 = vmatpush.msra.mxu0 0.0
        %5355 = vmatpush.msra.mxu0 0.0
        %5356 = vmatpush.msra.mxu0 0.0
        %5357 = vmatpush.msra.mxu0 0.0
        %5358 = vmatpush.msra.mxu0 0.0
        %5359 = vmatpush.msra.mxu0 0.0
        %5360 = vmatpush.msra.mxu0 0.0
        %5361 = vmatpush.msra.mxu0 0.0
        %5362 = vmatpush.msra.mxu0 %v5330
        %5363 = vmatpush.msra.mxu0 %v5328
        %5364 = vmatpush.msra.mxu0 %v5326
        %5365 = vmatpush.msra.mxu0 %v5324
        %5366 = vmatpush.msra.mxu0 %v5322
        %5367 = vmatpush.msra.mxu0 %v5320
        %5368 = vmatpush.msra.mxu0 %v5318
        %5369 = vmatpush.msra.mxu0 %v5316
        %5370 = vmatmul.f32.gmra.mxu0 %v5332
        %v5371 = vpop.f32.mrf.mxu0
        %v5372 = vadd.f32 0.0, %v5371
        %5373 = vdwg.mxu0
        %v5376 = vrot.slane %v5372, 7
        %v5377 = vsel %vm5178, %v5352, %v5376
        %v5379 = vadd.f32 %v5313, %v5377
        %s5380 = scalar_lea.vmem %s15, 512
        %v5381 = vld [vmem:[%s5380] sm:$0xff]
        %v5382 = vld [vmem:[%s5380 + $0x8] sm:$0xff]
        %v5383 = vld [vmem:[%s5380 + $0x10] sm:$0xff]
        %v5384 = vld [vmem:[%s5380 + $0x18] sm:$0xff]
        %v5385 = vld [vmem:[%s5380 + $0x20] sm:$0xff]
        %v5386 = vld [vmem:[%s5380 + $0x28] sm:$0xff]
        %v5387 = vld [vmem:[%s5380 + $0x30] sm:$0xff]
        %v5388 = vld [vmem:[%s5380 + $0x38] sm:$0xff]
        %v5389 = vld [vmem:[%s5380 + $0x40] sm:$0xff]
        %v5390 = vld [vmem:[%s5380 + $0x48] sm:$0xff]
        %v5391 = vld [vmem:[%s5380 + $0x50] sm:$0xff]
        %v5392 = vld [vmem:[%s5380 + $0x58] sm:$0xff]
        %v5393 = vld [vmem:[%s5380 + $0x60] sm:$0xff]
        %v5394 = vld [vmem:[%s5380 + $0x68] sm:$0xff]
        %v5395 = vld [vmem:[%s5380 + $0x70] sm:$0xff]
        %v5396 = vld [vmem:[%s5380 + $0x78] sm:$0xff]
        %v5397 = vrot.slane %v5114, 4
        %v5398 = vsel %vm5004, %v5397, 0
        %5400 = vmatpush.msra.mxu0 0.0
        %5401 = vmatpush.msra.mxu0 0.0
        %5402 = vmatpush.msra.mxu0 0.0
        %5403 = vmatpush.msra.mxu0 0.0
        %5404 = vmatpush.msra.mxu0 0.0
        %5405 = vmatpush.msra.mxu0 0.0
        %5406 = vmatpush.msra.mxu0 0.0
        %5407 = vmatpush.msra.mxu0 0.0
        %5408 = vmatpush.msra.mxu0 %v5395
        %5409 = vmatpush.msra.mxu0 %v5393
        %5410 = vmatpush.msra.mxu0 %v5391
        %5411 = vmatpush.msra.mxu0 %v5389
        %5412 = vmatpush.msra.mxu0 %v5387
        %5413 = vmatpush.msra.mxu0 %v5385
        %5414 = vmatpush.msra.mxu0 %v5383
        %5415 = vmatpush.msra.mxu0 %v5381
        %5416 = vmatmul.f32.gmra.mxu0 %v5398
        %v5417 = vpop.f32.mrf.mxu0
        %v5418 = vadd.f32 0.0, %v5417
        %5419 = vdwg.mxu0
        %5420 = vmatpush.msra.mxu0 0.0
        %5421 = vmatpush.msra.mxu0 0.0
        %5422 = vmatpush.msra.mxu0 0.0
        %5423 = vmatpush.msra.mxu0 0.0
        %5424 = vmatpush.msra.mxu0 0.0
        %5425 = vmatpush.msra.mxu0 0.0
        %5426 = vmatpush.msra.mxu0 0.0
        %5427 = vmatpush.msra.mxu0 0.0
        %5428 = vmatpush.msra.mxu0 %v5396
        %5429 = vmatpush.msra.mxu0 %v5394
        %5430 = vmatpush.msra.mxu0 %v5392
        %5431 = vmatpush.msra.mxu0 %v5390
        %5432 = vmatpush.msra.mxu0 %v5388
        %5433 = vmatpush.msra.mxu0 %v5386
        %5434 = vmatpush.msra.mxu0 %v5384
        %5435 = vmatpush.msra.mxu0 %v5382
        %5436 = vmatmul.f32.gmra.mxu0 %v5398
        %v5437 = vpop.f32.mrf.mxu0
        %v5438 = vadd.f32 0.0, %v5437
        %5439 = vdwg.mxu0
        %v5442 = vrot.slane %v5438, 7
        %v5443 = vsel %vm5178, %v5418, %v5442
        %v5445 = vadd.f32 %v5379, %v5443
        %s5446 = scalar_lea.vmem %s15, 640
        %v5447 = vld [vmem:[%s5446] sm:$0xff]
        %v5448 = vld [vmem:[%s5446 + $0x8] sm:$0xff]
        %v5449 = vld [vmem:[%s5446 + $0x10] sm:$0xff]
        %v5450 = vld [vmem:[%s5446 + $0x18] sm:$0xff]
        %v5451 = vld [vmem:[%s5446 + $0x20] sm:$0xff]
        %v5452 = vld [vmem:[%s5446 + $0x28] sm:$0xff]
        %v5453 = vld [vmem:[%s5446 + $0x30] sm:$0xff]
        %v5454 = vld [vmem:[%s5446 + $0x38] sm:$0xff]
        %v5455 = vld [vmem:[%s5446 + $0x40] sm:$0xff]
        %v5456 = vld [vmem:[%s5446 + $0x48] sm:$0xff]
        %v5457 = vld [vmem:[%s5446 + $0x50] sm:$0xff]
        %v5458 = vld [vmem:[%s5446 + $0x58] sm:$0xff]
        %v5459 = vld [vmem:[%s5446 + $0x60] sm:$0xff]
        %v5460 = vld [vmem:[%s5446 + $0x68] sm:$0xff]
        %v5461 = vld [vmem:[%s5446 + $0x70] sm:$0xff]
        %v5462 = vld [vmem:[%s5446 + $0x78] sm:$0xff]
        %v5463 = vrot.slane %v5114, 5
        %v5464 = vsel %vm5004, %v5463, 0
        %5466 = vmatpush.msra.mxu0 0.0
        %5467 = vmatpush.msra.mxu0 0.0
        %5468 = vmatpush.msra.mxu0 0.0
        %5469 = vmatpush.msra.mxu0 0.0
        %5470 = vmatpush.msra.mxu0 0.0
        %5471 = vmatpush.msra.mxu0 0.0
        %5472 = vmatpush.msra.mxu0 0.0
        %5473 = vmatpush.msra.mxu0 0.0
        %5474 = vmatpush.msra.mxu0 %v5461
        %5475 = vmatpush.msra.mxu0 %v5459
        %5476 = vmatpush.msra.mxu0 %v5457
        %5477 = vmatpush.msra.mxu0 %v5455
        %5478 = vmatpush.msra.mxu0 %v5453
        %5479 = vmatpush.msra.mxu0 %v5451
        %5480 = vmatpush.msra.mxu0 %v5449
        %5481 = vmatpush.msra.mxu0 %v5447
        %5482 = vmatmul.f32.gmra.mxu0 %v5464
        %v5483 = vpop.f32.mrf.mxu0
        %v5484 = vadd.f32 0.0, %v5483
        %5485 = vdwg.mxu0
        %5486 = vmatpush.msra.mxu0 0.0
        %5487 = vmatpush.msra.mxu0 0.0
        %5488 = vmatpush.msra.mxu0 0.0
        %5489 = vmatpush.msra.mxu0 0.0
        %5490 = vmatpush.msra.mxu0 0.0
        %5491 = vmatpush.msra.mxu0 0.0
        %5492 = vmatpush.msra.mxu0 0.0
        %5493 = vmatpush.msra.mxu0 0.0
        %5494 = vmatpush.msra.mxu0 %v5462
        %5495 = vmatpush.msra.mxu0 %v5460
        %5496 = vmatpush.msra.mxu0 %v5458
        %5497 = vmatpush.msra.mxu0 %v5456
        %5498 = vmatpush.msra.mxu0 %v5454
        %5499 = vmatpush.msra.mxu0 %v5452
        %5500 = vmatpush.msra.mxu0 %v5450
        %5501 = vmatpush.msra.mxu0 %v5448
        %5502 = vmatmul.f32.gmra.mxu0 %v5464
        %v5503 = vpop.f32.mrf.mxu0
        %v5504 = vadd.f32 0.0, %v5503
        %5505 = vdwg.mxu0
        %v5508 = vrot.slane %v5504, 7
        %v5509 = vsel %vm5178, %v5484, %v5508
        %v5511 = vadd.f32 %v5445, %v5509
        %s5512 = scalar_lea.vmem %s15, 768
        %v5513 = vld [vmem:[%s5512] sm:$0xff]
        %v5514 = vld [vmem:[%s5512 + $0x8] sm:$0xff]
        %v5515 = vld [vmem:[%s5512 + $0x10] sm:$0xff]
        %v5516 = vld [vmem:[%s5512 + $0x18] sm:$0xff]
        %v5517 = vld [vmem:[%s5512 + $0x20] sm:$0xff]
        %v5518 = vld [vmem:[%s5512 + $0x28] sm:$0xff]
        %v5519 = vld [vmem:[%s5512 + $0x30] sm:$0xff]
        %v5520 = vld [vmem:[%s5512 + $0x38] sm:$0xff]
        %v5521 = vld [vmem:[%s5512 + $0x40] sm:$0xff]
        %v5522 = vld [vmem:[%s5512 + $0x48] sm:$0xff]
        %v5523 = vld [vmem:[%s5512 + $0x50] sm:$0xff]
        %v5524 = vld [vmem:[%s5512 + $0x58] sm:$0xff]
        %v5525 = vld [vmem:[%s5512 + $0x60] sm:$0xff]
        %v5526 = vld [vmem:[%s5512 + $0x68] sm:$0xff]
        %v5527 = vld [vmem:[%s5512 + $0x70] sm:$0xff]
        %v5528 = vld [vmem:[%s5512 + $0x78] sm:$0xff]
        %v5529 = vrot.slane %v5114, 6
        %v5530 = vsel %vm5004, %v5529, 0
        %5532 = vmatpush.msra.mxu0 0.0
        %5533 = vmatpush.msra.mxu0 0.0
        %5534 = vmatpush.msra.mxu0 0.0
        %5535 = vmatpush.msra.mxu0 0.0
        %5536 = vmatpush.msra.mxu0 0.0
        %5537 = vmatpush.msra.mxu0 0.0
        %5538 = vmatpush.msra.mxu0 0.0
        %5539 = vmatpush.msra.mxu0 0.0
        %5540 = vmatpush.msra.mxu0 %v5527
        %5541 = vmatpush.msra.mxu0 %v5525
        %5542 = vmatpush.msra.mxu0 %v5523
        %5543 = vmatpush.msra.mxu0 %v5521
        %5544 = vmatpush.msra.mxu0 %v5519
        %5545 = vmatpush.msra.mxu0 %v5517
        %5546 = vmatpush.msra.mxu0 %v5515
        %5547 = vmatpush.msra.mxu0 %v5513
        %5548 = vmatmul.f32.gmra.mxu0 %v5530
        %v5549 = vpop.f32.mrf.mxu0
        %v5550 = vadd.f32 0.0, %v5549
        %5551 = vdwg.mxu0
        %5552 = vmatpush.msra.mxu0 0.0
        %5553 = vmatpush.msra.mxu0 0.0
        %5554 = vmatpush.msra.mxu0 0.0
        %5555 = vmatpush.msra.mxu0 0.0
        %5556 = vmatpush.msra.mxu0 0.0
        %5557 = vmatpush.msra.mxu0 0.0
        %5558 = vmatpush.msra.mxu0 0.0
        %5559 = vmatpush.msra.mxu0 0.0
        %5560 = vmatpush.msra.mxu0 %v5528
        %5561 = vmatpush.msra.mxu0 %v5526
        %5562 = vmatpush.msra.mxu0 %v5524
        %5563 = vmatpush.msra.mxu0 %v5522
        %5564 = vmatpush.msra.mxu0 %v5520
        %5565 = vmatpush.msra.mxu0 %v5518
        %5566 = vmatpush.msra.mxu0 %v5516
        %5567 = vmatpush.msra.mxu0 %v5514
        %5568 = vmatmul.f32.gmra.mxu0 %v5530
        %v5569 = vpop.f32.mrf.mxu0
        %v5570 = vadd.f32 0.0, %v5569
        %5571 = vdwg.mxu0
        %v5574 = vrot.slane %v5570, 7
        %v5575 = vsel %vm5178, %v5550, %v5574
        %v5577 = vadd.f32 %v5511, %v5575
        %v5578 = vmax.f32 %v5577, 0.0
        %v5579 = vld [vmem:[%s17] sm:$0xff]
        %v5580 = vld [vmem:[%s17 + $0x8] sm:$0xff]
        %v5581 = vld [vmem:[%s17 + $0x10] sm:$0xff]
        %v5582 = vld [vmem:[%s17 + $0x18] sm:$0xff]
        %v5583 = vld [vmem:[%s17 + $0x20] sm:$0xff]
        %v5584 = vld [vmem:[%s17 + $0x28] sm:$0xff]
        %v5585 = vld [vmem:[%s17 + $0x30] sm:$0xff]
        %v5586 = vld [vmem:[%s17 + $0x38] sm:$0xff]
        %v5587 = vld [vmem:[%s17 + $0x40] sm:$0xff]
        %v5588 = vld [vmem:[%s17 + $0x48] sm:$0xff]
        %v5589 = vld [vmem:[%s17 + $0x50] sm:$0xff]
        %v5590 = vld [vmem:[%s17 + $0x58] sm:$0xff]
        %v5591 = vld [vmem:[%s17 + $0x60] sm:$0xff]
        %v5592 = vld [vmem:[%s17 + $0x68] sm:$0xff]
        %v5593 = vld [vmem:[%s17 + $0x70] sm:$0xff]
        %v5594 = vld [vmem:[%s17 + $0x78] sm:$0xff]
        %v5595 = vld [vmem:[%s17 + $0x80] sm:$0xff]
        %v5596 = vld [vmem:[%s17 + $0x88] sm:$0xff]
        %v5597 = vld [vmem:[%s17 + $0x90] sm:$0xff]
        %v5598 = vld [vmem:[%s17 + $0x98] sm:$0xff]
        %v5599 = vld [vmem:[%s17 + $0xa0] sm:$0xff]
        %v5600 = vld [vmem:[%s17 + $0xa8] sm:$0xff]
        %v5601 = vld [vmem:[%s17 + $0xb0] sm:$0xff]
        %v5602 = vld [vmem:[%s17 + $0xb8] sm:$0xff]
        %v5603 = vld [vmem:[%s17 + $0xc0] sm:$0xff]
        %v5604 = vld [vmem:[%s17 + $0xc8] sm:$0xff]
        %v5605 = vld [vmem:[%s17 + $0xd0] sm:$0xff]
        %v5606 = vld [vmem:[%s17 + $0xd8] sm:$0xff]
        %v5607 = vld [vmem:[%s17 + $0xe0] sm:$0xff]
        %v5608 = vld [vmem:[%s17 + $0xe8] sm:$0xff]
        %v5609 = vld [vmem:[%s17 + $0xf0] sm:$0xff]
        %v5610 = vld [vmem:[%s17 + $0xf8] sm:$0xff]
        %v5611 = vld [vmem:[%s17 + $0x100] sm:$0xff]
        %v5612 = vld [vmem:[%s17 + $0x108] sm:$0xff]
        %v5613 = vld [vmem:[%s17 + $0x110] sm:$0xff]
        %v5614 = vld [vmem:[%s17 + $0x118] sm:$0xff]
        %v5615 = vld [vmem:[%s17 + $0x120] sm:$0xff]
        %v5616 = vld [vmem:[%s17 + $0x128] sm:$0xff]
        %v5617 = vld [vmem:[%s17 + $0x130] sm:$0xff]
        %v5618 = vld [vmem:[%s17 + $0x138] sm:$0xff]
        %v5619 = vld [vmem:[%s17 + $0x140] sm:$0xff]
        %v5620 = vld [vmem:[%s17 + $0x148] sm:$0xff]
        %v5621 = vld [vmem:[%s17 + $0x150] sm:$0xff]
        %v5622 = vld [vmem:[%s17 + $0x158] sm:$0xff]
        %v5623 = vld [vmem:[%s17 + $0x160] sm:$0xff]
        %v5624 = vld [vmem:[%s17 + $0x168] sm:$0xff]
        %v5625 = vld [vmem:[%s17 + $0x170] sm:$0xff]
        %v5626 = vld [vmem:[%s17 + $0x178] sm:$0xff]
        %v5627 = vld [vmem:[%s17 + $0x180] sm:$0xff]
        %v5628 = vld [vmem:[%s17 + $0x188] sm:$0xff]
        %v5629 = vld [vmem:[%s17 + $0x190] sm:$0xff]
        %v5630 = vld [vmem:[%s17 + $0x198] sm:$0xff]
        %v5631 = vld [vmem:[%s17 + $0x1a0] sm:$0xff]
        %v5632 = vld [vmem:[%s17 + $0x1a8] sm:$0xff]
        %v5633 = vld [vmem:[%s17 + $0x1b0] sm:$0xff]
        %v5634 = vld [vmem:[%s17 + $0x1b8] sm:$0xff]
        %v5635 = vld [vmem:[%s17 + $0x1c0] sm:$0xff]
        %v5636 = vld [vmem:[%s17 + $0x1c8] sm:$0xff]
        %v5637 = vld [vmem:[%s17 + $0x1d0] sm:$0xff]
        %v5638 = vld [vmem:[%s17 + $0x1d8] sm:$0xff]
        %v5639 = vld [vmem:[%s17 + $0x1e0] sm:$0xff]
        %v5640 = vld [vmem:[%s17 + $0x1e8] sm:$0xff]
        %v5641 = vld [vmem:[%s17 + $0x1f0] sm:$0xff]
        %v5642 = vld [vmem:[%s17 + $0x1f8] sm:$0xff]
        %v5643 = vld [vmem:[#allocation28] sm:$0x3]
        %v5645 = vperm.slane %v5578, 0
        %v5646 = vperm.slane %v5578, 1
        %v5650 = vperm.slane %v5643, 0
        %v5651 = vperm.slane %v5643, 1
        %5654 = vmatpush.msra.mxu0 %v5609
        %5655 = vmatpush.msra.mxu0 %v5607
        %5656 = vmatpush.msra.mxu0 %v5605
        %5657 = vmatpush.msra.mxu0 %v5603
        %5658 = vmatpush.msra.mxu0 %v5601
        %5659 = vmatpush.msra.mxu0 %v5599
        %5660 = vmatpush.msra.mxu0 %v5597
        %5661 = vmatpush.msra.mxu0 %v5595
        %5662 = vmatpush.msra.mxu0 %v5593
        %5663 = vmatpush.msra.mxu0 %v5591
        %5664 = vmatpush.msra.mxu0 %v5589
        %5665 = vmatpush.msra.mxu0 %v5587
        %5666 = vmatpush.msra.mxu0 %v5585
        %5667 = vmatpush.msra.mxu0 %v5583
        %5668 = vmatpush.msra.mxu0 %v5581
        %5669 = vmatpush.msra.mxu0 %v5579
        %5670 = vmatmul.f32.gmra.mxu0 %v5645
        %v5671 = vpop.f32.mrf.mxu0
        %v5672 = vadd.f32 %v5650, %v5671
        %5673 = vdwg.mxu0
        %5674 = vmatpush.msra.mxu0 %v5641
        %5675 = vmatpush.msra.mxu0 %v5639
        %5676 = vmatpush.msra.mxu0 %v5637
        %5677 = vmatpush.msra.mxu0 %v5635
        %5678 = vmatpush.msra.mxu0 %v5633
        %5679 = vmatpush.msra.mxu0 %v5631
        %5680 = vmatpush.msra.mxu0 %v5629
        %5681 = vmatpush.msra.mxu0 %v5627
        %5682 = vmatpush.msra.mxu0 %v5625
        %5683 = vmatpush.msra.mxu0 %v5623
        %5684 = vmatpush.msra.mxu0 %v5621
        %5685 = vmatpush.msra.mxu0 %v5619
        %5686 = vmatpush.msra.mxu0 %v5617
        %5687 = vmatpush.msra.mxu0 %v5615
        %5688 = vmatpush.msra.mxu0 %v5613
        %5689 = vmatpush.msra.mxu0 %v5611
        %5690 = vmatmul.f32.gmra.mxu0 %v5646
        %v5691 = vpop.f32.mrf.mxu0
        %v5692 = vadd.f32 %v5672, %v5691
        %5693 = vdwg.mxu0
        %5694 = vmatpush.msra.mxu0 %v5610
        %5695 = vmatpush.msra.mxu0 %v5608
        %5696 = vmatpush.msra.mxu0 %v5606
        %5697 = vmatpush.msra.mxu0 %v5604
        %5698 = vmatpush.msra.mxu0 %v5602
        %5699 = vmatpush.msra.mxu0 %v5600
        %5700 = vmatpush.msra.mxu0 %v5598
        %5701 = vmatpush.msra.mxu0 %v5596
        %5702 = vmatpush.msra.mxu0 %v5594
        %5703 = vmatpush.msra.mxu0 %v5592
        %5704 = vmatpush.msra.mxu0 %v5590
        %5705 = vmatpush.msra.mxu0 %v5588
        %5706 = vmatpush.msra.mxu0 %v5586
        %5707 = vmatpush.msra.mxu0 %v5584
        %5708 = vmatpush.msra.mxu0 %v5582
        %5709 = vmatpush.msra.mxu0 %v5580
        %5710 = vmatmul.f32.gmra.mxu0 %v5645
        %v5711 = vpop.f32.mrf.mxu0
        %v5712 = vadd.f32 %v5651, %v5711
        %5713 = vdwg.mxu0
        %5714 = vmatpush.msra.mxu0 %v5642
        %5715 = vmatpush.msra.mxu0 %v5640
        %5716 = vmatpush.msra.mxu0 %v5638
        %5717 = vmatpush.msra.mxu0 %v5636
        %5718 = vmatpush.msra.mxu0 %v5634
        %5719 = vmatpush.msra.mxu0 %v5632
        %5720 = vmatpush.msra.mxu0 %v5630
        %5721 = vmatpush.msra.mxu0 %v5628
        %5722 = vmatpush.msra.mxu0 %v5626
        %5723 = vmatpush.msra.mxu0 %v5624
        %5724 = vmatpush.msra.mxu0 %v5622
        %5725 = vmatpush.msra.mxu0 %v5620
        %5726 = vmatpush.msra.mxu0 %v5618
        %5727 = vmatpush.msra.mxu0 %v5616
        %5728 = vmatpush.msra.mxu0 %v5614
        %5729 = vmatpush.msra.mxu0 %v5612
        %5730 = vmatmul.f32.gmra.mxu0 %v5646
        %v5731 = vpop.f32.mrf.mxu0
        %v5732 = vadd.f32 %v5712, %v5731
        %5733 = vdwg.mxu0
        %v5734 = vmax.f32 %v5692, 0.0
        %v5735 = vmax.f32 %v5732, 0.0
        %v5736 = vld [vmem:[%s19] sm:$0xff]
        %v5737 = vld [vmem:[%s19 + $0x8] sm:$0xff]
        %v5738 = vld [vmem:[%s19 + $0x10] sm:$0xff]
        %v5739 = vld [vmem:[%s19 + $0x18] sm:$0xff]
        %v5740 = vld [vmem:[%s19 + $0x20] sm:$0xff]
        %v5741 = vld [vmem:[%s19 + $0x28] sm:$0xff]
        %v5742 = vld [vmem:[%s19 + $0x30] sm:$0xff]
        %v5743 = vld [vmem:[%s19 + $0x38] sm:$0xff]
        %v5744 = vld [vmem:[%s19 + $0x40] sm:$0xff]
        %v5745 = vld [vmem:[%s19 + $0x48] sm:$0xff]
        %v5746 = vld [vmem:[%s19 + $0x50] sm:$0xff]
        %v5747 = vld [vmem:[%s19 + $0x58] sm:$0xff]
        %v5748 = vld [vmem:[%s19 + $0x60] sm:$0xff]
        %v5749 = vld [vmem:[%s19 + $0x68] sm:$0xff]
        %v5750 = vld [vmem:[%s19 + $0x70] sm:$0xff]
        %v5751 = vld [vmem:[%s19 + $0x78] sm:$0xff]
        %v5752 = vld [vmem:[%s19 + $0x80] sm:$0xff]
        %v5753 = vld [vmem:[%s19 + $0x88] sm:$0xff]
        %v5754 = vld [vmem:[%s19 + $0x90] sm:$0xff]
        %v5755 = vld [vmem:[%s19 + $0x98] sm:$0xff]
        %v5756 = vld [vmem:[%s19 + $0xa0] sm:$0xff]
        %v5757 = vld [vmem:[%s19 + $0xa8] sm:$0xff]
        %v5758 = vld [vmem:[%s19 + $0xb0] sm:$0xff]
        %v5759 = vld [vmem:[%s19 + $0xb8] sm:$0xff]
        %v5760 = vld [vmem:[%s19 + $0xc0] sm:$0xff]
        %v5761 = vld [vmem:[%s19 + $0xc8] sm:$0xff]
        %v5762 = vld [vmem:[%s19 + $0xd0] sm:$0xff]
        %v5763 = vld [vmem:[%s19 + $0xd8] sm:$0xff]
        %v5764 = vld [vmem:[%s19 + $0xe0] sm:$0xff]
        %v5765 = vld [vmem:[%s19 + $0xe8] sm:$0xff]
        %v5766 = vld [vmem:[%s19 + $0xf0] sm:$0xff]
        %v5767 = vld [vmem:[%s19 + $0xf8] sm:$0xff]
        %v5768 = vld [vmem:[%s19 + $0x100] sm:$0xff]
        %v5769 = vld [vmem:[%s19 + $0x108] sm:$0xff]
        %v5770 = vld [vmem:[%s19 + $0x110] sm:$0xff]
        %v5771 = vld [vmem:[%s19 + $0x118] sm:$0xff]
        %v5772 = vld [vmem:[%s19 + $0x120] sm:$0xff]
        %v5773 = vld [vmem:[%s19 + $0x128] sm:$0xff]
        %v5774 = vld [vmem:[%s19 + $0x130] sm:$0xff]
        %v5775 = vld [vmem:[%s19 + $0x138] sm:$0xff]
        %v5776 = vld [vmem:[%s19 + $0x140] sm:$0xff]
        %v5777 = vld [vmem:[%s19 + $0x148] sm:$0xff]
        %v5778 = vld [vmem:[%s19 + $0x150] sm:$0xff]
        %v5779 = vld [vmem:[%s19 + $0x158] sm:$0xff]
        %v5780 = vld [vmem:[%s19 + $0x160] sm:$0xff]
        %v5781 = vld [vmem:[%s19 + $0x168] sm:$0xff]
        %v5782 = vld [vmem:[%s19 + $0x170] sm:$0xff]
        %v5783 = vld [vmem:[%s19 + $0x178] sm:$0xff]
        %v5784 = vld [vmem:[%s19 + $0x180] sm:$0xff]
        %v5785 = vld [vmem:[%s19 + $0x188] sm:$0xff]
        %v5786 = vld [vmem:[%s19 + $0x190] sm:$0xff]
        %v5787 = vld [vmem:[%s19 + $0x198] sm:$0xff]
        %v5788 = vld [vmem:[%s19 + $0x1a0] sm:$0xff]
        %v5789 = vld [vmem:[%s19 + $0x1a8] sm:$0xff]
        %v5790 = vld [vmem:[%s19 + $0x1b0] sm:$0xff]
        %v5791 = vld [vmem:[%s19 + $0x1b8] sm:$0xff]
        %v5792 = vld [vmem:[%s19 + $0x1c0] sm:$0xff]
        %v5793 = vld [vmem:[%s19 + $0x1c8] sm:$0xff]
        %v5794 = vld [vmem:[%s19 + $0x1d0] sm:$0xff]
        %v5795 = vld [vmem:[%s19 + $0x1d8] sm:$0xff]
        %v5796 = vld [vmem:[%s19 + $0x1e0] sm:$0xff]
        %v5797 = vld [vmem:[%s19 + $0x1e8] sm:$0xff]
        %v5798 = vld [vmem:[%s19 + $0x1f0] sm:$0xff]
        %v5799 = vld [vmem:[%s19 + $0x1f8] sm:$0xff]
        %v5800 = vld [vmem:[#allocation29] sm:$0x3]
        %v5802 = vperm.slane %v5800, 0
        %v5803 = vperm.slane %v5800, 1
        %5806 = vmatpush.msra.mxu0 %v5766
        %5807 = vmatpush.msra.mxu0 %v5764
        %5808 = vmatpush.msra.mxu0 %v5762
        %5809 = vmatpush.msra.mxu0 %v5760
        %5810 = vmatpush.msra.mxu0 %v5758
        %5811 = vmatpush.msra.mxu0 %v5756
        %5812 = vmatpush.msra.mxu0 %v5754
        %5813 = vmatpush.msra.mxu0 %v5752
        %5814 = vmatpush.msra.mxu0 %v5750
        %5815 = vmatpush.msra.mxu0 %v5748
        %5816 = vmatpush.msra.mxu0 %v5746
        %5817 = vmatpush.msra.mxu0 %v5744
        %5818 = vmatpush.msra.mxu0 %v5742
        %5819 = vmatpush.msra.mxu0 %v5740
        %5820 = vmatpush.msra.mxu0 %v5738
        %5821 = vmatpush.msra.mxu0 %v5736
        %5822 = vmatmul.f32.gmra.mxu0 %v5734
        %v5823 = vpop.f32.mrf.mxu0
        %v5824 = vadd.f32 %v5802, %v5823
        %5825 = vdwg.mxu0
        %5826 = vmatpush.msra.mxu0 %v5798
        %5827 = vmatpush.msra.mxu0 %v5796
        %5828 = vmatpush.msra.mxu0 %v5794
        %5829 = vmatpush.msra.mxu0 %v5792
        %5830 = vmatpush.msra.mxu0 %v5790
        %5831 = vmatpush.msra.mxu0 %v5788
        %5832 = vmatpush.msra.mxu0 %v5786
        %5833 = vmatpush.msra.mxu0 %v5784
        %5834 = vmatpush.msra.mxu0 %v5782
        %5835 = vmatpush.msra.mxu0 %v5780
        %5836 = vmatpush.msra.mxu0 %v5778
        %5837 = vmatpush.msra.mxu0 %v5776
        %5838 = vmatpush.msra.mxu0 %v5774
        %5839 = vmatpush.msra.mxu0 %v5772
        %5840 = vmatpush.msra.mxu0 %v5770
        %5841 = vmatpush.msra.mxu0 %v5768
        %5842 = vmatmul.f32.gmra.mxu0 %v5735
        %v5843 = vpop.f32.mrf.mxu0
        %v5844 = vadd.f32 %v5824, %v5843
        %5845 = vdwg.mxu0
        %5846 = vmatpush.msra.mxu0 %v5767
        %5847 = vmatpush.msra.mxu0 %v5765
        %5848 = vmatpush.msra.mxu0 %v5763
        %5849 = vmatpush.msra.mxu0 %v5761
        %5850 = vmatpush.msra.mxu0 %v5759
        %5851 = vmatpush.msra.mxu0 %v5757
        %5852 = vmatpush.msra.mxu0 %v5755
        %5853 = vmatpush.msra.mxu0 %v5753
        %5854 = vmatpush.msra.mxu0 %v5751
        %5855 = vmatpush.msra.mxu0 %v5749
        %5856 = vmatpush.msra.mxu0 %v5747
        %5857 = vmatpush.msra.mxu0 %v5745
        %5858 = vmatpush.msra.mxu0 %v5743
        %5859 = vmatpush.msra.mxu0 %v5741
        %5860 = vmatpush.msra.mxu0 %v5739
        %5861 = vmatpush.msra.mxu0 %v5737
        %5862 = vmatmul.f32.gmra.mxu0 %v5734
        %v5863 = vpop.f32.mrf.mxu0
        %v5864 = vadd.f32 %v5803, %v5863
        %5865 = vdwg.mxu0
        %5866 = vmatpush.msra.mxu0 %v5799
        %5867 = vmatpush.msra.mxu0 %v5797
        %5868 = vmatpush.msra.mxu0 %v5795
        %5869 = vmatpush.msra.mxu0 %v5793
        %5870 = vmatpush.msra.mxu0 %v5791
        %5871 = vmatpush.msra.mxu0 %v5789
        %5872 = vmatpush.msra.mxu0 %v5787
        %5873 = vmatpush.msra.mxu0 %v5785
        %5874 = vmatpush.msra.mxu0 %v5783
        %5875 = vmatpush.msra.mxu0 %v5781
        %5876 = vmatpush.msra.mxu0 %v5779
        %5877 = vmatpush.msra.mxu0 %v5777
        %5878 = vmatpush.msra.mxu0 %v5775
        %5879 = vmatpush.msra.mxu0 %v5773
        %5880 = vmatpush.msra.mxu0 %v5771
        %5881 = vmatpush.msra.mxu0 %v5769
        %5882 = vmatmul.f32.gmra.mxu0 %v5735
        %v5883 = vpop.f32.mrf.mxu0
        %v5884 = vadd.f32 %v5864, %v5883
        %5885 = vdwg.mxu0
        %v5886 = vmax.f32 %v5844, 0.0
        %v5887 = vmax.f32 %v5884, 0.0
        %v5888 = vld [vmem:[%s21] sm:$0xff]
        %v5889 = vld [vmem:[%s21 + $0x8] sm:$0xff]
        %v5890 = vld [vmem:[%s21 + $0x10] sm:$0xff]
        %v5891 = vld [vmem:[%s21 + $0x18] sm:$0xff]
        %v5892 = vld [vmem:[%s21 + $0x20] sm:$0xff]
        %v5893 = vld [vmem:[%s21 + $0x28] sm:$0xff]
        %v5894 = vld [vmem:[%s21 + $0x30] sm:$0xff]
        %v5895 = vld [vmem:[%s21 + $0x38] sm:$0xff]
        %v5896 = vld [vmem:[%s21 + $0x40] sm:$0xff]
        %v5897 = vld [vmem:[%s21 + $0x48] sm:$0xff]
        %v5898 = vld [vmem:[%s21 + $0x50] sm:$0xff]
        %v5899 = vld [vmem:[%s21 + $0x58] sm:$0xff]
        %v5900 = vld [vmem:[%s21 + $0x60] sm:$0xff]
        %v5901 = vld [vmem:[%s21 + $0x68] sm:$0xff]
        %v5902 = vld [vmem:[%s21 + $0x70] sm:$0xff]
        %v5903 = vld [vmem:[%s21 + $0x78] sm:$0xff]
        %v5904 = vld [vmem:[%s21 + $0x80] sm:$0xff]
        %v5905 = vld [vmem:[%s21 + $0x88] sm:$0xff]
        %v5906 = vld [vmem:[%s21 + $0x90] sm:$0xff]
        %v5907 = vld [vmem:[%s21 + $0x98] sm:$0xff]
        %v5908 = vld [vmem:[%s21 + $0xa0] sm:$0xff]
        %v5909 = vld [vmem:[%s21 + $0xa8] sm:$0xff]
        %v5910 = vld [vmem:[%s21 + $0xb0] sm:$0xff]
        %v5911 = vld [vmem:[%s21 + $0xb8] sm:$0xff]
        %v5912 = vld [vmem:[%s21 + $0xc0] sm:$0xff]
        %v5913 = vld [vmem:[%s21 + $0xc8] sm:$0xff]
        %v5914 = vld [vmem:[%s21 + $0xd0] sm:$0xff]
        %v5915 = vld [vmem:[%s21 + $0xd8] sm:$0xff]
        %v5916 = vld [vmem:[%s21 + $0xe0] sm:$0xff]
        %v5917 = vld [vmem:[%s21 + $0xe8] sm:$0xff]
        %v5918 = vld [vmem:[%s21 + $0xf0] sm:$0xff]
        %v5919 = vld [vmem:[%s21 + $0xf8] sm:$0xff]
        %v5920 = vld [vmem:[#allocation31] sm:$0x1]
        %5921 = vmatpush.msra.mxu0 %v5903
        %5922 = vmatpush.msra.mxu0 %v5902
        %5923 = vmatpush.msra.mxu0 %v5901
        %5924 = vmatpush.msra.mxu0 %v5900
        %5925 = vmatpush.msra.mxu0 %v5899
        %5926 = vmatpush.msra.mxu0 %v5898
        %5927 = vmatpush.msra.mxu0 %v5897
        %5928 = vmatpush.msra.mxu0 %v5896
        %5929 = vmatpush.msra.mxu0 %v5895
        %5930 = vmatpush.msra.mxu0 %v5894
        %5931 = vmatpush.msra.mxu0 %v5893
        %5932 = vmatpush.msra.mxu0 %v5892
        %5933 = vmatpush.msra.mxu0 %v5891
        %5934 = vmatpush.msra.mxu0 %v5890
        %5935 = vmatpush.msra.mxu0 %v5889
        %5936 = vmatpush.msra.mxu0 %v5888
        %5937 = vmatmul.f32.gmra.mxu0 %v5886
        %v5938 = vpop.f32.mrf.mxu0
        %v5939 = vadd.f32 %v5920, %v5938
        %5940 = vdwg.mxu0
        %5941 = vmatpush.msra.mxu0 %v5919
        %5942 = vmatpush.msra.mxu0 %v5918
        %5943 = vmatpush.msra.mxu0 %v5917
        %5944 = vmatpush.msra.mxu0 %v5916
        %5945 = vmatpush.msra.mxu0 %v5915
        %5946 = vmatpush.msra.mxu0 %v5914
        %5947 = vmatpush.msra.mxu0 %v5913
        %5948 = vmatpush.msra.mxu0 %v5912
        %5949 = vmatpush.msra.mxu0 %v5911
        %5950 = vmatpush.msra.mxu0 %v5910
        %5951 = vmatpush.msra.mxu0 %v5909
        %5952 = vmatpush.msra.mxu0 %v5908
        %5953 = vmatpush.msra.mxu0 %v5907
        %5954 = vmatpush.msra.mxu0 %v5906
        %5955 = vmatpush.msra.mxu0 %v5905
        %5956 = vmatpush.msra.mxu0 %v5904
        %5957 = vmatmul.f32.gmra.mxu0 %v5887
        %v5958 = vpop.f32.mrf.mxu0
        %v5959 = vadd.f32 %v5939, %v5958
        %5960 = vdwg.mxu0
        %v5961 = vmax.f32 %v5959, 0.0
        %v5962 = vld [vmem:[%s23] sm:$0xff]
        %v5963 = vld [vmem:[%s23 + $0x8] sm:$0xff]
        %v5964 = vld [vmem:[%s23 + $0x10] sm:$0xff]
        %v5965 = vld [vmem:[%s23 + $0x18] sm:$0xff]
        %v5966 = vld [vmem:[%s23 + $0x20] sm:$0xff]
        %v5967 = vld [vmem:[%s23 + $0x28] sm:$0xff]
        %v5968 = vld [vmem:[%s23 + $0x30] sm:$0xff]
        %v5969 = vld [vmem:[%s23 + $0x38] sm:$0xff]
        %v5970 = vld [vmem:[%s23 + $0x40] sm:$0xff]
        %v5971 = vld [vmem:[%s23 + $0x48] sm:$0xff]
        %v5972 = vld [vmem:[%s23 + $0x50] sm:$0xff]
        %v5973 = vld [vmem:[%s23 + $0x58] sm:$0xff]
        %v5974 = vld [vmem:[%s23 + $0x60] sm:$0xff]
        %v5975 = vld [vmem:[%s23 + $0x68] sm:$0xff]
        %v5976 = vld [vmem:[%s23 + $0x70] sm:$0xff]
        %v5977 = vld [vmem:[%s23 + $0x78] sm:$0xff]
        %v5978 = vld [vmem:[#allocation32] sm:$0x1]
        %5979 = vmatpush.msra.mxu0 %v5977
        %5980 = vmatpush.msra.mxu0 %v5976
        %5981 = vmatpush.msra.mxu0 %v5975
        %5982 = vmatpush.msra.mxu0 %v5974
        %5983 = vmatpush.msra.mxu0 %v5973
        %5984 = vmatpush.msra.mxu0 %v5972
        %5985 = vmatpush.msra.mxu0 %v5971
        %5986 = vmatpush.msra.mxu0 %v5970
        %5987 = vmatpush.msra.mxu0 %v5969
        %5988 = vmatpush.msra.mxu0 %v5968
        %5989 = vmatpush.msra.mxu0 %v5967
        %5990 = vmatpush.msra.mxu0 %v5966
        %5991 = vmatpush.msra.mxu0 %v5965
        %5992 = vmatpush.msra.mxu0 %v5964
        %5993 = vmatpush.msra.mxu0 %v5963
        %5994 = vmatpush.msra.mxu0 %v5962
        %5995 = vmatmul.f32.gmra.mxu0 %v5961
        %v5996 = vpop.f32.mrf.mxu0
        %v5997 = vadd.f32 %v5978, %v5996
        %5998 = vdwg.mxu0
        %v5999 = vmax.f32 %v5997, 0.0
        %v6000 = vld [vmem:[%s25] sm:$0xff]
        %v6001 = vld [vmem:[%s25 + $0x8] sm:$0xff]
        %v6002 = vld [vmem:[%s25 + $0x10] sm:$0xff]
        %v6003 = vld [vmem:[%s25 + $0x18] sm:$0xff]
        %v6004 = vld [vmem:[#allocation34] sm:$0x1]
        %v6006 = vsel %vm4692, %v5999, 0
        %6008 = vmatpush.msra.mxu0 0.0
        %6009 = vmatpush.msra.mxu0 0.0
        %6010 = vmatpush.msra.mxu0 0.0
        %6011 = vmatpush.msra.mxu0 0.0
        %6012 = vmatpush.msra.mxu0 0.0
        %6013 = vmatpush.msra.mxu0 0.0
        %6014 = vmatpush.msra.mxu0 0.0
        %6015 = vmatpush.msra.mxu0 0.0
        %6016 = vmatpush.msra.mxu0 0.0
        %6017 = vmatpush.msra.mxu0 0.0
        %6018 = vmatpush.msra.mxu0 0.0
        %6019 = vmatpush.msra.mxu0 0.0
        %6020 = vmatpush.msra.mxu0 %v6003
        %6021 = vmatpush.msra.mxu0 %v6002
        %6022 = vmatpush.msra.mxu0 %v6001
        %6023 = vmatpush.msra.mxu0 %v6000
        %6024 = vmatmul.f32.gmra.mxu0 %v6006
        %v6025 = vpop.f32.mrf.mxu0
        %v6026 = vadd.f32 %v6004, %v6025
        %6027 = vdwg.mxu0
        %vm6028 = vcmask 73728
        %6029 = vst.msk [vmem:[%s1067] sm:$0x1] %vm6028, %v6026
        %s6030 = sand.u32 %s630, 1
        %s6031 = scalar_lea.sflag [#allocation10], %s6030
        %s6032 = sand.u32 %s630, 1
        %s6033 = scalar_lea.vmem [#allocation35], %s6032
        // Predicated region
        $region197: #{net_forward.1} parent=127 // pred_check
          %p6034 = pneg %p640
        $region198: #{net_forward.1} parent=127 // pred_check_branch
          %6036 = sbr.rel (%p6034) target = $region200
        $region199: #{net_forward.1} parent=127 // pred_region
          %6038 = vsyncadd %s6031, 0
          %s6039 = scalar_lea.hbm %s27, %s50
          %s6041 = sshll.u32 %s6033, 4
          %s6042 = int_to_ptr.vmem [resolvable:$true] %s6041
          %s6043 = sshll.u32 %s6039, 4
          %s6044 = int_to_ptr.hbm [resolvable:$true] %s6043
          %6046 = dma.vmem_to_hbm [thread:$0]  %s6042, 16, %s6044, %s6031
        $region200: #{net_forward.1} parent=127 // pred_fallthru
          _
      $region128: #{net_forward.1} parent=5 // pred_fallthru
        _
      %p6047 = scmp.le.s32.totalorder 2, %s45
      // Predicated region
      $region201: #{net_forward.1} parent=5 // pred_check
        %p6048 = pneg %p6047
      $region202: #{net_forward.1} parent=5 // pred_check_branch
        %6050 = sbr.rel (%p6048) target = $region204
      $region203: #{net_forward.1} parent=5 // pred_region
        %s6051 = ssub.s32 %s45, 2
        // Predicated region
        $region205: #{net_forward.1} parent=203 // pred_check
          %p6052 = pneg %p646
        $region206: #{net_forward.1} parent=203 // pred_check_branch
          %6054 = sbr.rel (%p6052) target = $region208
        $region207: #{net_forward.1} parent=203 // pred_region
          %s6055 = sand.u32 %s631, 1
          %s6056 = scalar_lea.sflag [#allocation10], %s6055
          %s6057 = sand.u32 %s631, 1
          %s6058 = scalar_lea.vmem [#allocation35], %s6057
          %6060 = dma.done %s6056, 16
        $region208: #{net_forward.1} parent=203 // pred_fallthru
          _
      $region204: #{net_forward.1} parent=5 // pred_fallthru
        _
    $region6: #{net_forward.1} parent=1 // loop_footer
      %s49 = sadd.s32 1, %s45
    $region7: #{net_forward.1} parent=1 // loop_footer_branch
      %44 = sbr.rel target = $region3
    $region8: #{net_forward.1} parent=1 // loop_exit
      _
    %6061 = vsyncpa [#allocation9], 1
    %s6062 = scalar_lea.sflag [#allocation9], 1
    %6063 = vsyncpa %s6062, 1
    %6064 = vsyncpa [#allocation12], 1
    %6065 = vsyncpa [#allocation15], 1
    %6066 = vsyncpa [#allocation18], 1
    %6067 = vsyncpa [#allocation21], 1
    %6068 = vsyncpa [#allocation24], 1
    %6069 = vsyncpa [#allocation27], 1
    %6070 = vsyncpa [#allocation30], 1
    %6071 = vsyncpa [#allocation33], 1
    %6072 = vsyncpa [#allocation10], 1
    %s6073 = scalar_lea.sflag [#allocation10], 1
    %6074 = vsyncpa %s6073, 1

</llo_original>
